<compile_context>
chip_gen: v7x
topology: tpu7x:2x2x1
jax: 0.10.0
libtpu: 0.0.40
codegen_flags: <defaults>
</compile_context>

<pallas_src>
import functools
import math

import jax
import jax.numpy as jnp
from jax import lax
from jax.experimental import pallas as pl
from jax.experimental.pallas import tpu as pltpu


# ----------------------------------------------------------------------------------------------
# helpers
# ----------------------------------------------------------------------------------------------
def _round_up(x, m):
    return ((x + m - 1) // m) * m


# Abramowitz & Stegun 7.1.26 erf approximation (max abs error ~1.5e-7) -> exact-GELU semantics,
# using only ops with guaranteed Mosaic lowerings (exp, mul, add, where).
_ERF_P = 0.3275911
_ERF_A1 = 0.254829592
_ERF_A2 = -0.284496736
_ERF_A3 = 1.421413741
_ERF_A4 = -1.453152027
_ERF_A5 = 1.061405429
_INV_SQRT2 = 1.0 / math.sqrt(2.0)


def _erf_approx(z):
    az = jnp.abs(z)
    t = 1.0 / (1.0 + _ERF_P * az)
    poly = ((((_ERF_A5 * t + _ERF_A4) * t + _ERF_A3) * t + _ERF_A2) * t + _ERF_A1) * t
    y = 1.0 - poly * jnp.exp(-az * az)
    return jnp.where(z < 0.0, -y, y)


def _gelu_exact(x):
    return 0.5 * x * (1.0 + _erf_approx(x * _INV_SQRT2))


# ----------------------------------------------------------------------------------------------
# the single fused Pallas kernel:  y = [gelu]( (X @ W) * scale + shift )
# ----------------------------------------------------------------------------------------------
def _fused_mm_kernel(x_ref, w_ref, scale_ref, shift_ref, o_ref, *, apply_gelu):
    # Cast in-kernel (perf feedback: no f32 materialization at the pallas_call boundary).
    x = x_ref[...].astype(jnp.float32)
    w = w_ref[...].astype(jnp.float32)
    acc = jnp.dot(x, w, preferred_element_type=jnp.float32)      # MXU
    y = acc * scale_ref[...] + shift_ref[...]                     # bias + BN folded (VPU)
    if apply_gelu:
        y = _gelu_exact(y)                                        # EUP exp + VPU
    o_ref[...] = y.astype(o_ref.dtype)


def fused_matmul(x, w, scale, shift, *, apply_gelu, block_m=256):
    """y[:M,:N] = [gelu]((x @ w) * scale + shift), padded to lane/sublane-aligned shapes."""
    M, K = x.shape
    K2, N = w.shape
    assert K == K2
    Kp = _round_up(K, 128)          # lane-aligned contraction dim (zero padded -> exact)
    Np = _round_up(N, 128)          # lane-dense output columns -> unmasked full-width stores
    if M <= 512:
        tm = _round_up(M, 8)
        Mp = tm
    else:
        tm = block_m
        Mp = _round_up(M, tm)       # ceil-div + pad, never shrink the block to a divisor

    xp = jnp.pad(x, ((0, Mp - M), (0, Kp - K)))
    wp = jnp.pad(w, ((0, Kp - K), (0, Np - N)))
    sp = jnp.pad(scale.astype(jnp.float32).reshape(1, N), ((0, 0), (0, Np - N)))
    tp = jnp.pad(shift.astype(jnp.float32).reshape(1, N), ((0, 0), (0, Np - N)))

    out = pl.pallas_call(
        functools.partial(_fused_mm_kernel, apply_gelu=apply_gelu),
        out_shape=jax.ShapeDtypeStruct((Mp, Np), jnp.float32),
        grid=(Mp // tm,),
        in_specs=[
            pl.BlockSpec((tm, Kp), lambda i: (i, 0)),
            pl.BlockSpec((Kp, Np), lambda i: (0, 0)),     # resident across the row grid
            pl.BlockSpec((1, Np), lambda i: (0, 0)),
            pl.BlockSpec((1, Np), lambda i: (0, 0)),
        ],
        out_specs=pl.BlockSpec((tm, Np), lambda i: (i, 0)),
        compiler_params=pltpu.CompilerParams(
            dimension_semantics=("parallel",),            # row tiles shard across v7x's 2 TCs
        ),
    )(xp, wp, sp, tp)
    return out[:M, :N]


# ----------------------------------------------------------------------------------------------
# layer wrappers (layout-only JAX ops + one fused_matmul each)
# ----------------------------------------------------------------------------------------------
def _bn_fold(bn, eps=1e-5):
    s = bn["gamma"] / jnp.sqrt(bn["var"] + eps)
    t = bn["beta"] - bn["mean"] * s
    return s, t


def conv3x3_bias(x_nhwc, w, b):
    """nn.Conv2d(Cin, Cout, 3, 1, 1) with bias. w: (Cout, Cin, 3, 3) torch layout."""
    n, h, ww, c = x_nhwc.shape
    cout = w.shape[0]
    xp = jnp.pad(x_nhwc, ((0, 0), (1, 1), (1, 1), (0, 0)))
    cols = [xp[:, ky:ky + h, kx:kx + ww, :] for ky in range(3) for kx in range(3)]
    patches = jnp.concatenate(cols, axis=-1).reshape(n * h * ww, 9 * c)
    wmat = jnp.transpose(w, (2, 3, 1, 0)).reshape(9 * c, cout)     # rows ordered (ky,kx,ci)
    scale = jnp.ones((cout,), jnp.float32)
    y = fused_matmul(patches, wmat, scale, b, apply_gelu=False)
    return y.reshape(n, h, ww, cout)


def conv2x2s2_bn_gelu(x_nhwc, w, bn):
    """nn.Conv2d(Cin, Cout, 2, 2, 0, bias=False) -> BN -> GELU. w: (Cout, Cin, 2, 2)."""
    n, h, ww, c = x_nhwc.shape
    cout = w.shape[0]
    ho, wo = h // 2, ww // 2
    patches = (x_nhwc.reshape(n, ho, 2, wo, 2, c)
               .transpose(0, 1, 3, 2, 4, 5)
               .reshape(n * ho * wo, 4 * c))                       # cols ordered (ky,kx,ci)
    wmat = jnp.transpose(w, (2, 3, 1, 0)).reshape(4 * c, cout)
    s, t = _bn_fold(bn)
    y = fused_matmul(patches, wmat, s, t, apply_gelu=True)
    return y.reshape(n, ho, wo, cout)


def _expand_grouped_convT(w, groups):
    """torch ConvTranspose2d weight (Cin, Cout/groups, kh, kw) -> dense (Cin, Cout, kh, kw)."""
    cin, cpg_out, kh, kw = w.shape
    if groups == 1:
        return w
    cpg_in = cin // groups
    wr = w.reshape(groups, cpg_in, cpg_out, kh, kw)
    wd = jnp.zeros((groups, cpg_in, groups, cpg_out, kh, kw), w.dtype)
    idx = jnp.arange(groups)
    wd = wd.at[idx, :, idx].set(wr)                                # block-diagonal
    return wd.reshape(cin, groups * cpg_out, kh, kw)


def _pixel_shuffle2(y, n, h, ww, cout):
    """(P, 4*Cout) with cols ordered (a,b,c) -> NHWC (n, 2h, 2w, Cout)."""
    return (y.reshape(n, h, ww, 2, 2, cout)
            .transpose(0, 1, 3, 2, 4, 5)
            .reshape(n, 2 * h, 2 * ww, cout))


def dec_upsample_block(x_nhwc, w1, b1, w2, bn):
    """ConvT2x2/s2 grouped (+bias) -> ConvT1x1 (no bias) -> BN -> GELU, as one fused matmul."""
    n, h, ww, cin = x_nhwc.shape
    c1 = w2.shape[0]
    c2 = w2.shape[1]
    groups = c1 // w1.shape[1]
    hp = lax.Precision.HIGHEST
    w1d = _expand_grouped_convT(w1, groups)                        # (Cin, C1, 2, 2)
    w2m = w2.reshape(c1, c2)
    wc = jnp.einsum("icab,cd->idab", w1d, w2m, precision=hp)       # fold the 1x1 convT
    b_eff = jnp.dot(b1, w2m, precision=hp)                         # (C2,)
    wmat = jnp.transpose(wc, (0, 2, 3, 1)).reshape(cin, 4 * c2)    # cols ordered (a,b,c2)
    s, t = _bn_fold(bn)
    scale = jnp.tile(s, 4)
    shift = jnp.tile(b_eff * s + t, 4)
    y = fused_matmul(x_nhwc.reshape(n * h * ww, cin), wmat, scale, shift, apply_gelu=True)
    return _pixel_shuffle2(y, n, h, ww, c2)


def dec_final(x_nhwc, w1):
    """Final ConvT2x2/s2 (dense, bias=False), no BN / GELU."""
    n, h, ww, cin = x_nhwc.shape
    cout = w1.shape[1]
    wmat = jnp.transpose(w1, (0, 2, 3, 1)).reshape(cin, 4 * cout)
    scale = jnp.ones((4 * cout,), jnp.float32)
    shift = jnp.zeros((4 * cout,), jnp.float32)
    y = fused_matmul(x_nhwc.reshape(n * h * ww, cin), wmat, scale, shift, apply_gelu=False)
    return _pixel_shuffle2(y, n, h, ww, cout)


# ----------------------------------------------------------------------------------------------
# CoordinatorINIT forward (Pallas path)
# ----------------------------------------------------------------------------------------------
def coordinator_forward(x_nchw, params):
    h = jnp.transpose(x_nchw, (0, 2, 3, 1))                        # NCHW -> NHWC
    for blk in params["enc"]:
        h = conv3x3_bias(h, blk["w3"], blk["b3"])
        h = conv2x2s2_bn_gelu(h, blk["w2"], blk["bn"])
    z = jnp.transpose(h, (0, 3, 1, 2))                             # encoder output (NCHW)
    for blk in params["dec"][:-1]:
        h = dec_upsample_block(h, blk["w1"], blk["b1"], blk["w2"], blk["bn"])
    h = dec_final(h, params["dec"][-1]["w1"])
    wrap = jnp.transpose(h, (0, 3, 1, 2))
    return wrap, z


# ----------------------------------------------------------------------------------------------
# pure-JAX (XLA) reference mirroring the same forward, for self-checking
# ----------------------------------------------------------------------------------------------
def _ref_conv(x, w, b, stride, pad):
    out = lax.conv_general_dilated(
        x, w, (stride, stride), ((pad, pad), (pad, pad)),
        dimension_numbers=("NCHW", "OIHW", "NCHW"), precision=lax.Precision.HIGHEST)
    if b is not None:
        out = out + b.reshape(1, -1, 1, 1)
    return out


def _ref_convT2x2s2(x, wd, b):
    w_conv = jnp.transpose(wd, (1, 0, 2, 3))[:, :, ::-1, ::-1]
    out = lax.conv_general_dilated(
        x, w_conv, (1, 1), ((1, 1), (1, 1)), lhs_dilation=(2, 2),
        dimension_numbers=("NCHW", "OIHW", "NCHW"), precision=lax.Precision.HIGHEST)
    if b is not None:
        out = out + b.reshape(1, -1, 1, 1)
    return out


def _ref_convT1x1(x, w2):
    w_conv = jnp.transpose(w2, (1, 0, 2, 3))
    return lax.conv_general_dilated(
        x, w_conv, (1, 1), ((0, 0), (0, 0)),
        dimension_numbers=("NCHW", "OIHW", "NCHW"), precision=lax.Precision.HIGHEST)


def _ref_bn(x, bn, eps=1e-5):
    s = bn["gamma"] / jnp.sqrt(bn["var"] + eps)
    t = bn["beta"] - bn["mean"] * s
    return x * s.reshape(1, -1, 1, 1) + t.reshape(1, -1, 1, 1)


def _ref_gelu(x):
    return 0.5 * x * (1.0 + jax.scipy.special.erf(x * _INV_SQRT2))


def reference_forward(x, params):
    h = x
    for blk in params["enc"]:
        h = _ref_conv(h, blk["w3"], blk["b3"], stride=1, pad=1)
        h = _ref_conv(h, blk["w2"], None, stride=2, pad=0)
        h = _ref_gelu(_ref_bn(h, blk["bn"]))
    z = h
    for blk in params["dec"][:-1]:
        groups = blk["w2"].shape[0] // blk["w1"].shape[1]
        wd = _expand_grouped_convT(blk["w1"], groups)
        h = _ref_convT2x2s2(h, wd, blk["b1"])
        h = _ref_convT1x1(h, blk["w2"])
        h = _ref_gelu(_ref_bn(h, blk["bn"]))
    h = _ref_convT2x2s2(h, params["dec"][-1]["w1"], None)
    return h, z


# ----------------------------------------------------------------------------------------------
# deterministic parameter construction (torch layouts)
# ----------------------------------------------------------------------------------------------
def init_params(key, e_out_dim=64):
    keys = iter(jax.random.split(key, 128))

    def rnd(shape, scale=0.1):
        return scale * jax.random.normal(next(keys), shape, jnp.float32)

    def bn(c):
        return dict(
            gamma=1.0 + 0.1 * jax.random.normal(next(keys), (c,), jnp.float32),
            beta=0.1 * jax.random.normal(next(keys), (c,), jnp.float32),
            mean=0.1 * jax.random.normal(next(keys), (c,), jnp.float32),
            var=0.5 + jnp.abs(0.5 * jax.random.normal(next(keys), (c,), jnp.float32)),
        )

    # EncoderManual: 5 blocks of Conv3x3(+bias) -> Conv2x2/s2 (no bias) -> BN -> GELU
    enc_chans = [(3, 32, 32), (32, 32, 64), (64, 64, 64), (64, 64, 128), (128, 128, e_out_dim)]
    enc = [dict(w3=rnd((cmid, cin, 3, 3)), b3=rnd((cmid,)),
                w2=rnd((cout, cmid, 2, 2)), bn=bn(cout))
           for (cin, cmid, cout) in enc_chans]

    # DecoderManual (i_dim=0, arch='vit-base', add_conv=False), src_c = e_out_dim, g_c = 64
    src_c = e_out_dim
    g_c = 64 if src_c >= 64 else src_c
    dec_spec = [(src_c, 64, g_c, 64), (64, 64, 64, 32), (32, 32, 32, 32), (32, 32, 32, 16)]
    dec = [dict(w1=rnd((cin, c1 // g, 2, 2)), b1=rnd((c1,)),
                w2=rnd((c1, c2, 1, 1)), bn=bn(c2))
           for (cin, c1, g, c2) in dec_spec]
    dec.append(dict(w1=rnd((16, 3, 2, 2)), b1=None, w2=None, bn=None))   # final ConvT, bias=False
    return dict(enc=enc, dec=dec)


# ----------------------------------------------------------------------------------------------
if __name__ == "__main__":
    # Small shapes consistent with the module: batch=2, RGB, 32x32 input (encoder /32 -> 1x1),
    # e_out_dim = 64 (so the decoder's grouped ConvT uses groups=64 exactly as in the spec).
    N, H, W, E_OUT = 2, 32, 32, 64
    key = jax.random.PRNGKey(0)
    k_x, k_p = jax.random.split(key)
    x = jax.random.normal(k_x, (N, 3, H, W), dtype=jnp.float32)
    params = init_params(k_p, e_out_dim=E_OUT)

    wrap, z = jax.jit(coordinator_forward)(x, params)
    wrap, z = jax.block_until_ready((wrap, z))

    ref_wrap, ref_z = reference_forward(x, params)

    assert wrap.shape == (N, 3, H, W) and wrap.dtype == jnp.float32
    assert z.shape == (N, E_OUT, H // 32, W // 32)
    # Tolerance covers MXU f32 pass-count differences vs XLA HIGHEST-precision convs plus the
    # 1.5e-7 erf polynomial, accumulated over the 15 fused layers.
    assert jnp.allclose(z, ref_z, atol=5e-3, rtol=5e-3), "encoder output mismatch vs reference"
    assert jnp.allclose(wrap, ref_wrap, atol=5e-3, rtol=5e-3), "decoder output mismatch vs reference"
    print("KERNEL_OK")
</pallas_src>

<mosaic_0001>
module attributes {stable_mosaic.version = 11 : i64} {
  func.func @_fused_mm_kernel(%arg0: i32, %arg1: memref<256x128xf32, #tpu.memory_space<vmem>>, %arg2: memref<128x128xf32, #tpu.memory_space<vmem>>, %arg3: memref<1x128xf32, #tpu.memory_space<vmem>>, %arg4: memref<1x128xf32, #tpu.memory_space<vmem>>, %arg5: memref<256x128xf32, #tpu.memory_space<vmem>>) attributes {dimension_semantics = [#tpu.dimension_semantics<parallel>], iteration_bounds = array<i64: 8>, scalar_prefetch = 0 : i64, scratch_operands = 0 : i64, tpu.core_type = #tpu.core_type<tc>, window_params = [{transform_indices = @transform_0, window_bounds = array<i64: 256, 128>}, {pipeline_mode = #tpu.pipeline_mode<synchronous>, transform_indices = @transform_1, window_bounds = array<i64: 128, 128>}, {pipeline_mode = #tpu.pipeline_mode<synchronous>, transform_indices = @transform_2, window_bounds = array<i64: 1, 128>}, {pipeline_mode = #tpu.pipeline_mode<synchronous>, transform_indices = @transform_3, window_bounds = array<i64: 1, 128>}, {transform_indices = @transform_4, window_bounds = array<i64: 256, 128>}]} {
    %c0 = arith.constant 0 : index
    %c0_0 = arith.constant 0 : index
    %0 = vector.load %arg1[%c0, %c0_0] : memref<256x128xf32, #tpu.memory_space<vmem>>, vector<256x128xf32>
    %c0_1 = arith.constant 0 : index
    %c0_2 = arith.constant 0 : index
    %1 = vector.load %arg2[%c0_1, %c0_2] : memref<128x128xf32, #tpu.memory_space<vmem>>, vector<128x128xf32>
    %cst = arith.constant dense<0.000000e+00> : vector<256x128xf32>
    %2 = tpu.matmul %0, %1, %cst {dimension_numbers = #tpu.dot_dimension_numbers<[1], [0], [0], [1], [0, 0, 1, 1], [], []>} : vector<256x128xf32>, vector<128x128xf32>, vector<256x128xf32> -> vector<256x128xf32>
    %c0_3 = arith.constant 0 : index
    %c0_4 = arith.constant 0 : index
    %3 = vector.load %arg3[%c0_3, %c0_4] : memref<1x128xf32, #tpu.memory_space<vmem>>, vector<1x128xf32>
    %4 = vector.broadcast %3 : vector<1x128xf32> to vector<256x128xf32>
    %5 = arith.mulf %2, %4 : vector<256x128xf32>
    %c0_5 = arith.constant 0 : index
    %c0_6 = arith.constant 0 : index
    %6 = vector.load %arg4[%c0_5, %c0_6] : memref<1x128xf32, #tpu.memory_space<vmem>>, vector<1x128xf32>
    %7 = vector.broadcast %6 : vector<1x128xf32> to vector<256x128xf32>
    %8 = arith.addf %5, %7 : vector<256x128xf32>
    %c0_7 = arith.constant 0 : index
    %c0_8 = arith.constant 0 : index
    %9 = vector.load %arg5[%c0_7, %c0_8] : memref<256x128xf32, #tpu.memory_space<vmem>>, vector<256x128xf32>
    tpu.vector_store %arg5[%c0_7, %c0_8], %8 {strides = array<i32>} : memref<256x128xf32, #tpu.memory_space<vmem>>, vector<256x128xf32>,
    return
  }
  func.func @transform_0(%arg0: i32) -> (i32, i32) {
    %c0_i32 = arith.constant 0 : i32
    %c0_i32_0 = arith.constant 0 : i32
    return %arg0, %c0_i32 : i32, i32
  }
  func.func @transform_1(%arg0: i32) -> (i32, i32) {
    %c0_i32 = arith.constant 0 : i32
    %c0_i32_0 = arith.constant 0 : i32
    %c0_i32_1 = arith.constant 0 : i32
    return %c0_i32, %c0_i32_0 : i32, i32
  }
  func.func @transform_2(%arg0: i32) -> (i32, i32) {
    %c0_i32 = arith.constant 0 : i32
    %c0_i32_0 = arith.constant 0 : i32
    %c0_i32_1 = arith.constant 0 : i32
    return %c0_i32, %c0_i32_0 : i32, i32
  }
  func.func @transform_3(%arg0: i32) -> (i32, i32) {
    %c0_i32 = arith.constant 0 : i32
    %c0_i32_0 = arith.constant 0 : i32
    %c0_i32_1 = arith.constant 0 : i32
    return %c0_i32, %c0_i32_0 : i32, i32
  }
  func.func @transform_4(%arg0: i32) -> (i32, i32) {
    %c0_i32 = arith.constant 0 : i32
    %c0_i32_0 = arith.constant 0 : i32
    return %arg0, %c0_i32 : i32, i32
  }
}

module attributes {stable_mosaic.version = 11 : i64} {
  func.func @_fused_mm_kernel(%arg0: i32, %arg1: memref<512x128xf32, #tpu.memory_space<vmem>>, %arg2: memref<128x128xf32, #tpu.memory_space<vmem>>, %arg3: memref<1x128xf32, #tpu.memory_space<vmem>>, %arg4: memref<1x128xf32, #tpu.memory_space<vmem>>, %arg5: memref<512x128xf32, #tpu.memory_space<vmem>>) attributes {dimension_semantics = [#tpu.dimension_semantics<parallel>], iteration_bounds = array<i64: 1>, scalar_prefetch = 0 : i64, scratch_operands = 0 : i64, tpu.core_type = #tpu.core_type<tc>, window_params = [{transform_indices = @transform_0, window_bounds = array<i64: 512, 128>}, {pipeline_mode = #tpu.pipeline_mode<synchronous>, transform_indices = @transform_1, window_bounds = array<i64: 128, 128>}, {pipeline_mode = #tpu.pipeline_mode<synchronous>, transform_indices = @transform_2, window_bounds = array<i64: 1, 128>}, {pipeline_mode = #tpu.pipeline_mode<synchronous>, transform_indices = @transform_3, window_bounds = array<i64: 1, 128>}, {transform_indices = @transform_4, window_bounds = array<i64: 512, 128>}]} {
    %c0 = arith.constant 0 : index
    %c0_0 = arith.constant 0 : index
    %0 = vector.load %arg1[%c0, %c0_0] : memref<512x128xf32, #tpu.memory_space<vmem>>, vector<512x128xf32>
    %c0_1 = arith.constant 0 : index
    %c0_2 = arith.constant 0 : index
    %1 = vector.load %arg2[%c0_1, %c0_2] : memref<128x128xf32, #tpu.memory_space<vmem>>, vector<128x128xf32>
    %cst = arith.constant dense<0.000000e+00> : vector<512x128xf32>
    %2 = tpu.matmul %0, %1, %cst {dimension_numbers = #tpu.dot_dimension_numbers<[1], [0], [0], [1], [0, 0, 1, 1], [], []>} : vector<512x128xf32>, vector<128x128xf32>, vector<512x128xf32> -> vector<512x128xf32>
    %c0_3 = arith.constant 0 : index
    %c0_4 = arith.constant 0 : index
    %3 = vector.load %arg3[%c0_3, %c0_4] : memref<1x128xf32, #tpu.memory_space<vmem>>, vector<1x128xf32>
    %4 = vector.broadcast %3 : vector<1x128xf32> to vector<512x128xf32>
    %5 = arith.mulf %2, %4 : vector<512x128xf32>
    %c0_5 = arith.constant 0 : index
    %c0_6 = arith.constant 0 : index
    %6 = vector.load %arg4[%c0_5, %c0_6] : memref<1x128xf32, #tpu.memory_space<vmem>>, vector<1x128xf32>
    %7 = vector.broadcast %6 : vector<1x128xf32> to vector<512x128xf32>
    %8 = arith.addf %5, %7 : vector<512x128xf32>
    %cst_7 = arith.constant 5.000000e-01 : f32
    %9 = vector.broadcast %cst_7 : f32 to vector<512x128xf32>
    %10 = arith.mulf %9, %8 : vector<512x128xf32>
    %cst_8 = arith.constant 0.707106769 : f32
    %11 = vector.broadcast %cst_8 : f32 to vector<512x128xf32>
    %12 = arith.mulf %8, %11 : vector<512x128xf32>
    %13 = math.absf %12 : vector<512x128xf32>
    %cst_9 = arith.constant 0.327591091 : f32
    %14 = vector.broadcast %cst_9 : f32 to vector<512x128xf32>
    %15 = arith.mulf %14, %13 : vector<512x128xf32>
    %cst_10 = arith.constant 1.000000e+00 : f32
    %16 = vector.broadcast %cst_10 : f32 to vector<512x128xf32>
    %17 = arith.addf %16, %15 : vector<512x128xf32>
    %cst_11 = arith.constant 1.000000e+00 : f32
    %18 = vector.broadcast %cst_11 : f32 to vector<512x128xf32>
    %19 = arith.divf %18, %17 : vector<512x128xf32>
    %cst_12 = arith.constant 1.06140542 : f32
    %20 = vector.broadcast %cst_12 : f32 to vector<512x128xf32>
    %21 = arith.mulf %20, %19 : vector<512x128xf32>
    %cst_13 = arith.constant -1.45315206 : f32
    %22 = vector.broadcast %cst_13 : f32 to vector<512x128xf32>
    %23 = arith.addf %21, %22 : vector<512x128xf32>
    %24 = arith.mulf %23, %19 : vector<512x128xf32>
    %cst_14 = arith.constant 1.42141378 : f32
    %25 = vector.broadcast %cst_14 : f32 to vector<512x128xf32>
    %26 = arith.addf %24, %25 : vector<512x128xf32>
    %27 = arith.mulf %26, %19 : vector<512x128xf32>
    %cst_15 = arith.constant -0.284496725 : f32
    %28 = vector.broadcast %cst_15 : f32 to vector<512x128xf32>
    %29 = arith.addf %27, %28 : vector<512x128xf32>
    %30 = arith.mulf %29, %19 : vector<512x128xf32>
    %cst_16 = arith.constant 0.254829586 : f32
    %31 = vector.broadcast %cst_16 : f32 to vector<512x128xf32>
    %32 = arith.addf %30, %31 : vector<512x128xf32>
    %33 = arith.mulf %32, %19 : vector<512x128xf32>
    %cst_17 = arith.constant 0.000000e+00 : f32
    %34 = vector.broadcast %cst_17 : f32 to vector<512x128xf32>
    %35 = arith.subf %34, %13 : vector<512x128xf32>
    %36 = arith.mulf %35, %13 : vector<512x128xf32>
    %37 = math.exp %36 : vector<512x128xf32>
    %38 = arith.mulf %33, %37 : vector<512x128xf32>
    %cst_18 = arith.constant 1.000000e+00 : f32
    %39 = vector.broadcast %cst_18 : f32 to vector<512x128xf32>
    %40 = arith.subf %39, %38 : vector<512x128xf32>
    %cst_19 = arith.constant 0.000000e+00 : f32
    %41 = vector.broadcast %cst_19 : f32 to vector<512x128xf32>
    %42 = arith.cmpf olt, %12, %41 : vector<512x128xf32>
    %cst_20 = arith.constant 0.000000e+00 : f32
    %43 = vector.broadcast %cst_20 : f32 to vector<512x128xf32>
    %44 = arith.subf %43, %40 : vector<512x128xf32>
    %45 = arith.select %42, %44, %40 : vector<512x128xi1>, vector<512x128xf32>
    %cst_21 = arith.constant 1.000000e+00 : f32
    %46 = vector.broadcast %cst_21 : f32 to vector<512x128xf32>
    %47 = arith.addf %46, %45 : vector<512x128xf32>
    %48 = arith.mulf %10, %47 : vector<512x128xf32>
    %c0_22 = arith.constant 0 : index
    %c0_23 = arith.constant 0 : index
    %49 = vector.load %arg5[%c0_22, %c0_23] : memref<512x128xf32, #tpu.memory_space<vmem>>, vector<512x128xf32>
    tpu.vector_store %arg5[%c0_22, %c0_23], %48 {strides = array<i32>} : memref<512x128xf32, #tpu.memory_space<vmem>>, vector<512x128xf32>,
    return
  }
  func.func @transform_0(%arg0: i32) -> (i32, i32) {
    %c0_i32 = arith.constant 0 : i32
    %c0_i32_0 = arith.constant 0 : i32
    return %arg0, %c0_i32 : i32, i32
  }
  func.func @transform_1(%arg0: i32) -> (i32, i32) {
    %c0_i32 = arith.constant 0 : i32
    %c0_i32_0 = arith.constant 0 : i32
    %c0_i32_1 = arith.constant 0 : i32
    return %c0_i32, %c0_i32_0 : i32, i32
  }
  func.func @transform_2(%arg0: i32) -> (i32, i32) {
    %c0_i32 = arith.constant 0 : i32
    %c0_i32_0 = arith.constant 0 : i32
    %c0_i32_1 = arith.constant 0 : i32
    return %c0_i32, %c0_i32_0 : i32, i32
  }
  func.func @transform_3(%arg0: i32) -> (i32, i32) {
    %c0_i32 = arith.constant 0 : i32
    %c0_i32_0 = arith.constant 0 : i32
    %c0_i32_1 = arith.constant 0 : i32
    return %c0_i32, %c0_i32_0 : i32, i32
  }
  func.func @transform_4(%arg0: i32) -> (i32, i32) {
    %c0_i32 = arith.constant 0 : i32
    %c0_i32_0 = arith.constant 0 : i32
    return %arg0, %c0_i32 : i32, i32
  }
}

module attributes {stable_mosaic.version = 11 : i64} {
  func.func @_fused_mm_kernel(%arg0: i32, %arg1: memref<512x384xf32, #tpu.memory_space<vmem>>, %arg2: memref<384x128xf32, #tpu.memory_space<vmem>>, %arg3: memref<1x128xf32, #tpu.memory_space<vmem>>, %arg4: memref<1x128xf32, #tpu.memory_space<vmem>>, %arg5: memref<512x128xf32, #tpu.memory_space<vmem>>) attributes {dimension_semantics = [#tpu.dimension_semantics<parallel>], iteration_bounds = array<i64: 1>, scalar_prefetch = 0 : i64, scratch_operands = 0 : i64, tpu.core_type = #tpu.core_type<tc>, window_params = [{transform_indices = @transform_0, window_bounds = array<i64: 512, 384>}, {pipeline_mode = #tpu.pipeline_mode<synchronous>, transform_indices = @transform_1, window_bounds = array<i64: 384, 128>}, {pipeline_mode = #tpu.pipeline_mode<synchronous>, transform_indices = @transform_2, window_bounds = array<i64: 1, 128>}, {pipeline_mode = #tpu.pipeline_mode<synchronous>, transform_indices = @transform_3, window_bounds = array<i64: 1, 128>}, {transform_indices = @transform_4, window_bounds = array<i64: 512, 128>}]} {
    %c0 = arith.constant 0 : index
    %c0_0 = arith.constant 0 : index
    %0 = vector.load %arg1[%c0, %c0_0] : memref<512x384xf32, #tpu.memory_space<vmem>>, vector<512x384xf32>
    %c0_1 = arith.constant 0 : index
    %c0_2 = arith.constant 0 : index
    %1 = vector.load %arg2[%c0_1, %c0_2] : memref<384x128xf32, #tpu.memory_space<vmem>>, vector<384x128xf32>
    %cst = arith.constant dense<0.000000e+00> : vector<512x128xf32>
    %2 = tpu.matmul %0, %1, %cst {dimension_numbers = #tpu.dot_dimension_numbers<[1], [0], [0], [1], [0, 0, 1, 1], [], []>} : vector<512x384xf32>, vector<384x128xf32>, vector<512x128xf32> -> vector<512x128xf32>
    %c0_3 = arith.constant 0 : index
    %c0_4 = arith.constant 0 : index
    %3 = vector.load %arg3[%c0_3, %c0_4] : memref<1x128xf32, #tpu.memory_space<vmem>>, vector<1x128xf32>
    %4 = vector.broadcast %3 : vector<1x128xf32> to vector<512x128xf32>
    %5 = arith.mulf %2, %4 : vector<512x128xf32>
    %c0_5 = arith.constant 0 : index
    %c0_6 = arith.constant 0 : index
    %6 = vector.load %arg4[%c0_5, %c0_6] : memref<1x128xf32, #tpu.memory_space<vmem>>, vector<1x128xf32>
    %7 = vector.broadcast %6 : vector<1x128xf32> to vector<512x128xf32>
    %8 = arith.addf %5, %7 : vector<512x128xf32>
    %c0_7 = arith.constant 0 : index
    %c0_8 = arith.constant 0 : index
    %9 = vector.load %arg5[%c0_7, %c0_8] : memref<512x128xf32, #tpu.memory_space<vmem>>, vector<512x128xf32>
    tpu.vector_store %arg5[%c0_7, %c0_8], %8 {strides = array<i32>} : memref<512x128xf32, #tpu.memory_space<vmem>>, vector<512x128xf32>,
    return
  }
  func.func @transform_0(%arg0: i32) -> (i32, i32) {
    %c0_i32 = arith.constant 0 : i32
    %c0_i32_0 = arith.constant 0 : i32
    return %arg0, %c0_i32 : i32, i32
  }
  func.func @transform_1(%arg0: i32) -> (i32, i32) {
    %c0_i32 = arith.constant 0 : i32
    %c0_i32_0 = arith.constant 0 : i32
    %c0_i32_1 = arith.constant 0 : i32
    return %c0_i32, %c0_i32_0 : i32, i32
  }
  func.func @transform_2(%arg0: i32) -> (i32, i32) {
    %c0_i32 = arith.constant 0 : i32
    %c0_i32_0 = arith.constant 0 : i32
    %c0_i32_1 = arith.constant 0 : i32
    return %c0_i32, %c0_i32_0 : i32, i32
  }
  func.func @transform_3(%arg0: i32) -> (i32, i32) {
    %c0_i32 = arith.constant 0 : i32
    %c0_i32_0 = arith.constant 0 : i32
    %c0_i32_1 = arith.constant 0 : i32
    return %c0_i32, %c0_i32_0 : i32, i32
  }
  func.func @transform_4(%arg0: i32) -> (i32, i32) {
    %c0_i32 = arith.constant 0 : i32
    %c0_i32_0 = arith.constant 0 : i32
    return %arg0, %c0_i32 : i32, i32
  }
}

module attributes {stable_mosaic.version = 11 : i64} {
  func.func @_fused_mm_kernel(%arg0: i32, %arg1: memref<128x128xf32, #tpu.memory_space<vmem>>, %arg2: memref<128x128xf32, #tpu.memory_space<vmem>>, %arg3: memref<1x128xf32, #tpu.memory_space<vmem>>, %arg4: memref<1x128xf32, #tpu.memory_space<vmem>>, %arg5: memref<128x128xf32, #tpu.memory_space<vmem>>) attributes {dimension_semantics = [#tpu.dimension_semantics<parallel>], iteration_bounds = array<i64: 1>, scalar_prefetch = 0 : i64, scratch_operands = 0 : i64, tpu.core_type = #tpu.core_type<tc>, window_params = [{transform_indices = @transform_0, window_bounds = array<i64: 128, 128>}, {pipeline_mode = #tpu.pipeline_mode<synchronous>, transform_indices = @transform_1, window_bounds = array<i64: 128, 128>}, {pipeline_mode = #tpu.pipeline_mode<synchronous>, transform_indices = @transform_2, window_bounds = array<i64: 1, 128>}, {pipeline_mode = #tpu.pipeline_mode<synchronous>, transform_indices = @transform_3, window_bounds = array<i64: 1, 128>}, {transform_indices = @transform_4, window_bounds = array<i64: 128, 128>}]} {
    %c0 = arith.constant 0 : index
    %c0_0 = arith.constant 0 : index
    %0 = vector.load %arg1[%c0, %c0_0] : memref<128x128xf32, #tpu.memory_space<vmem>>, vector<128x128xf32>
    %c0_1 = arith.constant 0 : index
    %c0_2 = arith.constant 0 : index
    %1 = vector.load %arg2[%c0_1, %c0_2] : memref<128x128xf32, #tpu.memory_space<vmem>>, vector<128x128xf32>
    %cst = arith.constant dense<0.000000e+00> : vector<128x128xf32>
    %2 = tpu.matmul %0, %1, %cst {dimension_numbers = #tpu.dot_dimension_numbers<[1], [0], [0], [1], [0, 0, 1, 1], [], []>} : vector<128x128xf32>, vector<128x128xf32>, vector<128x128xf32> -> vector<128x128xf32>
    %c0_3 = arith.constant 0 : index
    %c0_4 = arith.constant 0 : index
    %3 = vector.load %arg3[%c0_3, %c0_4] : memref<1x128xf32, #tpu.memory_space<vmem>>, vector<1x128xf32>
    %4 = vector.broadcast %3 : vector<1x128xf32> to vector<128x128xf32>
    %5 = arith.mulf %2, %4 : vector<128x128xf32>
    %c0_5 = arith.constant 0 : index
    %c0_6 = arith.constant 0 : index
    %6 = vector.load %arg4[%c0_5, %c0_6] : memref<1x128xf32, #tpu.memory_space<vmem>>, vector<1x128xf32>
    %7 = vector.broadcast %6 : vector<1x128xf32> to vector<128x128xf32>
    %8 = arith.addf %5, %7 : vector<128x128xf32>
    %cst_7 = arith.constant 5.000000e-01 : f32
    %9 = vector.broadcast %cst_7 : f32 to vector<128x128xf32>
    %10 = arith.mulf %9, %8 : vector<128x128xf32>
    %cst_8 = arith.constant 0.707106769 : f32
    %11 = vector.broadcast %cst_8 : f32 to vector<128x128xf32>
    %12 = arith.mulf %8, %11 : vector<128x128xf32>
    %13 = math.absf %12 : vector<128x128xf32>
    %cst_9 = arith.constant 0.327591091 : f32
    %14 = vector.broadcast %cst_9 : f32 to vector<128x128xf32>
    %15 = arith.mulf %14, %13 : vector<128x128xf32>
    %cst_10 = arith.constant 1.000000e+00 : f32
    %16 = vector.broadcast %cst_10 : f32 to vector<128x128xf32>
    %17 = arith.addf %16, %15 : vector<128x128xf32>
    %cst_11 = arith.constant 1.000000e+00 : f32
    %18 = vector.broadcast %cst_11 : f32 to vector<128x128xf32>
    %19 = arith.divf %18, %17 : vector<128x128xf32>
    %cst_12 = arith.constant 1.06140542 : f32
    %20 = vector.broadcast %cst_12 : f32 to vector<128x128xf32>
    %21 = arith.mulf %20, %19 : vector<128x128xf32>
    %cst_13 = arith.constant -1.45315206 : f32
    %22 = vector.broadcast %cst_13 : f32 to vector<128x128xf32>
    %23 = arith.addf %21, %22 : vector<128x128xf32>
    %24 = arith.mulf %23, %19 : vector<128x128xf32>
    %cst_14 = arith.constant 1.42141378 : f32
    %25 = vector.broadcast %cst_14 : f32 to vector<128x128xf32>
    %26 = arith.addf %24, %25 : vector<128x128xf32>
    %27 = arith.mulf %26, %19 : vector<128x128xf32>
    %cst_15 = arith.constant -0.284496725 : f32
    %28 = vector.broadcast %cst_15 : f32 to vector<128x128xf32>
    %29 = arith.addf %27, %28 : vector<128x128xf32>
    %30 = arith.mulf %29, %19 : vector<128x128xf32>
    %cst_16 = arith.constant 0.254829586 : f32
    %31 = vector.broadcast %cst_16 : f32 to vector<128x128xf32>
    %32 = arith.addf %30, %31 : vector<128x128xf32>
    %33 = arith.mulf %32, %19 : vector<128x128xf32>
    %cst_17 = arith.constant 0.000000e+00 : f32
    %34 = vector.broadcast %cst_17 : f32 to vector<128x128xf32>
    %35 = arith.subf %34, %13 : vector<128x128xf32>
    %36 = arith.mulf %35, %13 : vector<128x128xf32>
    %37 = math.exp %36 : vector<128x128xf32>
    %38 = arith.mulf %33, %37 : vector<128x128xf32>
    %cst_18 = arith.constant 1.000000e+00 : f32
    %39 = vector.broadcast %cst_18 : f32 to vector<128x128xf32>
    %40 = arith.subf %39, %38 : vector<128x128xf32>
    %cst_19 = arith.constant 0.000000e+00 : f32
    %41 = vector.broadcast %cst_19 : f32 to vector<128x128xf32>
    %42 = arith.cmpf olt, %12, %41 : vector<128x128xf32>
    %cst_20 = arith.constant 0.000000e+00 : f32
    %43 = vector.broadcast %cst_20 : f32 to vector<128x128xf32>
    %44 = arith.subf %43, %40 : vector<128x128xf32>
    %45 = arith.select %42, %44, %40 : vector<128x128xi1>, vector<128x128xf32>
    %cst_21 = arith.constant 1.000000e+00 : f32
    %46 = vector.broadcast %cst_21 : f32 to vector<128x128xf32>
    %47 = arith.addf %46, %45 : vector<128x128xf32>
    %48 = arith.mulf %10, %47 : vector<128x128xf32>
    %c0_22 = arith.constant 0 : index
    %c0_23 = arith.constant 0 : index
    %49 = vector.load %arg5[%c0_22, %c0_23] : memref<128x128xf32, #tpu.memory_space<vmem>>, vector<128x128xf32>
    tpu.vector_store %arg5[%c0_22, %c0_23], %48 {strides = array<i32>} : memref<128x128xf32, #tpu.memory_space<vmem>>, vector<128x128xf32>,
    return
  }
  func.func @transform_0(%arg0: i32) -> (i32, i32) {
    %c0_i32 = arith.constant 0 : i32
    %c0_i32_0 = arith.constant 0 : i32
    return %arg0, %c0_i32 : i32, i32
  }
  func.func @transform_1(%arg0: i32) -> (i32, i32) {
    %c0_i32 = arith.constant 0 : i32
    %c0_i32_0 = arith.constant 0 : i32
    %c0_i32_1 = arith.constant 0 : i32
    return %c0_i32, %c0_i32_0 : i32, i32
  }
  func.func @transform_2(%arg0: i32) -> (i32, i32) {
    %c0_i32 = arith.constant 0 : i32
    %c0_i32_0 = arith.constant 0 : i32
    %c0_i32_1 = arith.constant 0 : i32
    return %c0_i32, %c0_i32_0 : i32, i32
  }
  func.func @transform_3(%arg0: i32) -> (i32, i32) {
    %c0_i32 = arith.constant 0 : i32
    %c0_i32_0 = arith.constant 0 : i32
    %c0_i32_1 = arith.constant 0 : i32
    return %c0_i32, %c0_i32_0 : i32, i32
  }
  func.func @transform_4(%arg0: i32) -> (i32, i32) {
    %c0_i32 = arith.constant 0 : i32
    %c0_i32_0 = arith.constant 0 : i32
    return %arg0, %c0_i32 : i32, i32
  }
}

module attributes {stable_mosaic.version = 11 : i64} {
  func.func @_fused_mm_kernel(%arg0: i32, %arg1: memref<128x640xf32, #tpu.memory_space<vmem>>, %arg2: memref<640x128xf32, #tpu.memory_space<vmem>>, %arg3: memref<1x128xf32, #tpu.memory_space<vmem>>, %arg4: memref<1x128xf32, #tpu.memory_space<vmem>>, %arg5: memref<128x128xf32, #tpu.memory_space<vmem>>) attributes {dimension_semantics = [#tpu.dimension_semantics<parallel>], iteration_bounds = array<i64: 1>, scalar_prefetch = 0 : i64, scratch_operands = 0 : i64, tpu.core_type = #tpu.core_type<tc>, window_params = [{transform_indices = @transform_0, window_bounds = array<i64: 128, 640>}, {pipeline_mode = #tpu.pipeline_mode<synchronous>, transform_indices = @transform_1, window_bounds = array<i64: 640, 128>}, {pipeline_mode = #tpu.pipeline_mode<synchronous>, transform_indices = @transform_2, window_bounds = array<i64: 1, 128>}, {pipeline_mode = #tpu.pipeline_mode<synchronous>, transform_indices = @transform_3, window_bounds = array<i64: 1, 128>}, {transform_indices = @transform_4, window_bounds = array<i64: 128, 128>}]} {
    %c0 = arith.constant 0 : index
    %c0_0 = arith.constant 0 : index
    %0 = vector.load %arg1[%c0, %c0_0] : memref<128x640xf32, #tpu.memory_space<vmem>>, vector<128x640xf32>
    %c0_1 = arith.constant 0 : index
    %c0_2 = arith.constant 0 : index
    %1 = vector.load %arg2[%c0_1, %c0_2] : memref<640x128xf32, #tpu.memory_space<vmem>>, vector<640x128xf32>
    %cst = arith.constant dense<0.000000e+00> : vector<128x128xf32>
    %2 = tpu.matmul %0, %1, %cst {dimension_numbers = #tpu.dot_dimension_numbers<[1], [0], [0], [1], [0, 0, 1, 1], [], []>} : vector<128x640xf32>, vector<640x128xf32>, vector<128x128xf32> -> vector<128x128xf32>
    %c0_3 = arith.constant 0 : index
    %c0_4 = arith.constant 0 : index
    %3 = vector.load %arg3[%c0_3, %c0_4] : memref<1x128xf32, #tpu.memory_space<vmem>>, vector<1x128xf32>
    %4 = vector.broadcast %3 : vector<1x128xf32> to vector<128x128xf32>
    %5 = arith.mulf %2, %4 : vector<128x128xf32>
    %c0_5 = arith.constant 0 : index
    %c0_6 = arith.constant 0 : index
    %6 = vector.load %arg4[%c0_5, %c0_6] : memref<1x128xf32, #tpu.memory_space<vmem>>, vector<1x128xf32>
    %7 = vector.broadcast %6 : vector<1x128xf32> to vector<128x128xf32>
    %8 = arith.addf %5, %7 : vector<128x128xf32>
    %c0_7 = arith.constant 0 : index
    %c0_8 = arith.constant 0 : index
    %9 = vector.load %arg5[%c0_7, %c0_8] : memref<128x128xf32, #tpu.memory_space<vmem>>, vector<128x128xf32>
    tpu.vector_store %arg5[%c0_7, %c0_8], %8 {strides = array<i32>} : memref<128x128xf32, #tpu.memory_space<vmem>>, vector<128x128xf32>,
    return
  }
  func.func @transform_0(%arg0: i32) -> (i32, i32) {
    %c0_i32 = arith.constant 0 : i32
    %c0_i32_0 = arith.constant 0 : i32
    return %arg0, %c0_i32 : i32, i32
  }
  func.func @transform_1(%arg0: i32) -> (i32, i32) {
    %c0_i32 = arith.constant 0 : i32
    %c0_i32_0 = arith.constant 0 : i32
    %c0_i32_1 = arith.constant 0 : i32
    return %c0_i32, %c0_i32_0 : i32, i32
  }
  func.func @transform_2(%arg0: i32) -> (i32, i32) {
    %c0_i32 = arith.constant 0 : i32
    %c0_i32_0 = arith.constant 0 : i32
    %c0_i32_1 = arith.constant 0 : i32
    return %c0_i32, %c0_i32_0 : i32, i32
  }
  func.func @transform_3(%arg0: i32) -> (i32, i32) {
    %c0_i32 = arith.constant 0 : i32
    %c0_i32_0 = arith.constant 0 : i32
    %c0_i32_1 = arith.constant 0 : i32
    return %c0_i32, %c0_i32_0 : i32, i32
  }
  func.func @transform_4(%arg0: i32) -> (i32, i32) {
    %c0_i32 = arith.constant 0 : i32
    %c0_i32_0 = arith.constant 0 : i32
    return %arg0, %c0_i32 : i32, i32
  }
}

module attributes {stable_mosaic.version = 11 : i64} {
  func.func @_fused_mm_kernel(%arg0: i32, %arg1: memref<32x256xf32, #tpu.memory_space<vmem>>, %arg2: memref<256x128xf32, #tpu.memory_space<vmem>>, %arg3: memref<1x128xf32, #tpu.memory_space<vmem>>, %arg4: memref<1x128xf32, #tpu.memory_space<vmem>>, %arg5: memref<32x128xf32, #tpu.memory_space<vmem>>) attributes {dimension_semantics = [#tpu.dimension_semantics<parallel>], iteration_bounds = array<i64: 1>, scalar_prefetch = 0 : i64, scratch_operands = 0 : i64, tpu.core_type = #tpu.core_type<tc>, window_params = [{transform_indices = @transform_0, window_bounds = array<i64: 32, 256>}, {pipeline_mode = #tpu.pipeline_mode<synchronous>, transform_indices = @transform_1, window_bounds = array<i64: 256, 128>}, {pipeline_mode = #tpu.pipeline_mode<synchronous>, transform_indices = @transform_2, window_bounds = array<i64: 1, 128>}, {pipeline_mode = #tpu.pipeline_mode<synchronous>, transform_indices = @transform_3, window_bounds = array<i64: 1, 128>}, {transform_indices = @transform_4, window_bounds = array<i64: 32, 128>}]} {
    %c0 = arith.constant 0 : index
    %c0_0 = arith.constant 0 : index
    %0 = vector.load %arg1[%c0, %c0_0] : memref<32x256xf32, #tpu.memory_space<vmem>>, vector<32x256xf32>
    %c0_1 = arith.constant 0 : index
    %c0_2 = arith.constant 0 : index
    %1 = vector.load %arg2[%c0_1, %c0_2] : memref<256x128xf32, #tpu.memory_space<vmem>>, vector<256x128xf32>
    %cst = arith.constant dense<0.000000e+00> : vector<32x128xf32>
    %2 = tpu.matmul %0, %1, %cst {dimension_numbers = #tpu.dot_dimension_numbers<[1], [0], [0], [1], [0, 0, 1, 1], [], []>} : vector<32x256xf32>, vector<256x128xf32>, vector<32x128xf32> -> vector<32x128xf32>
    %c0_3 = arith.constant 0 : index
    %c0_4 = arith.constant 0 : index
    %3 = vector.load %arg3[%c0_3, %c0_4] : memref<1x128xf32, #tpu.memory_space<vmem>>, vector<1x128xf32>
    %4 = vector.broadcast %3 : vector<1x128xf32> to vector<32x128xf32>
    %5 = arith.mulf %2, %4 : vector<32x128xf32>
    %c0_5 = arith.constant 0 : index
    %c0_6 = arith.constant 0 : index
    %6 = vector.load %arg4[%c0_5, %c0_6] : memref<1x128xf32, #tpu.memory_space<vmem>>, vector<1x128xf32>
    %7 = vector.broadcast %6 : vector<1x128xf32> to vector<32x128xf32>
    %8 = arith.addf %5, %7 : vector<32x128xf32>
    %cst_7 = arith.constant 5.000000e-01 : f32
    %9 = vector.broadcast %cst_7 : f32 to vector<32x128xf32>
    %10 = arith.mulf %9, %8 : vector<32x128xf32>
    %cst_8 = arith.constant 0.707106769 : f32
    %11 = vector.broadcast %cst_8 : f32 to vector<32x128xf32>
    %12 = arith.mulf %8, %11 : vector<32x128xf32>
    %13 = math.absf %12 : vector<32x128xf32>
    %cst_9 = arith.constant 0.327591091 : f32
    %14 = vector.broadcast %cst_9 : f32 to vector<32x128xf32>
    %15 = arith.mulf %14, %13 : vector<32x128xf32>
    %cst_10 = arith.constant 1.000000e+00 : f32
    %16 = vector.broadcast %cst_10 : f32 to vector<32x128xf32>
    %17 = arith.addf %16, %15 : vector<32x128xf32>
    %cst_11 = arith.constant 1.000000e+00 : f32
    %18 = vector.broadcast %cst_11 : f32 to vector<32x128xf32>
    %19 = arith.divf %18, %17 : vector<32x128xf32>
    %cst_12 = arith.constant 1.06140542 : f32
    %20 = vector.broadcast %cst_12 : f32 to vector<32x128xf32>
    %21 = arith.mulf %20, %19 : vector<32x128xf32>
    %cst_13 = arith.constant -1.45315206 : f32
    %22 = vector.broadcast %cst_13 : f32 to vector<32x128xf32>
    %23 = arith.addf %21, %22 : vector<32x128xf32>
    %24 = arith.mulf %23, %19 : vector<32x128xf32>
    %cst_14 = arith.constant 1.42141378 : f32
    %25 = vector.broadcast %cst_14 : f32 to vector<32x128xf32>
    %26 = arith.addf %24, %25 : vector<32x128xf32>
    %27 = arith.mulf %26, %19 : vector<32x128xf32>
    %cst_15 = arith.constant -0.284496725 : f32
    %28 = vector.broadcast %cst_15 : f32 to vector<32x128xf32>
    %29 = arith.addf %27, %28 : vector<32x128xf32>
    %30 = arith.mulf %29, %19 : vector<32x128xf32>
    %cst_16 = arith.constant 0.254829586 : f32
    %31 = vector.broadcast %cst_16 : f32 to vector<32x128xf32>
    %32 = arith.addf %30, %31 : vector<32x128xf32>
    %33 = arith.mulf %32, %19 : vector<32x128xf32>
    %cst_17 = arith.constant 0.000000e+00 : f32
    %34 = vector.broadcast %cst_17 : f32 to vector<32x128xf32>
    %35 = arith.subf %34, %13 : vector<32x128xf32>
    %36 = arith.mulf %35, %13 : vector<32x128xf32>
    %37 = math.exp %36 : vector<32x128xf32>
    %38 = arith.mulf %33, %37 : vector<32x128xf32>
    %cst_18 = arith.constant 1.000000e+00 : f32
    %39 = vector.broadcast %cst_18 : f32 to vector<32x128xf32>
    %40 = arith.subf %39, %38 : vector<32x128xf32>
    %cst_19 = arith.constant 0.000000e+00 : f32
    %41 = vector.broadcast %cst_19 : f32 to vector<32x128xf32>
    %42 = arith.cmpf olt, %12, %41 : vector<32x128xf32>
    %cst_20 = arith.constant 0.000000e+00 : f32
    %43 = vector.broadcast %cst_20 : f32 to vector<32x128xf32>
    %44 = arith.subf %43, %40 : vector<32x128xf32>
    %45 = arith.select %42, %44, %40 : vector<32x128xi1>, vector<32x128xf32>
    %cst_21 = arith.constant 1.000000e+00 : f32
    %46 = vector.broadcast %cst_21 : f32 to vector<32x128xf32>
    %47 = arith.addf %46, %45 : vector<32x128xf32>
    %48 = arith.mulf %10, %47 : vector<32x128xf32>
    %c0_22 = arith.constant 0 : index
    %c0_23 = arith.constant 0 : index
    %49 = vector.load %arg5[%c0_22, %c0_23] : memref<32x128xf32, #tpu.memory_space<vmem>>, vector<32x128xf32>
    tpu.vector_store %arg5[%c0_22, %c0_23], %48 {strides = array<i32>} : memref<32x128xf32, #tpu.memory_space<vmem>>, vector<32x128xf32>,
    return
  }
  func.func @transform_0(%arg0: i32) -> (i32, i32) {
    %c0_i32 = arith.constant 0 : i32
    %c0_i32_0 = arith.constant 0 : i32
    return %arg0, %c0_i32 : i32, i32
  }
  func.func @transform_1(%arg0: i32) -> (i32, i32) {
    %c0_i32 = arith.constant 0 : i32
    %c0_i32_0 = arith.constant 0 : i32
    %c0_i32_1 = arith.constant 0 : i32
    return %c0_i32, %c0_i32_0 : i32, i32
  }
  func.func @transform_2(%arg0: i32) -> (i32, i32) {
    %c0_i32 = arith.constant 0 : i32
    %c0_i32_0 = arith.constant 0 : i32
    %c0_i32_1 = arith.constant 0 : i32
    return %c0_i32, %c0_i32_0 : i32, i32
  }
  func.func @transform_3(%arg0: i32) -> (i32, i32) {
    %c0_i32 = arith.constant 0 : i32
    %c0_i32_0 = arith.constant 0 : i32
    %c0_i32_1 = arith.constant 0 : i32
    return %c0_i32, %c0_i32_0 : i32, i32
  }
  func.func @transform_4(%arg0: i32) -> (i32, i32) {
    %c0_i32 = arith.constant 0 : i32
    %c0_i32_0 = arith.constant 0 : i32
    return %arg0, %c0_i32 : i32, i32
  }
}

module attributes {stable_mosaic.version = 11 : i64} {
  func.func @_fused_mm_kernel(%arg0: i32, %arg1: memref<32x640xf32, #tpu.memory_space<vmem>>, %arg2: memref<640x128xf32, #tpu.memory_space<vmem>>, %arg3: memref<1x128xf32, #tpu.memory_space<vmem>>, %arg4: memref<1x128xf32, #tpu.memory_space<vmem>>, %arg5: memref<32x128xf32, #tpu.memory_space<vmem>>) attributes {dimension_semantics = [#tpu.dimension_semantics<parallel>], iteration_bounds = array<i64: 1>, scalar_prefetch = 0 : i64, scratch_operands = 0 : i64, tpu.core_type = #tpu.core_type<tc>, window_params = [{transform_indices = @transform_0, window_bounds = array<i64: 32, 640>}, {pipeline_mode = #tpu.pipeline_mode<synchronous>, transform_indices = @transform_1, window_bounds = array<i64: 640, 128>}, {pipeline_mode = #tpu.pipeline_mode<synchronous>, transform_indices = @transform_2, window_bounds = array<i64: 1, 128>}, {pipeline_mode = #tpu.pipeline_mode<synchronous>, transform_indices = @transform_3, window_bounds = array<i64: 1, 128>}, {transform_indices = @transform_4, window_bounds = array<i64: 32, 128>}]} {
    %c0 = arith.constant 0 : index
    %c0_0 = arith.constant 0 : index
    %0 = vector.load %arg1[%c0, %c0_0] : memref<32x640xf32, #tpu.memory_space<vmem>>, vector<32x640xf32>
    %c0_1 = arith.constant 0 : index
    %c0_2 = arith.constant 0 : index
    %1 = vector.load %arg2[%c0_1, %c0_2] : memref<640x128xf32, #tpu.memory_space<vmem>>, vector<640x128xf32>
    %cst = arith.constant dense<0.000000e+00> : vector<32x128xf32>
    %2 = tpu.matmul %0, %1, %cst {dimension_numbers = #tpu.dot_dimension_numbers<[1], [0], [0], [1], [0, 0, 1, 1], [], []>} : vector<32x640xf32>, vector<640x128xf32>, vector<32x128xf32> -> vector<32x128xf32>
    %c0_3 = arith.constant 0 : index
    %c0_4 = arith.constant 0 : index
    %3 = vector.load %arg3[%c0_3, %c0_4] : memref<1x128xf32, #tpu.memory_space<vmem>>, vector<1x128xf32>
    %4 = vector.broadcast %3 : vector<1x128xf32> to vector<32x128xf32>
    %5 = arith.mulf %2, %4 : vector<32x128xf32>
    %c0_5 = arith.constant 0 : index
    %c0_6 = arith.constant 0 : index
    %6 = vector.load %arg4[%c0_5, %c0_6] : memref<1x128xf32, #tpu.memory_space<vmem>>, vector<1x128xf32>
    %7 = vector.broadcast %6 : vector<1x128xf32> to vector<32x128xf32>
    %8 = arith.addf %5, %7 : vector<32x128xf32>
    %c0_7 = arith.constant 0 : index
    %c0_8 = arith.constant 0 : index
    %9 = vector.load %arg5[%c0_7, %c0_8] : memref<32x128xf32, #tpu.memory_space<vmem>>, vector<32x128xf32>
    tpu.vector_store %arg5[%c0_7, %c0_8], %8 {strides = array<i32>} : memref<32x128xf32, #tpu.memory_space<vmem>>, vector<32x128xf32>,
    return
  }
  func.func @transform_0(%arg0: i32) -> (i32, i32) {
    %c0_i32 = arith.constant 0 : i32
    %c0_i32_0 = arith.constant 0 : i32
    return %arg0, %c0_i32 : i32, i32
  }
  func.func @transform_1(%arg0: i32) -> (i32, i32) {
    %c0_i32 = arith.constant 0 : i32
    %c0_i32_0 = arith.constant 0 : i32
    %c0_i32_1 = arith.constant 0 : i32
    return %c0_i32, %c0_i32_0 : i32, i32
  }
  func.func @transform_2(%arg0: i32) -> (i32, i32) {
    %c0_i32 = arith.constant 0 : i32
    %c0_i32_0 = arith.constant 0 : i32
    %c0_i32_1 = arith.constant 0 : i32
    return %c0_i32, %c0_i32_0 : i32, i32
  }
  func.func @transform_3(%arg0: i32) -> (i32, i32) {
    %c0_i32 = arith.constant 0 : i32
    %c0_i32_0 = arith.constant 0 : i32
    %c0_i32_1 = arith.constant 0 : i32
    return %c0_i32, %c0_i32_0 : i32, i32
  }
  func.func @transform_4(%arg0: i32) -> (i32, i32) {
    %c0_i32 = arith.constant 0 : i32
    %c0_i32_0 = arith.constant 0 : i32
    return %arg0, %c0_i32 : i32, i32
  }
}

module attributes {stable_mosaic.version = 11 : i64} {
  func.func @_fused_mm_kernel(%arg0: i32, %arg1: memref<8x256xf32, #tpu.memory_space<vmem>>, %arg2: memref<256x128xf32, #tpu.memory_space<vmem>>, %arg3: memref<1x128xf32, #tpu.memory_space<vmem>>, %arg4: memref<1x128xf32, #tpu.memory_space<vmem>>, %arg5: memref<8x128xf32, #tpu.memory_space<vmem>>) attributes {dimension_semantics = [#tpu.dimension_semantics<parallel>], iteration_bounds = array<i64: 1>, scalar_prefetch = 0 : i64, scratch_operands = 0 : i64, tpu.core_type = #tpu.core_type<tc>, window_params = [{transform_indices = @transform_0, window_bounds = array<i64: 8, 256>}, {pipeline_mode = #tpu.pipeline_mode<synchronous>, transform_indices = @transform_1, window_bounds = array<i64: 256, 128>}, {pipeline_mode = #tpu.pipeline_mode<synchronous>, transform_indices = @transform_2, window_bounds = array<i64: 1, 128>}, {pipeline_mode = #tpu.pipeline_mode<synchronous>, transform_indices = @transform_3, window_bounds = array<i64: 1, 128>}, {transform_indices = @transform_4, window_bounds = array<i64: 8, 128>}]} {
    %c0 = arith.constant 0 : index
    %c0_0 = arith.constant 0 : index
    %0 = vector.load %arg1[%c0, %c0_0] : memref<8x256xf32, #tpu.memory_space<vmem>>, vector<8x256xf32>
    %c0_1 = arith.constant 0 : index
    %c0_2 = arith.constant 0 : index
    %1 = vector.load %arg2[%c0_1, %c0_2] : memref<256x128xf32, #tpu.memory_space<vmem>>, vector<256x128xf32>
    %cst = arith.constant dense<0.000000e+00> : vector<8x128xf32>
    %2 = tpu.matmul %0, %1, %cst {dimension_numbers = #tpu.dot_dimension_numbers<[1], [0], [0], [1], [0, 0, 1, 1], [], []>} : vector<8x256xf32>, vector<256x128xf32>, vector<8x128xf32> -> vector<8x128xf32>
    %c0_3 = arith.constant 0 : index
    %c0_4 = arith.constant 0 : index
    %3 = vector.load %arg3[%c0_3, %c0_4] : memref<1x128xf32, #tpu.memory_space<vmem>>, vector<1x128xf32>
    %4 = vector.broadcast %3 : vector<1x128xf32> to vector<8x128xf32>
    %5 = arith.mulf %2, %4 : vector<8x128xf32>
    %c0_5 = arith.constant 0 : index
    %c0_6 = arith.constant 0 : index
    %6 = vector.load %arg4[%c0_5, %c0_6] : memref<1x128xf32, #tpu.memory_space<vmem>>, vector<1x128xf32>
    %7 = vector.broadcast %6 : vector<1x128xf32> to vector<8x128xf32>
    %8 = arith.addf %5, %7 : vector<8x128xf32>
    %cst_7 = arith.constant 5.000000e-01 : f32
    %9 = vector.broadcast %cst_7 : f32 to vector<8x128xf32>
    %10 = arith.mulf %9, %8 : vector<8x128xf32>
    %cst_8 = arith.constant 0.707106769 : f32
    %11 = vector.broadcast %cst_8 : f32 to vector<8x128xf32>
    %12 = arith.mulf %8, %11 : vector<8x128xf32>
    %13 = math.absf %12 : vector<8x128xf32>
    %cst_9 = arith.constant 0.327591091 : f32
    %14 = vector.broadcast %cst_9 : f32 to vector<8x128xf32>
    %15 = arith.mulf %14, %13 : vector<8x128xf32>
    %cst_10 = arith.constant 1.000000e+00 : f32
    %16 = vector.broadcast %cst_10 : f32 to vector<8x128xf32>
    %17 = arith.addf %16, %15 : vector<8x128xf32>
    %cst_11 = arith.constant 1.000000e+00 : f32
    %18 = vector.broadcast %cst_11 : f32 to vector<8x128xf32>
    %19 = arith.divf %18, %17 : vector<8x128xf32>
    %cst_12 = arith.constant 1.06140542 : f32
    %20 = vector.broadcast %cst_12 : f32 to vector<8x128xf32>
    %21 = arith.mulf %20, %19 : vector<8x128xf32>
    %cst_13 = arith.constant -1.45315206 : f32
    %22 = vector.broadcast %cst_13 : f32 to vector<8x128xf32>
    %23 = arith.addf %21, %22 : vector<8x128xf32>
    %24 = arith.mulf %23, %19 : vector<8x128xf32>
    %cst_14 = arith.constant 1.42141378 : f32
    %25 = vector.broadcast %cst_14 : f32 to vector<8x128xf32>
    %26 = arith.addf %24, %25 : vector<8x128xf32>
    %27 = arith.mulf %26, %19 : vector<8x128xf32>
    %cst_15 = arith.constant -0.284496725 : f32
    %28 = vector.broadcast %cst_15 : f32 to vector<8x128xf32>
    %29 = arith.addf %27, %28 : vector<8x128xf32>
    %30 = arith.mulf %29, %19 : vector<8x128xf32>
    %cst_16 = arith.constant 0.254829586 : f32
    %31 = vector.broadcast %cst_16 : f32 to vector<8x128xf32>
    %32 = arith.addf %30, %31 : vector<8x128xf32>
    %33 = arith.mulf %32, %19 : vector<8x128xf32>
    %cst_17 = arith.constant 0.000000e+00 : f32
    %34 = vector.broadcast %cst_17 : f32 to vector<8x128xf32>
    %35 = arith.subf %34, %13 : vector<8x128xf32>
    %36 = arith.mulf %35, %13 : vector<8x128xf32>
    %37 = math.exp %36 : vector<8x128xf32>
    %38 = arith.mulf %33, %37 : vector<8x128xf32>
    %cst_18 = arith.constant 1.000000e+00 : f32
    %39 = vector.broadcast %cst_18 : f32 to vector<8x128xf32>
    %40 = arith.subf %39, %38 : vector<8x128xf32>
    %cst_19 = arith.constant 0.000000e+00 : f32
    %41 = vector.broadcast %cst_19 : f32 to vector<8x128xf32>
    %42 = arith.cmpf olt, %12, %41 : vector<8x128xf32>
    %cst_20 = arith.constant 0.000000e+00 : f32
    %43 = vector.broadcast %cst_20 : f32 to vector<8x128xf32>
    %44 = arith.subf %43, %40 : vector<8x128xf32>
    %45 = arith.select %42, %44, %40 : vector<8x128xi1>, vector<8x128xf32>
    %cst_21 = arith.constant 1.000000e+00 : f32
    %46 = vector.broadcast %cst_21 : f32 to vector<8x128xf32>
    %47 = arith.addf %46, %45 : vector<8x128xf32>
    %48 = arith.mulf %10, %47 : vector<8x128xf32>
    %c0_22 = arith.constant 0 : index
    %c0_23 = arith.constant 0 : index
    %49 = vector.load %arg5[%c0_22, %c0_23] : memref<8x128xf32, #tpu.memory_space<vmem>>, vector<8x128xf32>
    tpu.vector_store %arg5[%c0_22, %c0_23], %48 {strides = array<i32>} : memref<8x128xf32, #tpu.memory_space<vmem>>, vector<8x128xf32>,
    return
  }
  func.func @transform_0(%arg0: i32) -> (i32, i32) {
    %c0_i32 = arith.constant 0 : i32
    %c0_i32_0 = arith.constant 0 : i32
    return %arg0, %c0_i32 : i32, i32
  }
  func.func @transform_1(%arg0: i32) -> (i32, i32) {
    %c0_i32 = arith.constant 0 : i32
    %c0_i32_0 = arith.constant 0 : i32
    %c0_i32_1 = arith.constant 0 : i32
    return %c0_i32, %c0_i32_0 : i32, i32
  }
  func.func @transform_2(%arg0: i32) -> (i32, i32) {
    %c0_i32 = arith.constant 0 : i32
    %c0_i32_0 = arith.constant 0 : i32
    %c0_i32_1 = arith.constant 0 : i32
    return %c0_i32, %c0_i32_0 : i32, i32
  }
  func.func @transform_3(%arg0: i32) -> (i32, i32) {
    %c0_i32 = arith.constant 0 : i32
    %c0_i32_0 = arith.constant 0 : i32
    %c0_i32_1 = arith.constant 0 : i32
    return %c0_i32, %c0_i32_0 : i32, i32
  }
  func.func @transform_4(%arg0: i32) -> (i32, i32) {
    %c0_i32 = arith.constant 0 : i32
    %c0_i32_0 = arith.constant 0 : i32
    return %arg0, %c0_i32 : i32, i32
  }
}

module attributes {stable_mosaic.version = 11 : i64} {
  func.func @_fused_mm_kernel(%arg0: i32, %arg1: memref<8x1152xf32, #tpu.memory_space<vmem>>, %arg2: memref<1152x128xf32, #tpu.memory_space<vmem>>, %arg3: memref<1x128xf32, #tpu.memory_space<vmem>>, %arg4: memref<1x128xf32, #tpu.memory_space<vmem>>, %arg5: memref<8x128xf32, #tpu.memory_space<vmem>>) attributes {dimension_semantics = [#tpu.dimension_semantics<parallel>], iteration_bounds = array<i64: 1>, scalar_prefetch = 0 : i64, scratch_operands = 0 : i64, tpu.core_type = #tpu.core_type<tc>, window_params = [{transform_indices = @transform_0, window_bounds = array<i64: 8, 1152>}, {pipeline_mode = #tpu.pipeline_mode<synchronous>, transform_indices = @transform_1, window_bounds = array<i64: 1152, 128>}, {pipeline_mode = #tpu.pipeline_mode<synchronous>, transform_indices = @transform_2, window_bounds = array<i64: 1, 128>}, {pipeline_mode = #tpu.pipeline_mode<synchronous>, transform_indices = @transform_3, window_bounds = array<i64: 1, 128>}, {transform_indices = @transform_4, window_bounds = array<i64: 8, 128>}]} {
    %c0 = arith.constant 0 : index
    %c0_0 = arith.constant 0 : index
    %0 = vector.load %arg1[%c0, %c0_0] : memref<8x1152xf32, #tpu.memory_space<vmem>>, vector<8x1152xf32>
    %c0_1 = arith.constant 0 : index
    %c0_2 = arith.constant 0 : index
    %1 = vector.load %arg2[%c0_1, %c0_2] : memref<1152x128xf32, #tpu.memory_space<vmem>>, vector<1152x128xf32>
    %cst = arith.constant dense<0.000000e+00> : vector<8x128xf32>
    %2 = tpu.matmul %0, %1, %cst {dimension_numbers = #tpu.dot_dimension_numbers<[1], [0], [0], [1], [0, 0, 1, 1], [], []>} : vector<8x1152xf32>, vector<1152x128xf32>, vector<8x128xf32> -> vector<8x128xf32>
    %c0_3 = arith.constant 0 : index
    %c0_4 = arith.constant 0 : index
    %3 = vector.load %arg3[%c0_3, %c0_4] : memref<1x128xf32, #tpu.memory_space<vmem>>, vector<1x128xf32>
    %4 = vector.broadcast %3 : vector<1x128xf32> to vector<8x128xf32>
    %5 = arith.mulf %2, %4 : vector<8x128xf32>
    %c0_5 = arith.constant 0 : index
    %c0_6 = arith.constant 0 : index
    %6 = vector.load %arg4[%c0_5, %c0_6] : memref<1x128xf32, #tpu.memory_space<vmem>>, vector<1x128xf32>
    %7 = vector.broadcast %6 : vector<1x128xf32> to vector<8x128xf32>
    %8 = arith.addf %5, %7 : vector<8x128xf32>
    %c0_7 = arith.constant 0 : index
    %c0_8 = arith.constant 0 : index
    %9 = vector.load %arg5[%c0_7, %c0_8] : memref<8x128xf32, #tpu.memory_space<vmem>>, vector<8x128xf32>
    tpu.vector_store %arg5[%c0_7, %c0_8], %8 {strides = array<i32>} : memref<8x128xf32, #tpu.memory_space<vmem>>, vector<8x128xf32>,
    return
  }
  func.func @transform_0(%arg0: i32) -> (i32, i32) {
    %c0_i32 = arith.constant 0 : i32
    %c0_i32_0 = arith.constant 0 : i32
    return %arg0, %c0_i32 : i32, i32
  }
  func.func @transform_1(%arg0: i32) -> (i32, i32) {
    %c0_i32 = arith.constant 0 : i32
    %c0_i32_0 = arith.constant 0 : i32
    %c0_i32_1 = arith.constant 0 : i32
    return %c0_i32, %c0_i32_0 : i32, i32
  }
  func.func @transform_2(%arg0: i32) -> (i32, i32) {
    %c0_i32 = arith.constant 0 : i32
    %c0_i32_0 = arith.constant 0 : i32
    %c0_i32_1 = arith.constant 0 : i32
    return %c0_i32, %c0_i32_0 : i32, i32
  }
  func.func @transform_3(%arg0: i32) -> (i32, i32) {
    %c0_i32 = arith.constant 0 : i32
    %c0_i32_0 = arith.constant 0 : i32
    %c0_i32_1 = arith.constant 0 : i32
    return %c0_i32, %c0_i32_0 : i32, i32
  }
  func.func @transform_4(%arg0: i32) -> (i32, i32) {
    %c0_i32 = arith.constant 0 : i32
    %c0_i32_0 = arith.constant 0 : i32
    return %arg0, %c0_i32 : i32, i32
  }
}

module attributes {stable_mosaic.version = 11 : i64} {
  func.func @_fused_mm_kernel(%arg0: i32, %arg1: memref<8x512xf32, #tpu.memory_space<vmem>>, %arg2: memref<512x128xf32, #tpu.memory_space<vmem>>, %arg3: memref<1x128xf32, #tpu.memory_space<vmem>>, %arg4: memref<1x128xf32, #tpu.memory_space<vmem>>, %arg5: memref<8x128xf32, #tpu.memory_space<vmem>>) attributes {dimension_semantics = [#tpu.dimension_semantics<parallel>], iteration_bounds = array<i64: 1>, scalar_prefetch = 0 : i64, scratch_operands = 0 : i64, tpu.core_type = #tpu.core_type<tc>, window_params = [{transform_indices = @transform_0, window_bounds = array<i64: 8, 512>}, {pipeline_mode = #tpu.pipeline_mode<synchronous>, transform_indices = @transform_1, window_bounds = array<i64: 512, 128>}, {pipeline_mode = #tpu.pipeline_mode<synchronous>, transform_indices = @transform_2, window_bounds = array<i64: 1, 128>}, {pipeline_mode = #tpu.pipeline_mode<synchronous>, transform_indices = @transform_3, window_bounds = array<i64: 1, 128>}, {transform_indices = @transform_4, window_bounds = array<i64: 8, 128>}]} {
    %c0 = arith.constant 0 : index
    %c0_0 = arith.constant 0 : index
    %0 = vector.load %arg1[%c0, %c0_0] : memref<8x512xf32, #tpu.memory_space<vmem>>, vector<8x512xf32>
    %c0_1 = arith.constant 0 : index
    %c0_2 = arith.constant 0 : index
    %1 = vector.load %arg2[%c0_1, %c0_2] : memref<512x128xf32, #tpu.memory_space<vmem>>, vector<512x128xf32>
    %cst = arith.constant dense<0.000000e+00> : vector<8x128xf32>
    %2 = tpu.matmul %0, %1, %cst {dimension_numbers = #tpu.dot_dimension_numbers<[1], [0], [0], [1], [0, 0, 1, 1], [], []>} : vector<8x512xf32>, vector<512x128xf32>, vector<8x128xf32> -> vector<8x128xf32>
    %c0_3 = arith.constant 0 : index
    %c0_4 = arith.constant 0 : index
    %3 = vector.load %arg3[%c0_3, %c0_4] : memref<1x128xf32, #tpu.memory_space<vmem>>, vector<1x128xf32>
    %4 = vector.broadcast %3 : vector<1x128xf32> to vector<8x128xf32>
    %5 = arith.mulf %2, %4 : vector<8x128xf32>
    %c0_5 = arith.constant 0 : index
    %c0_6 = arith.constant 0 : index
    %6 = vector.load %arg4[%c0_5, %c0_6] : memref<1x128xf32, #tpu.memory_space<vmem>>, vector<1x128xf32>
    %7 = vector.broadcast %6 : vector<1x128xf32> to vector<8x128xf32>
    %8 = arith.addf %5, %7 : vector<8x128xf32>
    %cst_7 = arith.constant 5.000000e-01 : f32
    %9 = vector.broadcast %cst_7 : f32 to vector<8x128xf32>
    %10 = arith.mulf %9, %8 : vector<8x128xf32>
    %cst_8 = arith.constant 0.707106769 : f32
    %11 = vector.broadcast %cst_8 : f32 to vector<8x128xf32>
    %12 = arith.mulf %8, %11 : vector<8x128xf32>
    %13 = math.absf %12 : vector<8x128xf32>
    %cst_9 = arith.constant 0.327591091 : f32
    %14 = vector.broadcast %cst_9 : f32 to vector<8x128xf32>
    %15 = arith.mulf %14, %13 : vector<8x128xf32>
    %cst_10 = arith.constant 1.000000e+00 : f32
    %16 = vector.broadcast %cst_10 : f32 to vector<8x128xf32>
    %17 = arith.addf %16, %15 : vector<8x128xf32>
    %cst_11 = arith.constant 1.000000e+00 : f32
    %18 = vector.broadcast %cst_11 : f32 to vector<8x128xf32>
    %19 = arith.divf %18, %17 : vector<8x128xf32>
    %cst_12 = arith.constant 1.06140542 : f32
    %20 = vector.broadcast %cst_12 : f32 to vector<8x128xf32>
    %21 = arith.mulf %20, %19 : vector<8x128xf32>
    %cst_13 = arith.constant -1.45315206 : f32
    %22 = vector.broadcast %cst_13 : f32 to vector<8x128xf32>
    %23 = arith.addf %21, %22 : vector<8x128xf32>
    %24 = arith.mulf %23, %19 : vector<8x128xf32>
    %cst_14 = arith.constant 1.42141378 : f32
    %25 = vector.broadcast %cst_14 : f32 to vector<8x128xf32>
    %26 = arith.addf %24, %25 : vector<8x128xf32>
    %27 = arith.mulf %26, %19 : vector<8x128xf32>
    %cst_15 = arith.constant -0.284496725 : f32
    %28 = vector.broadcast %cst_15 : f32 to vector<8x128xf32>
    %29 = arith.addf %27, %28 : vector<8x128xf32>
    %30 = arith.mulf %29, %19 : vector<8x128xf32>
    %cst_16 = arith.constant 0.254829586 : f32
    %31 = vector.broadcast %cst_16 : f32 to vector<8x128xf32>
    %32 = arith.addf %30, %31 : vector<8x128xf32>
    %33 = arith.mulf %32, %19 : vector<8x128xf32>
    %cst_17 = arith.constant 0.000000e+00 : f32
    %34 = vector.broadcast %cst_17 : f32 to vector<8x128xf32>
    %35 = arith.subf %34, %13 : vector<8x128xf32>
    %36 = arith.mulf %35, %13 : vector<8x128xf32>
    %37 = math.exp %36 : vector<8x128xf32>
    %38 = arith.mulf %33, %37 : vector<8x128xf32>
    %cst_18 = arith.constant 1.000000e+00 : f32
    %39 = vector.broadcast %cst_18 : f32 to vector<8x128xf32>
    %40 = arith.subf %39, %38 : vector<8x128xf32>
    %cst_19 = arith.constant 0.000000e+00 : f32
    %41 = vector.broadcast %cst_19 : f32 to vector<8x128xf32>
    %42 = arith.cmpf olt, %12, %41 : vector<8x128xf32>
    %cst_20 = arith.constant 0.000000e+00 : f32
    %43 = vector.broadcast %cst_20 : f32 to vector<8x128xf32>
    %44 = arith.subf %43, %40 : vector<8x128xf32>
    %45 = arith.select %42, %44, %40 : vector<8x128xi1>, vector<8x128xf32>
    %cst_21 = arith.constant 1.000000e+00 : f32
    %46 = vector.broadcast %cst_21 : f32 to vector<8x128xf32>
    %47 = arith.addf %46, %45 : vector<8x128xf32>
    %48 = arith.mulf %10, %47 : vector<8x128xf32>
    %c0_22 = arith.constant 0 : index
    %c0_23 = arith.constant 0 : index
    %49 = vector.load %arg5[%c0_22, %c0_23] : memref<8x128xf32, #tpu.memory_space<vmem>>, vector<8x128xf32>
    tpu.vector_store %arg5[%c0_22, %c0_23], %48 {strides = array<i32>} : memref<8x128xf32, #tpu.memory_space<vmem>>, vector<8x128xf32>,
    return
  }
  func.func @transform_0(%arg0: i32) -> (i32, i32) {
    %c0_i32 = arith.constant 0 : i32
    %c0_i32_0 = arith.constant 0 : i32
    return %arg0, %c0_i32 : i32, i32
  }
  func.func @transform_1(%arg0: i32) -> (i32, i32) {
    %c0_i32 = arith.constant 0 : i32
    %c0_i32_0 = arith.constant 0 : i32
    %c0_i32_1 = arith.constant 0 : i32
    return %c0_i32, %c0_i32_0 : i32, i32
  }
  func.func @transform_2(%arg0: i32) -> (i32, i32) {
    %c0_i32 = arith.constant 0 : i32
    %c0_i32_0 = arith.constant 0 : i32
    %c0_i32_1 = arith.constant 0 : i32
    return %c0_i32, %c0_i32_0 : i32, i32
  }
  func.func @transform_3(%arg0: i32) -> (i32, i32) {
    %c0_i32 = arith.constant 0 : i32
    %c0_i32_0 = arith.constant 0 : i32
    %c0_i32_1 = arith.constant 0 : i32
    return %c0_i32, %c0_i32_0 : i32, i32
  }
  func.func @transform_4(%arg0: i32) -> (i32, i32) {
    %c0_i32 = arith.constant 0 : i32
    %c0_i32_0 = arith.constant 0 : i32
    return %arg0, %c0_i32 : i32, i32
  }
}

module attributes {stable_mosaic.version = 11 : i64} {
  func.func @_fused_mm_kernel(%arg0: i32, %arg1: memref<8x128xf32, #tpu.memory_space<vmem>>, %arg2: memref<128x256xf32, #tpu.memory_space<vmem>>, %arg3: memref<1x256xf32, #tpu.memory_space<vmem>>, %arg4: memref<1x256xf32, #tpu.memory_space<vmem>>, %arg5: memref<8x256xf32, #tpu.memory_space<vmem>>) attributes {dimension_semantics = [#tpu.dimension_semantics<parallel>], iteration_bounds = array<i64: 1>, scalar_prefetch = 0 : i64, scratch_operands = 0 : i64, tpu.core_type = #tpu.core_type<tc>, window_params = [{transform_indices = @transform_0, window_bounds = array<i64: 8, 128>}, {pipeline_mode = #tpu.pipeline_mode<synchronous>, transform_indices = @transform_1, window_bounds = array<i64: 128, 256>}, {pipeline_mode = #tpu.pipeline_mode<synchronous>, transform_indices = @transform_2, window_bounds = array<i64: 1, 256>}, {pipeline_mode = #tpu.pipeline_mode<synchronous>, transform_indices = @transform_3, window_bounds = array<i64: 1, 256>}, {transform_indices = @transform_4, window_bounds = array<i64: 8, 256>}]} {
    %c0 = arith.constant 0 : index
    %c0_0 = arith.constant 0 : index
    %0 = vector.load %arg1[%c0, %c0_0] : memref<8x128xf32, #tpu.memory_space<vmem>>, vector<8x128xf32>
    %c0_1 = arith.constant 0 : index
    %c0_2 = arith.constant 0 : index
    %1 = vector.load %arg2[%c0_1, %c0_2] : memref<128x256xf32, #tpu.memory_space<vmem>>, vector<128x256xf32>
    %cst = arith.constant dense<0.000000e+00> : vector<8x256xf32>
    %2 = tpu.matmul %0, %1, %cst {dimension_numbers = #tpu.dot_dimension_numbers<[1], [0], [0], [1], [0, 0, 1, 1], [], []>} : vector<8x128xf32>, vector<128x256xf32>, vector<8x256xf32> -> vector<8x256xf32>
    %c0_3 = arith.constant 0 : index
    %c0_4 = arith.constant 0 : index
    %3 = vector.load %arg3[%c0_3, %c0_4] : memref<1x256xf32, #tpu.memory_space<vmem>>, vector<1x256xf32>
    %4 = vector.broadcast %3 : vector<1x256xf32> to vector<8x256xf32>
    %5 = arith.mulf %2, %4 : vector<8x256xf32>
    %c0_5 = arith.constant 0 : index
    %c0_6 = arith.constant 0 : index
    %6 = vector.load %arg4[%c0_5, %c0_6] : memref<1x256xf32, #tpu.memory_space<vmem>>, vector<1x256xf32>
    %7 = vector.broadcast %6 : vector<1x256xf32> to vector<8x256xf32>
    %8 = arith.addf %5, %7 : vector<8x256xf32>
    %cst_7 = arith.constant 5.000000e-01 : f32
    %9 = vector.broadcast %cst_7 : f32 to vector<8x256xf32>
    %10 = arith.mulf %9, %8 : vector<8x256xf32>
    %cst_8 = arith.constant 0.707106769 : f32
    %11 = vector.broadcast %cst_8 : f32 to vector<8x256xf32>
    %12 = arith.mulf %8, %11 : vector<8x256xf32>
    %13 = math.absf %12 : vector<8x256xf32>
    %cst_9 = arith.constant 0.327591091 : f32
    %14 = vector.broadcast %cst_9 : f32 to vector<8x256xf32>
    %15 = arith.mulf %14, %13 : vector<8x256xf32>
    %cst_10 = arith.constant 1.000000e+00 : f32
    %16 = vector.broadcast %cst_10 : f32 to vector<8x256xf32>
    %17 = arith.addf %16, %15 : vector<8x256xf32>
    %cst_11 = arith.constant 1.000000e+00 : f32
    %18 = vector.broadcast %cst_11 : f32 to vector<8x256xf32>
    %19 = arith.divf %18, %17 : vector<8x256xf32>
    %cst_12 = arith.constant 1.06140542 : f32
    %20 = vector.broadcast %cst_12 : f32 to vector<8x256xf32>
    %21 = arith.mulf %20, %19 : vector<8x256xf32>
    %cst_13 = arith.constant -1.45315206 : f32
    %22 = vector.broadcast %cst_13 : f32 to vector<8x256xf32>
    %23 = arith.addf %21, %22 : vector<8x256xf32>
    %24 = arith.mulf %23, %19 : vector<8x256xf32>
    %cst_14 = arith.constant 1.42141378 : f32
    %25 = vector.broadcast %cst_14 : f32 to vector<8x256xf32>
    %26 = arith.addf %24, %25 : vector<8x256xf32>
    %27 = arith.mulf %26, %19 : vector<8x256xf32>
    %cst_15 = arith.constant -0.284496725 : f32
    %28 = vector.broadcast %cst_15 : f32 to vector<8x256xf32>
    %29 = arith.addf %27, %28 : vector<8x256xf32>
    %30 = arith.mulf %29, %19 : vector<8x256xf32>
    %cst_16 = arith.constant 0.254829586 : f32
    %31 = vector.broadcast %cst_16 : f32 to vector<8x256xf32>
    %32 = arith.addf %30, %31 : vector<8x256xf32>
    %33 = arith.mulf %32, %19 : vector<8x256xf32>
    %cst_17 = arith.constant 0.000000e+00 : f32
    %34 = vector.broadcast %cst_17 : f32 to vector<8x256xf32>
    %35 = arith.subf %34, %13 : vector<8x256xf32>
    %36 = arith.mulf %35, %13 : vector<8x256xf32>
    %37 = math.exp %36 : vector<8x256xf32>
    %38 = arith.mulf %33, %37 : vector<8x256xf32>
    %cst_18 = arith.constant 1.000000e+00 : f32
    %39 = vector.broadcast %cst_18 : f32 to vector<8x256xf32>
    %40 = arith.subf %39, %38 : vector<8x256xf32>
    %cst_19 = arith.constant 0.000000e+00 : f32
    %41 = vector.broadcast %cst_19 : f32 to vector<8x256xf32>
    %42 = arith.cmpf olt, %12, %41 : vector<8x256xf32>
    %cst_20 = arith.constant 0.000000e+00 : f32
    %43 = vector.broadcast %cst_20 : f32 to vector<8x256xf32>
    %44 = arith.subf %43, %40 : vector<8x256xf32>
    %45 = arith.select %42, %44, %40 : vector<8x256xi1>, vector<8x256xf32>
    %cst_21 = arith.constant 1.000000e+00 : f32
    %46 = vector.broadcast %cst_21 : f32 to vector<8x256xf32>
    %47 = arith.addf %46, %45 : vector<8x256xf32>
    %48 = arith.mulf %10, %47 : vector<8x256xf32>
    %c0_22 = arith.constant 0 : index
    %c0_23 = arith.constant 0 : index
    %49 = vector.load %arg5[%c0_22, %c0_23] : memref<8x256xf32, #tpu.memory_space<vmem>>, vector<8x256xf32>
    tpu.vector_store %arg5[%c0_22, %c0_23], %48 {strides = array<i32>} : memref<8x256xf32, #tpu.memory_space<vmem>>, vector<8x256xf32>,
    return
  }
  func.func @transform_0(%arg0: i32) -> (i32, i32) {
    %c0_i32 = arith.constant 0 : i32
    %c0_i32_0 = arith.constant 0 : i32
    return %arg0, %c0_i32 : i32, i32
  }
  func.func @transform_1(%arg0: i32) -> (i32, i32) {
    %c0_i32 = arith.constant 0 : i32
    %c0_i32_0 = arith.constant 0 : i32
    %c0_i32_1 = arith.constant 0 : i32
    return %c0_i32, %c0_i32_0 : i32, i32
  }
  func.func @transform_2(%arg0: i32) -> (i32, i32) {
    %c0_i32 = arith.constant 0 : i32
    %c0_i32_0 = arith.constant 0 : i32
    %c0_i32_1 = arith.constant 0 : i32
    return %c0_i32, %c0_i32_0 : i32, i32
  }
  func.func @transform_3(%arg0: i32) -> (i32, i32) {
    %c0_i32 = arith.constant 0 : i32
    %c0_i32_0 = arith.constant 0 : i32
    %c0_i32_1 = arith.constant 0 : i32
    return %c0_i32, %c0_i32_0 : i32, i32
  }
  func.func @transform_4(%arg0: i32) -> (i32, i32) {
    %c0_i32 = arith.constant 0 : i32
    %c0_i32_0 = arith.constant 0 : i32
    return %arg0, %c0_i32 : i32, i32
  }
}

module attributes {stable_mosaic.version = 11 : i64} {
  func.func @_fused_mm_kernel(%arg0: i32, %arg1: memref<8x128xf32, #tpu.memory_space<vmem>>, %arg2: memref<128x128xf32, #tpu.memory_space<vmem>>, %arg3: memref<1x128xf32, #tpu.memory_space<vmem>>, %arg4: memref<1x128xf32, #tpu.memory_space<vmem>>, %arg5: memref<8x128xf32, #tpu.memory_space<vmem>>) attributes {dimension_semantics = [#tpu.dimension_semantics<parallel>], iteration_bounds = array<i64: 1>, scalar_prefetch = 0 : i64, scratch_operands = 0 : i64, tpu.core_type = #tpu.core_type<tc>, window_params = [{transform_indices = @transform_0, window_bounds = array<i64: 8, 128>}, {pipeline_mode = #tpu.pipeline_mode<synchronous>, transform_indices = @transform_1, window_bounds = array<i64: 128, 128>}, {pipeline_mode = #tpu.pipeline_mode<synchronous>, transform_indices = @transform_2, window_bounds = array<i64: 1, 128>}, {pipeline_mode = #tpu.pipeline_mode<synchronous>, transform_indices = @transform_3, window_bounds = array<i64: 1, 128>}, {transform_indices = @transform_4, window_bounds = array<i64: 8, 128>}]} {
    %c0 = arith.constant 0 : index
    %c0_0 = arith.constant 0 : index
    %0 = vector.load %arg1[%c0, %c0_0] : memref<8x128xf32, #tpu.memory_space<vmem>>, vector<8x128xf32>
    %c0_1 = arith.constant 0 : index
    %c0_2 = arith.constant 0 : index
    %1 = vector.load %arg2[%c0_1, %c0_2] : memref<128x128xf32, #tpu.memory_space<vmem>>, vector<128x128xf32>
    %cst = arith.constant dense<0.000000e+00> : vector<8x128xf32>
    %2 = tpu.matmul %0, %1, %cst {dimension_numbers = #tpu.dot_dimension_numbers<[1], [0], [0], [1], [0, 0, 1, 1], [], []>} : vector<8x128xf32>, vector<128x128xf32>, vector<8x128xf32> -> vector<8x128xf32>
    %c0_3 = arith.constant 0 : index
    %c0_4 = arith.constant 0 : index
    %3 = vector.load %arg3[%c0_3, %c0_4] : memref<1x128xf32, #tpu.memory_space<vmem>>, vector<1x128xf32>
    %4 = vector.broadcast %3 : vector<1x128xf32> to vector<8x128xf32>
    %5 = arith.mulf %2, %4 : vector<8x128xf32>
    %c0_5 = arith.constant 0 : index
    %c0_6 = arith.constant 0 : index
    %6 = vector.load %arg4[%c0_5, %c0_6] : memref<1x128xf32, #tpu.memory_space<vmem>>, vector<1x128xf32>
    %7 = vector.broadcast %6 : vector<1x128xf32> to vector<8x128xf32>
    %8 = arith.addf %5, %7 : vector<8x128xf32>
    %cst_7 = arith.constant 5.000000e-01 : f32
    %9 = vector.broadcast %cst_7 : f32 to vector<8x128xf32>
    %10 = arith.mulf %9, %8 : vector<8x128xf32>
    %cst_8 = arith.constant 0.707106769 : f32
    %11 = vector.broadcast %cst_8 : f32 to vector<8x128xf32>
    %12 = arith.mulf %8, %11 : vector<8x128xf32>
    %13 = math.absf %12 : vector<8x128xf32>
    %cst_9 = arith.constant 0.327591091 : f32
    %14 = vector.broadcast %cst_9 : f32 to vector<8x128xf32>
    %15 = arith.mulf %14, %13 : vector<8x128xf32>
    %cst_10 = arith.constant 1.000000e+00 : f32
    %16 = vector.broadcast %cst_10 : f32 to vector<8x128xf32>
    %17 = arith.addf %16, %15 : vector<8x128xf32>
    %cst_11 = arith.constant 1.000000e+00 : f32
    %18 = vector.broadcast %cst_11 : f32 to vector<8x128xf32>
    %19 = arith.divf %18, %17 : vector<8x128xf32>
    %cst_12 = arith.constant 1.06140542 : f32
    %20 = vector.broadcast %cst_12 : f32 to vector<8x128xf32>
    %21 = arith.mulf %20, %19 : vector<8x128xf32>
    %cst_13 = arith.constant -1.45315206 : f32
    %22 = vector.broadcast %cst_13 : f32 to vector<8x128xf32>
    %23 = arith.addf %21, %22 : vector<8x128xf32>
    %24 = arith.mulf %23, %19 : vector<8x128xf32>
    %cst_14 = arith.constant 1.42141378 : f32
    %25 = vector.broadcast %cst_14 : f32 to vector<8x128xf32>
    %26 = arith.addf %24, %25 : vector<8x128xf32>
    %27 = arith.mulf %26, %19 : vector<8x128xf32>
    %cst_15 = arith.constant -0.284496725 : f32
    %28 = vector.broadcast %cst_15 : f32 to vector<8x128xf32>
    %29 = arith.addf %27, %28 : vector<8x128xf32>
    %30 = arith.mulf %29, %19 : vector<8x128xf32>
    %cst_16 = arith.constant 0.254829586 : f32
    %31 = vector.broadcast %cst_16 : f32 to vector<8x128xf32>
    %32 = arith.addf %30, %31 : vector<8x128xf32>
    %33 = arith.mulf %32, %19 : vector<8x128xf32>
    %cst_17 = arith.constant 0.000000e+00 : f32
    %34 = vector.broadcast %cst_17 : f32 to vector<8x128xf32>
    %35 = arith.subf %34, %13 : vector<8x128xf32>
    %36 = arith.mulf %35, %13 : vector<8x128xf32>
    %37 = math.exp %36 : vector<8x128xf32>
    %38 = arith.mulf %33, %37 : vector<8x128xf32>
    %cst_18 = arith.constant 1.000000e+00 : f32
    %39 = vector.broadcast %cst_18 : f32 to vector<8x128xf32>
    %40 = arith.subf %39, %38 : vector<8x128xf32>
    %cst_19 = arith.constant 0.000000e+00 : f32
    %41 = vector.broadcast %cst_19 : f32 to vector<8x128xf32>
    %42 = arith.cmpf olt, %12, %41 : vector<8x128xf32>
    %cst_20 = arith.constant 0.000000e+00 : f32
    %43 = vector.broadcast %cst_20 : f32 to vector<8x128xf32>
    %44 = arith.subf %43, %40 : vector<8x128xf32>
    %45 = arith.select %42, %44, %40 : vector<8x128xi1>, vector<8x128xf32>
    %cst_21 = arith.constant 1.000000e+00 : f32
    %46 = vector.broadcast %cst_21 : f32 to vector<8x128xf32>
    %47 = arith.addf %46, %45 : vector<8x128xf32>
    %48 = arith.mulf %10, %47 : vector<8x128xf32>
    %c0_22 = arith.constant 0 : index
    %c0_23 = arith.constant 0 : index
    %49 = vector.load %arg5[%c0_22, %c0_23] : memref<8x128xf32, #tpu.memory_space<vmem>>, vector<8x128xf32>
    tpu.vector_store %arg5[%c0_22, %c0_23], %48 {strides = array<i32>} : memref<8x128xf32, #tpu.memory_space<vmem>>, vector<8x128xf32>,
    return
  }
  func.func @transform_0(%arg0: i32) -> (i32, i32) {
    %c0_i32 = arith.constant 0 : i32
    %c0_i32_0 = arith.constant 0 : i32
    return %arg0, %c0_i32 : i32, i32
  }
  func.func @transform_1(%arg0: i32) -> (i32, i32) {
    %c0_i32 = arith.constant 0 : i32
    %c0_i32_0 = arith.constant 0 : i32
    %c0_i32_1 = arith.constant 0 : i32
    return %c0_i32, %c0_i32_0 : i32, i32
  }
  func.func @transform_2(%arg0: i32) -> (i32, i32) {
    %c0_i32 = arith.constant 0 : i32
    %c0_i32_0 = arith.constant 0 : i32
    %c0_i32_1 = arith.constant 0 : i32
    return %c0_i32, %c0_i32_0 : i32, i32
  }
  func.func @transform_3(%arg0: i32) -> (i32, i32) {
    %c0_i32 = arith.constant 0 : i32
    %c0_i32_0 = arith.constant 0 : i32
    %c0_i32_1 = arith.constant 0 : i32
    return %c0_i32, %c0_i32_0 : i32, i32
  }
  func.func @transform_4(%arg0: i32) -> (i32, i32) {
    %c0_i32 = arith.constant 0 : i32
    %c0_i32_0 = arith.constant 0 : i32
    return %arg0, %c0_i32 : i32, i32
  }
}

module attributes {stable_mosaic.version = 11 : i64} {
  func.func @_fused_mm_kernel(%arg0: i32, %arg1: memref<32x128xf32, #tpu.memory_space<vmem>>, %arg2: memref<128x128xf32, #tpu.memory_space<vmem>>, %arg3: memref<1x128xf32, #tpu.memory_space<vmem>>, %arg4: memref<1x128xf32, #tpu.memory_space<vmem>>, %arg5: memref<32x128xf32, #tpu.memory_space<vmem>>) attributes {dimension_semantics = [#tpu.dimension_semantics<parallel>], iteration_bounds = array<i64: 1>, scalar_prefetch = 0 : i64, scratch_operands = 0 : i64, tpu.core_type = #tpu.core_type<tc>, window_params = [{transform_indices = @transform_0, window_bounds = array<i64: 32, 128>}, {pipeline_mode = #tpu.pipeline_mode<synchronous>, transform_indices = @transform_1, window_bounds = array<i64: 128, 128>}, {pipeline_mode = #tpu.pipeline_mode<synchronous>, transform_indices = @transform_2, window_bounds = array<i64: 1, 128>}, {pipeline_mode = #tpu.pipeline_mode<synchronous>, transform_indices = @transform_3, window_bounds = array<i64: 1, 128>}, {transform_indices = @transform_4, window_bounds = array<i64: 32, 128>}]} {
    %c0 = arith.constant 0 : index
    %c0_0 = arith.constant 0 : index
    %0 = vector.load %arg1[%c0, %c0_0] : memref<32x128xf32, #tpu.memory_space<vmem>>, vector<32x128xf32>
    %c0_1 = arith.constant 0 : index
    %c0_2 = arith.constant 0 : index
    %1 = vector.load %arg2[%c0_1, %c0_2] : memref<128x128xf32, #tpu.memory_space<vmem>>, vector<128x128xf32>
    %cst = arith.constant dense<0.000000e+00> : vector<32x128xf32>
    %2 = tpu.matmul %0, %1, %cst {dimension_numbers = #tpu.dot_dimension_numbers<[1], [0], [0], [1], [0, 0, 1, 1], [], []>} : vector<32x128xf32>, vector<128x128xf32>, vector<32x128xf32> -> vector<32x128xf32>
    %c0_3 = arith.constant 0 : index
    %c0_4 = arith.constant 0 : index
    %3 = vector.load %arg3[%c0_3, %c0_4] : memref<1x128xf32, #tpu.memory_space<vmem>>, vector<1x128xf32>
    %4 = vector.broadcast %3 : vector<1x128xf32> to vector<32x128xf32>
    %5 = arith.mulf %2, %4 : vector<32x128xf32>
    %c0_5 = arith.constant 0 : index
    %c0_6 = arith.constant 0 : index
    %6 = vector.load %arg4[%c0_5, %c0_6] : memref<1x128xf32, #tpu.memory_space<vmem>>, vector<1x128xf32>
    %7 = vector.broadcast %6 : vector<1x128xf32> to vector<32x128xf32>
    %8 = arith.addf %5, %7 : vector<32x128xf32>
    %cst_7 = arith.constant 5.000000e-01 : f32
    %9 = vector.broadcast %cst_7 : f32 to vector<32x128xf32>
    %10 = arith.mulf %9, %8 : vector<32x128xf32>
    %cst_8 = arith.constant 0.707106769 : f32
    %11 = vector.broadcast %cst_8 : f32 to vector<32x128xf32>
    %12 = arith.mulf %8, %11 : vector<32x128xf32>
    %13 = math.absf %12 : vector<32x128xf32>
    %cst_9 = arith.constant 0.327591091 : f32
    %14 = vector.broadcast %cst_9 : f32 to vector<32x128xf32>
    %15 = arith.mulf %14, %13 : vector<32x128xf32>
    %cst_10 = arith.constant 1.000000e+00 : f32
    %16 = vector.broadcast %cst_10 : f32 to vector<32x128xf32>
    %17 = arith.addf %16, %15 : vector<32x128xf32>
    %cst_11 = arith.constant 1.000000e+00 : f32
    %18 = vector.broadcast %cst_11 : f32 to vector<32x128xf32>
    %19 = arith.divf %18, %17 : vector<32x128xf32>
    %cst_12 = arith.constant 1.06140542 : f32
    %20 = vector.broadcast %cst_12 : f32 to vector<32x128xf32>
    %21 = arith.mulf %20, %19 : vector<32x128xf32>
    %cst_13 = arith.constant -1.45315206 : f32
    %22 = vector.broadcast %cst_13 : f32 to vector<32x128xf32>
    %23 = arith.addf %21, %22 : vector<32x128xf32>
    %24 = arith.mulf %23, %19 : vector<32x128xf32>
    %cst_14 = arith.constant 1.42141378 : f32
    %25 = vector.broadcast %cst_14 : f32 to vector<32x128xf32>
    %26 = arith.addf %24, %25 : vector<32x128xf32>
    %27 = arith.mulf %26, %19 : vector<32x128xf32>
    %cst_15 = arith.constant -0.284496725 : f32
    %28 = vector.broadcast %cst_15 : f32 to vector<32x128xf32>
    %29 = arith.addf %27, %28 : vector<32x128xf32>
    %30 = arith.mulf %29, %19 : vector<32x128xf32>
    %cst_16 = arith.constant 0.254829586 : f32
    %31 = vector.broadcast %cst_16 : f32 to vector<32x128xf32>
    %32 = arith.addf %30, %31 : vector<32x128xf32>
    %33 = arith.mulf %32, %19 : vector<32x128xf32>
    %cst_17 = arith.constant 0.000000e+00 : f32
    %34 = vector.broadcast %cst_17 : f32 to vector<32x128xf32>
    %35 = arith.subf %34, %13 : vector<32x128xf32>
    %36 = arith.mulf %35, %13 : vector<32x128xf32>
    %37 = math.exp %36 : vector<32x128xf32>
    %38 = arith.mulf %33, %37 : vector<32x128xf32>
    %cst_18 = arith.constant 1.000000e+00 : f32
    %39 = vector.broadcast %cst_18 : f32 to vector<32x128xf32>
    %40 = arith.subf %39, %38 : vector<32x128xf32>
    %cst_19 = arith.constant 0.000000e+00 : f32
    %41 = vector.broadcast %cst_19 : f32 to vector<32x128xf32>
    %42 = arith.cmpf olt, %12, %41 : vector<32x128xf32>
    %cst_20 = arith.constant 0.000000e+00 : f32
    %43 = vector.broadcast %cst_20 : f32 to vector<32x128xf32>
    %44 = arith.subf %43, %40 : vector<32x128xf32>
    %45 = arith.select %42, %44, %40 : vector<32x128xi1>, vector<32x128xf32>
    %cst_21 = arith.constant 1.000000e+00 : f32
    %46 = vector.broadcast %cst_21 : f32 to vector<32x128xf32>
    %47 = arith.addf %46, %45 : vector<32x128xf32>
    %48 = arith.mulf %10, %47 : vector<32x128xf32>
    %c0_22 = arith.constant 0 : index
    %c0_23 = arith.constant 0 : index
    %49 = vector.load %arg5[%c0_22, %c0_23] : memref<32x128xf32, #tpu.memory_space<vmem>>, vector<32x128xf32>
    tpu.vector_store %arg5[%c0_22, %c0_23], %48 {strides = array<i32>} : memref<32x128xf32, #tpu.memory_space<vmem>>, vector<32x128xf32>,
    return
  }
  func.func @transform_0(%arg0: i32) -> (i32, i32) {
    %c0_i32 = arith.constant 0 : i32
    %c0_i32_0 = arith.constant 0 : i32
    return %arg0, %c0_i32 : i32, i32
  }
  func.func @transform_1(%arg0: i32) -> (i32, i32) {
    %c0_i32 = arith.constant 0 : i32
    %c0_i32_0 = arith.constant 0 : i32
    %c0_i32_1 = arith.constant 0 : i32
    return %c0_i32, %c0_i32_0 : i32, i32
  }
  func.func @transform_2(%arg0: i32) -> (i32, i32) {
    %c0_i32 = arith.constant 0 : i32
    %c0_i32_0 = arith.constant 0 : i32
    %c0_i32_1 = arith.constant 0 : i32
    return %c0_i32, %c0_i32_0 : i32, i32
  }
  func.func @transform_3(%arg0: i32) -> (i32, i32) {
    %c0_i32 = arith.constant 0 : i32
    %c0_i32_0 = arith.constant 0 : i32
    %c0_i32_1 = arith.constant 0 : i32
    return %c0_i32, %c0_i32_0 : i32, i32
  }
  func.func @transform_4(%arg0: i32) -> (i32, i32) {
    %c0_i32 = arith.constant 0 : i32
    %c0_i32_0 = arith.constant 0 : i32
    return %arg0, %c0_i32 : i32, i32
  }
}

module attributes {stable_mosaic.version = 11 : i64} {
  func.func @_fused_mm_kernel(%arg0: i32, %arg1: memref<512x128xf32, #tpu.memory_space<vmem>>, %arg2: memref<128x128xf32, #tpu.memory_space<vmem>>, %arg3: memref<1x128xf32, #tpu.memory_space<vmem>>, %arg4: memref<1x128xf32, #tpu.memory_space<vmem>>, %arg5: memref<512x128xf32, #tpu.memory_space<vmem>>) attributes {dimension_semantics = [#tpu.dimension_semantics<parallel>], iteration_bounds = array<i64: 1>, scalar_prefetch = 0 : i64, scratch_operands = 0 : i64, tpu.core_type = #tpu.core_type<tc>, window_params = [{transform_indices = @transform_0, window_bounds = array<i64: 512, 128>}, {pipeline_mode = #tpu.pipeline_mode<synchronous>, transform_indices = @transform_1, window_bounds = array<i64: 128, 128>}, {pipeline_mode = #tpu.pipeline_mode<synchronous>, transform_indices = @transform_2, window_bounds = array<i64: 1, 128>}, {pipeline_mode = #tpu.pipeline_mode<synchronous>, transform_indices = @transform_3, window_bounds = array<i64: 1, 128>}, {transform_indices = @transform_4, window_bounds = array<i64: 512, 128>}]} {
    %c0 = arith.constant 0 : index
    %c0_0 = arith.constant 0 : index
    %0 = vector.load %arg1[%c0, %c0_0] : memref<512x128xf32, #tpu.memory_space<vmem>>, vector<512x128xf32>
    %c0_1 = arith.constant 0 : index
    %c0_2 = arith.constant 0 : index
    %1 = vector.load %arg2[%c0_1, %c0_2] : memref<128x128xf32, #tpu.memory_space<vmem>>, vector<128x128xf32>
    %cst = arith.constant dense<0.000000e+00> : vector<512x128xf32>
    %2 = tpu.matmul %0, %1, %cst {dimension_numbers = #tpu.dot_dimension_numbers<[1], [0], [0], [1], [0, 0, 1, 1], [], []>} : vector<512x128xf32>, vector<128x128xf32>, vector<512x128xf32> -> vector<512x128xf32>
    %c0_3 = arith.constant 0 : index
    %c0_4 = arith.constant 0 : index
    %3 = vector.load %arg3[%c0_3, %c0_4] : memref<1x128xf32, #tpu.memory_space<vmem>>, vector<1x128xf32>
    %4 = vector.broadcast %3 : vector<1x128xf32> to vector<512x128xf32>
    %5 = arith.mulf %2, %4 : vector<512x128xf32>
    %c0_5 = arith.constant 0 : index
    %c0_6 = arith.constant 0 : index
    %6 = vector.load %arg4[%c0_5, %c0_6] : memref<1x128xf32, #tpu.memory_space<vmem>>, vector<1x128xf32>
    %7 = vector.broadcast %6 : vector<1x128xf32> to vector<512x128xf32>
    %8 = arith.addf %5, %7 : vector<512x128xf32>
    %c0_7 = arith.constant 0 : index
    %c0_8 = arith.constant 0 : index
    %9 = vector.load %arg5[%c0_7, %c0_8] : memref<512x128xf32, #tpu.memory_space<vmem>>, vector<512x128xf32>
    tpu.vector_store %arg5[%c0_7, %c0_8], %8 {strides = array<i32>} : memref<512x128xf32, #tpu.memory_space<vmem>>, vector<512x128xf32>,
    return
  }
  func.func @transform_0(%arg0: i32) -> (i32, i32) {
    %c0_i32 = arith.constant 0 : i32
    %c0_i32_0 = arith.constant 0 : i32
    return %arg0, %c0_i32 : i32, i32
  }
  func.func @transform_1(%arg0: i32) -> (i32, i32) {
    %c0_i32 = arith.constant 0 : i32
    %c0_i32_0 = arith.constant 0 : i32
    %c0_i32_1 = arith.constant 0 : i32
    return %c0_i32, %c0_i32_0 : i32, i32
  }
  func.func @transform_2(%arg0: i32) -> (i32, i32) {
    %c0_i32 = arith.constant 0 : i32
    %c0_i32_0 = arith.constant 0 : i32
    %c0_i32_1 = arith.constant 0 : i32
    return %c0_i32, %c0_i32_0 : i32, i32
  }
  func.func @transform_3(%arg0: i32) -> (i32, i32) {
    %c0_i32 = arith.constant 0 : i32
    %c0_i32_0 = arith.constant 0 : i32
    %c0_i32_1 = arith.constant 0 : i32
    return %c0_i32, %c0_i32_0 : i32, i32
  }
  func.func @transform_4(%arg0: i32) -> (i32, i32) {
    %c0_i32 = arith.constant 0 : i32
    %c0_i32_0 = arith.constant 0 : i32
    return %arg0, %c0_i32 : i32, i32
  }
}

</mosaic_0001>

<llo_original>
// kernel: coordinator_forward.15
$region0: #{coordinator_forward.15}
  #allocation0 [shape = 'u32[]', space=smem, size = 0x4, offset = 0x4, fixed_abs, tag = 'smem constant byte address 0x4 - core index']
  #allocation1 [shape = 'u32[144,128]{1,0:T(1,128)}', space=vmem, size = 0x12000, scoped, tag = 'internal scratch']
  %s0 = inlined_call_operand.vmem [shape: f32[2048,128], index: 0, kind: input, shape index: {}]
  %s1 = inlined_call_operand.vmem [shape: f32[128,128], index: 1, kind: input, shape index: {}]
  %s2 = inlined_call_operand.vmem [shape: f32[1,128], index: 2, kind: input, shape index: {}]
  %s3 = inlined_call_operand.vmem [shape: f32[1,128], index: 3, kind: input, shape index: {}]
  %s4 = inlined_call_operand.vmem [shape: f32[2048,128], index: 4, kind: output, shape index: {}]
  %s5 = sld [smem:[#allocation0]]
  $region49: #{coordinator_forward.15} parent=0
    _
  %s7 = ssub.s32 1, %s5
  %s8 = scalar_select 0, %s7, %s5
  loop: start=0, step=1, limit=10
  $region2: #{coordinator_forward.15} parent=0 // loop_pre_header
    _
  $region3: #{coordinator_forward.15} parent=0 // loop_header
    %s10 = sphi 0, %s14
    %p11 = scmp.ge.s32.totalorder %s10, 10
    %s20 = sphi 0, %s22
    %s23 = sphi 0, %s20
    %s24 = sphi 0, %s23
    %s40 = sphi 0, %s24
    %s44 = sphi 0, %s44
    %s46 = sphi 0, %s44
    %s47 = sphi 0, %s46
    %s61 = sphi 0, %s47
    %s65 = sphi 0, %s65
    %s67 = sphi 0, %s65
    %s68 = sphi 0, %s67
    %s82 = sphi 0, %s68
    %s86 = sphi 0, %s86
    %s88 = sphi 0, %s86
    %s89 = sphi 0, %s88
    %s103 = sphi 0, %s89
    %s109 = sphi 0, %s111
    %s112 = sphi 0, %s109
    %s113 = sphi 0, %s112
    %s129 = sphi 0, %s113
  $region4: #{coordinator_forward.15} parent=0 // loop_header_branch
    %13 = sbr.rel (%p11) target = $region8
  $region5: #{coordinator_forward.15} parent=0 // loop_body
    %s15 = ssub.s32 %s10, 1
    %s16 = ssub.s32 %s10, 2
    %s17 = sadd.s32 %s10, 1
    %s18 = ssub.s32 %s10, %s17
    %p19 = scmp.eq.s32.totalorder %s18, 0
    %s21 = sadd.s32 %s20, 1
    %s22 = scalar_select %p19, %s20, %s21
    %p25 = pneg %p19
    %p26 = scmp.eq.s32.totalorder %s10, 7
    %p27 = por %p25, %p26
    %p28 = scmp.ne.s32.totalorder %s20, %s23
    %p29 = scmp.eq.s32.totalorder %s10, 0
    %p30 = por %p28, %p29
    %p31 = scmp.ne.s32.totalorder %s20, %s23
    %p32 = scmp.eq.s32.totalorder %s15, 7
    %p33 = por %p31, %p32
    %p34 = scmp.ne.s32.totalorder %s23, %s24
    %p35 = scmp.eq.s32.totalorder %s15, 0
    %p36 = por %p34, %p35
    %p37 = scmp.ne.s32.totalorder %s23, %s24
    %p38 = scmp.eq.s32.totalorder %s16, 7
    %p39 = por %p37, %p38
    %p41 = scmp.ne.s32.totalorder %s24, %s40
    %p42 = scmp.eq.s32.totalorder %s16, 0
    %p43 = por %p41, %p42
    %s45 = sadd.s32 %s44, 1
    %p48 = scmp.eq.s32.totalorder %s10, 7
    %p49 = scmp.ne.s32.totalorder %s44, %s46
    %p50 = scmp.eq.s32.totalorder %s10, 0
    %p51 = por %p49, %p50
    %p52 = scmp.ne.s32.totalorder %s44, %s46
    %p53 = scmp.eq.s32.totalorder %s15, 7
    %p54 = por %p52, %p53
    %p55 = scmp.ne.s32.totalorder %s46, %s47
    %p56 = scmp.eq.s32.totalorder %s15, 0
    %p57 = por %p55, %p56
    %p58 = scmp.ne.s32.totalorder %s46, %s47
    %p59 = scmp.eq.s32.totalorder %s16, 7
    %p60 = por %p58, %p59
    %p62 = scmp.ne.s32.totalorder %s47, %s61
    %p63 = scmp.eq.s32.totalorder %s16, 0
    %p64 = por %p62, %p63
    %s66 = sadd.s32 %s65, 1
    %p69 = scmp.eq.s32.totalorder %s10, 7
    %p70 = scmp.ne.s32.totalorder %s65, %s67
    %p71 = scmp.eq.s32.totalorder %s10, 0
    %p72 = por %p70, %p71
    %p73 = scmp.ne.s32.totalorder %s65, %s67
    %p74 = scmp.eq.s32.totalorder %s15, 7
    %p75 = por %p73, %p74
    %p76 = scmp.ne.s32.totalorder %s67, %s68
    %p77 = scmp.eq.s32.totalorder %s15, 0
    %p78 = por %p76, %p77
    %p79 = scmp.ne.s32.totalorder %s67, %s68
    %p80 = scmp.eq.s32.totalorder %s16, 7
    %p81 = por %p79, %p80
    %p83 = scmp.ne.s32.totalorder %s68, %s82
    %p84 = scmp.eq.s32.totalorder %s16, 0
    %p85 = por %p83, %p84
    %s87 = sadd.s32 %s86, 1
    %p90 = scmp.eq.s32.totalorder %s10, 7
    %p91 = scmp.ne.s32.totalorder %s86, %s88
    %p92 = scmp.eq.s32.totalorder %s10, 0
    %p93 = por %p91, %p92
    %p94 = scmp.ne.s32.totalorder %s86, %s88
    %p95 = scmp.eq.s32.totalorder %s15, 7
    %p96 = por %p94, %p95
    %p97 = scmp.ne.s32.totalorder %s88, %s89
    %p98 = scmp.eq.s32.totalorder %s15, 0
    %p99 = por %p97, %p98
    %p100 = scmp.ne.s32.totalorder %s88, %s89
    %p101 = scmp.eq.s32.totalorder %s16, 7
    %p102 = por %p100, %p101
    %p104 = scmp.ne.s32.totalorder %s89, %s103
    %p105 = scmp.eq.s32.totalorder %s16, 0
    %p106 = por %p104, %p105
    %s107 = ssub.s32 %s10, %s17
    %p108 = scmp.eq.s32.totalorder %s107, 0
    %s110 = sadd.s32 %s109, 1
    %s111 = scalar_select %p108, %s109, %s110
    %p114 = pneg %p108
    %p115 = scmp.eq.s32.totalorder %s10, 7
    %p116 = por %p114, %p115
    %p117 = scmp.ne.s32.totalorder %s109, %s112
    %p118 = scmp.eq.s32.totalorder %s10, 0
    %p119 = por %p117, %p118
    %p120 = scmp.ne.s32.totalorder %s109, %s112
    %p121 = scmp.eq.s32.totalorder %s15, 7
    %p122 = por %p120, %p121
    %p123 = scmp.ne.s32.totalorder %s112, %s113
    %p124 = scmp.eq.s32.totalorder %s15, 0
    %p125 = por %p123, %p124
    %p126 = scmp.ne.s32.totalorder %s112, %s113
    %p127 = scmp.eq.s32.totalorder %s16, 7
    %p128 = por %p126, %p127
    %p130 = scmp.ne.s32.totalorder %s113, %s129
    %p131 = scmp.eq.s32.totalorder %s16, 0
    %p132 = por %p130, %p131
    %p133 = scmp.le.s32.totalorder 1, %s10
    %p134 = scmp.lt.s32.totalorder %s10, 9
    %p135 = pnand %p133, %p134
    %p136 = pneg %p135
    // Predicated region
    $region9: #{coordinator_forward.15} parent=5 // pred_check
      _
    $region10: #{coordinator_forward.15} parent=5 // pred_check_branch
      %138 = sbr.rel (%p135) target = $region12
    $region11: #{coordinator_forward.15} parent=5 // pred_region
      %s139 = ssub.s32 %s10, 1
      // Predicated region
      $region13: #{coordinator_forward.15} parent=11 // pred_check
        %p140 = pneg %p57
      $region14: #{coordinator_forward.15} parent=11 // pred_check_branch
        %142 = sbr.rel (%p140) target = $region16
      $region15: #{coordinator_forward.15} parent=11 // pred_region
        _
      $region16: #{coordinator_forward.15} parent=11 // pred_fallthru
        _
      // Predicated region
      $region17: #{coordinator_forward.15} parent=11 // pred_check
        %p143 = pneg %p78
      $region18: #{coordinator_forward.15} parent=11 // pred_check_branch
        %145 = sbr.rel (%p143) target = $region20
      $region19: #{coordinator_forward.15} parent=11 // pred_region
        _
      $region20: #{coordinator_forward.15} parent=11 // pred_fallthru
        _
      // Predicated region
      $region21: #{coordinator_forward.15} parent=11 // pred_check
        %p146 = pneg %p99
      $region22: #{coordinator_forward.15} parent=11 // pred_check_branch
        %148 = sbr.rel (%p146) target = $region24
      $region23: #{coordinator_forward.15} parent=11 // pred_region
        _
      $region24: #{coordinator_forward.15} parent=11 // pred_fallthru
        _
    $region12: #{coordinator_forward.15} parent=5 // pred_fallthru
      _
    %p149 = scmp.lt.s32.totalorder %s10, 8
    // Predicated region
    $region25: #{coordinator_forward.15} parent=5 // pred_check
      %p150 = pneg %p149
    $region26: #{coordinator_forward.15} parent=5 // pred_check_branch
      %152 = sbr.rel (%p150) target = $region28
    $region27: #{coordinator_forward.15} parent=5 // pred_region
      // Predicated region
      $region29: #{coordinator_forward.15} parent=27 // pred_check
        %p153 = pneg %p30
      $region30: #{coordinator_forward.15} parent=27 // pred_check_branch
        %155 = sbr.rel (%p153) target = $region32
      $region31: #{coordinator_forward.15} parent=27 // pred_region
        %s156 = smul.u32 32, %s10
        %p157 = scmp.lt.s32.totalorder %s156, 255
        %s158 = scalar_select %p157, %s156, 255
        %s159 = smul.addr %s158, 8
        %s160 = scalar_lea.vmem %s0, %s159
        %s161 = smul.u32 32, %s10
      $region32: #{coordinator_forward.15} parent=27 // pred_fallthru
        _
    $region28: #{coordinator_forward.15} parent=5 // pred_fallthru
      _
    %p162 = scmp.le.s32.totalorder 1, %s10
    %p163 = scmp.lt.s32.totalorder %s10, 9
    %p164 = pnand %p162, %p163
    %p165 = pneg %p164
    // Predicated region
    $region33: #{coordinator_forward.15} parent=5 // pred_check
      _
    $region34: #{coordinator_forward.15} parent=5 // pred_check_branch
      %167 = sbr.rel (%p164) target = $region36
    $region35: #{coordinator_forward.15} parent=5 // pred_region
      %s168 = ssub.s32 %s10, 1
      %s169 = smul.u32 32, %s15
      %p170 = scmp.lt.s32.totalorder %s169, 255
      %s171 = scalar_select %p170, %s169, 255
      %s172 = smul.addr %s171, 8
      %s173 = scalar_lea.vmem %s0, %s172
      %p174 = pneg %p36
      %p175 = pneg %p33
      %p176 = pneg %p57
      %p177 = pneg %p54
      %p178 = pneg %p78
      %p179 = pneg %p75
      %p180 = pneg %p99
      %p181 = pneg %p96
      %p182 = pneg %p125
      %p183 = pneg %p122
      %s184 = smul.u32 32, %s15
      %p185 = scmp.lt.s32.totalorder %s184, 255
      %s186 = scalar_select %p185, %s184, 255
      %s187 = smul.addr %s186, 8
      %s188 = scalar_lea.vmem %s4, %s187
      %s189 = smul.u32 32, %s15
      %p190 = scmp.lt.s32.totalorder %s189, 255
      %s191 = scalar_select %p190, %s189, 255
      %s192 = smul.addr %s191, 8
      %s193 = scalar_lea.vmem %s0, %s192
      %s194 = smul.u32 32, %s15
      %s195 = smul.u32 32, %s15
      %p196 = scmp.lt.s32.totalorder %s195, 255
      %s197 = scalar_select %p196, %s195, 255
      %s198 = smul.addr %s197, 8
      %s199 = scalar_lea.vmem %s4, %s198
      %s200 = smul.u32 32, %s15
      %v201 = vld [vmem:[%s193] sm:$0xff]
      %v202 = vld [vmem:[%s193 + $0x8] sm:$0xff]
      %v203 = vld [vmem:[%s193 + $0x10] sm:$0xff]
      %v204 = vld [vmem:[%s193 + $0x18] sm:$0xff]
      %v205 = vld [vmem:[%s193 + $0x20] sm:$0xff]
      %v206 = vld [vmem:[%s193 + $0x28] sm:$0xff]
      %v207 = vld [vmem:[%s193 + $0x30] sm:$0xff]
      %v208 = vld [vmem:[%s193 + $0x38] sm:$0xff]
      %v209 = vld [vmem:[%s193 + $0x40] sm:$0xff]
      %v210 = vld [vmem:[%s193 + $0x48] sm:$0xff]
      %v211 = vld [vmem:[%s193 + $0x50] sm:$0xff]
      %v212 = vld [vmem:[%s193 + $0x58] sm:$0xff]
      %v213 = vld [vmem:[%s193 + $0x60] sm:$0xff]
      %v214 = vld [vmem:[%s193 + $0x68] sm:$0xff]
      %v215 = vld [vmem:[%s193 + $0x70] sm:$0xff]
      %v216 = vld [vmem:[%s193 + $0x78] sm:$0xff]
      %v217 = vld [vmem:[%s193 + $0x80] sm:$0xff]
      %v218 = vld [vmem:[%s193 + $0x88] sm:$0xff]
      %v219 = vld [vmem:[%s193 + $0x90] sm:$0xff]
      %v220 = vld [vmem:[%s193 + $0x98] sm:$0xff]
      %v221 = vld [vmem:[%s193 + $0xa0] sm:$0xff]
      %v222 = vld [vmem:[%s193 + $0xa8] sm:$0xff]
      %v223 = vld [vmem:[%s193 + $0xb0] sm:$0xff]
      %v224 = vld [vmem:[%s193 + $0xb8] sm:$0xff]
      %v225 = vld [vmem:[%s193 + $0xc0] sm:$0xff]
      %v226 = vld [vmem:[%s193 + $0xc8] sm:$0xff]
      %v227 = vld [vmem:[%s193 + $0xd0] sm:$0xff]
      %v228 = vld [vmem:[%s193 + $0xd8] sm:$0xff]
      %v229 = vld [vmem:[%s193 + $0xe0] sm:$0xff]
      %v230 = vld [vmem:[%s193 + $0xe8] sm:$0xff]
      %v231 = vld [vmem:[%s193 + $0xf0] sm:$0xff]
      %v232 = vld [vmem:[%s193 + $0xf8] sm:$0xff]
      %v233 = vld [vmem:[%s1] sm:$0xff]
      %v234 = vld [vmem:[%s1 + $0x8] sm:$0xff]
      %v235 = vld [vmem:[%s1 + $0x10] sm:$0xff]
      %v236 = vld [vmem:[%s1 + $0x18] sm:$0xff]
      %v237 = vld [vmem:[%s1 + $0x20] sm:$0xff]
      %v238 = vld [vmem:[%s1 + $0x28] sm:$0xff]
      %v239 = vld [vmem:[%s1 + $0x30] sm:$0xff]
      %v240 = vld [vmem:[%s1 + $0x38] sm:$0xff]
      %v241 = vld [vmem:[%s1 + $0x40] sm:$0xff]
      %v242 = vld [vmem:[%s1 + $0x48] sm:$0xff]
      %v243 = vld [vmem:[%s1 + $0x50] sm:$0xff]
      %v244 = vld [vmem:[%s1 + $0x58] sm:$0xff]
      %v245 = vld [vmem:[%s1 + $0x60] sm:$0xff]
      %v246 = vld [vmem:[%s1 + $0x68] sm:$0xff]
      %v247 = vld [vmem:[%s1 + $0x70] sm:$0xff]
      %v248 = vld [vmem:[%s1 + $0x78] sm:$0xff]
      %249 = vmatprep.subr.mxu0 0.0
      %250 = vmatpush1.msra.mxu0 %v233
      %251 = vmatprep.subr.mxu0 0.0
      %252 = vmatpush1.msra.mxu0 %v234
      %253 = vmatprep.subr.mxu0 0.0
      %254 = vmatpush1.msra.mxu0 %v235
      %255 = vmatprep.subr.mxu0 0.0
      %256 = vmatpush1.msra.mxu0 %v236
      %257 = vmatprep.subr.mxu0 0.0
      %258 = vmatpush1.msra.mxu0 %v237
      %259 = vmatprep.subr.mxu0 0.0
      %260 = vmatpush1.msra.mxu0 %v238
      %261 = vmatprep.subr.mxu0 0.0
      %262 = vmatpush1.msra.mxu0 %v239
      %263 = vmatprep.subr.mxu0 0.0
      %264 = vmatpush1.msra.mxu0 %v240
      %265 = vmatprep.subr.mxu0 0.0
      %266 = vmatpush1.msra.mxu0 %v241
      %267 = vmatprep.subr.mxu0 0.0
      %268 = vmatpush1.msra.mxu0 %v242
      %269 = vmatprep.subr.mxu0 0.0
      %270 = vmatpush1.msra.mxu0 %v243
      %271 = vmatprep.subr.mxu0 0.0
      %272 = vmatpush1.msra.mxu0 %v244
      %273 = vmatprep.subr.mxu0 0.0
      %274 = vmatpush1.msra.mxu0 %v245
      %275 = vmatprep.subr.mxu0 0.0
      %276 = vmatpush1.msra.mxu0 %v246
      %277 = vmatprep.subr.mxu0 0.0
      %278 = vmatpush1.msra.mxu0 %v247
      %279 = vmatprep.subr.mxu0 0.0
      %280 = vmatpush1.msra.mxu0 %v248
      %281 = vmatprep.subr.mxu0 0.0
      %282 = vmatpush1.msra.mxu0 0.0
      %283 = vmatprep.subr.mxu0 0.0
      %284 = vmatpush1.msra.mxu0 0.0
      %285 = vmatprep.subr.mxu0 0.0
      %286 = vmatpush1.msra.mxu0 0.0
      %287 = vmatprep.subr.mxu0 0.0
      %288 = vmatpush1.msra.mxu0 0.0
      %289 = vmatprep.subr.mxu0 0.0
      %290 = vmatpush1.msra.mxu0 0.0
      %291 = vmatprep.subr.mxu0 0.0
      %292 = vmatpush1.msra.mxu0 0.0
      %293 = vmatprep.subr.mxu0 0.0
      %294 = vmatpush1.msra.mxu0 0.0
      %295 = vmatprep.subr.mxu0 0.0
      %296 = vmatpush1.msra.mxu0 0.0
      %297 = vmatprep.subr.mxu0 0.0
      %298 = vmatpush1.msra.mxu0 0.0
      %299 = vmatprep.subr.mxu0 0.0
      %300 = vmatpush1.msra.mxu0 0.0
      %301 = vmatprep.subr.mxu0 0.0
      %302 = vmatpush1.msra.mxu0 0.0
      %303 = vmatprep.subr.mxu0 0.0
      %304 = vmatpush1.msra.mxu0 0.0
      %305 = vmatprep.subr.mxu0 0.0
      %306 = vmatpush1.msra.mxu0 0.0
      %307 = vmatprep.subr.mxu0 0.0
      %308 = vmatpush1.msra.mxu0 0.0
      %309 = vmatprep.subr.mxu0 0.0
      %310 = vmatpush1.msra.mxu0 0.0
      %311 = vmatprep.subr.mxu0 0.0
      %312 = vmatpush1.msra.mxu0 0.0
      %313 = vmatprep.mubr.f32.mxu0 0.0
      %314 = vmatmul.mubr.f32.gmra.mrb[0].mxu0 %v201
      %v315 = vpop.f32.mrb[0].mxu0
      %v316 = vadd.f32 0.0, %v315
      %v317 = vpop.f32.mrb[0].mxu0
      %318 = vmatprep.mubr.f32.mxu0 0.0
      %319 = vmatmul.mubr.f32.gmra.mrb[0].mxu0 %v202
      %v320 = vpop.f32.mrb[0].mxu0
      %v321 = vadd.f32 0.0, %v320
      %v322 = vpop.f32.mrb[0].mxu0
      %323 = vmatprep.mubr.f32.mxu0 0.0
      %324 = vmatmul.mubr.f32.gmra.mrb[0].mxu0 %v203
      %v325 = vpop.f32.mrb[0].mxu0
      %v326 = vadd.f32 0.0, %v325
      %v327 = vpop.f32.mrb[0].mxu0
      %328 = vmatprep.mubr.f32.mxu0 0.0
      %329 = vmatmul.mubr.f32.gmra.mrb[0].mxu0 %v204
      %v330 = vpop.f32.mrb[0].mxu0
      %v331 = vadd.f32 0.0, %v330
      %v332 = vpop.f32.mrb[0].mxu0
      %333 = vmatprep.mubr.f32.mxu0 0.0
      %334 = vmatmul.mubr.f32.gmra.mrb[0].mxu0 %v205
      %v335 = vpop.f32.mrb[0].mxu0
      %v336 = vadd.f32 0.0, %v335
      %v337 = vpop.f32.mrb[0].mxu0
      %338 = vmatprep.mubr.f32.mxu0 0.0
      %339 = vmatmul.mubr.f32.gmra.mrb[0].mxu0 %v206
      %v340 = vpop.f32.mrb[0].mxu0
      %v341 = vadd.f32 0.0, %v340
      %v342 = vpop.f32.mrb[0].mxu0
      %343 = vmatprep.mubr.f32.mxu0 0.0
      %344 = vmatmul.mubr.f32.gmra.mrb[0].mxu0 %v207
      %v345 = vpop.f32.mrb[0].mxu0
      %v346 = vadd.f32 0.0, %v345
      %v347 = vpop.f32.mrb[0].mxu0
      %348 = vmatprep.mubr.f32.mxu0 0.0
      %349 = vmatmul.mubr.f32.gmra.mrb[0].mxu0 %v208
      %v350 = vpop.f32.mrb[0].mxu0
      %v351 = vadd.f32 0.0, %v350
      %v352 = vpop.f32.mrb[0].mxu0
      %353 = vmatprep.mubr.f32.mxu0 0.0
      %354 = vmatmul.mubr.f32.gmra.mrb[0].mxu0 %v209
      %v355 = vpop.f32.mrb[0].mxu0
      %v356 = vadd.f32 0.0, %v355
      %v357 = vpop.f32.mrb[0].mxu0
      %358 = vmatprep.mubr.f32.mxu0 0.0
      %359 = vmatmul.mubr.f32.gmra.mrb[0].mxu0 %v210
      %v360 = vpop.f32.mrb[0].mxu0
      %v361 = vadd.f32 0.0, %v360
      %v362 = vpop.f32.mrb[0].mxu0
      %363 = vmatprep.mubr.f32.mxu0 0.0
      %364 = vmatmul.mubr.f32.gmra.mrb[0].mxu0 %v211
      %v365 = vpop.f32.mrb[0].mxu0
      %v366 = vadd.f32 0.0, %v365
      %v367 = vpop.f32.mrb[0].mxu0
      %368 = vmatprep.mubr.f32.mxu0 0.0
      %369 = vmatmul.mubr.f32.gmra.mrb[0].mxu0 %v212
      %v370 = vpop.f32.mrb[0].mxu0
      %v371 = vadd.f32 0.0, %v370
      %v372 = vpop.f32.mrb[0].mxu0
      %373 = vmatprep.mubr.f32.mxu0 0.0
      %374 = vmatmul.mubr.f32.gmra.mrb[0].mxu0 %v213
      %v375 = vpop.f32.mrb[0].mxu0
      %v376 = vadd.f32 0.0, %v375
      %v377 = vpop.f32.mrb[0].mxu0
      %378 = vmatprep.mubr.f32.mxu0 0.0
      %379 = vmatmul.mubr.f32.gmra.mrb[0].mxu0 %v214
      %v380 = vpop.f32.mrb[0].mxu0
      %v381 = vadd.f32 0.0, %v380
      %v382 = vpop.f32.mrb[0].mxu0
      %383 = vmatprep.mubr.f32.mxu0 0.0
      %384 = vmatmul.mubr.f32.gmra.mrb[0].mxu0 %v215
      %v385 = vpop.f32.mrb[0].mxu0
      %v386 = vadd.f32 0.0, %v385
      %v387 = vpop.f32.mrb[0].mxu0
      %388 = vmatprep.mubr.f32.mxu0 0.0
      %389 = vmatmul.mubr.f32.gmra.mrb[0].mxu0 %v216
      %v390 = vpop.f32.mrb[0].mxu0
      %v391 = vadd.f32 0.0, %v390
      %v392 = vpop.f32.mrb[0].mxu0
      %393 = vmatprep.mubr.f32.mxu0 0.0
      %394 = vmatmul.mubr.f32.gmra.mrb[0].mxu0 %v217
      %v395 = vpop.f32.mrb[0].mxu0
      %v396 = vadd.f32 0.0, %v395
      %v397 = vpop.f32.mrb[0].mxu0
      %398 = vmatprep.mubr.f32.mxu0 0.0
      %399 = vmatmul.mubr.f32.gmra.mrb[0].mxu0 %v218
      %v400 = vpop.f32.mrb[0].mxu0
      %v401 = vadd.f32 0.0, %v400
      %v402 = vpop.f32.mrb[0].mxu0
      %403 = vmatprep.mubr.f32.mxu0 0.0
      %404 = vmatmul.mubr.f32.gmra.mrb[0].mxu0 %v219
      %v405 = vpop.f32.mrb[0].mxu0
      %v406 = vadd.f32 0.0, %v405
      %v407 = vpop.f32.mrb[0].mxu0
      %408 = vmatprep.mubr.f32.mxu0 0.0
      %409 = vmatmul.mubr.f32.gmra.mrb[0].mxu0 %v220
      %v410 = vpop.f32.mrb[0].mxu0
      %v411 = vadd.f32 0.0, %v410
      %v412 = vpop.f32.mrb[0].mxu0
      %413 = vmatprep.mubr.f32.mxu0 0.0
      %414 = vmatmul.mubr.f32.gmra.mrb[0].mxu0 %v221
      %v415 = vpop.f32.mrb[0].mxu0
      %v416 = vadd.f32 0.0, %v415
      %v417 = vpop.f32.mrb[0].mxu0
      %418 = vmatprep.mubr.f32.mxu0 0.0
      %419 = vmatmul.mubr.f32.gmra.mrb[0].mxu0 %v222
      %v420 = vpop.f32.mrb[0].mxu0
      %v421 = vadd.f32 0.0, %v420
      %v422 = vpop.f32.mrb[0].mxu0
      %423 = vmatprep.mubr.f32.mxu0 0.0
      %424 = vmatmul.mubr.f32.gmra.mrb[0].mxu0 %v223
      %v425 = vpop.f32.mrb[0].mxu0
      %v426 = vadd.f32 0.0, %v425
      %v427 = vpop.f32.mrb[0].mxu0
      %428 = vmatprep.mubr.f32.mxu0 0.0
      %429 = vmatmul.mubr.f32.gmra.mrb[0].mxu0 %v224
      %v430 = vpop.f32.mrb[0].mxu0
      %v431 = vadd.f32 0.0, %v430
      %v432 = vpop.f32.mrb[0].mxu0
      %433 = vmatprep.mubr.f32.mxu0 0.0
      %434 = vmatmul.mubr.f32.gmra.mrb[0].mxu0 %v225
      %v435 = vpop.f32.mrb[0].mxu0
      %v436 = vadd.f32 0.0, %v435
      %v437 = vpop.f32.mrb[0].mxu0
      %438 = vmatprep.mubr.f32.mxu0 0.0
      %439 = vmatmul.mubr.f32.gmra.mrb[0].mxu0 %v226
      %v440 = vpop.f32.mrb[0].mxu0
      %v441 = vadd.f32 0.0, %v440
      %v442 = vpop.f32.mrb[0].mxu0
      %443 = vmatprep.mubr.f32.mxu0 0.0
      %444 = vmatmul.mubr.f32.gmra.mrb[0].mxu0 %v227
      %v445 = vpop.f32.mrb[0].mxu0
      %v446 = vadd.f32 0.0, %v445
      %v447 = vpop.f32.mrb[0].mxu0
      %448 = vmatprep.mubr.f32.mxu0 0.0
      %449 = vmatmul.mubr.f32.gmra.mrb[0].mxu0 %v228
      %v450 = vpop.f32.mrb[0].mxu0
      %v451 = vadd.f32 0.0, %v450
      %v452 = vpop.f32.mrb[0].mxu0
      %453 = vmatprep.mubr.f32.mxu0 0.0
      %454 = vmatmul.mubr.f32.gmra.mrb[0].mxu0 %v229
      %v455 = vpop.f32.mrb[0].mxu0
      %v456 = vadd.f32 0.0, %v455
      %v457 = vpop.f32.mrb[0].mxu0
      %458 = vmatprep.mubr.f32.mxu0 0.0
      %459 = vmatmul.mubr.f32.gmra.mrb[0].mxu0 %v230
      %v460 = vpop.f32.mrb[0].mxu0
      %v461 = vadd.f32 0.0, %v460
      %v462 = vpop.f32.mrb[0].mxu0
      %463 = vmatprep.mubr.f32.mxu0 0.0
      %464 = vmatmul.mubr.f32.gmra.mrb[0].mxu0 %v231
      %v465 = vpop.f32.mrb[0].mxu0
      %v466 = vadd.f32 0.0, %v465
      %v467 = vpop.f32.mrb[0].mxu0
      %468 = vmatprep.mubr.f32.mxu0 0.0
      %469 = vmatmul.mubr.f32.gmra.mrb[0].mxu0 %v232
      %v470 = vpop.f32.mrb[0].mxu0
      %v471 = vadd.f32 0.0, %v470
      %v472 = vpop.f32.mrb[0].mxu0
      %473 = vdwg.mxu0
      %v474 = vld [vmem:[%s2] sm:$0x1]
      %v476 = vlaneseq
      %v477 = vshrl.u32 %v476, 7
      %v478 = vsub.s32 0, %v477
      %v479 = vrot.slane %v474, %v478
      %v481 = vmul.f32 %v316, %v479
      %v482 = vmul.f32 %v321, %v479
      %v483 = vmul.f32 %v326, %v479
      %v484 = vmul.f32 %v331, %v479
      %v485 = vmul.f32 %v336, %v479
      %v486 = vmul.f32 %v341, %v479
      %v487 = vmul.f32 %v346, %v479
      %v488 = vmul.f32 %v351, %v479
      %v489 = vmul.f32 %v356, %v479
      %v490 = vmul.f32 %v361, %v479
      %v491 = vmul.f32 %v366, %v479
      %v492 = vmul.f32 %v371, %v479
      %v493 = vmul.f32 %v376, %v479
      %v494 = vmul.f32 %v381, %v479
      %v495 = vmul.f32 %v386, %v479
      %v496 = vmul.f32 %v391, %v479
      %v497 = vmul.f32 %v396, %v479
      %v498 = vmul.f32 %v401, %v479
      %v499 = vmul.f32 %v406, %v479
      %v500 = vmul.f32 %v411, %v479
      %v501 = vmul.f32 %v416, %v479
      %v502 = vmul.f32 %v421, %v479
      %v503 = vmul.f32 %v426, %v479
      %v504 = vmul.f32 %v431, %v479
      %v505 = vmul.f32 %v436, %v479
      %v506 = vmul.f32 %v441, %v479
      %v507 = vmul.f32 %v446, %v479
      %v508 = vmul.f32 %v451, %v479
      %v509 = vmul.f32 %v456, %v479
      %v510 = vmul.f32 %v461, %v479
      %v511 = vmul.f32 %v466, %v479
      %v512 = vmul.f32 %v471, %v479
      %v513 = vld [vmem:[%s3] sm:$0x1]
      %v515 = vlaneseq
      %v516 = vshrl.u32 %v515, 7
      %v517 = vsub.s32 0, %v516
      %v518 = vrot.slane %v513, %v517
      %v520 = vadd.f32 %v481, %v518
      %v521 = vadd.f32 %v482, %v518
      %v522 = vadd.f32 %v483, %v518
      %v523 = vadd.f32 %v484, %v518
      %v524 = vadd.f32 %v485, %v518
      %v525 = vadd.f32 %v486, %v518
      %v526 = vadd.f32 %v487, %v518
      %v527 = vadd.f32 %v488, %v518
      %v528 = vadd.f32 %v489, %v518
      %v529 = vadd.f32 %v490, %v518
      %v530 = vadd.f32 %v491, %v518
      %v531 = vadd.f32 %v492, %v518
      %v532 = vadd.f32 %v493, %v518
      %v533 = vadd.f32 %v494, %v518
      %v534 = vadd.f32 %v495, %v518
      %v535 = vadd.f32 %v496, %v518
      %v536 = vadd.f32 %v497, %v518
      %v537 = vadd.f32 %v498, %v518
      %v538 = vadd.f32 %v499, %v518
      %v539 = vadd.f32 %v500, %v518
      %v540 = vadd.f32 %v501, %v518
      %v541 = vadd.f32 %v502, %v518
      %v542 = vadd.f32 %v503, %v518
      %v543 = vadd.f32 %v504, %v518
      %v544 = vadd.f32 %v505, %v518
      %v545 = vadd.f32 %v506, %v518
      %v546 = vadd.f32 %v507, %v518
      %v547 = vadd.f32 %v508, %v518
      %v548 = vadd.f32 %v509, %v518
      %v549 = vadd.f32 %v510, %v518
      %v550 = vadd.f32 %v511, %v518
      %v551 = vadd.f32 %v512, %v518
      %552 = vst [vmem:[%s199] sm:$0xff] %v520
      %553 = vst [vmem:[%s199 + $0x8] sm:$0xff] %v521
      %554 = vst [vmem:[%s199 + $0x10] sm:$0xff] %v522
      %555 = vst [vmem:[%s199 + $0x18] sm:$0xff] %v523
      %556 = vst [vmem:[%s199 + $0x20] sm:$0xff] %v524
      %557 = vst [vmem:[%s199 + $0x28] sm:$0xff] %v525
      %558 = vst [vmem:[%s199 + $0x30] sm:$0xff] %v526
      %559 = vst [vmem:[%s199 + $0x38] sm:$0xff] %v527
      %560 = vst [vmem:[%s199 + $0x40] sm:$0xff] %v528
      %561 = vst [vmem:[%s199 + $0x48] sm:$0xff] %v529
      %562 = vst [vmem:[%s199 + $0x50] sm:$0xff] %v530
      %563 = vst [vmem:[%s199 + $0x58] sm:$0xff] %v531
      %564 = vst [vmem:[%s199 + $0x60] sm:$0xff] %v532
      %565 = vst [vmem:[%s199 + $0x68] sm:$0xff] %v533
      %566 = vst [vmem:[%s199 + $0x70] sm:$0xff] %v534
      %567 = vst [vmem:[%s199 + $0x78] sm:$0xff] %v535
      %568 = vst [vmem:[%s199 + $0x80] sm:$0xff] %v536
      %569 = vst [vmem:[%s199 + $0x88] sm:$0xff] %v537
      %570 = vst [vmem:[%s199 + $0x90] sm:$0xff] %v538
      %571 = vst [vmem:[%s199 + $0x98] sm:$0xff] %v539
      %572 = vst [vmem:[%s199 + $0xa0] sm:$0xff] %v540
      %573 = vst [vmem:[%s199 + $0xa8] sm:$0xff] %v541
      %574 = vst [vmem:[%s199 + $0xb0] sm:$0xff] %v542
      %575 = vst [vmem:[%s199 + $0xb8] sm:$0xff] %v543
      %576 = vst [vmem:[%s199 + $0xc0] sm:$0xff] %v544
      %577 = vst [vmem:[%s199 + $0xc8] sm:$0xff] %v545
      %578 = vst [vmem:[%s199 + $0xd0] sm:$0xff] %v546
      %579 = vst [vmem:[%s199 + $0xd8] sm:$0xff] %v547
      %580 = vst [vmem:[%s199 + $0xe0] sm:$0xff] %v548
      %581 = vst [vmem:[%s199 + $0xe8] sm:$0xff] %v549
      %582 = vst [vmem:[%s199 + $0xf0] sm:$0xff] %v550
      %583 = vst [vmem:[%s199 + $0xf8] sm:$0xff] %v551
      %s584 = smul.u32 32, %s15
      %p585 = scmp.lt.s32.totalorder %s584, 255
      %s586 = scalar_select %p585, %s584, 255
      %s587 = smul.addr %s586, 8
      %s588 = scalar_lea.vmem %s4, %s587
      // Predicated region
      $region37: #{coordinator_forward.15} parent=35 // pred_check
        %p589 = pneg %p122
      $region38: #{coordinator_forward.15} parent=35 // pred_check_branch
        %591 = sbr.rel (%p589) target = $region40
      $region39: #{coordinator_forward.15} parent=35 // pred_region
        %s592 = smul.u32 32, %s15
      $region40: #{coordinator_forward.15} parent=35 // pred_fallthru
        _
    $region36: #{coordinator_forward.15} parent=5 // pred_fallthru
      _
    %p593 = scmp.le.s32.totalorder 2, %s10
    // Predicated region
    $region41: #{coordinator_forward.15} parent=5 // pred_check
      %p594 = pneg %p593
    $region42: #{coordinator_forward.15} parent=5 // pred_check_branch
      %596 = sbr.rel (%p594) target = $region44
    $region43: #{coordinator_forward.15} parent=5 // pred_region
      %s597 = ssub.s32 %s10, 2
      // Predicated region
      $region45: #{coordinator_forward.15} parent=43 // pred_check
        %p598 = pneg %p128
      $region46: #{coordinator_forward.15} parent=43 // pred_check_branch
        %600 = sbr.rel (%p598) target = $region48
      $region47: #{coordinator_forward.15} parent=43 // pred_region
        %s601 = smul.u32 32, %s16
        %p602 = scmp.lt.s32.totalorder %s601, 255
        %s603 = scalar_select %p602, %s601, 255
        %s604 = smul.addr %s603, 8
        %s605 = scalar_lea.vmem %s4, %s604
      $region48: #{coordinator_forward.15} parent=43 // pred_fallthru
        _
    $region44: #{coordinator_forward.15} parent=5 // pred_fallthru
      _
  $region6: #{coordinator_forward.15} parent=0 // loop_footer
    %s14 = sadd.s32 1, %s10
  $region7: #{coordinator_forward.15} parent=0 // loop_footer_branch
    %9 = sbr.rel target = $region3
  $region8: #{coordinator_forward.15} parent=0 // loop_exit
    _

// kernel: coordinator_forward.16
$region0: #{coordinator_forward.16}
  #allocation0 [shape = 'u32[]', space=smem, size = 0x4, offset = 0x4, fixed_abs, tag = 'smem constant byte address 0x4 - core index']
  #allocation1 [shape = 'u32[144,128]{1,0:T(1,128)}', space=vmem, size = 0x12000, scoped, tag = 'internal scratch']
  %s0 = inlined_call_operand.vmem [shape: f32[512,128], index: 0, kind: input, shape index: {}]
  %s1 = inlined_call_operand.vmem [shape: f32[128,128], index: 1, kind: input, shape index: {}]
  %s2 = inlined_call_operand.vmem [shape: f32[1,128], index: 2, kind: input, shape index: {}]
  %s3 = inlined_call_operand.vmem [shape: f32[1,128], index: 3, kind: input, shape index: {}]
  %s4 = inlined_call_operand.vmem [shape: f32[512,128], index: 4, kind: output, shape index: {}]
  %s5 = sld [smem:[#allocation0]]
  $region26: #{coordinator_forward.16} parent=0
    _
  %s7 = ssub.s32 1, %s5
  %s8 = scalar_select 0, %s7, %s5
  // Predicated region
  $region2: #{coordinator_forward.16} parent=0 // pred_check
    _
  $region3: #{coordinator_forward.16} parent=0 // pred_check_branch
    %10 = sbr.rel (0) target = $region5
  $region4: #{coordinator_forward.16} parent=0 // pred_region
    _
  $region5: #{coordinator_forward.16} parent=0 // pred_fallthru
    _
  // Predicated region
  $region6: #{coordinator_forward.16} parent=0 // pred_check
    _
  $region7: #{coordinator_forward.16} parent=0 // pred_check_branch
    %12 = sbr.rel (0) target = $region9
  $region8: #{coordinator_forward.16} parent=0 // pred_region
    _
  $region9: #{coordinator_forward.16} parent=0 // pred_fallthru
    _
  // Predicated region
  $region10: #{coordinator_forward.16} parent=0 // pred_check
    _
  $region11: #{coordinator_forward.16} parent=0 // pred_check_branch
    %14 = sbr.rel (0) target = $region13
  $region12: #{coordinator_forward.16} parent=0 // pred_region
    _
  $region13: #{coordinator_forward.16} parent=0 // pred_fallthru
    _
  // Predicated region
  $region14: #{coordinator_forward.16} parent=0 // pred_check
    _
  $region15: #{coordinator_forward.16} parent=0 // pred_check_branch
    %16 = sbr.rel (0) target = $region17
  $region16: #{coordinator_forward.16} parent=0 // pred_region
    _
  $region17: #{coordinator_forward.16} parent=0 // pred_fallthru
    _
  %v17 = vld [vmem:[%s0] sm:$0xff]
  %v18 = vld [vmem:[%s0 + $0x8] sm:$0xff]
  %v19 = vld [vmem:[%s0 + $0x10] sm:$0xff]
  %v20 = vld [vmem:[%s0 + $0x18] sm:$0xff]
  %v21 = vld [vmem:[%s0 + $0x20] sm:$0xff]
  %v22 = vld [vmem:[%s0 + $0x28] sm:$0xff]
  %v23 = vld [vmem:[%s0 + $0x30] sm:$0xff]
  %v24 = vld [vmem:[%s0 + $0x38] sm:$0xff]
  %v25 = vld [vmem:[%s0 + $0x40] sm:$0xff]
  %v26 = vld [vmem:[%s0 + $0x48] sm:$0xff]
  %v27 = vld [vmem:[%s0 + $0x50] sm:$0xff]
  %v28 = vld [vmem:[%s0 + $0x58] sm:$0xff]
  %v29 = vld [vmem:[%s0 + $0x60] sm:$0xff]
  %v30 = vld [vmem:[%s0 + $0x68] sm:$0xff]
  %v31 = vld [vmem:[%s0 + $0x70] sm:$0xff]
  %v32 = vld [vmem:[%s0 + $0x78] sm:$0xff]
  %v33 = vld [vmem:[%s0 + $0x80] sm:$0xff]
  %v34 = vld [vmem:[%s0 + $0x88] sm:$0xff]
  %v35 = vld [vmem:[%s0 + $0x90] sm:$0xff]
  %v36 = vld [vmem:[%s0 + $0x98] sm:$0xff]
  %v37 = vld [vmem:[%s0 + $0xa0] sm:$0xff]
  %v38 = vld [vmem:[%s0 + $0xa8] sm:$0xff]
  %v39 = vld [vmem:[%s0 + $0xb0] sm:$0xff]
  %v40 = vld [vmem:[%s0 + $0xb8] sm:$0xff]
  %v41 = vld [vmem:[%s0 + $0xc0] sm:$0xff]
  %v42 = vld [vmem:[%s0 + $0xc8] sm:$0xff]
  %v43 = vld [vmem:[%s0 + $0xd0] sm:$0xff]
  %v44 = vld [vmem:[%s0 + $0xd8] sm:$0xff]
  %v45 = vld [vmem:[%s0 + $0xe0] sm:$0xff]
  %v46 = vld [vmem:[%s0 + $0xe8] sm:$0xff]
  %v47 = vld [vmem:[%s0 + $0xf0] sm:$0xff]
  %v48 = vld [vmem:[%s0 + $0xf8] sm:$0xff]
  %v49 = vld [vmem:[%s0 + $0x100] sm:$0xff]
  %v50 = vld [vmem:[%s0 + $0x108] sm:$0xff]
  %v51 = vld [vmem:[%s0 + $0x110] sm:$0xff]
  %v52 = vld [vmem:[%s0 + $0x118] sm:$0xff]
  %v53 = vld [vmem:[%s0 + $0x120] sm:$0xff]
  %v54 = vld [vmem:[%s0 + $0x128] sm:$0xff]
  %v55 = vld [vmem:[%s0 + $0x130] sm:$0xff]
  %v56 = vld [vmem:[%s0 + $0x138] sm:$0xff]
  %v57 = vld [vmem:[%s0 + $0x140] sm:$0xff]
  %v58 = vld [vmem:[%s0 + $0x148] sm:$0xff]
  %v59 = vld [vmem:[%s0 + $0x150] sm:$0xff]
  %v60 = vld [vmem:[%s0 + $0x158] sm:$0xff]
  %v61 = vld [vmem:[%s0 + $0x160] sm:$0xff]
  %v62 = vld [vmem:[%s0 + $0x168] sm:$0xff]
  %v63 = vld [vmem:[%s0 + $0x170] sm:$0xff]
  %v64 = vld [vmem:[%s0 + $0x178] sm:$0xff]
  %v65 = vld [vmem:[%s0 + $0x180] sm:$0xff]
  %v66 = vld [vmem:[%s0 + $0x188] sm:$0xff]
  %v67 = vld [vmem:[%s0 + $0x190] sm:$0xff]
  %v68 = vld [vmem:[%s0 + $0x198] sm:$0xff]
  %v69 = vld [vmem:[%s0 + $0x1a0] sm:$0xff]
  %v70 = vld [vmem:[%s0 + $0x1a8] sm:$0xff]
  %v71 = vld [vmem:[%s0 + $0x1b0] sm:$0xff]
  %v72 = vld [vmem:[%s0 + $0x1b8] sm:$0xff]
  %v73 = vld [vmem:[%s0 + $0x1c0] sm:$0xff]
  %v74 = vld [vmem:[%s0 + $0x1c8] sm:$0xff]
  %v75 = vld [vmem:[%s0 + $0x1d0] sm:$0xff]
  %v76 = vld [vmem:[%s0 + $0x1d8] sm:$0xff]
  %v77 = vld [vmem:[%s0 + $0x1e0] sm:$0xff]
  %v78 = vld [vmem:[%s0 + $0x1e8] sm:$0xff]
  %v79 = vld [vmem:[%s0 + $0x1f0] sm:$0xff]
  %v80 = vld [vmem:[%s0 + $0x1f8] sm:$0xff]
  %v81 = vld [vmem:[%s1] sm:$0xff]
  %v82 = vld [vmem:[%s1 + $0x8] sm:$0xff]
  %v83 = vld [vmem:[%s1 + $0x10] sm:$0xff]
  %v84 = vld [vmem:[%s1 + $0x18] sm:$0xff]
  %v85 = vld [vmem:[%s1 + $0x20] sm:$0xff]
  %v86 = vld [vmem:[%s1 + $0x28] sm:$0xff]
  %v87 = vld [vmem:[%s1 + $0x30] sm:$0xff]
  %v88 = vld [vmem:[%s1 + $0x38] sm:$0xff]
  %v89 = vld [vmem:[%s1 + $0x40] sm:$0xff]
  %v90 = vld [vmem:[%s1 + $0x48] sm:$0xff]
  %v91 = vld [vmem:[%s1 + $0x50] sm:$0xff]
  %v92 = vld [vmem:[%s1 + $0x58] sm:$0xff]
  %v93 = vld [vmem:[%s1 + $0x60] sm:$0xff]
  %v94 = vld [vmem:[%s1 + $0x68] sm:$0xff]
  %v95 = vld [vmem:[%s1 + $0x70] sm:$0xff]
  %v96 = vld [vmem:[%s1 + $0x78] sm:$0xff]
  %97 = vmatprep.subr.mxu0 0.0
  %98 = vmatpush1.msra.mxu0 %v81
  %99 = vmatprep.subr.mxu0 0.0
  %100 = vmatpush1.msra.mxu0 %v82
  %101 = vmatprep.subr.mxu0 0.0
  %102 = vmatpush1.msra.mxu0 %v83
  %103 = vmatprep.subr.mxu0 0.0
  %104 = vmatpush1.msra.mxu0 %v84
  %105 = vmatprep.subr.mxu0 0.0
  %106 = vmatpush1.msra.mxu0 %v85
  %107 = vmatprep.subr.mxu0 0.0
  %108 = vmatpush1.msra.mxu0 %v86
  %109 = vmatprep.subr.mxu0 0.0
  %110 = vmatpush1.msra.mxu0 %v87
  %111 = vmatprep.subr.mxu0 0.0
  %112 = vmatpush1.msra.mxu0 %v88
  %113 = vmatprep.subr.mxu0 0.0
  %114 = vmatpush1.msra.mxu0 %v89
  %115 = vmatprep.subr.mxu0 0.0
  %116 = vmatpush1.msra.mxu0 %v90
  %117 = vmatprep.subr.mxu0 0.0
  %118 = vmatpush1.msra.mxu0 %v91
  %119 = vmatprep.subr.mxu0 0.0
  %120 = vmatpush1.msra.mxu0 %v92
  %121 = vmatprep.subr.mxu0 0.0
  %122 = vmatpush1.msra.mxu0 %v93
  %123 = vmatprep.subr.mxu0 0.0
  %124 = vmatpush1.msra.mxu0 %v94
  %125 = vmatprep.subr.mxu0 0.0
  %126 = vmatpush1.msra.mxu0 %v95
  %127 = vmatprep.subr.mxu0 0.0
  %128 = vmatpush1.msra.mxu0 %v96
  %129 = vmatprep.subr.mxu0 0.0
  %130 = vmatpush1.msra.mxu0 0.0
  %131 = vmatprep.subr.mxu0 0.0
  %132 = vmatpush1.msra.mxu0 0.0
  %133 = vmatprep.subr.mxu0 0.0
  %134 = vmatpush1.msra.mxu0 0.0
  %135 = vmatprep.subr.mxu0 0.0
  %136 = vmatpush1.msra.mxu0 0.0
  %137 = vmatprep.subr.mxu0 0.0
  %138 = vmatpush1.msra.mxu0 0.0
  %139 = vmatprep.subr.mxu0 0.0
  %140 = vmatpush1.msra.mxu0 0.0
  %141 = vmatprep.subr.mxu0 0.0
  %142 = vmatpush1.msra.mxu0 0.0
  %143 = vmatprep.subr.mxu0 0.0
  %144 = vmatpush1.msra.mxu0 0.0
  %145 = vmatprep.subr.mxu0 0.0
  %146 = vmatpush1.msra.mxu0 0.0
  %147 = vmatprep.subr.mxu0 0.0
  %148 = vmatpush1.msra.mxu0 0.0
  %149 = vmatprep.subr.mxu0 0.0
  %150 = vmatpush1.msra.mxu0 0.0
  %151 = vmatprep.subr.mxu0 0.0
  %152 = vmatpush1.msra.mxu0 0.0
  %153 = vmatprep.subr.mxu0 0.0
  %154 = vmatpush1.msra.mxu0 0.0
  %155 = vmatprep.subr.mxu0 0.0
  %156 = vmatpush1.msra.mxu0 0.0
  %157 = vmatprep.subr.mxu0 0.0
  %158 = vmatpush1.msra.mxu0 0.0
  %159 = vmatprep.subr.mxu0 0.0
  %160 = vmatpush1.msra.mxu0 0.0
  %161 = vmatprep.mubr.f32.mxu0 0.0
  %162 = vmatmul.mubr.f32.gmra.mrb[0].mxu0 %v17
  %v163 = vpop.f32.mrb[0].mxu0
  %v164 = vadd.f32 0.0, %v163
  %v165 = vpop.f32.mrb[0].mxu0
  %166 = vmatprep.mubr.f32.mxu0 0.0
  %167 = vmatmul.mubr.f32.gmra.mrb[0].mxu0 %v18
  %v168 = vpop.f32.mrb[0].mxu0
  %v169 = vadd.f32 0.0, %v168
  %v170 = vpop.f32.mrb[0].mxu0
  %171 = vmatprep.mubr.f32.mxu0 0.0
  %172 = vmatmul.mubr.f32.gmra.mrb[0].mxu0 %v19
  %v173 = vpop.f32.mrb[0].mxu0
  %v174 = vadd.f32 0.0, %v173
  %v175 = vpop.f32.mrb[0].mxu0
  %176 = vmatprep.mubr.f32.mxu0 0.0
  %177 = vmatmul.mubr.f32.gmra.mrb[0].mxu0 %v20
  %v178 = vpop.f32.mrb[0].mxu0
  %v179 = vadd.f32 0.0, %v178
  %v180 = vpop.f32.mrb[0].mxu0
  %181 = vmatprep.mubr.f32.mxu0 0.0
  %182 = vmatmul.mubr.f32.gmra.mrb[0].mxu0 %v21
  %v183 = vpop.f32.mrb[0].mxu0
  %v184 = vadd.f32 0.0, %v183
  %v185 = vpop.f32.mrb[0].mxu0
  %186 = vmatprep.mubr.f32.mxu0 0.0
  %187 = vmatmul.mubr.f32.gmra.mrb[0].mxu0 %v22
  %v188 = vpop.f32.mrb[0].mxu0
  %v189 = vadd.f32 0.0, %v188
  %v190 = vpop.f32.mrb[0].mxu0
  %191 = vmatprep.mubr.f32.mxu0 0.0
  %192 = vmatmul.mubr.f32.gmra.mrb[0].mxu0 %v23
  %v193 = vpop.f32.mrb[0].mxu0
  %v194 = vadd.f32 0.0, %v193
  %v195 = vpop.f32.mrb[0].mxu0
  %196 = vmatprep.mubr.f32.mxu0 0.0
  %197 = vmatmul.mubr.f32.gmra.mrb[0].mxu0 %v24
  %v198 = vpop.f32.mrb[0].mxu0
  %v199 = vadd.f32 0.0, %v198
  %v200 = vpop.f32.mrb[0].mxu0
  %201 = vmatprep.mubr.f32.mxu0 0.0
  %202 = vmatmul.mubr.f32.gmra.mrb[0].mxu0 %v25
  %v203 = vpop.f32.mrb[0].mxu0
  %v204 = vadd.f32 0.0, %v203
  %v205 = vpop.f32.mrb[0].mxu0
  %206 = vmatprep.mubr.f32.mxu0 0.0
  %207 = vmatmul.mubr.f32.gmra.mrb[0].mxu0 %v26
  %v208 = vpop.f32.mrb[0].mxu0
  %v209 = vadd.f32 0.0, %v208
  %v210 = vpop.f32.mrb[0].mxu0
  %211 = vmatprep.mubr.f32.mxu0 0.0
  %212 = vmatmul.mubr.f32.gmra.mrb[0].mxu0 %v27
  %v213 = vpop.f32.mrb[0].mxu0
  %v214 = vadd.f32 0.0, %v213
  %v215 = vpop.f32.mrb[0].mxu0
  %216 = vmatprep.mubr.f32.mxu0 0.0
  %217 = vmatmul.mubr.f32.gmra.mrb[0].mxu0 %v28
  %v218 = vpop.f32.mrb[0].mxu0
  %v219 = vadd.f32 0.0, %v218
  %v220 = vpop.f32.mrb[0].mxu0
  %221 = vmatprep.mubr.f32.mxu0 0.0
  %222 = vmatmul.mubr.f32.gmra.mrb[0].mxu0 %v29
  %v223 = vpop.f32.mrb[0].mxu0
  %v224 = vadd.f32 0.0, %v223
  %v225 = vpop.f32.mrb[0].mxu0
  %226 = vmatprep.mubr.f32.mxu0 0.0
  %227 = vmatmul.mubr.f32.gmra.mrb[0].mxu0 %v30
  %v228 = vpop.f32.mrb[0].mxu0
  %v229 = vadd.f32 0.0, %v228
  %v230 = vpop.f32.mrb[0].mxu0
  %231 = vmatprep.mubr.f32.mxu0 0.0
  %232 = vmatmul.mubr.f32.gmra.mrb[0].mxu0 %v31
  %v233 = vpop.f32.mrb[0].mxu0
  %v234 = vadd.f32 0.0, %v233
  %v235 = vpop.f32.mrb[0].mxu0
  %236 = vmatprep.mubr.f32.mxu0 0.0
  %237 = vmatmul.mubr.f32.gmra.mrb[0].mxu0 %v32
  %v238 = vpop.f32.mrb[0].mxu0
  %v239 = vadd.f32 0.0, %v238
  %v240 = vpop.f32.mrb[0].mxu0
  %241 = vmatprep.mubr.f32.mxu0 0.0
  %242 = vmatmul.mubr.f32.gmra.mrb[0].mxu0 %v33
  %v243 = vpop.f32.mrb[0].mxu0
  %v244 = vadd.f32 0.0, %v243
  %v245 = vpop.f32.mrb[0].mxu0
  %246 = vmatprep.mubr.f32.mxu0 0.0
  %247 = vmatmul.mubr.f32.gmra.mrb[0].mxu0 %v34
  %v248 = vpop.f32.mrb[0].mxu0
  %v249 = vadd.f32 0.0, %v248
  %v250 = vpop.f32.mrb[0].mxu0
  %251 = vmatprep.mubr.f32.mxu0 0.0
  %252 = vmatmul.mubr.f32.gmra.mrb[0].mxu0 %v35
  %v253 = vpop.f32.mrb[0].mxu0
  %v254 = vadd.f32 0.0, %v253
  %v255 = vpop.f32.mrb[0].mxu0
  %256 = vmatprep.mubr.f32.mxu0 0.0
  %257 = vmatmul.mubr.f32.gmra.mrb[0].mxu0 %v36
  %v258 = vpop.f32.mrb[0].mxu0
  %v259 = vadd.f32 0.0, %v258
  %v260 = vpop.f32.mrb[0].mxu0
  %261 = vmatprep.mubr.f32.mxu0 0.0
  %262 = vmatmul.mubr.f32.gmra.mrb[0].mxu0 %v37
  %v263 = vpop.f32.mrb[0].mxu0
  %v264 = vadd.f32 0.0, %v263
  %v265 = vpop.f32.mrb[0].mxu0
  %266 = vmatprep.mubr.f32.mxu0 0.0
  %267 = vmatmul.mubr.f32.gmra.mrb[0].mxu0 %v38
  %v268 = vpop.f32.mrb[0].mxu0
  %v269 = vadd.f32 0.0, %v268
  %v270 = vpop.f32.mrb[0].mxu0
  %271 = vmatprep.mubr.f32.mxu0 0.0
  %272 = vmatmul.mubr.f32.gmra.mrb[0].mxu0 %v39
  %v273 = vpop.f32.mrb[0].mxu0
  %v274 = vadd.f32 0.0, %v273
  %v275 = vpop.f32.mrb[0].mxu0
  %276 = vmatprep.mubr.f32.mxu0 0.0
  %277 = vmatmul.mubr.f32.gmra.mrb[0].mxu0 %v40
  %v278 = vpop.f32.mrb[0].mxu0
  %v279 = vadd.f32 0.0, %v278
  %v280 = vpop.f32.mrb[0].mxu0
  %281 = vmatprep.mubr.f32.mxu0 0.0
  %282 = vmatmul.mubr.f32.gmra.mrb[0].mxu0 %v41
  %v283 = vpop.f32.mrb[0].mxu0
  %v284 = vadd.f32 0.0, %v283
  %v285 = vpop.f32.mrb[0].mxu0
  %286 = vmatprep.mubr.f32.mxu0 0.0
  %287 = vmatmul.mubr.f32.gmra.mrb[0].mxu0 %v42
  %v288 = vpop.f32.mrb[0].mxu0
  %v289 = vadd.f32 0.0, %v288
  %v290 = vpop.f32.mrb[0].mxu0
  %291 = vmatprep.mubr.f32.mxu0 0.0
  %292 = vmatmul.mubr.f32.gmra.mrb[0].mxu0 %v43
  %v293 = vpop.f32.mrb[0].mxu0
  %v294 = vadd.f32 0.0, %v293
  %v295 = vpop.f32.mrb[0].mxu0
  %296 = vmatprep.mubr.f32.mxu0 0.0
  %297 = vmatmul.mubr.f32.gmra.mrb[0].mxu0 %v44
  %v298 = vpop.f32.mrb[0].mxu0
  %v299 = vadd.f32 0.0, %v298
  %v300 = vpop.f32.mrb[0].mxu0
  %301 = vmatprep.mubr.f32.mxu0 0.0
  %302 = vmatmul.mubr.f32.gmra.mrb[0].mxu0 %v45
  %v303 = vpop.f32.mrb[0].mxu0
  %v304 = vadd.f32 0.0, %v303
  %v305 = vpop.f32.mrb[0].mxu0
  %306 = vmatprep.mubr.f32.mxu0 0.0
  %307 = vmatmul.mubr.f32.gmra.mrb[0].mxu0 %v46
  %v308 = vpop.f32.mrb[0].mxu0
  %v309 = vadd.f32 0.0, %v308
  %v310 = vpop.f32.mrb[0].mxu0
  %311 = vmatprep.mubr.f32.mxu0 0.0
  %312 = vmatmul.mubr.f32.gmra.mrb[0].mxu0 %v47
  %v313 = vpop.f32.mrb[0].mxu0
  %v314 = vadd.f32 0.0, %v313
  %v315 = vpop.f32.mrb[0].mxu0
  %316 = vmatprep.mubr.f32.mxu0 0.0
  %317 = vmatmul.mubr.f32.gmra.mrb[0].mxu0 %v48
  %v318 = vpop.f32.mrb[0].mxu0
  %v319 = vadd.f32 0.0, %v318
  %v320 = vpop.f32.mrb[0].mxu0
  %321 = vmatprep.mubr.f32.mxu0 0.0
  %322 = vmatmul.mubr.f32.gmra.mrb[0].mxu0 %v49
  %v323 = vpop.f32.mrb[0].mxu0
  %v324 = vadd.f32 0.0, %v323
  %v325 = vpop.f32.mrb[0].mxu0
  %326 = vmatprep.mubr.f32.mxu0 0.0
  %327 = vmatmul.mubr.f32.gmra.mrb[0].mxu0 %v50
  %v328 = vpop.f32.mrb[0].mxu0
  %v329 = vadd.f32 0.0, %v328
  %v330 = vpop.f32.mrb[0].mxu0
  %331 = vmatprep.mubr.f32.mxu0 0.0
  %332 = vmatmul.mubr.f32.gmra.mrb[0].mxu0 %v51
  %v333 = vpop.f32.mrb[0].mxu0
  %v334 = vadd.f32 0.0, %v333
  %v335 = vpop.f32.mrb[0].mxu0
  %336 = vmatprep.mubr.f32.mxu0 0.0
  %337 = vmatmul.mubr.f32.gmra.mrb[0].mxu0 %v52
  %v338 = vpop.f32.mrb[0].mxu0
  %v339 = vadd.f32 0.0, %v338
  %v340 = vpop.f32.mrb[0].mxu0
  %341 = vmatprep.mubr.f32.mxu0 0.0
  %342 = vmatmul.mubr.f32.gmra.mrb[0].mxu0 %v53
  %v343 = vpop.f32.mrb[0].mxu0
  %v344 = vadd.f32 0.0, %v343
  %v345 = vpop.f32.mrb[0].mxu0
  %346 = vmatprep.mubr.f32.mxu0 0.0
  %347 = vmatmul.mubr.f32.gmra.mrb[0].mxu0 %v54
  %v348 = vpop.f32.mrb[0].mxu0
  %v349 = vadd.f32 0.0, %v348
  %v350 = vpop.f32.mrb[0].mxu0
  %351 = vmatprep.mubr.f32.mxu0 0.0
  %352 = vmatmul.mubr.f32.gmra.mrb[0].mxu0 %v55
  %v353 = vpop.f32.mrb[0].mxu0
  %v354 = vadd.f32 0.0, %v353
  %v355 = vpop.f32.mrb[0].mxu0
  %356 = vmatprep.mubr.f32.mxu0 0.0
  %357 = vmatmul.mubr.f32.gmra.mrb[0].mxu0 %v56
  %v358 = vpop.f32.mrb[0].mxu0
  %v359 = vadd.f32 0.0, %v358
  %v360 = vpop.f32.mrb[0].mxu0
  %361 = vmatprep.mubr.f32.mxu0 0.0
  %362 = vmatmul.mubr.f32.gmra.mrb[0].mxu0 %v57
  %v363 = vpop.f32.mrb[0].mxu0
  %v364 = vadd.f32 0.0, %v363
  %v365 = vpop.f32.mrb[0].mxu0
  %366 = vmatprep.mubr.f32.mxu0 0.0
  %367 = vmatmul.mubr.f32.gmra.mrb[0].mxu0 %v58
  %v368 = vpop.f32.mrb[0].mxu0
  %v369 = vadd.f32 0.0, %v368
  %v370 = vpop.f32.mrb[0].mxu0
  %371 = vmatprep.mubr.f32.mxu0 0.0
  %372 = vmatmul.mubr.f32.gmra.mrb[0].mxu0 %v59
  %v373 = vpop.f32.mrb[0].mxu0
  %v374 = vadd.f32 0.0, %v373
  %v375 = vpop.f32.mrb[0].mxu0
  %376 = vmatprep.mubr.f32.mxu0 0.0
  %377 = vmatmul.mubr.f32.gmra.mrb[0].mxu0 %v60
  %v378 = vpop.f32.mrb[0].mxu0
  %v379 = vadd.f32 0.0, %v378
  %v380 = vpop.f32.mrb[0].mxu0
  %381 = vmatprep.mubr.f32.mxu0 0.0
  %382 = vmatmul.mubr.f32.gmra.mrb[0].mxu0 %v61
  %v383 = vpop.f32.mrb[0].mxu0
  %v384 = vadd.f32 0.0, %v383
  %v385 = vpop.f32.mrb[0].mxu0
  %386 = vmatprep.mubr.f32.mxu0 0.0
  %387 = vmatmul.mubr.f32.gmra.mrb[0].mxu0 %v62
  %v388 = vpop.f32.mrb[0].mxu0
  %v389 = vadd.f32 0.0, %v388
  %v390 = vpop.f32.mrb[0].mxu0
  %391 = vmatprep.mubr.f32.mxu0 0.0
  %392 = vmatmul.mubr.f32.gmra.mrb[0].mxu0 %v63
  %v393 = vpop.f32.mrb[0].mxu0
  %v394 = vadd.f32 0.0, %v393
  %v395 = vpop.f32.mrb[0].mxu0
  %396 = vmatprep.mubr.f32.mxu0 0.0
  %397 = vmatmul.mubr.f32.gmra.mrb[0].mxu0 %v64
  %v398 = vpop.f32.mrb[0].mxu0
  %v399 = vadd.f32 0.0, %v398
  %v400 = vpop.f32.mrb[0].mxu0
  %401 = vmatprep.mubr.f32.mxu0 0.0
  %402 = vmatmul.mubr.f32.gmra.mrb[0].mxu0 %v65
  %v403 = vpop.f32.mrb[0].mxu0
  %v404 = vadd.f32 0.0, %v403
  %v405 = vpop.f32.mrb[0].mxu0
  %406 = vmatprep.mubr.f32.mxu0 0.0
  %407 = vmatmul.mubr.f32.gmra.mrb[0].mxu0 %v66
  %v408 = vpop.f32.mrb[0].mxu0
  %v409 = vadd.f32 0.0, %v408
  %v410 = vpop.f32.mrb[0].mxu0
  %411 = vmatprep.mubr.f32.mxu0 0.0
  %412 = vmatmul.mubr.f32.gmra.mrb[0].mxu0 %v67
  %v413 = vpop.f32.mrb[0].mxu0
  %v414 = vadd.f32 0.0, %v413
  %v415 = vpop.f32.mrb[0].mxu0
  %416 = vmatprep.mubr.f32.mxu0 0.0
  %417 = vmatmul.mubr.f32.gmra.mrb[0].mxu0 %v68
  %v418 = vpop.f32.mrb[0].mxu0
  %v419 = vadd.f32 0.0, %v418
  %v420 = vpop.f32.mrb[0].mxu0
  %421 = vmatprep.mubr.f32.mxu0 0.0
  %422 = vmatmul.mubr.f32.gmra.mrb[0].mxu0 %v69
  %v423 = vpop.f32.mrb[0].mxu0
  %v424 = vadd.f32 0.0, %v423
  %v425 = vpop.f32.mrb[0].mxu0
  %426 = vmatprep.mubr.f32.mxu0 0.0
  %427 = vmatmul.mubr.f32.gmra.mrb[0].mxu0 %v70
  %v428 = vpop.f32.mrb[0].mxu0
  %v429 = vadd.f32 0.0, %v428
  %v430 = vpop.f32.mrb[0].mxu0
  %431 = vmatprep.mubr.f32.mxu0 0.0
  %432 = vmatmul.mubr.f32.gmra.mrb[0].mxu0 %v71
  %v433 = vpop.f32.mrb[0].mxu0
  %v434 = vadd.f32 0.0, %v433
  %v435 = vpop.f32.mrb[0].mxu0
  %436 = vmatprep.mubr.f32.mxu0 0.0
  %437 = vmatmul.mubr.f32.gmra.mrb[0].mxu0 %v72
  %v438 = vpop.f32.mrb[0].mxu0
  %v439 = vadd.f32 0.0, %v438
  %v440 = vpop.f32.mrb[0].mxu0
  %441 = vmatprep.mubr.f32.mxu0 0.0
  %442 = vmatmul.mubr.f32.gmra.mrb[0].mxu0 %v73
  %v443 = vpop.f32.mrb[0].mxu0
  %v444 = vadd.f32 0.0, %v443
  %v445 = vpop.f32.mrb[0].mxu0
  %446 = vmatprep.mubr.f32.mxu0 0.0
  %447 = vmatmul.mubr.f32.gmra.mrb[0].mxu0 %v74
  %v448 = vpop.f32.mrb[0].mxu0
  %v449 = vadd.f32 0.0, %v448
  %v450 = vpop.f32.mrb[0].mxu0
  %451 = vmatprep.mubr.f32.mxu0 0.0
  %452 = vmatmul.mubr.f32.gmra.mrb[0].mxu0 %v75
  %v453 = vpop.f32.mrb[0].mxu0
  %v454 = vadd.f32 0.0, %v453
  %v455 = vpop.f32.mrb[0].mxu0
  %456 = vmatprep.mubr.f32.mxu0 0.0
  %457 = vmatmul.mubr.f32.gmra.mrb[0].mxu0 %v76
  %v458 = vpop.f32.mrb[0].mxu0
  %v459 = vadd.f32 0.0, %v458
  %v460 = vpop.f32.mrb[0].mxu0
  %461 = vmatprep.mubr.f32.mxu0 0.0
  %462 = vmatmul.mubr.f32.gmra.mrb[0].mxu0 %v77
  %v463 = vpop.f32.mrb[0].mxu0
  %v464 = vadd.f32 0.0, %v463
  %v465 = vpop.f32.mrb[0].mxu0
  %466 = vmatprep.mubr.f32.mxu0 0.0
  %467 = vmatmul.mubr.f32.gmra.mrb[0].mxu0 %v78
  %v468 = vpop.f32.mrb[0].mxu0
  %v469 = vadd.f32 0.0, %v468
  %v470 = vpop.f32.mrb[0].mxu0
  %471 = vmatprep.mubr.f32.mxu0 0.0
  %472 = vmatmul.mubr.f32.gmra.mrb[0].mxu0 %v79
  %v473 = vpop.f32.mrb[0].mxu0
  %v474 = vadd.f32 0.0, %v473
  %v475 = vpop.f32.mrb[0].mxu0
  %476 = vmatprep.mubr.f32.mxu0 0.0
  %477 = vmatmul.mubr.f32.gmra.mrb[0].mxu0 %v80
  %v478 = vpop.f32.mrb[0].mxu0
  %v479 = vadd.f32 0.0, %v478
  %v480 = vpop.f32.mrb[0].mxu0
  %481 = vdwg.mxu0
  %v482 = vld [vmem:[%s2] sm:$0x1]
  %v484 = vlaneseq
  %v485 = vshrl.u32 %v484, 7
  %v486 = vsub.s32 0, %v485
  %v487 = vrot.slane %v482, %v486
  %v489 = vmul.f32 %v164, %v487
  %v490 = vmul.f32 %v169, %v487
  %v491 = vmul.f32 %v174, %v487
  %v492 = vmul.f32 %v179, %v487
  %v493 = vmul.f32 %v184, %v487
  %v494 = vmul.f32 %v189, %v487
  %v495 = vmul.f32 %v194, %v487
  %v496 = vmul.f32 %v199, %v487
  %v497 = vmul.f32 %v204, %v487
  %v498 = vmul.f32 %v209, %v487
  %v499 = vmul.f32 %v214, %v487
  %v500 = vmul.f32 %v219, %v487
  %v501 = vmul.f32 %v224, %v487
  %v502 = vmul.f32 %v229, %v487
  %v503 = vmul.f32 %v234, %v487
  %v504 = vmul.f32 %v239, %v487
  %v505 = vmul.f32 %v244, %v487
  %v506 = vmul.f32 %v249, %v487
  %v507 = vmul.f32 %v254, %v487
  %v508 = vmul.f32 %v259, %v487
  %v509 = vmul.f32 %v264, %v487
  %v510 = vmul.f32 %v269, %v487
  %v511 = vmul.f32 %v274, %v487
  %v512 = vmul.f32 %v279, %v487
  %v513 = vmul.f32 %v284, %v487
  %v514 = vmul.f32 %v289, %v487
  %v515 = vmul.f32 %v294, %v487
  %v516 = vmul.f32 %v299, %v487
  %v517 = vmul.f32 %v304, %v487
  %v518 = vmul.f32 %v309, %v487
  %v519 = vmul.f32 %v314, %v487
  %v520 = vmul.f32 %v319, %v487
  %v521 = vmul.f32 %v324, %v487
  %v522 = vmul.f32 %v329, %v487
  %v523 = vmul.f32 %v334, %v487
  %v524 = vmul.f32 %v339, %v487
  %v525 = vmul.f32 %v344, %v487
  %v526 = vmul.f32 %v349, %v487
  %v527 = vmul.f32 %v354, %v487
  %v528 = vmul.f32 %v359, %v487
  %v529 = vmul.f32 %v364, %v487
  %v530 = vmul.f32 %v369, %v487
  %v531 = vmul.f32 %v374, %v487
  %v532 = vmul.f32 %v379, %v487
  %v533 = vmul.f32 %v384, %v487
  %v534 = vmul.f32 %v389, %v487
  %v535 = vmul.f32 %v394, %v487
  %v536 = vmul.f32 %v399, %v487
  %v537 = vmul.f32 %v404, %v487
  %v538 = vmul.f32 %v409, %v487
  %v539 = vmul.f32 %v414, %v487
  %v540 = vmul.f32 %v419, %v487
  %v541 = vmul.f32 %v424, %v487
  %v542 = vmul.f32 %v429, %v487
  %v543 = vmul.f32 %v434, %v487
  %v544 = vmul.f32 %v439, %v487
  %v545 = vmul.f32 %v444, %v487
  %v546 = vmul.f32 %v449, %v487
  %v547 = vmul.f32 %v454, %v487
  %v548 = vmul.f32 %v459, %v487
  %v549 = vmul.f32 %v464, %v487
  %v550 = vmul.f32 %v469, %v487
  %v551 = vmul.f32 %v474, %v487
  %v552 = vmul.f32 %v479, %v487
  %v553 = vld [vmem:[%s3] sm:$0x1]
  %v555 = vlaneseq
  %v556 = vshrl.u32 %v555, 7
  %v557 = vsub.s32 0, %v556
  %v558 = vrot.slane %v553, %v557
  %v560 = vadd.f32 %v489, %v558
  %v561 = vadd.f32 %v490, %v558
  %v562 = vadd.f32 %v491, %v558
  %v563 = vadd.f32 %v492, %v558
  %v564 = vadd.f32 %v493, %v558
  %v565 = vadd.f32 %v494, %v558
  %v566 = vadd.f32 %v495, %v558
  %v567 = vadd.f32 %v496, %v558
  %v568 = vadd.f32 %v497, %v558
  %v569 = vadd.f32 %v498, %v558
  %v570 = vadd.f32 %v499, %v558
  %v571 = vadd.f32 %v500, %v558
  %v572 = vadd.f32 %v501, %v558
  %v573 = vadd.f32 %v502, %v558
  %v574 = vadd.f32 %v503, %v558
  %v575 = vadd.f32 %v504, %v558
  %v576 = vadd.f32 %v505, %v558
  %v577 = vadd.f32 %v506, %v558
  %v578 = vadd.f32 %v507, %v558
  %v579 = vadd.f32 %v508, %v558
  %v580 = vadd.f32 %v509, %v558
  %v581 = vadd.f32 %v510, %v558
  %v582 = vadd.f32 %v511, %v558
  %v583 = vadd.f32 %v512, %v558
  %v584 = vadd.f32 %v513, %v558
  %v585 = vadd.f32 %v514, %v558
  %v586 = vadd.f32 %v515, %v558
  %v587 = vadd.f32 %v516, %v558
  %v588 = vadd.f32 %v517, %v558
  %v589 = vadd.f32 %v518, %v558
  %v590 = vadd.f32 %v519, %v558
  %v591 = vadd.f32 %v520, %v558
  %v592 = vadd.f32 %v521, %v558
  %v593 = vadd.f32 %v522, %v558
  %v594 = vadd.f32 %v523, %v558
  %v595 = vadd.f32 %v524, %v558
  %v596 = vadd.f32 %v525, %v558
  %v597 = vadd.f32 %v526, %v558
  %v598 = vadd.f32 %v527, %v558
  %v599 = vadd.f32 %v528, %v558
  %v600 = vadd.f32 %v529, %v558
  %v601 = vadd.f32 %v530, %v558
  %v602 = vadd.f32 %v531, %v558
  %v603 = vadd.f32 %v532, %v558
  %v604 = vadd.f32 %v533, %v558
  %v605 = vadd.f32 %v534, %v558
  %v606 = vadd.f32 %v535, %v558
  %v607 = vadd.f32 %v536, %v558
  %v608 = vadd.f32 %v537, %v558
  %v609 = vadd.f32 %v538, %v558
  %v610 = vadd.f32 %v539, %v558
  %v611 = vadd.f32 %v540, %v558
  %v612 = vadd.f32 %v541, %v558
  %v613 = vadd.f32 %v542, %v558
  %v614 = vadd.f32 %v543, %v558
  %v615 = vadd.f32 %v544, %v558
  %v616 = vadd.f32 %v545, %v558
  %v617 = vadd.f32 %v546, %v558
  %v618 = vadd.f32 %v547, %v558
  %v619 = vadd.f32 %v548, %v558
  %v620 = vadd.f32 %v549, %v558
  %v621 = vadd.f32 %v550, %v558
  %v622 = vadd.f32 %v551, %v558
  %v623 = vadd.f32 %v552, %v558
  %v624 = vmul.f32 %v560, 0.5
  %v625 = vmul.f32 %v561, 0.5
  %v626 = vmul.f32 %v562, 0.5
  %v627 = vmul.f32 %v563, 0.5
  %v628 = vmul.f32 %v564, 0.5
  %v629 = vmul.f32 %v565, 0.5
  %v630 = vmul.f32 %v566, 0.5
  %v631 = vmul.f32 %v567, 0.5
  %v632 = vmul.f32 %v568, 0.5
  %v633 = vmul.f32 %v569, 0.5
  %v634 = vmul.f32 %v570, 0.5
  %v635 = vmul.f32 %v571, 0.5
  %v636 = vmul.f32 %v572, 0.5
  %v637 = vmul.f32 %v573, 0.5
  %v638 = vmul.f32 %v574, 0.5
  %v639 = vmul.f32 %v575, 0.5
  %v640 = vmul.f32 %v576, 0.5
  %v641 = vmul.f32 %v577, 0.5
  %v642 = vmul.f32 %v578, 0.5
  %v643 = vmul.f32 %v579, 0.5
  %v644 = vmul.f32 %v580, 0.5
  %v645 = vmul.f32 %v581, 0.5
  %v646 = vmul.f32 %v582, 0.5
  %v647 = vmul.f32 %v583, 0.5
  %v648 = vmul.f32 %v584, 0.5
  %v649 = vmul.f32 %v585, 0.5
  %v650 = vmul.f32 %v586, 0.5
  %v651 = vmul.f32 %v587, 0.5
  %v652 = vmul.f32 %v588, 0.5
  %v653 = vmul.f32 %v589, 0.5
  %v654 = vmul.f32 %v590, 0.5
  %v655 = vmul.f32 %v591, 0.5
  %v656 = vmul.f32 %v592, 0.5
  %v657 = vmul.f32 %v593, 0.5
  %v658 = vmul.f32 %v594, 0.5
  %v659 = vmul.f32 %v595, 0.5
  %v660 = vmul.f32 %v596, 0.5
  %v661 = vmul.f32 %v597, 0.5
  %v662 = vmul.f32 %v598, 0.5
  %v663 = vmul.f32 %v599, 0.5
  %v664 = vmul.f32 %v600, 0.5
  %v665 = vmul.f32 %v601, 0.5
  %v666 = vmul.f32 %v602, 0.5
  %v667 = vmul.f32 %v603, 0.5
  %v668 = vmul.f32 %v604, 0.5
  %v669 = vmul.f32 %v605, 0.5
  %v670 = vmul.f32 %v606, 0.5
  %v671 = vmul.f32 %v607, 0.5
  %v672 = vmul.f32 %v608, 0.5
  %v673 = vmul.f32 %v609, 0.5
  %v674 = vmul.f32 %v610, 0.5
  %v675 = vmul.f32 %v611, 0.5
  %v676 = vmul.f32 %v612, 0.5
  %v677 = vmul.f32 %v613, 0.5
  %v678 = vmul.f32 %v614, 0.5
  %v679 = vmul.f32 %v615, 0.5
  %v680 = vmul.f32 %v616, 0.5
  %v681 = vmul.f32 %v617, 0.5
  %v682 = vmul.f32 %v618, 0.5
  %v683 = vmul.f32 %v619, 0.5
  %v684 = vmul.f32 %v620, 0.5
  %v685 = vmul.f32 %v621, 0.5
  %v686 = vmul.f32 %v622, 0.5
  %v687 = vmul.f32 %v623, 0.5
  %v688 = vmul.f32 %v560, 0.70710677
  %v689 = vmul.f32 %v561, 0.70710677
  %v690 = vmul.f32 %v562, 0.70710677
  %v691 = vmul.f32 %v563, 0.70710677
  %v692 = vmul.f32 %v564, 0.70710677
  %v693 = vmul.f32 %v565, 0.70710677
  %v694 = vmul.f32 %v566, 0.70710677
  %v695 = vmul.f32 %v567, 0.70710677
  %v696 = vmul.f32 %v568, 0.70710677
  %v697 = vmul.f32 %v569, 0.70710677
  %v698 = vmul.f32 %v570, 0.70710677
  %v699 = vmul.f32 %v571, 0.70710677
  %v700 = vmul.f32 %v572, 0.70710677
  %v701 = vmul.f32 %v573, 0.70710677
  %v702 = vmul.f32 %v574, 0.70710677
  %v703 = vmul.f32 %v575, 0.70710677
  %v704 = vmul.f32 %v576, 0.70710677
  %v705 = vmul.f32 %v577, 0.70710677
  %v706 = vmul.f32 %v578, 0.70710677
  %v707 = vmul.f32 %v579, 0.70710677
  %v708 = vmul.f32 %v580, 0.70710677
  %v709 = vmul.f32 %v581, 0.70710677
  %v710 = vmul.f32 %v582, 0.70710677
  %v711 = vmul.f32 %v583, 0.70710677
  %v712 = vmul.f32 %v584, 0.70710677
  %v713 = vmul.f32 %v585, 0.70710677
  %v714 = vmul.f32 %v586, 0.70710677
  %v715 = vmul.f32 %v587, 0.70710677
  %v716 = vmul.f32 %v588, 0.70710677
  %v717 = vmul.f32 %v589, 0.70710677
  %v718 = vmul.f32 %v590, 0.70710677
  %v719 = vmul.f32 %v591, 0.70710677
  %v720 = vmul.f32 %v592, 0.70710677
  %v721 = vmul.f32 %v593, 0.70710677
  %v722 = vmul.f32 %v594, 0.70710677
  %v723 = vmul.f32 %v595, 0.70710677
  %v724 = vmul.f32 %v596, 0.70710677
  %v725 = vmul.f32 %v597, 0.70710677
  %v726 = vmul.f32 %v598, 0.70710677
  %v727 = vmul.f32 %v599, 0.70710677
  %v728 = vmul.f32 %v600, 0.70710677
  %v729 = vmul.f32 %v601, 0.70710677
  %v730 = vmul.f32 %v602, 0.70710677
  %v731 = vmul.f32 %v603, 0.70710677
  %v732 = vmul.f32 %v604, 0.70710677
  %v733 = vmul.f32 %v605, 0.70710677
  %v734 = vmul.f32 %v606, 0.70710677
  %v735 = vmul.f32 %v607, 0.70710677
  %v736 = vmul.f32 %v608, 0.70710677
  %v737 = vmul.f32 %v609, 0.70710677
  %v738 = vmul.f32 %v610, 0.70710677
  %v739 = vmul.f32 %v611, 0.70710677
  %v740 = vmul.f32 %v612, 0.70710677
  %v741 = vmul.f32 %v613, 0.70710677
  %v742 = vmul.f32 %v614, 0.70710677
  %v743 = vmul.f32 %v615, 0.70710677
  %v744 = vmul.f32 %v616, 0.70710677
  %v745 = vmul.f32 %v617, 0.70710677
  %v746 = vmul.f32 %v618, 0.70710677
  %v747 = vmul.f32 %v619, 0.70710677
  %v748 = vmul.f32 %v620, 0.70710677
  %v749 = vmul.f32 %v621, 0.70710677
  %v750 = vmul.f32 %v622, 0.70710677
  %v751 = vmul.f32 %v623, 0.70710677
  %v752 = vand.u32 2147483647, %v688
  %v753 = vand.u32 2147483647, %v689
  %v754 = vand.u32 2147483647, %v690
  %v755 = vand.u32 2147483647, %v691
  %v756 = vand.u32 2147483647, %v692
  %v757 = vand.u32 2147483647, %v693
  %v758 = vand.u32 2147483647, %v694
  %v759 = vand.u32 2147483647, %v695
  %v760 = vand.u32 2147483647, %v696
  %v761 = vand.u32 2147483647, %v697
  %v762 = vand.u32 2147483647, %v698
  %v763 = vand.u32 2147483647, %v699
  %v764 = vand.u32 2147483647, %v700
  %v765 = vand.u32 2147483647, %v701
  %v766 = vand.u32 2147483647, %v702
  %v767 = vand.u32 2147483647, %v703
  %v768 = vand.u32 2147483647, %v704
  %v769 = vand.u32 2147483647, %v705
  %v770 = vand.u32 2147483647, %v706
  %v771 = vand.u32 2147483647, %v707
  %v772 = vand.u32 2147483647, %v708
  %v773 = vand.u32 2147483647, %v709
  %v774 = vand.u32 2147483647, %v710
  %v775 = vand.u32 2147483647, %v711
  %v776 = vand.u32 2147483647, %v712
  %v777 = vand.u32 2147483647, %v713
  %v778 = vand.u32 2147483647, %v714
  %v779 = vand.u32 2147483647, %v715
  %v780 = vand.u32 2147483647, %v716
  %v781 = vand.u32 2147483647, %v717
  %v782 = vand.u32 2147483647, %v718
  %v783 = vand.u32 2147483647, %v719
  %v784 = vand.u32 2147483647, %v720
  %v785 = vand.u32 2147483647, %v721
  %v786 = vand.u32 2147483647, %v722
  %v787 = vand.u32 2147483647, %v723
  %v788 = vand.u32 2147483647, %v724
  %v789 = vand.u32 2147483647, %v725
  %v790 = vand.u32 2147483647, %v726
  %v791 = vand.u32 2147483647, %v727
  %v792 = vand.u32 2147483647, %v728
  %v793 = vand.u32 2147483647, %v729
  %v794 = vand.u32 2147483647, %v730
  %v795 = vand.u32 2147483647, %v731
  %v796 = vand.u32 2147483647, %v732
  %v797 = vand.u32 2147483647, %v733
  %v798 = vand.u32 2147483647, %v734
  %v799 = vand.u32 2147483647, %v735
  %v800 = vand.u32 2147483647, %v736
  %v801 = vand.u32 2147483647, %v737
  %v802 = vand.u32 2147483647, %v738
  %v803 = vand.u32 2147483647, %v739
  %v804 = vand.u32 2147483647, %v740
  %v805 = vand.u32 2147483647, %v741
  %v806 = vand.u32 2147483647, %v742
  %v807 = vand.u32 2147483647, %v743
  %v808 = vand.u32 2147483647, %v744
  %v809 = vand.u32 2147483647, %v745
  %v810 = vand.u32 2147483647, %v746
  %v811 = vand.u32 2147483647, %v747
  %v812 = vand.u32 2147483647, %v748
  %v813 = vand.u32 2147483647, %v749
  %v814 = vand.u32 2147483647, %v750
  %v815 = vand.u32 2147483647, %v751
  %v816 = vmul.f32 %v752, 0.3275911
  %v817 = vmul.f32 %v753, 0.3275911
  %v818 = vmul.f32 %v754, 0.3275911
  %v819 = vmul.f32 %v755, 0.3275911
  %v820 = vmul.f32 %v756, 0.3275911
  %v821 = vmul.f32 %v757, 0.3275911
  %v822 = vmul.f32 %v758, 0.3275911
  %v823 = vmul.f32 %v759, 0.3275911
  %v824 = vmul.f32 %v760, 0.3275911
  %v825 = vmul.f32 %v761, 0.3275911
  %v826 = vmul.f32 %v762, 0.3275911
  %v827 = vmul.f32 %v763, 0.3275911
  %v828 = vmul.f32 %v764, 0.3275911
  %v829 = vmul.f32 %v765, 0.3275911
  %v830 = vmul.f32 %v766, 0.3275911
  %v831 = vmul.f32 %v767, 0.3275911
  %v832 = vmul.f32 %v768, 0.3275911
  %v833 = vmul.f32 %v769, 0.3275911
  %v834 = vmul.f32 %v770, 0.3275911
  %v835 = vmul.f32 %v771, 0.3275911
  %v836 = vmul.f32 %v772, 0.3275911
  %v837 = vmul.f32 %v773, 0.3275911
  %v838 = vmul.f32 %v774, 0.3275911
  %v839 = vmul.f32 %v775, 0.3275911
  %v840 = vmul.f32 %v776, 0.3275911
  %v841 = vmul.f32 %v777, 0.3275911
  %v842 = vmul.f32 %v778, 0.3275911
  %v843 = vmul.f32 %v779, 0.3275911
  %v844 = vmul.f32 %v780, 0.3275911
  %v845 = vmul.f32 %v781, 0.3275911
  %v846 = vmul.f32 %v782, 0.3275911
  %v847 = vmul.f32 %v783, 0.3275911
  %v848 = vmul.f32 %v784, 0.3275911
  %v849 = vmul.f32 %v785, 0.3275911
  %v850 = vmul.f32 %v786, 0.3275911
  %v851 = vmul.f32 %v787, 0.3275911
  %v852 = vmul.f32 %v788, 0.3275911
  %v853 = vmul.f32 %v789, 0.3275911
  %v854 = vmul.f32 %v790, 0.3275911
  %v855 = vmul.f32 %v791, 0.3275911
  %v856 = vmul.f32 %v792, 0.3275911
  %v857 = vmul.f32 %v793, 0.3275911
  %v858 = vmul.f32 %v794, 0.3275911
  %v859 = vmul.f32 %v795, 0.3275911
  %v860 = vmul.f32 %v796, 0.3275911
  %v861 = vmul.f32 %v797, 0.3275911
  %v862 = vmul.f32 %v798, 0.3275911
  %v863 = vmul.f32 %v799, 0.3275911
  %v864 = vmul.f32 %v800, 0.3275911
  %v865 = vmul.f32 %v801, 0.3275911
  %v866 = vmul.f32 %v802, 0.3275911
  %v867 = vmul.f32 %v803, 0.3275911
  %v868 = vmul.f32 %v804, 0.3275911
  %v869 = vmul.f32 %v805, 0.3275911
  %v870 = vmul.f32 %v806, 0.3275911
  %v871 = vmul.f32 %v807, 0.3275911
  %v872 = vmul.f32 %v808, 0.3275911
  %v873 = vmul.f32 %v809, 0.3275911
  %v874 = vmul.f32 %v810, 0.3275911
  %v875 = vmul.f32 %v811, 0.3275911
  %v876 = vmul.f32 %v812, 0.3275911
  %v877 = vmul.f32 %v813, 0.3275911
  %v878 = vmul.f32 %v814, 0.3275911
  %v879 = vmul.f32 %v815, 0.3275911
  %v880 = vadd.f32 %v816, 1.0
  %v881 = vadd.f32 %v817, 1.0
  %v882 = vadd.f32 %v818, 1.0
  %v883 = vadd.f32 %v819, 1.0
  %v884 = vadd.f32 %v820, 1.0
  %v885 = vadd.f32 %v821, 1.0
  %v886 = vadd.f32 %v822, 1.0
  %v887 = vadd.f32 %v823, 1.0
  %v888 = vadd.f32 %v824, 1.0
  %v889 = vadd.f32 %v825, 1.0
  %v890 = vadd.f32 %v826, 1.0
  %v891 = vadd.f32 %v827, 1.0
  %v892 = vadd.f32 %v828, 1.0
  %v893 = vadd.f32 %v829, 1.0
  %v894 = vadd.f32 %v830, 1.0
  %v895 = vadd.f32 %v831, 1.0
  %v896 = vadd.f32 %v832, 1.0
  %v897 = vadd.f32 %v833, 1.0
  %v898 = vadd.f32 %v834, 1.0
  %v899 = vadd.f32 %v835, 1.0
  %v900 = vadd.f32 %v836, 1.0
  %v901 = vadd.f32 %v837, 1.0
  %v902 = vadd.f32 %v838, 1.0
  %v903 = vadd.f32 %v839, 1.0
  %v904 = vadd.f32 %v840, 1.0
  %v905 = vadd.f32 %v841, 1.0
  %v906 = vadd.f32 %v842, 1.0
  %v907 = vadd.f32 %v843, 1.0
  %v908 = vadd.f32 %v844, 1.0
  %v909 = vadd.f32 %v845, 1.0
  %v910 = vadd.f32 %v846, 1.0
  %v911 = vadd.f32 %v847, 1.0
  %v912 = vadd.f32 %v848, 1.0
  %v913 = vadd.f32 %v849, 1.0
  %v914 = vadd.f32 %v850, 1.0
  %v915 = vadd.f32 %v851, 1.0
  %v916 = vadd.f32 %v852, 1.0
  %v917 = vadd.f32 %v853, 1.0
  %v918 = vadd.f32 %v854, 1.0
  %v919 = vadd.f32 %v855, 1.0
  %v920 = vadd.f32 %v856, 1.0
  %v921 = vadd.f32 %v857, 1.0
  %v922 = vadd.f32 %v858, 1.0
  %v923 = vadd.f32 %v859, 1.0
  %v924 = vadd.f32 %v860, 1.0
  %v925 = vadd.f32 %v861, 1.0
  %v926 = vadd.f32 %v862, 1.0
  %v927 = vadd.f32 %v863, 1.0
  %v928 = vadd.f32 %v864, 1.0
  %v929 = vadd.f32 %v865, 1.0
  %v930 = vadd.f32 %v866, 1.0
  %v931 = vadd.f32 %v867, 1.0
  %v932 = vadd.f32 %v868, 1.0
  %v933 = vadd.f32 %v869, 1.0
  %v934 = vadd.f32 %v870, 1.0
  %v935 = vadd.f32 %v871, 1.0
  %v936 = vadd.f32 %v872, 1.0
  %v937 = vadd.f32 %v873, 1.0
  %v938 = vadd.f32 %v874, 1.0
  %v939 = vadd.f32 %v875, 1.0
  %v940 = vadd.f32 %v876, 1.0
  %v941 = vadd.f32 %v877, 1.0
  %v942 = vadd.f32 %v878, 1.0
  %v943 = vadd.f32 %v879, 1.0
  %v944 = vrcp.pop %v880
  %v945 = vmul.f32 1.0, %v944
  %v946 = vrcp.pop %v881
  %v947 = vmul.f32 1.0, %v946
  %v948 = vrcp.pop %v882
  %v949 = vmul.f32 1.0, %v948
  %v950 = vrcp.pop %v883
  %v951 = vmul.f32 1.0, %v950
  %v952 = vrcp.pop %v884
  %v953 = vmul.f32 1.0, %v952
  %v954 = vrcp.pop %v885
  %v955 = vmul.f32 1.0, %v954
  %v956 = vrcp.pop %v886
  %v957 = vmul.f32 1.0, %v956
  %v958 = vrcp.pop %v887
  %v959 = vmul.f32 1.0, %v958
  %v960 = vrcp.pop %v888
  %v961 = vmul.f32 1.0, %v960
  %v962 = vrcp.pop %v889
  %v963 = vmul.f32 1.0, %v962
  %v964 = vrcp.pop %v890
  %v965 = vmul.f32 1.0, %v964
  %v966 = vrcp.pop %v891
  %v967 = vmul.f32 1.0, %v966
  %v968 = vrcp.pop %v892
  %v969 = vmul.f32 1.0, %v968
  %v970 = vrcp.pop %v893
  %v971 = vmul.f32 1.0, %v970
  %v972 = vrcp.pop %v894
  %v973 = vmul.f32 1.0, %v972
  %v974 = vrcp.pop %v895
  %v975 = vmul.f32 1.0, %v974
  %v976 = vrcp.pop %v896
  %v977 = vmul.f32 1.0, %v976
  %v978 = vrcp.pop %v897
  %v979 = vmul.f32 1.0, %v978
  %v980 = vrcp.pop %v898
  %v981 = vmul.f32 1.0, %v980
  %v982 = vrcp.pop %v899
  %v983 = vmul.f32 1.0, %v982
  %v984 = vrcp.pop %v900
  %v985 = vmul.f32 1.0, %v984
  %v986 = vrcp.pop %v901
  %v987 = vmul.f32 1.0, %v986
  %v988 = vrcp.pop %v902
  %v989 = vmul.f32 1.0, %v988
  %v990 = vrcp.pop %v903
  %v991 = vmul.f32 1.0, %v990
  %v992 = vrcp.pop %v904
  %v993 = vmul.f32 1.0, %v992
  %v994 = vrcp.pop %v905
  %v995 = vmul.f32 1.0, %v994
  %v996 = vrcp.pop %v906
  %v997 = vmul.f32 1.0, %v996
  %v998 = vrcp.pop %v907
  %v999 = vmul.f32 1.0, %v998
  %v1000 = vrcp.pop %v908
  %v1001 = vmul.f32 1.0, %v1000
  %v1002 = vrcp.pop %v909
  %v1003 = vmul.f32 1.0, %v1002
  %v1004 = vrcp.pop %v910
  %v1005 = vmul.f32 1.0, %v1004
  %v1006 = vrcp.pop %v911
  %v1007 = vmul.f32 1.0, %v1006
  %v1008 = vrcp.pop %v912
  %v1009 = vmul.f32 1.0, %v1008
  %v1010 = vrcp.pop %v913
  %v1011 = vmul.f32 1.0, %v1010
  %v1012 = vrcp.pop %v914
  %v1013 = vmul.f32 1.0, %v1012
  %v1014 = vrcp.pop %v915
  %v1015 = vmul.f32 1.0, %v1014
  %v1016 = vrcp.pop %v916
  %v1017 = vmul.f32 1.0, %v1016
  %v1018 = vrcp.pop %v917
  %v1019 = vmul.f32 1.0, %v1018
  %v1020 = vrcp.pop %v918
  %v1021 = vmul.f32 1.0, %v1020
  %v1022 = vrcp.pop %v919
  %v1023 = vmul.f32 1.0, %v1022
  %v1024 = vrcp.pop %v920
  %v1025 = vmul.f32 1.0, %v1024
  %v1026 = vrcp.pop %v921
  %v1027 = vmul.f32 1.0, %v1026
  %v1028 = vrcp.pop %v922
  %v1029 = vmul.f32 1.0, %v1028
  %v1030 = vrcp.pop %v923
  %v1031 = vmul.f32 1.0, %v1030
  %v1032 = vrcp.pop %v924
  %v1033 = vmul.f32 1.0, %v1032
  %v1034 = vrcp.pop %v925
  %v1035 = vmul.f32 1.0, %v1034
  %v1036 = vrcp.pop %v926
  %v1037 = vmul.f32 1.0, %v1036
  %v1038 = vrcp.pop %v927
  %v1039 = vmul.f32 1.0, %v1038
  %v1040 = vrcp.pop %v928
  %v1041 = vmul.f32 1.0, %v1040
  %v1042 = vrcp.pop %v929
  %v1043 = vmul.f32 1.0, %v1042
  %v1044 = vrcp.pop %v930
  %v1045 = vmul.f32 1.0, %v1044
  %v1046 = vrcp.pop %v931
  %v1047 = vmul.f32 1.0, %v1046
  %v1048 = vrcp.pop %v932
  %v1049 = vmul.f32 1.0, %v1048
  %v1050 = vrcp.pop %v933
  %v1051 = vmul.f32 1.0, %v1050
  %v1052 = vrcp.pop %v934
  %v1053 = vmul.f32 1.0, %v1052
  %v1054 = vrcp.pop %v935
  %v1055 = vmul.f32 1.0, %v1054
  %v1056 = vrcp.pop %v936
  %v1057 = vmul.f32 1.0, %v1056
  %v1058 = vrcp.pop %v937
  %v1059 = vmul.f32 1.0, %v1058
  %v1060 = vrcp.pop %v938
  %v1061 = vmul.f32 1.0, %v1060
  %v1062 = vrcp.pop %v939
  %v1063 = vmul.f32 1.0, %v1062
  %v1064 = vrcp.pop %v940
  %v1065 = vmul.f32 1.0, %v1064
  %v1066 = vrcp.pop %v941
  %v1067 = vmul.f32 1.0, %v1066
  %v1068 = vrcp.pop %v942
  %v1069 = vmul.f32 1.0, %v1068
  %v1070 = vrcp.pop %v943
  %v1071 = vmul.f32 1.0, %v1070
  %v1072 = vmul.f32 %v945, 1.0614054
  %v1073 = vmul.f32 %v947, 1.0614054
  %v1074 = vmul.f32 %v949, 1.0614054
  %v1075 = vmul.f32 %v951, 1.0614054
  %v1076 = vmul.f32 %v953, 1.0614054
  %v1077 = vmul.f32 %v955, 1.0614054
  %v1078 = vmul.f32 %v957, 1.0614054
  %v1079 = vmul.f32 %v959, 1.0614054
  %v1080 = vmul.f32 %v961, 1.0614054
  %v1081 = vmul.f32 %v963, 1.0614054
  %v1082 = vmul.f32 %v965, 1.0614054
  %v1083 = vmul.f32 %v967, 1.0614054
  %v1084 = vmul.f32 %v969, 1.0614054
  %v1085 = vmul.f32 %v971, 1.0614054
  %v1086 = vmul.f32 %v973, 1.0614054
  %v1087 = vmul.f32 %v975, 1.0614054
  %v1088 = vmul.f32 %v977, 1.0614054
  %v1089 = vmul.f32 %v979, 1.0614054
  %v1090 = vmul.f32 %v981, 1.0614054
  %v1091 = vmul.f32 %v983, 1.0614054
  %v1092 = vmul.f32 %v985, 1.0614054
  %v1093 = vmul.f32 %v987, 1.0614054
  %v1094 = vmul.f32 %v989, 1.0614054
  %v1095 = vmul.f32 %v991, 1.0614054
  %v1096 = vmul.f32 %v993, 1.0614054
  %v1097 = vmul.f32 %v995, 1.0614054
  %v1098 = vmul.f32 %v997, 1.0614054
  %v1099 = vmul.f32 %v999, 1.0614054
  %v1100 = vmul.f32 %v1001, 1.0614054
  %v1101 = vmul.f32 %v1003, 1.0614054
  %v1102 = vmul.f32 %v1005, 1.0614054
  %v1103 = vmul.f32 %v1007, 1.0614054
  %v1104 = vmul.f32 %v1009, 1.0614054
  %v1105 = vmul.f32 %v1011, 1.0614054
  %v1106 = vmul.f32 %v1013, 1.0614054
  %v1107 = vmul.f32 %v1015, 1.0614054
  %v1108 = vmul.f32 %v1017, 1.0614054
  %v1109 = vmul.f32 %v1019, 1.0614054
  %v1110 = vmul.f32 %v1021, 1.0614054
  %v1111 = vmul.f32 %v1023, 1.0614054
  %v1112 = vmul.f32 %v1025, 1.0614054
  %v1113 = vmul.f32 %v1027, 1.0614054
  %v1114 = vmul.f32 %v1029, 1.0614054
  %v1115 = vmul.f32 %v1031, 1.0614054
  %v1116 = vmul.f32 %v1033, 1.0614054
  %v1117 = vmul.f32 %v1035, 1.0614054
  %v1118 = vmul.f32 %v1037, 1.0614054
  %v1119 = vmul.f32 %v1039, 1.0614054
  %v1120 = vmul.f32 %v1041, 1.0614054
  %v1121 = vmul.f32 %v1043, 1.0614054
  %v1122 = vmul.f32 %v1045, 1.0614054
  %v1123 = vmul.f32 %v1047, 1.0614054
  %v1124 = vmul.f32 %v1049, 1.0614054
  %v1125 = vmul.f32 %v1051, 1.0614054
  %v1126 = vmul.f32 %v1053, 1.0614054
  %v1127 = vmul.f32 %v1055, 1.0614054
  %v1128 = vmul.f32 %v1057, 1.0614054
  %v1129 = vmul.f32 %v1059, 1.0614054
  %v1130 = vmul.f32 %v1061, 1.0614054
  %v1131 = vmul.f32 %v1063, 1.0614054
  %v1132 = vmul.f32 %v1065, 1.0614054
  %v1133 = vmul.f32 %v1067, 1.0614054
  %v1134 = vmul.f32 %v1069, 1.0614054
  %v1135 = vmul.f32 %v1071, 1.0614054
  %v1136 = vadd.f32 %v1072, -1.4531521
  %v1137 = vadd.f32 %v1073, -1.4531521
  %v1138 = vadd.f32 %v1074, -1.4531521
  %v1139 = vadd.f32 %v1075, -1.4531521
  %v1140 = vadd.f32 %v1076, -1.4531521
  %v1141 = vadd.f32 %v1077, -1.4531521
  %v1142 = vadd.f32 %v1078, -1.4531521
  %v1143 = vadd.f32 %v1079, -1.4531521
  %v1144 = vadd.f32 %v1080, -1.4531521
  %v1145 = vadd.f32 %v1081, -1.4531521
  %v1146 = vadd.f32 %v1082, -1.4531521
  %v1147 = vadd.f32 %v1083, -1.4531521
  %v1148 = vadd.f32 %v1084, -1.4531521
  %v1149 = vadd.f32 %v1085, -1.4531521
  %v1150 = vadd.f32 %v1086, -1.4531521
  %v1151 = vadd.f32 %v1087, -1.4531521
  %v1152 = vadd.f32 %v1088, -1.4531521
  %v1153 = vadd.f32 %v1089, -1.4531521
  %v1154 = vadd.f32 %v1090, -1.4531521
  %v1155 = vadd.f32 %v1091, -1.4531521
  %v1156 = vadd.f32 %v1092, -1.4531521
  %v1157 = vadd.f32 %v1093, -1.4531521
  %v1158 = vadd.f32 %v1094, -1.4531521
  %v1159 = vadd.f32 %v1095, -1.4531521
  %v1160 = vadd.f32 %v1096, -1.4531521
  %v1161 = vadd.f32 %v1097, -1.4531521
  %v1162 = vadd.f32 %v1098, -1.4531521
  %v1163 = vadd.f32 %v1099, -1.4531521
  %v1164 = vadd.f32 %v1100, -1.4531521
  %v1165 = vadd.f32 %v1101, -1.4531521
  %v1166 = vadd.f32 %v1102, -1.4531521
  %v1167 = vadd.f32 %v1103, -1.4531521
  %v1168 = vadd.f32 %v1104, -1.4531521
  %v1169 = vadd.f32 %v1105, -1.4531521
  %v1170 = vadd.f32 %v1106, -1.4531521
  %v1171 = vadd.f32 %v1107, -1.4531521
  %v1172 = vadd.f32 %v1108, -1.4531521
  %v1173 = vadd.f32 %v1109, -1.4531521
  %v1174 = vadd.f32 %v1110, -1.4531521
  %v1175 = vadd.f32 %v1111, -1.4531521
  %v1176 = vadd.f32 %v1112, -1.4531521
  %v1177 = vadd.f32 %v1113, -1.4531521
  %v1178 = vadd.f32 %v1114, -1.4531521
  %v1179 = vadd.f32 %v1115, -1.4531521
  %v1180 = vadd.f32 %v1116, -1.4531521
  %v1181 = vadd.f32 %v1117, -1.4531521
  %v1182 = vadd.f32 %v1118, -1.4531521
  %v1183 = vadd.f32 %v1119, -1.4531521
  %v1184 = vadd.f32 %v1120, -1.4531521
  %v1185 = vadd.f32 %v1121, -1.4531521
  %v1186 = vadd.f32 %v1122, -1.4531521
  %v1187 = vadd.f32 %v1123, -1.4531521
  %v1188 = vadd.f32 %v1124, -1.4531521
  %v1189 = vadd.f32 %v1125, -1.4531521
  %v1190 = vadd.f32 %v1126, -1.4531521
  %v1191 = vadd.f32 %v1127, -1.4531521
  %v1192 = vadd.f32 %v1128, -1.4531521
  %v1193 = vadd.f32 %v1129, -1.4531521
  %v1194 = vadd.f32 %v1130, -1.4531521
  %v1195 = vadd.f32 %v1131, -1.4531521
  %v1196 = vadd.f32 %v1132, -1.4531521
  %v1197 = vadd.f32 %v1133, -1.4531521
  %v1198 = vadd.f32 %v1134, -1.4531521
  %v1199 = vadd.f32 %v1135, -1.4531521
  %v1200 = vmul.f32 %v1136, %v945
  %v1201 = vmul.f32 %v1137, %v947
  %v1202 = vmul.f32 %v1138, %v949
  %v1203 = vmul.f32 %v1139, %v951
  %v1204 = vmul.f32 %v1140, %v953
  %v1205 = vmul.f32 %v1141, %v955
  %v1206 = vmul.f32 %v1142, %v957
  %v1207 = vmul.f32 %v1143, %v959
  %v1208 = vmul.f32 %v1144, %v961
  %v1209 = vmul.f32 %v1145, %v963
  %v1210 = vmul.f32 %v1146, %v965
  %v1211 = vmul.f32 %v1147, %v967
  %v1212 = vmul.f32 %v1148, %v969
  %v1213 = vmul.f32 %v1149, %v971
  %v1214 = vmul.f32 %v1150, %v973
  %v1215 = vmul.f32 %v1151, %v975
  %v1216 = vmul.f32 %v1152, %v977
  %v1217 = vmul.f32 %v1153, %v979
  %v1218 = vmul.f32 %v1154, %v981
  %v1219 = vmul.f32 %v1155, %v983
  %v1220 = vmul.f32 %v1156, %v985
  %v1221 = vmul.f32 %v1157, %v987
  %v1222 = vmul.f32 %v1158, %v989
  %v1223 = vmul.f32 %v1159, %v991
  %v1224 = vmul.f32 %v1160, %v993
  %v1225 = vmul.f32 %v1161, %v995
  %v1226 = vmul.f32 %v1162, %v997
  %v1227 = vmul.f32 %v1163, %v999
  %v1228 = vmul.f32 %v1164, %v1001
  %v1229 = vmul.f32 %v1165, %v1003
  %v1230 = vmul.f32 %v1166, %v1005
  %v1231 = vmul.f32 %v1167, %v1007
  %v1232 = vmul.f32 %v1168, %v1009
  %v1233 = vmul.f32 %v1169, %v1011
  %v1234 = vmul.f32 %v1170, %v1013
  %v1235 = vmul.f32 %v1171, %v1015
  %v1236 = vmul.f32 %v1172, %v1017
  %v1237 = vmul.f32 %v1173, %v1019
  %v1238 = vmul.f32 %v1174, %v1021
  %v1239 = vmul.f32 %v1175, %v1023
  %v1240 = vmul.f32 %v1176, %v1025
  %v1241 = vmul.f32 %v1177, %v1027
  %v1242 = vmul.f32 %v1178, %v1029
  %v1243 = vmul.f32 %v1179, %v1031
  %v1244 = vmul.f32 %v1180, %v1033
  %v1245 = vmul.f32 %v1181, %v1035
  %v1246 = vmul.f32 %v1182, %v1037
  %v1247 = vmul.f32 %v1183, %v1039
  %v1248 = vmul.f32 %v1184, %v1041
  %v1249 = vmul.f32 %v1185, %v1043
  %v1250 = vmul.f32 %v1186, %v1045
  %v1251 = vmul.f32 %v1187, %v1047
  %v1252 = vmul.f32 %v1188, %v1049
  %v1253 = vmul.f32 %v1189, %v1051
  %v1254 = vmul.f32 %v1190, %v1053
  %v1255 = vmul.f32 %v1191, %v1055
  %v1256 = vmul.f32 %v1192, %v1057
  %v1257 = vmul.f32 %v1193, %v1059
  %v1258 = vmul.f32 %v1194, %v1061
  %v1259 = vmul.f32 %v1195, %v1063
  %v1260 = vmul.f32 %v1196, %v1065
  %v1261 = vmul.f32 %v1197, %v1067
  %v1262 = vmul.f32 %v1198, %v1069
  %v1263 = vmul.f32 %v1199, %v1071
  %v1264 = vadd.f32 %v1200, 1.4214138
  %v1265 = vadd.f32 %v1201, 1.4214138
  %v1266 = vadd.f32 %v1202, 1.4214138
  %v1267 = vadd.f32 %v1203, 1.4214138
  %v1268 = vadd.f32 %v1204, 1.4214138
  %v1269 = vadd.f32 %v1205, 1.4214138
  %v1270 = vadd.f32 %v1206, 1.4214138
  %v1271 = vadd.f32 %v1207, 1.4214138
  %v1272 = vadd.f32 %v1208, 1.4214138
  %v1273 = vadd.f32 %v1209, 1.4214138
  %v1274 = vadd.f32 %v1210, 1.4214138
  %v1275 = vadd.f32 %v1211, 1.4214138
  %v1276 = vadd.f32 %v1212, 1.4214138
  %v1277 = vadd.f32 %v1213, 1.4214138
  %v1278 = vadd.f32 %v1214, 1.4214138
  %v1279 = vadd.f32 %v1215, 1.4214138
  %v1280 = vadd.f32 %v1216, 1.4214138
  %v1281 = vadd.f32 %v1217, 1.4214138
  %v1282 = vadd.f32 %v1218, 1.4214138
  %v1283 = vadd.f32 %v1219, 1.4214138
  %v1284 = vadd.f32 %v1220, 1.4214138
  %v1285 = vadd.f32 %v1221, 1.4214138
  %v1286 = vadd.f32 %v1222, 1.4214138
  %v1287 = vadd.f32 %v1223, 1.4214138
  %v1288 = vadd.f32 %v1224, 1.4214138
  %v1289 = vadd.f32 %v1225, 1.4214138
  %v1290 = vadd.f32 %v1226, 1.4214138
  %v1291 = vadd.f32 %v1227, 1.4214138
  %v1292 = vadd.f32 %v1228, 1.4214138
  %v1293 = vadd.f32 %v1229, 1.4214138
  %v1294 = vadd.f32 %v1230, 1.4214138
  %v1295 = vadd.f32 %v1231, 1.4214138
  %v1296 = vadd.f32 %v1232, 1.4214138
  %v1297 = vadd.f32 %v1233, 1.4214138
  %v1298 = vadd.f32 %v1234, 1.4214138
  %v1299 = vadd.f32 %v1235, 1.4214138
  %v1300 = vadd.f32 %v1236, 1.4214138
  %v1301 = vadd.f32 %v1237, 1.4214138
  %v1302 = vadd.f32 %v1238, 1.4214138
  %v1303 = vadd.f32 %v1239, 1.4214138
  %v1304 = vadd.f32 %v1240, 1.4214138
  %v1305 = vadd.f32 %v1241, 1.4214138
  %v1306 = vadd.f32 %v1242, 1.4214138
  %v1307 = vadd.f32 %v1243, 1.4214138
  %v1308 = vadd.f32 %v1244, 1.4214138
  %v1309 = vadd.f32 %v1245, 1.4214138
  %v1310 = vadd.f32 %v1246, 1.4214138
  %v1311 = vadd.f32 %v1247, 1.4214138
  %v1312 = vadd.f32 %v1248, 1.4214138
  %v1313 = vadd.f32 %v1249, 1.4214138
  %v1314 = vadd.f32 %v1250, 1.4214138
  %v1315 = vadd.f32 %v1251, 1.4214138
  %v1316 = vadd.f32 %v1252, 1.4214138
  %v1317 = vadd.f32 %v1253, 1.4214138
  %v1318 = vadd.f32 %v1254, 1.4214138
  %v1319 = vadd.f32 %v1255, 1.4214138
  %v1320 = vadd.f32 %v1256, 1.4214138
  %v1321 = vadd.f32 %v1257, 1.4214138
  %v1322 = vadd.f32 %v1258, 1.4214138
  %v1323 = vadd.f32 %v1259, 1.4214138
  %v1324 = vadd.f32 %v1260, 1.4214138
  %v1325 = vadd.f32 %v1261, 1.4214138
  %v1326 = vadd.f32 %v1262, 1.4214138
  %v1327 = vadd.f32 %v1263, 1.4214138
  %v1328 = vmul.f32 %v1264, %v945
  %v1329 = vmul.f32 %v1265, %v947
  %v1330 = vmul.f32 %v1266, %v949
  %v1331 = vmul.f32 %v1267, %v951
  %v1332 = vmul.f32 %v1268, %v953
  %v1333 = vmul.f32 %v1269, %v955
  %v1334 = vmul.f32 %v1270, %v957
  %v1335 = vmul.f32 %v1271, %v959
  %v1336 = vmul.f32 %v1272, %v961
  %v1337 = vmul.f32 %v1273, %v963
  %v1338 = vmul.f32 %v1274, %v965
  %v1339 = vmul.f32 %v1275, %v967
  %v1340 = vmul.f32 %v1276, %v969
  %v1341 = vmul.f32 %v1277, %v971
  %v1342 = vmul.f32 %v1278, %v973
  %v1343 = vmul.f32 %v1279, %v975
  %v1344 = vmul.f32 %v1280, %v977
  %v1345 = vmul.f32 %v1281, %v979
  %v1346 = vmul.f32 %v1282, %v981
  %v1347 = vmul.f32 %v1283, %v983
  %v1348 = vmul.f32 %v1284, %v985
  %v1349 = vmul.f32 %v1285, %v987
  %v1350 = vmul.f32 %v1286, %v989
  %v1351 = vmul.f32 %v1287, %v991
  %v1352 = vmul.f32 %v1288, %v993
  %v1353 = vmul.f32 %v1289, %v995
  %v1354 = vmul.f32 %v1290, %v997
  %v1355 = vmul.f32 %v1291, %v999
  %v1356 = vmul.f32 %v1292, %v1001
  %v1357 = vmul.f32 %v1293, %v1003
  %v1358 = vmul.f32 %v1294, %v1005
  %v1359 = vmul.f32 %v1295, %v1007
  %v1360 = vmul.f32 %v1296, %v1009
  %v1361 = vmul.f32 %v1297, %v1011
  %v1362 = vmul.f32 %v1298, %v1013
  %v1363 = vmul.f32 %v1299, %v1015
  %v1364 = vmul.f32 %v1300, %v1017
  %v1365 = vmul.f32 %v1301, %v1019
  %v1366 = vmul.f32 %v1302, %v1021
  %v1367 = vmul.f32 %v1303, %v1023
  %v1368 = vmul.f32 %v1304, %v1025
  %v1369 = vmul.f32 %v1305, %v1027
  %v1370 = vmul.f32 %v1306, %v1029
  %v1371 = vmul.f32 %v1307, %v1031
  %v1372 = vmul.f32 %v1308, %v1033
  %v1373 = vmul.f32 %v1309, %v1035
  %v1374 = vmul.f32 %v1310, %v1037
  %v1375 = vmul.f32 %v1311, %v1039
  %v1376 = vmul.f32 %v1312, %v1041
  %v1377 = vmul.f32 %v1313, %v1043
  %v1378 = vmul.f32 %v1314, %v1045
  %v1379 = vmul.f32 %v1315, %v1047
  %v1380 = vmul.f32 %v1316, %v1049
  %v1381 = vmul.f32 %v1317, %v1051
  %v1382 = vmul.f32 %v1318, %v1053
  %v1383 = vmul.f32 %v1319, %v1055
  %v1384 = vmul.f32 %v1320, %v1057
  %v1385 = vmul.f32 %v1321, %v1059
  %v1386 = vmul.f32 %v1322, %v1061
  %v1387 = vmul.f32 %v1323, %v1063
  %v1388 = vmul.f32 %v1324, %v1065
  %v1389 = vmul.f32 %v1325, %v1067
  %v1390 = vmul.f32 %v1326, %v1069
  %v1391 = vmul.f32 %v1327, %v1071
  %v1392 = vadd.f32 %v1328, -0.28449672
  %v1393 = vadd.f32 %v1329, -0.28449672
  %v1394 = vadd.f32 %v1330, -0.28449672
  %v1395 = vadd.f32 %v1331, -0.28449672
  %v1396 = vadd.f32 %v1332, -0.28449672
  %v1397 = vadd.f32 %v1333, -0.28449672
  %v1398 = vadd.f32 %v1334, -0.28449672
  %v1399 = vadd.f32 %v1335, -0.28449672
  %v1400 = vadd.f32 %v1336, -0.28449672
  %v1401 = vadd.f32 %v1337, -0.28449672
  %v1402 = vadd.f32 %v1338, -0.28449672
  %v1403 = vadd.f32 %v1339, -0.28449672
  %v1404 = vadd.f32 %v1340, -0.28449672
  %v1405 = vadd.f32 %v1341, -0.28449672
  %v1406 = vadd.f32 %v1342, -0.28449672
  %v1407 = vadd.f32 %v1343, -0.28449672
  %v1408 = vadd.f32 %v1344, -0.28449672
  %v1409 = vadd.f32 %v1345, -0.28449672
  %v1410 = vadd.f32 %v1346, -0.28449672
  %v1411 = vadd.f32 %v1347, -0.28449672
  %v1412 = vadd.f32 %v1348, -0.28449672
  %v1413 = vadd.f32 %v1349, -0.28449672
  %v1414 = vadd.f32 %v1350, -0.28449672
  %v1415 = vadd.f32 %v1351, -0.28449672
  %v1416 = vadd.f32 %v1352, -0.28449672
  %v1417 = vadd.f32 %v1353, -0.28449672
  %v1418 = vadd.f32 %v1354, -0.28449672
  %v1419 = vadd.f32 %v1355, -0.28449672
  %v1420 = vadd.f32 %v1356, -0.28449672
  %v1421 = vadd.f32 %v1357, -0.28449672
  %v1422 = vadd.f32 %v1358, -0.28449672
  %v1423 = vadd.f32 %v1359, -0.28449672
  %v1424 = vadd.f32 %v1360, -0.28449672
  %v1425 = vadd.f32 %v1361, -0.28449672
  %v1426 = vadd.f32 %v1362, -0.28449672
  %v1427 = vadd.f32 %v1363, -0.28449672
  %v1428 = vadd.f32 %v1364, -0.28449672
  %v1429 = vadd.f32 %v1365, -0.28449672
  %v1430 = vadd.f32 %v1366, -0.28449672
  %v1431 = vadd.f32 %v1367, -0.28449672
  %v1432 = vadd.f32 %v1368, -0.28449672
  %v1433 = vadd.f32 %v1369, -0.28449672
  %v1434 = vadd.f32 %v1370, -0.28449672
  %v1435 = vadd.f32 %v1371, -0.28449672
  %v1436 = vadd.f32 %v1372, -0.28449672
  %v1437 = vadd.f32 %v1373, -0.28449672
  %v1438 = vadd.f32 %v1374, -0.28449672
  %v1439 = vadd.f32 %v1375, -0.28449672
  %v1440 = vadd.f32 %v1376, -0.28449672
  %v1441 = vadd.f32 %v1377, -0.28449672
  %v1442 = vadd.f32 %v1378, -0.28449672
  %v1443 = vadd.f32 %v1379, -0.28449672
  %v1444 = vadd.f32 %v1380, -0.28449672
  %v1445 = vadd.f32 %v1381, -0.28449672
  %v1446 = vadd.f32 %v1382, -0.28449672
  %v1447 = vadd.f32 %v1383, -0.28449672
  %v1448 = vadd.f32 %v1384, -0.28449672
  %v1449 = vadd.f32 %v1385, -0.28449672
  %v1450 = vadd.f32 %v1386, -0.28449672
  %v1451 = vadd.f32 %v1387, -0.28449672
  %v1452 = vadd.f32 %v1388, -0.28449672
  %v1453 = vadd.f32 %v1389, -0.28449672
  %v1454 = vadd.f32 %v1390, -0.28449672
  %v1455 = vadd.f32 %v1391, -0.28449672
  %v1456 = vmul.f32 %v1392, %v945
  %v1457 = vmul.f32 %v1393, %v947
  %v1458 = vmul.f32 %v1394, %v949
  %v1459 = vmul.f32 %v1395, %v951
  %v1460 = vmul.f32 %v1396, %v953
  %v1461 = vmul.f32 %v1397, %v955
  %v1462 = vmul.f32 %v1398, %v957
  %v1463 = vmul.f32 %v1399, %v959
  %v1464 = vmul.f32 %v1400, %v961
  %v1465 = vmul.f32 %v1401, %v963
  %v1466 = vmul.f32 %v1402, %v965
  %v1467 = vmul.f32 %v1403, %v967
  %v1468 = vmul.f32 %v1404, %v969
  %v1469 = vmul.f32 %v1405, %v971
  %v1470 = vmul.f32 %v1406, %v973
  %v1471 = vmul.f32 %v1407, %v975
  %v1472 = vmul.f32 %v1408, %v977
  %v1473 = vmul.f32 %v1409, %v979
  %v1474 = vmul.f32 %v1410, %v981
  %v1475 = vmul.f32 %v1411, %v983
  %v1476 = vmul.f32 %v1412, %v985
  %v1477 = vmul.f32 %v1413, %v987
  %v1478 = vmul.f32 %v1414, %v989
  %v1479 = vmul.f32 %v1415, %v991
  %v1480 = vmul.f32 %v1416, %v993
  %v1481 = vmul.f32 %v1417, %v995
  %v1482 = vmul.f32 %v1418, %v997
  %v1483 = vmul.f32 %v1419, %v999
  %v1484 = vmul.f32 %v1420, %v1001
  %v1485 = vmul.f32 %v1421, %v1003
  %v1486 = vmul.f32 %v1422, %v1005
  %v1487 = vmul.f32 %v1423, %v1007
  %v1488 = vmul.f32 %v1424, %v1009
  %v1489 = vmul.f32 %v1425, %v1011
  %v1490 = vmul.f32 %v1426, %v1013
  %v1491 = vmul.f32 %v1427, %v1015
  %v1492 = vmul.f32 %v1428, %v1017
  %v1493 = vmul.f32 %v1429, %v1019
  %v1494 = vmul.f32 %v1430, %v1021
  %v1495 = vmul.f32 %v1431, %v1023
  %v1496 = vmul.f32 %v1432, %v1025
  %v1497 = vmul.f32 %v1433, %v1027
  %v1498 = vmul.f32 %v1434, %v1029
  %v1499 = vmul.f32 %v1435, %v1031
  %v1500 = vmul.f32 %v1436, %v1033
  %v1501 = vmul.f32 %v1437, %v1035
  %v1502 = vmul.f32 %v1438, %v1037
  %v1503 = vmul.f32 %v1439, %v1039
  %v1504 = vmul.f32 %v1440, %v1041
  %v1505 = vmul.f32 %v1441, %v1043
  %v1506 = vmul.f32 %v1442, %v1045
  %v1507 = vmul.f32 %v1443, %v1047
  %v1508 = vmul.f32 %v1444, %v1049
  %v1509 = vmul.f32 %v1445, %v1051
  %v1510 = vmul.f32 %v1446, %v1053
  %v1511 = vmul.f32 %v1447, %v1055
  %v1512 = vmul.f32 %v1448, %v1057
  %v1513 = vmul.f32 %v1449, %v1059
  %v1514 = vmul.f32 %v1450, %v1061
  %v1515 = vmul.f32 %v1451, %v1063
  %v1516 = vmul.f32 %v1452, %v1065
  %v1517 = vmul.f32 %v1453, %v1067
  %v1518 = vmul.f32 %v1454, %v1069
  %v1519 = vmul.f32 %v1455, %v1071
  %v1520 = vadd.f32 %v1456, 0.2548296
  %v1521 = vadd.f32 %v1457, 0.2548296
  %v1522 = vadd.f32 %v1458, 0.2548296
  %v1523 = vadd.f32 %v1459, 0.2548296
  %v1524 = vadd.f32 %v1460, 0.2548296
  %v1525 = vadd.f32 %v1461, 0.2548296
  %v1526 = vadd.f32 %v1462, 0.2548296
  %v1527 = vadd.f32 %v1463, 0.2548296
  %v1528 = vadd.f32 %v1464, 0.2548296
  %v1529 = vadd.f32 %v1465, 0.2548296
  %v1530 = vadd.f32 %v1466, 0.2548296
  %v1531 = vadd.f32 %v1467, 0.2548296
  %v1532 = vadd.f32 %v1468, 0.2548296
  %v1533 = vadd.f32 %v1469, 0.2548296
  %v1534 = vadd.f32 %v1470, 0.2548296
  %v1535 = vadd.f32 %v1471, 0.2548296
  %v1536 = vadd.f32 %v1472, 0.2548296
  %v1537 = vadd.f32 %v1473, 0.2548296
  %v1538 = vadd.f32 %v1474, 0.2548296
  %v1539 = vadd.f32 %v1475, 0.2548296
  %v1540 = vadd.f32 %v1476, 0.2548296
  %v1541 = vadd.f32 %v1477, 0.2548296
  %v1542 = vadd.f32 %v1478, 0.2548296
  %v1543 = vadd.f32 %v1479, 0.2548296
  %v1544 = vadd.f32 %v1480, 0.2548296
  %v1545 = vadd.f32 %v1481, 0.2548296
  %v1546 = vadd.f32 %v1482, 0.2548296
  %v1547 = vadd.f32 %v1483, 0.2548296
  %v1548 = vadd.f32 %v1484, 0.2548296
  %v1549 = vadd.f32 %v1485, 0.2548296
  %v1550 = vadd.f32 %v1486, 0.2548296
  %v1551 = vadd.f32 %v1487, 0.2548296
  %v1552 = vadd.f32 %v1488, 0.2548296
  %v1553 = vadd.f32 %v1489, 0.2548296
  %v1554 = vadd.f32 %v1490, 0.2548296
  %v1555 = vadd.f32 %v1491, 0.2548296
  %v1556 = vadd.f32 %v1492, 0.2548296
  %v1557 = vadd.f32 %v1493, 0.2548296
  %v1558 = vadd.f32 %v1494, 0.2548296
  %v1559 = vadd.f32 %v1495, 0.2548296
  %v1560 = vadd.f32 %v1496, 0.2548296
  %v1561 = vadd.f32 %v1497, 0.2548296
  %v1562 = vadd.f32 %v1498, 0.2548296
  %v1563 = vadd.f32 %v1499, 0.2548296
  %v1564 = vadd.f32 %v1500, 0.2548296
  %v1565 = vadd.f32 %v1501, 0.2548296
  %v1566 = vadd.f32 %v1502, 0.2548296
  %v1567 = vadd.f32 %v1503, 0.2548296
  %v1568 = vadd.f32 %v1504, 0.2548296
  %v1569 = vadd.f32 %v1505, 0.2548296
  %v1570 = vadd.f32 %v1506, 0.2548296
  %v1571 = vadd.f32 %v1507, 0.2548296
  %v1572 = vadd.f32 %v1508, 0.2548296
  %v1573 = vadd.f32 %v1509, 0.2548296
  %v1574 = vadd.f32 %v1510, 0.2548296
  %v1575 = vadd.f32 %v1511, 0.2548296
  %v1576 = vadd.f32 %v1512, 0.2548296
  %v1577 = vadd.f32 %v1513, 0.2548296
  %v1578 = vadd.f32 %v1514, 0.2548296
  %v1579 = vadd.f32 %v1515, 0.2548296
  %v1580 = vadd.f32 %v1516, 0.2548296
  %v1581 = vadd.f32 %v1517, 0.2548296
  %v1582 = vadd.f32 %v1518, 0.2548296
  %v1583 = vadd.f32 %v1519, 0.2548296
  %v1584 = vmul.f32 %v1520, %v945
  %v1585 = vmul.f32 %v1521, %v947
  %v1586 = vmul.f32 %v1522, %v949
  %v1587 = vmul.f32 %v1523, %v951
  %v1588 = vmul.f32 %v1524, %v953
  %v1589 = vmul.f32 %v1525, %v955
  %v1590 = vmul.f32 %v1526, %v957
  %v1591 = vmul.f32 %v1527, %v959
  %v1592 = vmul.f32 %v1528, %v961
  %v1593 = vmul.f32 %v1529, %v963
  %v1594 = vmul.f32 %v1530, %v965
  %v1595 = vmul.f32 %v1531, %v967
  %v1596 = vmul.f32 %v1532, %v969
  %v1597 = vmul.f32 %v1533, %v971
  %v1598 = vmul.f32 %v1534, %v973
  %v1599 = vmul.f32 %v1535, %v975
  %v1600 = vmul.f32 %v1536, %v977
  %v1601 = vmul.f32 %v1537, %v979
  %v1602 = vmul.f32 %v1538, %v981
  %v1603 = vmul.f32 %v1539, %v983
  %v1604 = vmul.f32 %v1540, %v985
  %v1605 = vmul.f32 %v1541, %v987
  %v1606 = vmul.f32 %v1542, %v989
  %v1607 = vmul.f32 %v1543, %v991
  %v1608 = vmul.f32 %v1544, %v993
  %v1609 = vmul.f32 %v1545, %v995
  %v1610 = vmul.f32 %v1546, %v997
  %v1611 = vmul.f32 %v1547, %v999
  %v1612 = vmul.f32 %v1548, %v1001
  %v1613 = vmul.f32 %v1549, %v1003
  %v1614 = vmul.f32 %v1550, %v1005
  %v1615 = vmul.f32 %v1551, %v1007
  %v1616 = vmul.f32 %v1552, %v1009
  %v1617 = vmul.f32 %v1553, %v1011
  %v1618 = vmul.f32 %v1554, %v1013
  %v1619 = vmul.f32 %v1555, %v1015
  %v1620 = vmul.f32 %v1556, %v1017
  %v1621 = vmul.f32 %v1557, %v1019
  %v1622 = vmul.f32 %v1558, %v1021
  %v1623 = vmul.f32 %v1559, %v1023
  %v1624 = vmul.f32 %v1560, %v1025
  %v1625 = vmul.f32 %v1561, %v1027
  %v1626 = vmul.f32 %v1562, %v1029
  %v1627 = vmul.f32 %v1563, %v1031
  %v1628 = vmul.f32 %v1564, %v1033
  %v1629 = vmul.f32 %v1565, %v1035
  %v1630 = vmul.f32 %v1566, %v1037
  %v1631 = vmul.f32 %v1567, %v1039
  %v1632 = vmul.f32 %v1568, %v1041
  %v1633 = vmul.f32 %v1569, %v1043
  %v1634 = vmul.f32 %v1570, %v1045
  %v1635 = vmul.f32 %v1571, %v1047
  %v1636 = vmul.f32 %v1572, %v1049
  %v1637 = vmul.f32 %v1573, %v1051
  %v1638 = vmul.f32 %v1574, %v1053
  %v1639 = vmul.f32 %v1575, %v1055
  %v1640 = vmul.f32 %v1576, %v1057
  %v1641 = vmul.f32 %v1577, %v1059
  %v1642 = vmul.f32 %v1578, %v1061
  %v1643 = vmul.f32 %v1579, %v1063
  %v1644 = vmul.f32 %v1580, %v1065
  %v1645 = vmul.f32 %v1581, %v1067
  %v1646 = vmul.f32 %v1582, %v1069
  %v1647 = vmul.f32 %v1583, %v1071
  %v1648 = vsub.f32 0.0, %v752
  %v1649 = vsub.f32 0.0, %v753
  %v1650 = vsub.f32 0.0, %v754
  %v1651 = vsub.f32 0.0, %v755
  %v1652 = vsub.f32 0.0, %v756
  %v1653 = vsub.f32 0.0, %v757
  %v1654 = vsub.f32 0.0, %v758
  %v1655 = vsub.f32 0.0, %v759
  %v1656 = vsub.f32 0.0, %v760
  %v1657 = vsub.f32 0.0, %v761
  %v1658 = vsub.f32 0.0, %v762
  %v1659 = vsub.f32 0.0, %v763
  %v1660 = vsub.f32 0.0, %v764
  %v1661 = vsub.f32 0.0, %v765
  %v1662 = vsub.f32 0.0, %v766
  %v1663 = vsub.f32 0.0, %v767
  %v1664 = vsub.f32 0.0, %v768
  %v1665 = vsub.f32 0.0, %v769
  %v1666 = vsub.f32 0.0, %v770
  %v1667 = vsub.f32 0.0, %v771
  %v1668 = vsub.f32 0.0, %v772
  %v1669 = vsub.f32 0.0, %v773
  %v1670 = vsub.f32 0.0, %v774
  %v1671 = vsub.f32 0.0, %v775
  %v1672 = vsub.f32 0.0, %v776
  %v1673 = vsub.f32 0.0, %v777
  %v1674 = vsub.f32 0.0, %v778
  %v1675 = vsub.f32 0.0, %v779
  %v1676 = vsub.f32 0.0, %v780
  %v1677 = vsub.f32 0.0, %v781
  %v1678 = vsub.f32 0.0, %v782
  %v1679 = vsub.f32 0.0, %v783
  %v1680 = vsub.f32 0.0, %v784
  %v1681 = vsub.f32 0.0, %v785
  %v1682 = vsub.f32 0.0, %v786
  %v1683 = vsub.f32 0.0, %v787
  %v1684 = vsub.f32 0.0, %v788
  %v1685 = vsub.f32 0.0, %v789
  %v1686 = vsub.f32 0.0, %v790
  %v1687 = vsub.f32 0.0, %v791
  %v1688 = vsub.f32 0.0, %v792
  %v1689 = vsub.f32 0.0, %v793
  %v1690 = vsub.f32 0.0, %v794
  %v1691 = vsub.f32 0.0, %v795
  %v1692 = vsub.f32 0.0, %v796
  %v1693 = vsub.f32 0.0, %v797
  %v1694 = vsub.f32 0.0, %v798
  %v1695 = vsub.f32 0.0, %v799
  %v1696 = vsub.f32 0.0, %v800
  %v1697 = vsub.f32 0.0, %v801
  %v1698 = vsub.f32 0.0, %v802
  %v1699 = vsub.f32 0.0, %v803
  %v1700 = vsub.f32 0.0, %v804
  %v1701 = vsub.f32 0.0, %v805
  %v1702 = vsub.f32 0.0, %v806
  %v1703 = vsub.f32 0.0, %v807
  %v1704 = vsub.f32 0.0, %v808
  %v1705 = vsub.f32 0.0, %v809
  %v1706 = vsub.f32 0.0, %v810
  %v1707 = vsub.f32 0.0, %v811
  %v1708 = vsub.f32 0.0, %v812
  %v1709 = vsub.f32 0.0, %v813
  %v1710 = vsub.f32 0.0, %v814
  %v1711 = vsub.f32 0.0, %v815
  %v1712 = vmul.f32 %v1648, %v752
  %v1713 = vmul.f32 %v1649, %v753
  %v1714 = vmul.f32 %v1650, %v754
  %v1715 = vmul.f32 %v1651, %v755
  %v1716 = vmul.f32 %v1652, %v756
  %v1717 = vmul.f32 %v1653, %v757
  %v1718 = vmul.f32 %v1654, %v758
  %v1719 = vmul.f32 %v1655, %v759
  %v1720 = vmul.f32 %v1656, %v760
  %v1721 = vmul.f32 %v1657, %v761
  %v1722 = vmul.f32 %v1658, %v762
  %v1723 = vmul.f32 %v1659, %v763
  %v1724 = vmul.f32 %v1660, %v764
  %v1725 = vmul.f32 %v1661, %v765
  %v1726 = vmul.f32 %v1662, %v766
  %v1727 = vmul.f32 %v1663, %v767
  %v1728 = vmul.f32 %v1664, %v768
  %v1729 = vmul.f32 %v1665, %v769
  %v1730 = vmul.f32 %v1666, %v770
  %v1731 = vmul.f32 %v1667, %v771
  %v1732 = vmul.f32 %v1668, %v772
  %v1733 = vmul.f32 %v1669, %v773
  %v1734 = vmul.f32 %v1670, %v774
  %v1735 = vmul.f32 %v1671, %v775
  %v1736 = vmul.f32 %v1672, %v776
  %v1737 = vmul.f32 %v1673, %v777
  %v1738 = vmul.f32 %v1674, %v778
  %v1739 = vmul.f32 %v1675, %v779
  %v1740 = vmul.f32 %v1676, %v780
  %v1741 = vmul.f32 %v1677, %v781
  %v1742 = vmul.f32 %v1678, %v782
  %v1743 = vmul.f32 %v1679, %v783
  %v1744 = vmul.f32 %v1680, %v784
  %v1745 = vmul.f32 %v1681, %v785
  %v1746 = vmul.f32 %v1682, %v786
  %v1747 = vmul.f32 %v1683, %v787
  %v1748 = vmul.f32 %v1684, %v788
  %v1749 = vmul.f32 %v1685, %v789
  %v1750 = vmul.f32 %v1686, %v790
  %v1751 = vmul.f32 %v1687, %v791
  %v1752 = vmul.f32 %v1688, %v792
  %v1753 = vmul.f32 %v1689, %v793
  %v1754 = vmul.f32 %v1690, %v794
  %v1755 = vmul.f32 %v1691, %v795
  %v1756 = vmul.f32 %v1692, %v796
  %v1757 = vmul.f32 %v1693, %v797
  %v1758 = vmul.f32 %v1694, %v798
  %v1759 = vmul.f32 %v1695, %v799
  %v1760 = vmul.f32 %v1696, %v800
  %v1761 = vmul.f32 %v1697, %v801
  %v1762 = vmul.f32 %v1698, %v802
  %v1763 = vmul.f32 %v1699, %v803
  %v1764 = vmul.f32 %v1700, %v804
  %v1765 = vmul.f32 %v1701, %v805
  %v1766 = vmul.f32 %v1702, %v806
  %v1767 = vmul.f32 %v1703, %v807
  %v1768 = vmul.f32 %v1704, %v808
  %v1769 = vmul.f32 %v1705, %v809
  %v1770 = vmul.f32 %v1706, %v810
  %v1771 = vmul.f32 %v1707, %v811
  %v1772 = vmul.f32 %v1708, %v812
  %v1773 = vmul.f32 %v1709, %v813
  %v1774 = vmul.f32 %v1710, %v814
  %v1775 = vmul.f32 %v1711, %v815
  %v1776 = vmul.f32 %v1712, 1.442695
  %v1777 = vpow.pop %v1776
  %v1778 = vmul.f32 %v1713, 1.442695
  %v1779 = vpow.pop %v1778
  %v1780 = vmul.f32 %v1714, 1.442695
  %v1781 = vpow.pop %v1780
  %v1782 = vmul.f32 %v1715, 1.442695
  %v1783 = vpow.pop %v1782
  %v1784 = vmul.f32 %v1716, 1.442695
  %v1785 = vpow.pop %v1784
  %v1786 = vmul.f32 %v1717, 1.442695
  %v1787 = vpow.pop %v1786
  %v1788 = vmul.f32 %v1718, 1.442695
  %v1789 = vpow.pop %v1788
  %v1790 = vmul.f32 %v1719, 1.442695
  %v1791 = vpow.pop %v1790
  %v1792 = vmul.f32 %v1720, 1.442695
  %v1793 = vpow.pop %v1792
  %v1794 = vmul.f32 %v1721, 1.442695
  %v1795 = vpow.pop %v1794
  %v1796 = vmul.f32 %v1722, 1.442695
  %v1797 = vpow.pop %v1796
  %v1798 = vmul.f32 %v1723, 1.442695
  %v1799 = vpow.pop %v1798
  %v1800 = vmul.f32 %v1724, 1.442695
  %v1801 = vpow.pop %v1800
  %v1802 = vmul.f32 %v1725, 1.442695
  %v1803 = vpow.pop %v1802
  %v1804 = vmul.f32 %v1726, 1.442695
  %v1805 = vpow.pop %v1804
  %v1806 = vmul.f32 %v1727, 1.442695
  %v1807 = vpow.pop %v1806
  %v1808 = vmul.f32 %v1728, 1.442695
  %v1809 = vpow.pop %v1808
  %v1810 = vmul.f32 %v1729, 1.442695
  %v1811 = vpow.pop %v1810
  %v1812 = vmul.f32 %v1730, 1.442695
  %v1813 = vpow.pop %v1812
  %v1814 = vmul.f32 %v1731, 1.442695
  %v1815 = vpow.pop %v1814
  %v1816 = vmul.f32 %v1732, 1.442695
  %v1817 = vpow.pop %v1816
  %v1818 = vmul.f32 %v1733, 1.442695
  %v1819 = vpow.pop %v1818
  %v1820 = vmul.f32 %v1734, 1.442695
  %v1821 = vpow.pop %v1820
  %v1822 = vmul.f32 %v1735, 1.442695
  %v1823 = vpow.pop %v1822
  %v1824 = vmul.f32 %v1736, 1.442695
  %v1825 = vpow.pop %v1824
  %v1826 = vmul.f32 %v1737, 1.442695
  %v1827 = vpow.pop %v1826
  %v1828 = vmul.f32 %v1738, 1.442695
  %v1829 = vpow.pop %v1828
  %v1830 = vmul.f32 %v1739, 1.442695
  %v1831 = vpow.pop %v1830
  %v1832 = vmul.f32 %v1740, 1.442695
  %v1833 = vpow.pop %v1832
  %v1834 = vmul.f32 %v1741, 1.442695
  %v1835 = vpow.pop %v1834
  %v1836 = vmul.f32 %v1742, 1.442695
  %v1837 = vpow.pop %v1836
  %v1838 = vmul.f32 %v1743, 1.442695
  %v1839 = vpow.pop %v1838
  %v1840 = vmul.f32 %v1744, 1.442695
  %v1841 = vpow.pop %v1840
  %v1842 = vmul.f32 %v1745, 1.442695
  %v1843 = vpow.pop %v1842
  %v1844 = vmul.f32 %v1746, 1.442695
  %v1845 = vpow.pop %v1844
  %v1846 = vmul.f32 %v1747, 1.442695
  %v1847 = vpow.pop %v1846
  %v1848 = vmul.f32 %v1748, 1.442695
  %v1849 = vpow.pop %v1848
  %v1850 = vmul.f32 %v1749, 1.442695
  %v1851 = vpow.pop %v1850
  %v1852 = vmul.f32 %v1750, 1.442695
  %v1853 = vpow.pop %v1852
  %v1854 = vmul.f32 %v1751, 1.442695
  %v1855 = vpow.pop %v1854
  %v1856 = vmul.f32 %v1752, 1.442695
  %v1857 = vpow.pop %v1856
  %v1858 = vmul.f32 %v1753, 1.442695
  %v1859 = vpow.pop %v1858
  %v1860 = vmul.f32 %v1754, 1.442695
  %v1861 = vpow.pop %v1860
  %v1862 = vmul.f32 %v1755, 1.442695
  %v1863 = vpow.pop %v1862
  %v1864 = vmul.f32 %v1756, 1.442695
  %v1865 = vpow.pop %v1864
  %v1866 = vmul.f32 %v1757, 1.442695
  %v1867 = vpow.pop %v1866
  %v1868 = vmul.f32 %v1758, 1.442695
  %v1869 = vpow.pop %v1868
  %v1870 = vmul.f32 %v1759, 1.442695
  %v1871 = vpow.pop %v1870
  %v1872 = vmul.f32 %v1760, 1.442695
  %v1873 = vpow.pop %v1872
  %v1874 = vmul.f32 %v1761, 1.442695
  %v1875 = vpow.pop %v1874
  %v1876 = vmul.f32 %v1762, 1.442695
  %v1877 = vpow.pop %v1876
  %v1878 = vmul.f32 %v1763, 1.442695
  %v1879 = vpow.pop %v1878
  %v1880 = vmul.f32 %v1764, 1.442695
  %v1881 = vpow.pop %v1880
  %v1882 = vmul.f32 %v1765, 1.442695
  %v1883 = vpow.pop %v1882
  %v1884 = vmul.f32 %v1766, 1.442695
  %v1885 = vpow.pop %v1884
  %v1886 = vmul.f32 %v1767, 1.442695
  %v1887 = vpow.pop %v1886
  %v1888 = vmul.f32 %v1768, 1.442695
  %v1889 = vpow.pop %v1888
  %v1890 = vmul.f32 %v1769, 1.442695
  %v1891 = vpow.pop %v1890
  %v1892 = vmul.f32 %v1770, 1.442695
  %v1893 = vpow.pop %v1892
  %v1894 = vmul.f32 %v1771, 1.442695
  %v1895 = vpow.pop %v1894
  %v1896 = vmul.f32 %v1772, 1.442695
  %v1897 = vpow.pop %v1896
  %v1898 = vmul.f32 %v1773, 1.442695
  %v1899 = vpow.pop %v1898
  %v1900 = vmul.f32 %v1774, 1.442695
  %v1901 = vpow.pop %v1900
  %v1902 = vmul.f32 %v1775, 1.442695
  %v1903 = vpow.pop %v1902
  %v1904 = vmul.f32 %v1584, %v1777
  %v1905 = vmul.f32 %v1585, %v1779
  %v1906 = vmul.f32 %v1586, %v1781
  %v1907 = vmul.f32 %v1587, %v1783
  %v1908 = vmul.f32 %v1588, %v1785
  %v1909 = vmul.f32 %v1589, %v1787
  %v1910 = vmul.f32 %v1590, %v1789
  %v1911 = vmul.f32 %v1591, %v1791
  %v1912 = vmul.f32 %v1592, %v1793
  %v1913 = vmul.f32 %v1593, %v1795
  %v1914 = vmul.f32 %v1594, %v1797
  %v1915 = vmul.f32 %v1595, %v1799
  %v1916 = vmul.f32 %v1596, %v1801
  %v1917 = vmul.f32 %v1597, %v1803
  %v1918 = vmul.f32 %v1598, %v1805
  %v1919 = vmul.f32 %v1599, %v1807
  %v1920 = vmul.f32 %v1600, %v1809
  %v1921 = vmul.f32 %v1601, %v1811
  %v1922 = vmul.f32 %v1602, %v1813
  %v1923 = vmul.f32 %v1603, %v1815
  %v1924 = vmul.f32 %v1604, %v1817
  %v1925 = vmul.f32 %v1605, %v1819
  %v1926 = vmul.f32 %v1606, %v1821
  %v1927 = vmul.f32 %v1607, %v1823
  %v1928 = vmul.f32 %v1608, %v1825
  %v1929 = vmul.f32 %v1609, %v1827
  %v1930 = vmul.f32 %v1610, %v1829
  %v1931 = vmul.f32 %v1611, %v1831
  %v1932 = vmul.f32 %v1612, %v1833
  %v1933 = vmul.f32 %v1613, %v1835
  %v1934 = vmul.f32 %v1614, %v1837
  %v1935 = vmul.f32 %v1615, %v1839
  %v1936 = vmul.f32 %v1616, %v1841
  %v1937 = vmul.f32 %v1617, %v1843
  %v1938 = vmul.f32 %v1618, %v1845
  %v1939 = vmul.f32 %v1619, %v1847
  %v1940 = vmul.f32 %v1620, %v1849
  %v1941 = vmul.f32 %v1621, %v1851
  %v1942 = vmul.f32 %v1622, %v1853
  %v1943 = vmul.f32 %v1623, %v1855
  %v1944 = vmul.f32 %v1624, %v1857
  %v1945 = vmul.f32 %v1625, %v1859
  %v1946 = vmul.f32 %v1626, %v1861
  %v1947 = vmul.f32 %v1627, %v1863
  %v1948 = vmul.f32 %v1628, %v1865
  %v1949 = vmul.f32 %v1629, %v1867
  %v1950 = vmul.f32 %v1630, %v1869
  %v1951 = vmul.f32 %v1631, %v1871
  %v1952 = vmul.f32 %v1632, %v1873
  %v1953 = vmul.f32 %v1633, %v1875
  %v1954 = vmul.f32 %v1634, %v1877
  %v1955 = vmul.f32 %v1635, %v1879
  %v1956 = vmul.f32 %v1636, %v1881
  %v1957 = vmul.f32 %v1637, %v1883
  %v1958 = vmul.f32 %v1638, %v1885
  %v1959 = vmul.f32 %v1639, %v1887
  %v1960 = vmul.f32 %v1640, %v1889
  %v1961 = vmul.f32 %v1641, %v1891
  %v1962 = vmul.f32 %v1642, %v1893
  %v1963 = vmul.f32 %v1643, %v1895
  %v1964 = vmul.f32 %v1644, %v1897
  %v1965 = vmul.f32 %v1645, %v1899
  %v1966 = vmul.f32 %v1646, %v1901
  %v1967 = vmul.f32 %v1647, %v1903
  %v1968 = vsub.f32 1.0, %v1904
  %v1969 = vsub.f32 1.0, %v1905
  %v1970 = vsub.f32 1.0, %v1906
  %v1971 = vsub.f32 1.0, %v1907
  %v1972 = vsub.f32 1.0, %v1908
  %v1973 = vsub.f32 1.0, %v1909
  %v1974 = vsub.f32 1.0, %v1910
  %v1975 = vsub.f32 1.0, %v1911
  %v1976 = vsub.f32 1.0, %v1912
  %v1977 = vsub.f32 1.0, %v1913
  %v1978 = vsub.f32 1.0, %v1914
  %v1979 = vsub.f32 1.0, %v1915
  %v1980 = vsub.f32 1.0, %v1916
  %v1981 = vsub.f32 1.0, %v1917
  %v1982 = vsub.f32 1.0, %v1918
  %v1983 = vsub.f32 1.0, %v1919
  %v1984 = vsub.f32 1.0, %v1920
  %v1985 = vsub.f32 1.0, %v1921
  %v1986 = vsub.f32 1.0, %v1922
  %v1987 = vsub.f32 1.0, %v1923
  %v1988 = vsub.f32 1.0, %v1924
  %v1989 = vsub.f32 1.0, %v1925
  %v1990 = vsub.f32 1.0, %v1926
  %v1991 = vsub.f32 1.0, %v1927
  %v1992 = vsub.f32 1.0, %v1928
  %v1993 = vsub.f32 1.0, %v1929
  %v1994 = vsub.f32 1.0, %v1930
  %v1995 = vsub.f32 1.0, %v1931
  %v1996 = vsub.f32 1.0, %v1932
  %v1997 = vsub.f32 1.0, %v1933
  %v1998 = vsub.f32 1.0, %v1934
  %v1999 = vsub.f32 1.0, %v1935
  %v2000 = vsub.f32 1.0, %v1936
  %v2001 = vsub.f32 1.0, %v1937
  %v2002 = vsub.f32 1.0, %v1938
  %v2003 = vsub.f32 1.0, %v1939
  %v2004 = vsub.f32 1.0, %v1940
  %v2005 = vsub.f32 1.0, %v1941
  %v2006 = vsub.f32 1.0, %v1942
  %v2007 = vsub.f32 1.0, %v1943
  %v2008 = vsub.f32 1.0, %v1944
  %v2009 = vsub.f32 1.0, %v1945
  %v2010 = vsub.f32 1.0, %v1946
  %v2011 = vsub.f32 1.0, %v1947
  %v2012 = vsub.f32 1.0, %v1948
  %v2013 = vsub.f32 1.0, %v1949
  %v2014 = vsub.f32 1.0, %v1950
  %v2015 = vsub.f32 1.0, %v1951
  %v2016 = vsub.f32 1.0, %v1952
  %v2017 = vsub.f32 1.0, %v1953
  %v2018 = vsub.f32 1.0, %v1954
  %v2019 = vsub.f32 1.0, %v1955
  %v2020 = vsub.f32 1.0, %v1956
  %v2021 = vsub.f32 1.0, %v1957
  %v2022 = vsub.f32 1.0, %v1958
  %v2023 = vsub.f32 1.0, %v1959
  %v2024 = vsub.f32 1.0, %v1960
  %v2025 = vsub.f32 1.0, %v1961
  %v2026 = vsub.f32 1.0, %v1962
  %v2027 = vsub.f32 1.0, %v1963
  %v2028 = vsub.f32 1.0, %v1964
  %v2029 = vsub.f32 1.0, %v1965
  %v2030 = vsub.f32 1.0, %v1966
  %v2031 = vsub.f32 1.0, %v1967
  %vm2032 = vcmp.lt.f32.partialorder %v688, 0.0
  %vm2033 = vcmp.lt.f32.partialorder %v689, 0.0
  %vm2034 = vcmp.lt.f32.partialorder %v690, 0.0
  %vm2035 = vcmp.lt.f32.partialorder %v691, 0.0
  %vm2036 = vcmp.lt.f32.partialorder %v692, 0.0
  %vm2037 = vcmp.lt.f32.partialorder %v693, 0.0
  %vm2038 = vcmp.lt.f32.partialorder %v694, 0.0
  %vm2039 = vcmp.lt.f32.partialorder %v695, 0.0
  %vm2040 = vcmp.lt.f32.partialorder %v696, 0.0
  %vm2041 = vcmp.lt.f32.partialorder %v697, 0.0
  %vm2042 = vcmp.lt.f32.partialorder %v698, 0.0
  %vm2043 = vcmp.lt.f32.partialorder %v699, 0.0
  %vm2044 = vcmp.lt.f32.partialorder %v700, 0.0
  %vm2045 = vcmp.lt.f32.partialorder %v701, 0.0
  %vm2046 = vcmp.lt.f32.partialorder %v702, 0.0
  %vm2047 = vcmp.lt.f32.partialorder %v703, 0.0
  %vm2048 = vcmp.lt.f32.partialorder %v704, 0.0
  %vm2049 = vcmp.lt.f32.partialorder %v705, 0.0
  %vm2050 = vcmp.lt.f32.partialorder %v706, 0.0
  %vm2051 = vcmp.lt.f32.partialorder %v707, 0.0
  %vm2052 = vcmp.lt.f32.partialorder %v708, 0.0
  %vm2053 = vcmp.lt.f32.partialorder %v709, 0.0
  %vm2054 = vcmp.lt.f32.partialorder %v710, 0.0
  %vm2055 = vcmp.lt.f32.partialorder %v711, 0.0
  %vm2056 = vcmp.lt.f32.partialorder %v712, 0.0
  %vm2057 = vcmp.lt.f32.partialorder %v713, 0.0
  %vm2058 = vcmp.lt.f32.partialorder %v714, 0.0
  %vm2059 = vcmp.lt.f32.partialorder %v715, 0.0
  %vm2060 = vcmp.lt.f32.partialorder %v716, 0.0
  %vm2061 = vcmp.lt.f32.partialorder %v717, 0.0
  %vm2062 = vcmp.lt.f32.partialorder %v718, 0.0
  %vm2063 = vcmp.lt.f32.partialorder %v719, 0.0
  %vm2064 = vcmp.lt.f32.partialorder %v720, 0.0
  %vm2065 = vcmp.lt.f32.partialorder %v721, 0.0
  %vm2066 = vcmp.lt.f32.partialorder %v722, 0.0
  %vm2067 = vcmp.lt.f32.partialorder %v723, 0.0
  %vm2068 = vcmp.lt.f32.partialorder %v724, 0.0
  %vm2069 = vcmp.lt.f32.partialorder %v725, 0.0
  %vm2070 = vcmp.lt.f32.partialorder %v726, 0.0
  %vm2071 = vcmp.lt.f32.partialorder %v727, 0.0
  %vm2072 = vcmp.lt.f32.partialorder %v728, 0.0
  %vm2073 = vcmp.lt.f32.partialorder %v729, 0.0
  %vm2074 = vcmp.lt.f32.partialorder %v730, 0.0
  %vm2075 = vcmp.lt.f32.partialorder %v731, 0.0
  %vm2076 = vcmp.lt.f32.partialorder %v732, 0.0
  %vm2077 = vcmp.lt.f32.partialorder %v733, 0.0
  %vm2078 = vcmp.lt.f32.partialorder %v734, 0.0
  %vm2079 = vcmp.lt.f32.partialorder %v735, 0.0
  %vm2080 = vcmp.lt.f32.partialorder %v736, 0.0
  %vm2081 = vcmp.lt.f32.partialorder %v737, 0.0
  %vm2082 = vcmp.lt.f32.partialorder %v738, 0.0
  %vm2083 = vcmp.lt.f32.partialorder %v739, 0.0
  %vm2084 = vcmp.lt.f32.partialorder %v740, 0.0
  %vm2085 = vcmp.lt.f32.partialorder %v741, 0.0
  %vm2086 = vcmp.lt.f32.partialorder %v742, 0.0
  %vm2087 = vcmp.lt.f32.partialorder %v743, 0.0
  %vm2088 = vcmp.lt.f32.partialorder %v744, 0.0
  %vm2089 = vcmp.lt.f32.partialorder %v745, 0.0
  %vm2090 = vcmp.lt.f32.partialorder %v746, 0.0
  %vm2091 = vcmp.lt.f32.partialorder %v747, 0.0
  %vm2092 = vcmp.lt.f32.partialorder %v748, 0.0
  %vm2093 = vcmp.lt.f32.partialorder %v749, 0.0
  %vm2094 = vcmp.lt.f32.partialorder %v750, 0.0
  %vm2095 = vcmp.lt.f32.partialorder %v751, 0.0
  %v2096 = vsub.f32 0.0, %v1968
  %v2097 = vsub.f32 0.0, %v1969
  %v2098 = vsub.f32 0.0, %v1970
  %v2099 = vsub.f32 0.0, %v1971
  %v2100 = vsub.f32 0.0, %v1972
  %v2101 = vsub.f32 0.0, %v1973
  %v2102 = vsub.f32 0.0, %v1974
  %v2103 = vsub.f32 0.0, %v1975
  %v2104 = vsub.f32 0.0, %v1976
  %v2105 = vsub.f32 0.0, %v1977
  %v2106 = vsub.f32 0.0, %v1978
  %v2107 = vsub.f32 0.0, %v1979
  %v2108 = vsub.f32 0.0, %v1980
  %v2109 = vsub.f32 0.0, %v1981
  %v2110 = vsub.f32 0.0, %v1982
  %v2111 = vsub.f32 0.0, %v1983
  %v2112 = vsub.f32 0.0, %v1984
  %v2113 = vsub.f32 0.0, %v1985
  %v2114 = vsub.f32 0.0, %v1986
  %v2115 = vsub.f32 0.0, %v1987
  %v2116 = vsub.f32 0.0, %v1988
  %v2117 = vsub.f32 0.0, %v1989
  %v2118 = vsub.f32 0.0, %v1990
  %v2119 = vsub.f32 0.0, %v1991
  %v2120 = vsub.f32 0.0, %v1992
  %v2121 = vsub.f32 0.0, %v1993
  %v2122 = vsub.f32 0.0, %v1994
  %v2123 = vsub.f32 0.0, %v1995
  %v2124 = vsub.f32 0.0, %v1996
  %v2125 = vsub.f32 0.0, %v1997
  %v2126 = vsub.f32 0.0, %v1998
  %v2127 = vsub.f32 0.0, %v1999
  %v2128 = vsub.f32 0.0, %v2000
  %v2129 = vsub.f32 0.0, %v2001
  %v2130 = vsub.f32 0.0, %v2002
  %v2131 = vsub.f32 0.0, %v2003
  %v2132 = vsub.f32 0.0, %v2004
  %v2133 = vsub.f32 0.0, %v2005
  %v2134 = vsub.f32 0.0, %v2006
  %v2135 = vsub.f32 0.0, %v2007
  %v2136 = vsub.f32 0.0, %v2008
  %v2137 = vsub.f32 0.0, %v2009
  %v2138 = vsub.f32 0.0, %v2010
  %v2139 = vsub.f32 0.0, %v2011
  %v2140 = vsub.f32 0.0, %v2012
  %v2141 = vsub.f32 0.0, %v2013
  %v2142 = vsub.f32 0.0, %v2014
  %v2143 = vsub.f32 0.0, %v2015
  %v2144 = vsub.f32 0.0, %v2016
  %v2145 = vsub.f32 0.0, %v2017
  %v2146 = vsub.f32 0.0, %v2018
  %v2147 = vsub.f32 0.0, %v2019
  %v2148 = vsub.f32 0.0, %v2020
  %v2149 = vsub.f32 0.0, %v2021
  %v2150 = vsub.f32 0.0, %v2022
  %v2151 = vsub.f32 0.0, %v2023
  %v2152 = vsub.f32 0.0, %v2024
  %v2153 = vsub.f32 0.0, %v2025
  %v2154 = vsub.f32 0.0, %v2026
  %v2155 = vsub.f32 0.0, %v2027
  %v2156 = vsub.f32 0.0, %v2028
  %v2157 = vsub.f32 0.0, %v2029
  %v2158 = vsub.f32 0.0, %v2030
  %v2159 = vsub.f32 0.0, %v2031
  %v2160 = vsel %vm2032, %v2096, %v1968
  %v2161 = vsel %vm2033, %v2097, %v1969
  %v2162 = vsel %vm2034, %v2098, %v1970
  %v2163 = vsel %vm2035, %v2099, %v1971
  %v2164 = vsel %vm2036, %v2100, %v1972
  %v2165 = vsel %vm2037, %v2101, %v1973
  %v2166 = vsel %vm2038, %v2102, %v1974
  %v2167 = vsel %vm2039, %v2103, %v1975
  %v2168 = vsel %vm2040, %v2104, %v1976
  %v2169 = vsel %vm2041, %v2105, %v1977
  %v2170 = vsel %vm2042, %v2106, %v1978
  %v2171 = vsel %vm2043, %v2107, %v1979
  %v2172 = vsel %vm2044, %v2108, %v1980
  %v2173 = vsel %vm2045, %v2109, %v1981
  %v2174 = vsel %vm2046, %v2110, %v1982
  %v2175 = vsel %vm2047, %v2111, %v1983
  %v2176 = vsel %vm2048, %v2112, %v1984
  %v2177 = vsel %vm2049, %v2113, %v1985
  %v2178 = vsel %vm2050, %v2114, %v1986
  %v2179 = vsel %vm2051, %v2115, %v1987
  %v2180 = vsel %vm2052, %v2116, %v1988
  %v2181 = vsel %vm2053, %v2117, %v1989
  %v2182 = vsel %vm2054, %v2118, %v1990
  %v2183 = vsel %vm2055, %v2119, %v1991
  %v2184 = vsel %vm2056, %v2120, %v1992
  %v2185 = vsel %vm2057, %v2121, %v1993
  %v2186 = vsel %vm2058, %v2122, %v1994
  %v2187 = vsel %vm2059, %v2123, %v1995
  %v2188 = vsel %vm2060, %v2124, %v1996
  %v2189 = vsel %vm2061, %v2125, %v1997
  %v2190 = vsel %vm2062, %v2126, %v1998
  %v2191 = vsel %vm2063, %v2127, %v1999
  %v2192 = vsel %vm2064, %v2128, %v2000
  %v2193 = vsel %vm2065, %v2129, %v2001
  %v2194 = vsel %vm2066, %v2130, %v2002
  %v2195 = vsel %vm2067, %v2131, %v2003
  %v2196 = vsel %vm2068, %v2132, %v2004
  %v2197 = vsel %vm2069, %v2133, %v2005
  %v2198 = vsel %vm2070, %v2134, %v2006
  %v2199 = vsel %vm2071, %v2135, %v2007
  %v2200 = vsel %vm2072, %v2136, %v2008
  %v2201 = vsel %vm2073, %v2137, %v2009
  %v2202 = vsel %vm2074, %v2138, %v2010
  %v2203 = vsel %vm2075, %v2139, %v2011
  %v2204 = vsel %vm2076, %v2140, %v2012
  %v2205 = vsel %vm2077, %v2141, %v2013
  %v2206 = vsel %vm2078, %v2142, %v2014
  %v2207 = vsel %vm2079, %v2143, %v2015
  %v2208 = vsel %vm2080, %v2144, %v2016
  %v2209 = vsel %vm2081, %v2145, %v2017
  %v2210 = vsel %vm2082, %v2146, %v2018
  %v2211 = vsel %vm2083, %v2147, %v2019
  %v2212 = vsel %vm2084, %v2148, %v2020
  %v2213 = vsel %vm2085, %v2149, %v2021
  %v2214 = vsel %vm2086, %v2150, %v2022
  %v2215 = vsel %vm2087, %v2151, %v2023
  %v2216 = vsel %vm2088, %v2152, %v2024
  %v2217 = vsel %vm2089, %v2153, %v2025
  %v2218 = vsel %vm2090, %v2154, %v2026
  %v2219 = vsel %vm2091, %v2155, %v2027
  %v2220 = vsel %vm2092, %v2156, %v2028
  %v2221 = vsel %vm2093, %v2157, %v2029
  %v2222 = vsel %vm2094, %v2158, %v2030
  %v2223 = vsel %vm2095, %v2159, %v2031
  %v2224 = vadd.f32 %v2160, 1.0
  %v2225 = vadd.f32 %v2161, 1.0
  %v2226 = vadd.f32 %v2162, 1.0
  %v2227 = vadd.f32 %v2163, 1.0
  %v2228 = vadd.f32 %v2164, 1.0
  %v2229 = vadd.f32 %v2165, 1.0
  %v2230 = vadd.f32 %v2166, 1.0
  %v2231 = vadd.f32 %v2167, 1.0
  %v2232 = vadd.f32 %v2168, 1.0
  %v2233 = vadd.f32 %v2169, 1.0
  %v2234 = vadd.f32 %v2170, 1.0
  %v2235 = vadd.f32 %v2171, 1.0
  %v2236 = vadd.f32 %v2172, 1.0
  %v2237 = vadd.f32 %v2173, 1.0
  %v2238 = vadd.f32 %v2174, 1.0
  %v2239 = vadd.f32 %v2175, 1.0
  %v2240 = vadd.f32 %v2176, 1.0
  %v2241 = vadd.f32 %v2177, 1.0
  %v2242 = vadd.f32 %v2178, 1.0
  %v2243 = vadd.f32 %v2179, 1.0
  %v2244 = vadd.f32 %v2180, 1.0
  %v2245 = vadd.f32 %v2181, 1.0
  %v2246 = vadd.f32 %v2182, 1.0
  %v2247 = vadd.f32 %v2183, 1.0
  %v2248 = vadd.f32 %v2184, 1.0
  %v2249 = vadd.f32 %v2185, 1.0
  %v2250 = vadd.f32 %v2186, 1.0
  %v2251 = vadd.f32 %v2187, 1.0
  %v2252 = vadd.f32 %v2188, 1.0
  %v2253 = vadd.f32 %v2189, 1.0
  %v2254 = vadd.f32 %v2190, 1.0
  %v2255 = vadd.f32 %v2191, 1.0
  %v2256 = vadd.f32 %v2192, 1.0
  %v2257 = vadd.f32 %v2193, 1.0
  %v2258 = vadd.f32 %v2194, 1.0
  %v2259 = vadd.f32 %v2195, 1.0
  %v2260 = vadd.f32 %v2196, 1.0
  %v2261 = vadd.f32 %v2197, 1.0
  %v2262 = vadd.f32 %v2198, 1.0
  %v2263 = vadd.f32 %v2199, 1.0
  %v2264 = vadd.f32 %v2200, 1.0
  %v2265 = vadd.f32 %v2201, 1.0
  %v2266 = vadd.f32 %v2202, 1.0
  %v2267 = vadd.f32 %v2203, 1.0
  %v2268 = vadd.f32 %v2204, 1.0
  %v2269 = vadd.f32 %v2205, 1.0
  %v2270 = vadd.f32 %v2206, 1.0
  %v2271 = vadd.f32 %v2207, 1.0
  %v2272 = vadd.f32 %v2208, 1.0
  %v2273 = vadd.f32 %v2209, 1.0
  %v2274 = vadd.f32 %v2210, 1.0
  %v2275 = vadd.f32 %v2211, 1.0
  %v2276 = vadd.f32 %v2212, 1.0
  %v2277 = vadd.f32 %v2213, 1.0
  %v2278 = vadd.f32 %v2214, 1.0
  %v2279 = vadd.f32 %v2215, 1.0
  %v2280 = vadd.f32 %v2216, 1.0
  %v2281 = vadd.f32 %v2217, 1.0
  %v2282 = vadd.f32 %v2218, 1.0
  %v2283 = vadd.f32 %v2219, 1.0
  %v2284 = vadd.f32 %v2220, 1.0
  %v2285 = vadd.f32 %v2221, 1.0
  %v2286 = vadd.f32 %v2222, 1.0
  %v2287 = vadd.f32 %v2223, 1.0
  %v2288 = vmul.f32 %v624, %v2224
  %v2289 = vmul.f32 %v625, %v2225
  %v2290 = vmul.f32 %v626, %v2226
  %v2291 = vmul.f32 %v627, %v2227
  %v2292 = vmul.f32 %v628, %v2228
  %v2293 = vmul.f32 %v629, %v2229
  %v2294 = vmul.f32 %v630, %v2230
  %v2295 = vmul.f32 %v631, %v2231
  %v2296 = vmul.f32 %v632, %v2232
  %v2297 = vmul.f32 %v633, %v2233
  %v2298 = vmul.f32 %v634, %v2234
  %v2299 = vmul.f32 %v635, %v2235
  %v2300 = vmul.f32 %v636, %v2236
  %v2301 = vmul.f32 %v637, %v2237
  %v2302 = vmul.f32 %v638, %v2238
  %v2303 = vmul.f32 %v639, %v2239
  %v2304 = vmul.f32 %v640, %v2240
  %v2305 = vmul.f32 %v641, %v2241
  %v2306 = vmul.f32 %v642, %v2242
  %v2307 = vmul.f32 %v643, %v2243
  %v2308 = vmul.f32 %v644, %v2244
  %v2309 = vmul.f32 %v645, %v2245
  %v2310 = vmul.f32 %v646, %v2246
  %v2311 = vmul.f32 %v647, %v2247
  %v2312 = vmul.f32 %v648, %v2248
  %v2313 = vmul.f32 %v649, %v2249
  %v2314 = vmul.f32 %v650, %v2250
  %v2315 = vmul.f32 %v651, %v2251
  %v2316 = vmul.f32 %v652, %v2252
  %v2317 = vmul.f32 %v653, %v2253
  %v2318 = vmul.f32 %v654, %v2254
  %v2319 = vmul.f32 %v655, %v2255
  %v2320 = vmul.f32 %v656, %v2256
  %v2321 = vmul.f32 %v657, %v2257
  %v2322 = vmul.f32 %v658, %v2258
  %v2323 = vmul.f32 %v659, %v2259
  %v2324 = vmul.f32 %v660, %v2260
  %v2325 = vmul.f32 %v661, %v2261
  %v2326 = vmul.f32 %v662, %v2262
  %v2327 = vmul.f32 %v663, %v2263
  %v2328 = vmul.f32 %v664, %v2264
  %v2329 = vmul.f32 %v665, %v2265
  %v2330 = vmul.f32 %v666, %v2266
  %v2331 = vmul.f32 %v667, %v2267
  %v2332 = vmul.f32 %v668, %v2268
  %v2333 = vmul.f32 %v669, %v2269
  %v2334 = vmul.f32 %v670, %v2270
  %v2335 = vmul.f32 %v671, %v2271
  %v2336 = vmul.f32 %v672, %v2272
  %v2337 = vmul.f32 %v673, %v2273
  %v2338 = vmul.f32 %v674, %v2274
  %v2339 = vmul.f32 %v675, %v2275
  %v2340 = vmul.f32 %v676, %v2276
  %v2341 = vmul.f32 %v677, %v2277
  %v2342 = vmul.f32 %v678, %v2278
  %v2343 = vmul.f32 %v679, %v2279
  %v2344 = vmul.f32 %v680, %v2280
  %v2345 = vmul.f32 %v681, %v2281
  %v2346 = vmul.f32 %v682, %v2282
  %v2347 = vmul.f32 %v683, %v2283
  %v2348 = vmul.f32 %v684, %v2284
  %v2349 = vmul.f32 %v685, %v2285
  %v2350 = vmul.f32 %v686, %v2286
  %v2351 = vmul.f32 %v687, %v2287
  %2352 = vst [vmem:[%s4] sm:$0xff] %v2288
  %2353 = vst [vmem:[%s4 + $0x8] sm:$0xff] %v2289
  %2354 = vst [vmem:[%s4 + $0x10] sm:$0xff] %v2290
  %2355 = vst [vmem:[%s4 + $0x18] sm:$0xff] %v2291
  %2356 = vst [vmem:[%s4 + $0x20] sm:$0xff] %v2292
  %2357 = vst [vmem:[%s4 + $0x28] sm:$0xff] %v2293
  %2358 = vst [vmem:[%s4 + $0x30] sm:$0xff] %v2294
  %2359 = vst [vmem:[%s4 + $0x38] sm:$0xff] %v2295
  %2360 = vst [vmem:[%s4 + $0x40] sm:$0xff] %v2296
  %2361 = vst [vmem:[%s4 + $0x48] sm:$0xff] %v2297
  %2362 = vst [vmem:[%s4 + $0x50] sm:$0xff] %v2298
  %2363 = vst [vmem:[%s4 + $0x58] sm:$0xff] %v2299
  %2364 = vst [vmem:[%s4 + $0x60] sm:$0xff] %v2300
  %2365 = vst [vmem:[%s4 + $0x68] sm:$0xff] %v2301
  %2366 = vst [vmem:[%s4 + $0x70] sm:$0xff] %v2302
  %2367 = vst [vmem:[%s4 + $0x78] sm:$0xff] %v2303
  %2368 = vst [vmem:[%s4 + $0x80] sm:$0xff] %v2304
  %2369 = vst [vmem:[%s4 + $0x88] sm:$0xff] %v2305
  %2370 = vst [vmem:[%s4 + $0x90] sm:$0xff] %v2306
  %2371 = vst [vmem:[%s4 + $0x98] sm:$0xff] %v2307
  %2372 = vst [vmem:[%s4 + $0xa0] sm:$0xff] %v2308
  %2373 = vst [vmem:[%s4 + $0xa8] sm:$0xff] %v2309
  %2374 = vst [vmem:[%s4 + $0xb0] sm:$0xff] %v2310
  %2375 = vst [vmem:[%s4 + $0xb8] sm:$0xff] %v2311
  %2376 = vst [vmem:[%s4 + $0xc0] sm:$0xff] %v2312
  %2377 = vst [vmem:[%s4 + $0xc8] sm:$0xff] %v2313
  %2378 = vst [vmem:[%s4 + $0xd0] sm:$0xff] %v2314
  %2379 = vst [vmem:[%s4 + $0xd8] sm:$0xff] %v2315
  %2380 = vst [vmem:[%s4 + $0xe0] sm:$0xff] %v2316
  %2381 = vst [vmem:[%s4 + $0xe8] sm:$0xff] %v2317
  %2382 = vst [vmem:[%s4 + $0xf0] sm:$0xff] %v2318
  %2383 = vst [vmem:[%s4 + $0xf8] sm:$0xff] %v2319
  %2384 = vst [vmem:[%s4 + $0x100] sm:$0xff] %v2320
  %2385 = vst [vmem:[%s4 + $0x108] sm:$0xff] %v2321
  %2386 = vst [vmem:[%s4 + $0x110] sm:$0xff] %v2322
  %2387 = vst [vmem:[%s4 + $0x118] sm:$0xff] %v2323
  %2388 = vst [vmem:[%s4 + $0x120] sm:$0xff] %v2324
  %2389 = vst [vmem:[%s4 + $0x128] sm:$0xff] %v2325
  %2390 = vst [vmem:[%s4 + $0x130] sm:$0xff] %v2326
  %2391 = vst [vmem:[%s4 + $0x138] sm:$0xff] %v2327
  %2392 = vst [vmem:[%s4 + $0x140] sm:$0xff] %v2328
  %2393 = vst [vmem:[%s4 + $0x148] sm:$0xff] %v2329
  %2394 = vst [vmem:[%s4 + $0x150] sm:$0xff] %v2330
  %2395 = vst [vmem:[%s4 + $0x158] sm:$0xff] %v2331
  %2396 = vst [vmem:[%s4 + $0x160] sm:$0xff] %v2332
  %2397 = vst [vmem:[%s4 + $0x168] sm:$0xff] %v2333
  %2398 = vst [vmem:[%s4 + $0x170] sm:$0xff] %v2334
  %2399 = vst [vmem:[%s4 + $0x178] sm:$0xff] %v2335
  %2400 = vst [vmem:[%s4 + $0x180] sm:$0xff] %v2336
  %2401 = vst [vmem:[%s4 + $0x188] sm:$0xff] %v2337
  %2402 = vst [vmem:[%s4 + $0x190] sm:$0xff] %v2338
  %2403 = vst [vmem:[%s4 + $0x198] sm:$0xff] %v2339
  %2404 = vst [vmem:[%s4 + $0x1a0] sm:$0xff] %v2340
  %2405 = vst [vmem:[%s4 + $0x1a8] sm:$0xff] %v2341
  %2406 = vst [vmem:[%s4 + $0x1b0] sm:$0xff] %v2342
  %2407 = vst [vmem:[%s4 + $0x1b8] sm:$0xff] %v2343
  %2408 = vst [vmem:[%s4 + $0x1c0] sm:$0xff] %v2344
  %2409 = vst [vmem:[%s4 + $0x1c8] sm:$0xff] %v2345
  %2410 = vst [vmem:[%s4 + $0x1d0] sm:$0xff] %v2346
  %2411 = vst [vmem:[%s4 + $0x1d8] sm:$0xff] %v2347
  %2412 = vst [vmem:[%s4 + $0x1e0] sm:$0xff] %v2348
  %2413 = vst [vmem:[%s4 + $0x1e8] sm:$0xff] %v2349
  %2414 = vst [vmem:[%s4 + $0x1f0] sm:$0xff] %v2350
  %2415 = vst [vmem:[%s4 + $0x1f8] sm:$0xff] %v2351
  // Predicated region
  $region18: #{coordinator_forward.16} parent=0 // pred_check
    _
  $region19: #{coordinator_forward.16} parent=0 // pred_check_branch
    %2417 = sbr.rel (0) target = $region21
  $region20: #{coordinator_forward.16} parent=0 // pred_region
    _
  $region21: #{coordinator_forward.16} parent=0 // pred_fallthru
    _
  // Predicated region
  $region22: #{coordinator_forward.16} parent=0 // pred_check
    _
  $region23: #{coordinator_forward.16} parent=0 // pred_check_branch
    %2419 = sbr.rel (0) target = $region25
  $region24: #{coordinator_forward.16} parent=0 // pred_region
    _
  $region25: #{coordinator_forward.16} parent=0 // pred_fallthru
    _

// kernel: coordinator_forward.17
$region0: #{coordinator_forward.17}
  #allocation0 [shape = 'u32[]', space=smem, size = 0x4, offset = 0x4, fixed_abs, tag = 'smem constant byte address 0x4 - core index']
  #allocation1 [shape = 'u32[144,128]{1,0:T(1,128)}', space=vmem, size = 0x12000, scoped, tag = 'internal scratch']
  %s0 = inlined_call_operand.vmem [shape: f32[512,384], index: 0, kind: input, shape index: {}]
  %s1 = inlined_call_operand.vmem [shape: f32[384,128], index: 1, kind: input, shape index: {}]
  %s2 = inlined_call_operand.vmem [shape: f32[1,128], index: 2, kind: input, shape index: {}]
  %s3 = inlined_call_operand.vmem [shape: f32[1,128], index: 3, kind: input, shape index: {}]
  %s4 = inlined_call_operand.vmem [shape: f32[512,128], index: 4, kind: output, shape index: {}]
  %s5 = sld [smem:[#allocation0]]
  $region26: #{coordinator_forward.17} parent=0
    _
  %s7 = ssub.s32 1, %s5
  %s8 = scalar_select 0, %s7, %s5
  // Predicated region
  $region2: #{coordinator_forward.17} parent=0 // pred_check
    _
  $region3: #{coordinator_forward.17} parent=0 // pred_check_branch
    %10 = sbr.rel (0) target = $region5
  $region4: #{coordinator_forward.17} parent=0 // pred_region
    _
  $region5: #{coordinator_forward.17} parent=0 // pred_fallthru
    _
  // Predicated region
  $region6: #{coordinator_forward.17} parent=0 // pred_check
    _
  $region7: #{coordinator_forward.17} parent=0 // pred_check_branch
    %12 = sbr.rel (0) target = $region9
  $region8: #{coordinator_forward.17} parent=0 // pred_region
    _
  $region9: #{coordinator_forward.17} parent=0 // pred_fallthru
    _
  // Predicated region
  $region10: #{coordinator_forward.17} parent=0 // pred_check
    _
  $region11: #{coordinator_forward.17} parent=0 // pred_check_branch
    %14 = sbr.rel (0) target = $region13
  $region12: #{coordinator_forward.17} parent=0 // pred_region
    _
  $region13: #{coordinator_forward.17} parent=0 // pred_fallthru
    _
  // Predicated region
  $region14: #{coordinator_forward.17} parent=0 // pred_check
    _
  $region15: #{coordinator_forward.17} parent=0 // pred_check_branch
    %16 = sbr.rel (0) target = $region17
  $region16: #{coordinator_forward.17} parent=0 // pred_region
    _
  $region17: #{coordinator_forward.17} parent=0 // pred_fallthru
    _
  %v17 = vld [vmem:[%s0] sm:$0xff]
  %v18 = vld [vmem:[%s0 + $0x8] sm:$0xff]
  %v19 = vld [vmem:[%s0 + $0x10] sm:$0xff]
  %v20 = vld [vmem:[%s0 + $0x18] sm:$0xff]
  %v21 = vld [vmem:[%s0 + $0x20] sm:$0xff]
  %v22 = vld [vmem:[%s0 + $0x28] sm:$0xff]
  %v23 = vld [vmem:[%s0 + $0x30] sm:$0xff]
  %v24 = vld [vmem:[%s0 + $0x38] sm:$0xff]
  %v25 = vld [vmem:[%s0 + $0x40] sm:$0xff]
  %v26 = vld [vmem:[%s0 + $0x48] sm:$0xff]
  %v27 = vld [vmem:[%s0 + $0x50] sm:$0xff]
  %v28 = vld [vmem:[%s0 + $0x58] sm:$0xff]
  %v29 = vld [vmem:[%s0 + $0x60] sm:$0xff]
  %v30 = vld [vmem:[%s0 + $0x68] sm:$0xff]
  %v31 = vld [vmem:[%s0 + $0x70] sm:$0xff]
  %v32 = vld [vmem:[%s0 + $0x78] sm:$0xff]
  %v33 = vld [vmem:[%s0 + $0x80] sm:$0xff]
  %v34 = vld [vmem:[%s0 + $0x88] sm:$0xff]
  %v35 = vld [vmem:[%s0 + $0x90] sm:$0xff]
  %v36 = vld [vmem:[%s0 + $0x98] sm:$0xff]
  %v37 = vld [vmem:[%s0 + $0xa0] sm:$0xff]
  %v38 = vld [vmem:[%s0 + $0xa8] sm:$0xff]
  %v39 = vld [vmem:[%s0 + $0xb0] sm:$0xff]
  %v40 = vld [vmem:[%s0 + $0xb8] sm:$0xff]
  %v41 = vld [vmem:[%s0 + $0xc0] sm:$0xff]
  %v42 = vld [vmem:[%s0 + $0xc8] sm:$0xff]
  %v43 = vld [vmem:[%s0 + $0xd0] sm:$0xff]
  %v44 = vld [vmem:[%s0 + $0xd8] sm:$0xff]
  %v45 = vld [vmem:[%s0 + $0xe0] sm:$0xff]
  %v46 = vld [vmem:[%s0 + $0xe8] sm:$0xff]
  %v47 = vld [vmem:[%s0 + $0xf0] sm:$0xff]
  %v48 = vld [vmem:[%s0 + $0xf8] sm:$0xff]
  %v49 = vld [vmem:[%s0 + $0x100] sm:$0xff]
  %v50 = vld [vmem:[%s0 + $0x108] sm:$0xff]
  %v51 = vld [vmem:[%s0 + $0x110] sm:$0xff]
  %v52 = vld [vmem:[%s0 + $0x118] sm:$0xff]
  %v53 = vld [vmem:[%s0 + $0x120] sm:$0xff]
  %v54 = vld [vmem:[%s0 + $0x128] sm:$0xff]
  %v55 = vld [vmem:[%s0 + $0x130] sm:$0xff]
  %v56 = vld [vmem:[%s0 + $0x138] sm:$0xff]
  %v57 = vld [vmem:[%s0 + $0x140] sm:$0xff]
  %v58 = vld [vmem:[%s0 + $0x148] sm:$0xff]
  %v59 = vld [vmem:[%s0 + $0x150] sm:$0xff]
  %v60 = vld [vmem:[%s0 + $0x158] sm:$0xff]
  %v61 = vld [vmem:[%s0 + $0x160] sm:$0xff]
  %v62 = vld [vmem:[%s0 + $0x168] sm:$0xff]
  %v63 = vld [vmem:[%s0 + $0x170] sm:$0xff]
  %v64 = vld [vmem:[%s0 + $0x178] sm:$0xff]
  %v65 = vld [vmem:[%s0 + $0x180] sm:$0xff]
  %v66 = vld [vmem:[%s0 + $0x188] sm:$0xff]
  %v67 = vld [vmem:[%s0 + $0x190] sm:$0xff]
  %v68 = vld [vmem:[%s0 + $0x198] sm:$0xff]
  %v69 = vld [vmem:[%s0 + $0x1a0] sm:$0xff]
  %v70 = vld [vmem:[%s0 + $0x1a8] sm:$0xff]
  %v71 = vld [vmem:[%s0 + $0x1b0] sm:$0xff]
  %v72 = vld [vmem:[%s0 + $0x1b8] sm:$0xff]
  %v73 = vld [vmem:[%s0 + $0x1c0] sm:$0xff]
  %v74 = vld [vmem:[%s0 + $0x1c8] sm:$0xff]
  %v75 = vld [vmem:[%s0 + $0x1d0] sm:$0xff]
  %v76 = vld [vmem:[%s0 + $0x1d8] sm:$0xff]
  %v77 = vld [vmem:[%s0 + $0x1e0] sm:$0xff]
  %v78 = vld [vmem:[%s0 + $0x1e8] sm:$0xff]
  %v79 = vld [vmem:[%s0 + $0x1f0] sm:$0xff]
  %v80 = vld [vmem:[%s0 + $0x1f8] sm:$0xff]
  %v81 = vld [vmem:[%s0 + $0x200] sm:$0xff]
  %v82 = vld [vmem:[%s0 + $0x208] sm:$0xff]
  %v83 = vld [vmem:[%s0 + $0x210] sm:$0xff]
  %v84 = vld [vmem:[%s0 + $0x218] sm:$0xff]
  %v85 = vld [vmem:[%s0 + $0x220] sm:$0xff]
  %v86 = vld [vmem:[%s0 + $0x228] sm:$0xff]
  %v87 = vld [vmem:[%s0 + $0x230] sm:$0xff]
  %v88 = vld [vmem:[%s0 + $0x238] sm:$0xff]
  %v89 = vld [vmem:[%s0 + $0x240] sm:$0xff]
  %v90 = vld [vmem:[%s0 + $0x248] sm:$0xff]
  %v91 = vld [vmem:[%s0 + $0x250] sm:$0xff]
  %v92 = vld [vmem:[%s0 + $0x258] sm:$0xff]
  %v93 = vld [vmem:[%s0 + $0x260] sm:$0xff]
  %v94 = vld [vmem:[%s0 + $0x268] sm:$0xff]
  %v95 = vld [vmem:[%s0 + $0x270] sm:$0xff]
  %v96 = vld [vmem:[%s0 + $0x278] sm:$0xff]
  %v97 = vld [vmem:[%s0 + $0x280] sm:$0xff]
  %v98 = vld [vmem:[%s0 + $0x288] sm:$0xff]
  %v99 = vld [vmem:[%s0 + $0x290] sm:$0xff]
  %v100 = vld [vmem:[%s0 + $0x298] sm:$0xff]
  %v101 = vld [vmem:[%s0 + $0x2a0] sm:$0xff]
  %v102 = vld [vmem:[%s0 + $0x2a8] sm:$0xff]
  %v103 = vld [vmem:[%s0 + $0x2b0] sm:$0xff]
  %v104 = vld [vmem:[%s0 + $0x2b8] sm:$0xff]
  %v105 = vld [vmem:[%s0 + $0x2c0] sm:$0xff]
  %v106 = vld [vmem:[%s0 + $0x2c8] sm:$0xff]
  %v107 = vld [vmem:[%s0 + $0x2d0] sm:$0xff]
  %v108 = vld [vmem:[%s0 + $0x2d8] sm:$0xff]
  %v109 = vld [vmem:[%s0 + $0x2e0] sm:$0xff]
  %v110 = vld [vmem:[%s0 + $0x2e8] sm:$0xff]
  %v111 = vld [vmem:[%s0 + $0x2f0] sm:$0xff]
  %v112 = vld [vmem:[%s0 + $0x2f8] sm:$0xff]
  %v113 = vld [vmem:[%s0 + $0x300] sm:$0xff]
  %v114 = vld [vmem:[%s0 + $0x308] sm:$0xff]
  %v115 = vld [vmem:[%s0 + $0x310] sm:$0xff]
  %v116 = vld [vmem:[%s0 + $0x318] sm:$0xff]
  %v117 = vld [vmem:[%s0 + $0x320] sm:$0xff]
  %v118 = vld [vmem:[%s0 + $0x328] sm:$0xff]
  %v119 = vld [vmem:[%s0 + $0x330] sm:$0xff]
  %v120 = vld [vmem:[%s0 + $0x338] sm:$0xff]
  %v121 = vld [vmem:[%s0 + $0x340] sm:$0xff]
  %v122 = vld [vmem:[%s0 + $0x348] sm:$0xff]
  %v123 = vld [vmem:[%s0 + $0x350] sm:$0xff]
  %v124 = vld [vmem:[%s0 + $0x358] sm:$0xff]
  %v125 = vld [vmem:[%s0 + $0x360] sm:$0xff]
  %v126 = vld [vmem:[%s0 + $0x368] sm:$0xff]
  %v127 = vld [vmem:[%s0 + $0x370] sm:$0xff]
  %v128 = vld [vmem:[%s0 + $0x378] sm:$0xff]
  %v129 = vld [vmem:[%s0 + $0x380] sm:$0xff]
  %v130 = vld [vmem:[%s0 + $0x388] sm:$0xff]
  %v131 = vld [vmem:[%s0 + $0x390] sm:$0xff]
  %v132 = vld [vmem:[%s0 + $0x398] sm:$0xff]
  %v133 = vld [vmem:[%s0 + $0x3a0] sm:$0xff]
  %v134 = vld [vmem:[%s0 + $0x3a8] sm:$0xff]
  %v135 = vld [vmem:[%s0 + $0x3b0] sm:$0xff]
  %v136 = vld [vmem:[%s0 + $0x3b8] sm:$0xff]
  %v137 = vld [vmem:[%s0 + $0x3c0] sm:$0xff]
  %v138 = vld [vmem:[%s0 + $0x3c8] sm:$0xff]
  %v139 = vld [vmem:[%s0 + $0x3d0] sm:$0xff]
  %v140 = vld [vmem:[%s0 + $0x3d8] sm:$0xff]
  %v141 = vld [vmem:[%s0 + $0x3e0] sm:$0xff]
  %v142 = vld [vmem:[%s0 + $0x3e8] sm:$0xff]
  %v143 = vld [vmem:[%s0 + $0x3f0] sm:$0xff]
  %v144 = vld [vmem:[%s0 + $0x3f8] sm:$0xff]
  %v145 = vld [vmem:[%s0 + $0x400] sm:$0xff]
  %v146 = vld [vmem:[%s0 + $0x408] sm:$0xff]
  %v147 = vld [vmem:[%s0 + $0x410] sm:$0xff]
  %v148 = vld [vmem:[%s0 + $0x418] sm:$0xff]
  %v149 = vld [vmem:[%s0 + $0x420] sm:$0xff]
  %v150 = vld [vmem:[%s0 + $0x428] sm:$0xff]
  %v151 = vld [vmem:[%s0 + $0x430] sm:$0xff]
  %v152 = vld [vmem:[%s0 + $0x438] sm:$0xff]
  %v153 = vld [vmem:[%s0 + $0x440] sm:$0xff]
  %v154 = vld [vmem:[%s0 + $0x448] sm:$0xff]
  %v155 = vld [vmem:[%s0 + $0x450] sm:$0xff]
  %v156 = vld [vmem:[%s0 + $0x458] sm:$0xff]
  %v157 = vld [vmem:[%s0 + $0x460] sm:$0xff]
  %v158 = vld [vmem:[%s0 + $0x468] sm:$0xff]
  %v159 = vld [vmem:[%s0 + $0x470] sm:$0xff]
  %v160 = vld [vmem:[%s0 + $0x478] sm:$0xff]
  %v161 = vld [vmem:[%s0 + $0x480] sm:$0xff]
  %v162 = vld [vmem:[%s0 + $0x488] sm:$0xff]
  %v163 = vld [vmem:[%s0 + $0x490] sm:$0xff]
  %v164 = vld [vmem:[%s0 + $0x498] sm:$0xff]
  %v165 = vld [vmem:[%s0 + $0x4a0] sm:$0xff]
  %v166 = vld [vmem:[%s0 + $0x4a8] sm:$0xff]
  %v167 = vld [vmem:[%s0 + $0x4b0] sm:$0xff]
  %v168 = vld [vmem:[%s0 + $0x4b8] sm:$0xff]
  %v169 = vld [vmem:[%s0 + $0x4c0] sm:$0xff]
  %v170 = vld [vmem:[%s0 + $0x4c8] sm:$0xff]
  %v171 = vld [vmem:[%s0 + $0x4d0] sm:$0xff]
  %v172 = vld [vmem:[%s0 + $0x4d8] sm:$0xff]
  %v173 = vld [vmem:[%s0 + $0x4e0] sm:$0xff]
  %v174 = vld [vmem:[%s0 + $0x4e8] sm:$0xff]
  %v175 = vld [vmem:[%s0 + $0x4f0] sm:$0xff]
  %v176 = vld [vmem:[%s0 + $0x4f8] sm:$0xff]
  %v177 = vld [vmem:[%s0 + $0x500] sm:$0xff]
  %v178 = vld [vmem:[%s0 + $0x508] sm:$0xff]
  %v179 = vld [vmem:[%s0 + $0x510] sm:$0xff]
  %v180 = vld [vmem:[%s0 + $0x518] sm:$0xff]
  %v181 = vld [vmem:[%s0 + $0x520] sm:$0xff]
  %v182 = vld [vmem:[%s0 + $0x528] sm:$0xff]
  %v183 = vld [vmem:[%s0 + $0x530] sm:$0xff]
  %v184 = vld [vmem:[%s0 + $0x538] sm:$0xff]
  %v185 = vld [vmem:[%s0 + $0x540] sm:$0xff]
  %v186 = vld [vmem:[%s0 + $0x548] sm:$0xff]
  %v187 = vld [vmem:[%s0 + $0x550] sm:$0xff]
  %v188 = vld [vmem:[%s0 + $0x558] sm:$0xff]
  %v189 = vld [vmem:[%s0 + $0x560] sm:$0xff]
  %v190 = vld [vmem:[%s0 + $0x568] sm:$0xff]
  %v191 = vld [vmem:[%s0 + $0x570] sm:$0xff]
  %v192 = vld [vmem:[%s0 + $0x578] sm:$0xff]
  %v193 = vld [vmem:[%s0 + $0x580] sm:$0xff]
  %v194 = vld [vmem:[%s0 + $0x588] sm:$0xff]
  %v195 = vld [vmem:[%s0 + $0x590] sm:$0xff]
  %v196 = vld [vmem:[%s0 + $0x598] sm:$0xff]
  %v197 = vld [vmem:[%s0 + $0x5a0] sm:$0xff]
  %v198 = vld [vmem:[%s0 + $0x5a8] sm:$0xff]
  %v199 = vld [vmem:[%s0 + $0x5b0] sm:$0xff]
  %v200 = vld [vmem:[%s0 + $0x5b8] sm:$0xff]
  %v201 = vld [vmem:[%s0 + $0x5c0] sm:$0xff]
  %v202 = vld [vmem:[%s0 + $0x5c8] sm:$0xff]
  %v203 = vld [vmem:[%s0 + $0x5d0] sm:$0xff]
  %v204 = vld [vmem:[%s0 + $0x5d8] sm:$0xff]
  %v205 = vld [vmem:[%s0 + $0x5e0] sm:$0xff]
  %v206 = vld [vmem:[%s0 + $0x5e8] sm:$0xff]
  %v207 = vld [vmem:[%s0 + $0x5f0] sm:$0xff]
  %v208 = vld [vmem:[%s0 + $0x5f8] sm:$0xff]
  %v209 = vld [vmem:[%s1] sm:$0xff]
  %v210 = vld [vmem:[%s1 + $0x8] sm:$0xff]
  %v211 = vld [vmem:[%s1 + $0x10] sm:$0xff]
  %v212 = vld [vmem:[%s1 + $0x18] sm:$0xff]
  %v213 = vld [vmem:[%s1 + $0x20] sm:$0xff]
  %v214 = vld [vmem:[%s1 + $0x28] sm:$0xff]
  %v215 = vld [vmem:[%s1 + $0x30] sm:$0xff]
  %v216 = vld [vmem:[%s1 + $0x38] sm:$0xff]
  %v217 = vld [vmem:[%s1 + $0x40] sm:$0xff]
  %v218 = vld [vmem:[%s1 + $0x48] sm:$0xff]
  %v219 = vld [vmem:[%s1 + $0x50] sm:$0xff]
  %v220 = vld [vmem:[%s1 + $0x58] sm:$0xff]
  %v221 = vld [vmem:[%s1 + $0x60] sm:$0xff]
  %v222 = vld [vmem:[%s1 + $0x68] sm:$0xff]
  %v223 = vld [vmem:[%s1 + $0x70] sm:$0xff]
  %v224 = vld [vmem:[%s1 + $0x78] sm:$0xff]
  %v225 = vld [vmem:[%s1 + $0x80] sm:$0xff]
  %v226 = vld [vmem:[%s1 + $0x88] sm:$0xff]
  %v227 = vld [vmem:[%s1 + $0x90] sm:$0xff]
  %v228 = vld [vmem:[%s1 + $0x98] sm:$0xff]
  %v229 = vld [vmem:[%s1 + $0xa0] sm:$0xff]
  %v230 = vld [vmem:[%s1 + $0xa8] sm:$0xff]
  %v231 = vld [vmem:[%s1 + $0xb0] sm:$0xff]
  %v232 = vld [vmem:[%s1 + $0xb8] sm:$0xff]
  %v233 = vld [vmem:[%s1 + $0xc0] sm:$0xff]
  %v234 = vld [vmem:[%s1 + $0xc8] sm:$0xff]
  %v235 = vld [vmem:[%s1 + $0xd0] sm:$0xff]
  %v236 = vld [vmem:[%s1 + $0xd8] sm:$0xff]
  %v237 = vld [vmem:[%s1 + $0xe0] sm:$0xff]
  %v238 = vld [vmem:[%s1 + $0xe8] sm:$0xff]
  %v239 = vld [vmem:[%s1 + $0xf0] sm:$0xff]
  %v240 = vld [vmem:[%s1 + $0xf8] sm:$0xff]
  %v241 = vld [vmem:[%s1 + $0x100] sm:$0xff]
  %v242 = vld [vmem:[%s1 + $0x108] sm:$0xff]
  %v243 = vld [vmem:[%s1 + $0x110] sm:$0xff]
  %v244 = vld [vmem:[%s1 + $0x118] sm:$0xff]
  %v245 = vld [vmem:[%s1 + $0x120] sm:$0xff]
  %v246 = vld [vmem:[%s1 + $0x128] sm:$0xff]
  %v247 = vld [vmem:[%s1 + $0x130] sm:$0xff]
  %v248 = vld [vmem:[%s1 + $0x138] sm:$0xff]
  %v249 = vld [vmem:[%s1 + $0x140] sm:$0xff]
  %v250 = vld [vmem:[%s1 + $0x148] sm:$0xff]
  %v251 = vld [vmem:[%s1 + $0x150] sm:$0xff]
  %v252 = vld [vmem:[%s1 + $0x158] sm:$0xff]
  %v253 = vld [vmem:[%s1 + $0x160] sm:$0xff]
  %v254 = vld [vmem:[%s1 + $0x168] sm:$0xff]
  %v255 = vld [vmem:[%s1 + $0x170] sm:$0xff]
  %v256 = vld [vmem:[%s1 + $0x178] sm:$0xff]
  %257 = vmatprep.subr.mxu0 0.0
  %258 = vmatpush1.msra.mxu0 %v209
  %259 = vmatprep.subr.mxu0 0.0
  %260 = vmatpush1.msra.mxu0 %v210
  %261 = vmatprep.subr.mxu0 0.0
  %262 = vmatpush1.msra.mxu0 %v211
  %263 = vmatprep.subr.mxu0 0.0
  %264 = vmatpush1.msra.mxu0 %v212
  %265 = vmatprep.subr.mxu0 0.0
  %266 = vmatpush1.msra.mxu0 %v213
  %267 = vmatprep.subr.mxu0 0.0
  %268 = vmatpush1.msra.mxu0 %v214
  %269 = vmatprep.subr.mxu0 0.0
  %270 = vmatpush1.msra.mxu0 %v215
  %271 = vmatprep.subr.mxu0 0.0
  %272 = vmatpush1.msra.mxu0 %v216
  %273 = vmatprep.subr.mxu0 0.0
  %274 = vmatpush1.msra.mxu0 %v217
  %275 = vmatprep.subr.mxu0 0.0
  %276 = vmatpush1.msra.mxu0 %v218
  %277 = vmatprep.subr.mxu0 0.0
  %278 = vmatpush1.msra.mxu0 %v219
  %279 = vmatprep.subr.mxu0 0.0
  %280 = vmatpush1.msra.mxu0 %v220
  %281 = vmatprep.subr.mxu0 0.0
  %282 = vmatpush1.msra.mxu0 %v221
  %283 = vmatprep.subr.mxu0 0.0
  %284 = vmatpush1.msra.mxu0 %v222
  %285 = vmatprep.subr.mxu0 0.0
  %286 = vmatpush1.msra.mxu0 %v223
  %287 = vmatprep.subr.mxu0 0.0
  %288 = vmatpush1.msra.mxu0 %v224
  %289 = vmatprep.subr.mxu0 0.0
  %290 = vmatpush1.msra.mxu0 %v225
  %291 = vmatprep.subr.mxu0 0.0
  %292 = vmatpush1.msra.mxu0 %v226
  %293 = vmatprep.subr.mxu0 0.0
  %294 = vmatpush1.msra.mxu0 %v227
  %295 = vmatprep.subr.mxu0 0.0
  %296 = vmatpush1.msra.mxu0 %v228
  %297 = vmatprep.subr.mxu0 0.0
  %298 = vmatpush1.msra.mxu0 %v229
  %299 = vmatprep.subr.mxu0 0.0
  %300 = vmatpush1.msra.mxu0 %v230
  %301 = vmatprep.subr.mxu0 0.0
  %302 = vmatpush1.msra.mxu0 %v231
  %303 = vmatprep.subr.mxu0 0.0
  %304 = vmatpush1.msra.mxu0 %v232
  %305 = vmatprep.subr.mxu0 0.0
  %306 = vmatpush1.msra.mxu0 %v233
  %307 = vmatprep.subr.mxu0 0.0
  %308 = vmatpush1.msra.mxu0 %v234
  %309 = vmatprep.subr.mxu0 0.0
  %310 = vmatpush1.msra.mxu0 %v235
  %311 = vmatprep.subr.mxu0 0.0
  %312 = vmatpush1.msra.mxu0 %v236
  %313 = vmatprep.subr.mxu0 0.0
  %314 = vmatpush1.msra.mxu0 %v237
  %315 = vmatprep.subr.mxu0 0.0
  %316 = vmatpush1.msra.mxu0 %v238
  %317 = vmatprep.subr.mxu0 0.0
  %318 = vmatpush1.msra.mxu0 %v239
  %319 = vmatprep.subr.mxu0 0.0
  %320 = vmatpush1.msra.mxu0 %v240
  %321 = vmatprep.mubr.f32.mxu0 %v18
  %322 = vmatmul.mubr.f32.gmra.mrb[0].mxu0 %v17
  %v323 = vpop.f32.mrb[0].mxu0
  %v324 = vadd.f32 0.0, %v323
  %v325 = vpop.f32.mrb[0].mxu0
  %326 = vmatprep.mubr.f32.mxu0 %v21
  %327 = vmatmul.mubr.f32.gmra.mrb[0].mxu0 %v20
  %v328 = vpop.f32.mrb[0].mxu0
  %v329 = vadd.f32 0.0, %v328
  %v330 = vpop.f32.mrb[0].mxu0
  %331 = vmatprep.mubr.f32.mxu0 %v24
  %332 = vmatmul.mubr.f32.gmra.mrb[0].mxu0 %v23
  %v333 = vpop.f32.mrb[0].mxu0
  %v334 = vadd.f32 0.0, %v333
  %v335 = vpop.f32.mrb[0].mxu0
  %336 = vmatprep.mubr.f32.mxu0 %v27
  %337 = vmatmul.mubr.f32.gmra.mrb[0].mxu0 %v26
  %v338 = vpop.f32.mrb[0].mxu0
  %v339 = vadd.f32 0.0, %v338
  %v340 = vpop.f32.mrb[0].mxu0
  %341 = vmatprep.mubr.f32.mxu0 %v30
  %342 = vmatmul.mubr.f32.gmra.mrb[0].mxu0 %v29
  %v343 = vpop.f32.mrb[0].mxu0
  %v344 = vadd.f32 0.0, %v343
  %v345 = vpop.f32.mrb[0].mxu0
  %346 = vmatprep.mubr.f32.mxu0 %v33
  %347 = vmatmul.mubr.f32.gmra.mrb[0].mxu0 %v32
  %v348 = vpop.f32.mrb[0].mxu0
  %v349 = vadd.f32 0.0, %v348
  %v350 = vpop.f32.mrb[0].mxu0
  %351 = vmatprep.mubr.f32.mxu0 %v36
  %352 = vmatmul.mubr.f32.gmra.mrb[0].mxu0 %v35
  %v353 = vpop.f32.mrb[0].mxu0
  %v354 = vadd.f32 0.0, %v353
  %v355 = vpop.f32.mrb[0].mxu0
  %356 = vmatprep.mubr.f32.mxu0 %v39
  %357 = vmatmul.mubr.f32.gmra.mrb[0].mxu0 %v38
  %v358 = vpop.f32.mrb[0].mxu0
  %v359 = vadd.f32 0.0, %v358
  %v360 = vpop.f32.mrb[0].mxu0
  %361 = vmatprep.mubr.f32.mxu0 %v42
  %362 = vmatmul.mubr.f32.gmra.mrb[0].mxu0 %v41
  %v363 = vpop.f32.mrb[0].mxu0
  %v364 = vadd.f32 0.0, %v363
  %v365 = vpop.f32.mrb[0].mxu0
  %366 = vmatprep.mubr.f32.mxu0 %v45
  %367 = vmatmul.mubr.f32.gmra.mrb[0].mxu0 %v44
  %v368 = vpop.f32.mrb[0].mxu0
  %v369 = vadd.f32 0.0, %v368
  %v370 = vpop.f32.mrb[0].mxu0
  %371 = vmatprep.mubr.f32.mxu0 %v48
  %372 = vmatmul.mubr.f32.gmra.mrb[0].mxu0 %v47
  %v373 = vpop.f32.mrb[0].mxu0
  %v374 = vadd.f32 0.0, %v373
  %v375 = vpop.f32.mrb[0].mxu0
  %376 = vmatprep.mubr.f32.mxu0 %v51
  %377 = vmatmul.mubr.f32.gmra.mrb[0].mxu0 %v50
  %v378 = vpop.f32.mrb[0].mxu0
  %v379 = vadd.f32 0.0, %v378
  %v380 = vpop.f32.mrb[0].mxu0
  %381 = vmatprep.mubr.f32.mxu0 %v54
  %382 = vmatmul.mubr.f32.gmra.mrb[0].mxu0 %v53
  %v383 = vpop.f32.mrb[0].mxu0
  %v384 = vadd.f32 0.0, %v383
  %v385 = vpop.f32.mrb[0].mxu0
  %386 = vmatprep.mubr.f32.mxu0 %v57
  %387 = vmatmul.mubr.f32.gmra.mrb[0].mxu0 %v56
  %v388 = vpop.f32.mrb[0].mxu0
  %v389 = vadd.f32 0.0, %v388
  %v390 = vpop.f32.mrb[0].mxu0
  %391 = vmatprep.mubr.f32.mxu0 %v60
  %392 = vmatmul.mubr.f32.gmra.mrb[0].mxu0 %v59
  %v393 = vpop.f32.mrb[0].mxu0
  %v394 = vadd.f32 0.0, %v393
  %v395 = vpop.f32.mrb[0].mxu0
  %396 = vmatprep.mubr.f32.mxu0 %v63
  %397 = vmatmul.mubr.f32.gmra.mrb[0].mxu0 %v62
  %v398 = vpop.f32.mrb[0].mxu0
  %v399 = vadd.f32 0.0, %v398
  %v400 = vpop.f32.mrb[0].mxu0
  %401 = vmatprep.mubr.f32.mxu0 %v66
  %402 = vmatmul.mubr.f32.gmra.mrb[0].mxu0 %v65
  %v403 = vpop.f32.mrb[0].mxu0
  %v404 = vadd.f32 0.0, %v403
  %v405 = vpop.f32.mrb[0].mxu0
  %406 = vmatprep.mubr.f32.mxu0 %v69
  %407 = vmatmul.mubr.f32.gmra.mrb[0].mxu0 %v68
  %v408 = vpop.f32.mrb[0].mxu0
  %v409 = vadd.f32 0.0, %v408
  %v410 = vpop.f32.mrb[0].mxu0
  %411 = vmatprep.mubr.f32.mxu0 %v72
  %412 = vmatmul.mubr.f32.gmra.mrb[0].mxu0 %v71
  %v413 = vpop.f32.mrb[0].mxu0
  %v414 = vadd.f32 0.0, %v413
  %v415 = vpop.f32.mrb[0].mxu0
  %416 = vmatprep.mubr.f32.mxu0 %v75
  %417 = vmatmul.mubr.f32.gmra.mrb[0].mxu0 %v74
  %v418 = vpop.f32.mrb[0].mxu0
  %v419 = vadd.f32 0.0, %v418
  %v420 = vpop.f32.mrb[0].mxu0
  %421 = vmatprep.mubr.f32.mxu0 %v78
  %422 = vmatmul.mubr.f32.gmra.mrb[0].mxu0 %v77
  %v423 = vpop.f32.mrb[0].mxu0
  %v424 = vadd.f32 0.0, %v423
  %v425 = vpop.f32.mrb[0].mxu0
  %426 = vmatprep.mubr.f32.mxu0 %v81
  %427 = vmatmul.mubr.f32.gmra.mrb[0].mxu0 %v80
  %v428 = vpop.f32.mrb[0].mxu0
  %v429 = vadd.f32 0.0, %v428
  %v430 = vpop.f32.mrb[0].mxu0
  %431 = vmatprep.mubr.f32.mxu0 %v84
  %432 = vmatmul.mubr.f32.gmra.mrb[0].mxu0 %v83
  %v433 = vpop.f32.mrb[0].mxu0
  %v434 = vadd.f32 0.0, %v433
  %v435 = vpop.f32.mrb[0].mxu0
  %436 = vmatprep.mubr.f32.mxu0 %v87
  %437 = vmatmul.mubr.f32.gmra.mrb[0].mxu0 %v86
  %v438 = vpop.f32.mrb[0].mxu0
  %v439 = vadd.f32 0.0, %v438
  %v440 = vpop.f32.mrb[0].mxu0
  %441 = vmatprep.mubr.f32.mxu0 %v90
  %442 = vmatmul.mubr.f32.gmra.mrb[0].mxu0 %v89
  %v443 = vpop.f32.mrb[0].mxu0
  %v444 = vadd.f32 0.0, %v443
  %v445 = vpop.f32.mrb[0].mxu0
  %446 = vmatprep.mubr.f32.mxu0 %v93
  %447 = vmatmul.mubr.f32.gmra.mrb[0].mxu0 %v92
  %v448 = vpop.f32.mrb[0].mxu0
  %v449 = vadd.f32 0.0, %v448
  %v450 = vpop.f32.mrb[0].mxu0
  %451 = vmatprep.mubr.f32.mxu0 %v96
  %452 = vmatmul.mubr.f32.gmra.mrb[0].mxu0 %v95
  %v453 = vpop.f32.mrb[0].mxu0
  %v454 = vadd.f32 0.0, %v453
  %v455 = vpop.f32.mrb[0].mxu0
  %456 = vmatprep.mubr.f32.mxu0 %v99
  %457 = vmatmul.mubr.f32.gmra.mrb[0].mxu0 %v98
  %v458 = vpop.f32.mrb[0].mxu0
  %v459 = vadd.f32 0.0, %v458
  %v460 = vpop.f32.mrb[0].mxu0
  %461 = vmatprep.mubr.f32.mxu0 %v102
  %462 = vmatmul.mubr.f32.gmra.mrb[0].mxu0 %v101
  %v463 = vpop.f32.mrb[0].mxu0
  %v464 = vadd.f32 0.0, %v463
  %v465 = vpop.f32.mrb[0].mxu0
  %466 = vmatprep.mubr.f32.mxu0 %v105
  %467 = vmatmul.mubr.f32.gmra.mrb[0].mxu0 %v104
  %v468 = vpop.f32.mrb[0].mxu0
  %v469 = vadd.f32 0.0, %v468
  %v470 = vpop.f32.mrb[0].mxu0
  %471 = vmatprep.mubr.f32.mxu0 %v108
  %472 = vmatmul.mubr.f32.gmra.mrb[0].mxu0 %v107
  %v473 = vpop.f32.mrb[0].mxu0
  %v474 = vadd.f32 0.0, %v473
  %v475 = vpop.f32.mrb[0].mxu0
  %476 = vmatprep.mubr.f32.mxu0 %v111
  %477 = vmatmul.mubr.f32.gmra.mrb[0].mxu0 %v110
  %v478 = vpop.f32.mrb[0].mxu0
  %v479 = vadd.f32 0.0, %v478
  %v480 = vpop.f32.mrb[0].mxu0
  %481 = vmatprep.mubr.f32.mxu0 %v114
  %482 = vmatmul.mubr.f32.gmra.mrb[0].mxu0 %v113
  %v483 = vpop.f32.mrb[0].mxu0
  %v484 = vadd.f32 0.0, %v483
  %v485 = vpop.f32.mrb[0].mxu0
  %486 = vmatprep.mubr.f32.mxu0 %v117
  %487 = vmatmul.mubr.f32.gmra.mrb[0].mxu0 %v116
  %v488 = vpop.f32.mrb[0].mxu0
  %v489 = vadd.f32 0.0, %v488
  %v490 = vpop.f32.mrb[0].mxu0
  %491 = vmatprep.mubr.f32.mxu0 %v120
  %492 = vmatmul.mubr.f32.gmra.mrb[0].mxu0 %v119
  %v493 = vpop.f32.mrb[0].mxu0
  %v494 = vadd.f32 0.0, %v493
  %v495 = vpop.f32.mrb[0].mxu0
  %496 = vmatprep.mubr.f32.mxu0 %v123
  %497 = vmatmul.mubr.f32.gmra.mrb[0].mxu0 %v122
  %v498 = vpop.f32.mrb[0].mxu0
  %v499 = vadd.f32 0.0, %v498
  %v500 = vpop.f32.mrb[0].mxu0
  %501 = vmatprep.mubr.f32.mxu0 %v126
  %502 = vmatmul.mubr.f32.gmra.mrb[0].mxu0 %v125
  %v503 = vpop.f32.mrb[0].mxu0
  %v504 = vadd.f32 0.0, %v503
  %v505 = vpop.f32.mrb[0].mxu0
  %506 = vmatprep.mubr.f32.mxu0 %v129
  %507 = vmatmul.mubr.f32.gmra.mrb[0].mxu0 %v128
  %v508 = vpop.f32.mrb[0].mxu0
  %v509 = vadd.f32 0.0, %v508
  %v510 = vpop.f32.mrb[0].mxu0
  %511 = vmatprep.mubr.f32.mxu0 %v132
  %512 = vmatmul.mubr.f32.gmra.mrb[0].mxu0 %v131
  %v513 = vpop.f32.mrb[0].mxu0
  %v514 = vadd.f32 0.0, %v513
  %v515 = vpop.f32.mrb[0].mxu0
  %516 = vmatprep.mubr.f32.mxu0 %v135
  %517 = vmatmul.mubr.f32.gmra.mrb[0].mxu0 %v134
  %v518 = vpop.f32.mrb[0].mxu0
  %v519 = vadd.f32 0.0, %v518
  %v520 = vpop.f32.mrb[0].mxu0
  %521 = vmatprep.mubr.f32.mxu0 %v138
  %522 = vmatmul.mubr.f32.gmra.mrb[0].mxu0 %v137
  %v523 = vpop.f32.mrb[0].mxu0
  %v524 = vadd.f32 0.0, %v523
  %v525 = vpop.f32.mrb[0].mxu0
  %526 = vmatprep.mubr.f32.mxu0 %v141
  %527 = vmatmul.mubr.f32.gmra.mrb[0].mxu0 %v140
  %v528 = vpop.f32.mrb[0].mxu0
  %v529 = vadd.f32 0.0, %v528
  %v530 = vpop.f32.mrb[0].mxu0
  %531 = vmatprep.mubr.f32.mxu0 %v144
  %532 = vmatmul.mubr.f32.gmra.mrb[0].mxu0 %v143
  %v533 = vpop.f32.mrb[0].mxu0
  %v534 = vadd.f32 0.0, %v533
  %v535 = vpop.f32.mrb[0].mxu0
  %536 = vmatprep.mubr.f32.mxu0 %v147
  %537 = vmatmul.mubr.f32.gmra.mrb[0].mxu0 %v146
  %v538 = vpop.f32.mrb[0].mxu0
  %v539 = vadd.f32 0.0, %v538
  %v540 = vpop.f32.mrb[0].mxu0
  %541 = vmatprep.mubr.f32.mxu0 %v150
  %542 = vmatmul.mubr.f32.gmra.mrb[0].mxu0 %v149
  %v543 = vpop.f32.mrb[0].mxu0
  %v544 = vadd.f32 0.0, %v543
  %v545 = vpop.f32.mrb[0].mxu0
  %546 = vmatprep.mubr.f32.mxu0 %v153
  %547 = vmatmul.mubr.f32.gmra.mrb[0].mxu0 %v152
  %v548 = vpop.f32.mrb[0].mxu0
  %v549 = vadd.f32 0.0, %v548
  %v550 = vpop.f32.mrb[0].mxu0
  %551 = vmatprep.mubr.f32.mxu0 %v156
  %552 = vmatmul.mubr.f32.gmra.mrb[0].mxu0 %v155
  %v553 = vpop.f32.mrb[0].mxu0
  %v554 = vadd.f32 0.0, %v553
  %v555 = vpop.f32.mrb[0].mxu0
  %556 = vmatprep.mubr.f32.mxu0 %v159
  %557 = vmatmul.mubr.f32.gmra.mrb[0].mxu0 %v158
  %v558 = vpop.f32.mrb[0].mxu0
  %v559 = vadd.f32 0.0, %v558
  %v560 = vpop.f32.mrb[0].mxu0
  %561 = vmatprep.mubr.f32.mxu0 %v162
  %562 = vmatmul.mubr.f32.gmra.mrb[0].mxu0 %v161
  %v563 = vpop.f32.mrb[0].mxu0
  %v564 = vadd.f32 0.0, %v563
  %v565 = vpop.f32.mrb[0].mxu0
  %566 = vmatprep.mubr.f32.mxu0 %v165
  %567 = vmatmul.mubr.f32.gmra.mrb[0].mxu0 %v164
  %v568 = vpop.f32.mrb[0].mxu0
  %v569 = vadd.f32 0.0, %v568
  %v570 = vpop.f32.mrb[0].mxu0
  %571 = vmatprep.mubr.f32.mxu0 %v168
  %572 = vmatmul.mubr.f32.gmra.mrb[0].mxu0 %v167
  %v573 = vpop.f32.mrb[0].mxu0
  %v574 = vadd.f32 0.0, %v573
  %v575 = vpop.f32.mrb[0].mxu0
  %576 = vmatprep.mubr.f32.mxu0 %v171
  %577 = vmatmul.mubr.f32.gmra.mrb[0].mxu0 %v170
  %v578 = vpop.f32.mrb[0].mxu0
  %v579 = vadd.f32 0.0, %v578
  %v580 = vpop.f32.mrb[0].mxu0
  %581 = vmatprep.mubr.f32.mxu0 %v174
  %582 = vmatmul.mubr.f32.gmra.mrb[0].mxu0 %v173
  %v583 = vpop.f32.mrb[0].mxu0
  %v584 = vadd.f32 0.0, %v583
  %v585 = vpop.f32.mrb[0].mxu0
  %586 = vmatprep.mubr.f32.mxu0 %v177
  %587 = vmatmul.mubr.f32.gmra.mrb[0].mxu0 %v176
  %v588 = vpop.f32.mrb[0].mxu0
  %v589 = vadd.f32 0.0, %v588
  %v590 = vpop.f32.mrb[0].mxu0
  %591 = vmatprep.mubr.f32.mxu0 %v180
  %592 = vmatmul.mubr.f32.gmra.mrb[0].mxu0 %v179
  %v593 = vpop.f32.mrb[0].mxu0
  %v594 = vadd.f32 0.0, %v593
  %v595 = vpop.f32.mrb[0].mxu0
  %596 = vmatprep.mubr.f32.mxu0 %v183
  %597 = vmatmul.mubr.f32.gmra.mrb[0].mxu0 %v182
  %v598 = vpop.f32.mrb[0].mxu0
  %v599 = vadd.f32 0.0, %v598
  %v600 = vpop.f32.mrb[0].mxu0
  %601 = vmatprep.mubr.f32.mxu0 %v186
  %602 = vmatmul.mubr.f32.gmra.mrb[0].mxu0 %v185
  %v603 = vpop.f32.mrb[0].mxu0
  %v604 = vadd.f32 0.0, %v603
  %v605 = vpop.f32.mrb[0].mxu0
  %606 = vmatprep.mubr.f32.mxu0 %v189
  %607 = vmatmul.mubr.f32.gmra.mrb[0].mxu0 %v188
  %v608 = vpop.f32.mrb[0].mxu0
  %v609 = vadd.f32 0.0, %v608
  %v610 = vpop.f32.mrb[0].mxu0
  %611 = vmatprep.mubr.f32.mxu0 %v192
  %612 = vmatmul.mubr.f32.gmra.mrb[0].mxu0 %v191
  %v613 = vpop.f32.mrb[0].mxu0
  %v614 = vadd.f32 0.0, %v613
  %v615 = vpop.f32.mrb[0].mxu0
  %616 = vmatprep.mubr.f32.mxu0 %v195
  %617 = vmatmul.mubr.f32.gmra.mrb[0].mxu0 %v194
  %v618 = vpop.f32.mrb[0].mxu0
  %v619 = vadd.f32 0.0, %v618
  %v620 = vpop.f32.mrb[0].mxu0
  %621 = vmatprep.mubr.f32.mxu0 %v198
  %622 = vmatmul.mubr.f32.gmra.mrb[0].mxu0 %v197
  %v623 = vpop.f32.mrb[0].mxu0
  %v624 = vadd.f32 0.0, %v623
  %v625 = vpop.f32.mrb[0].mxu0
  %626 = vmatprep.mubr.f32.mxu0 %v201
  %627 = vmatmul.mubr.f32.gmra.mrb[0].mxu0 %v200
  %v628 = vpop.f32.mrb[0].mxu0
  %v629 = vadd.f32 0.0, %v628
  %v630 = vpop.f32.mrb[0].mxu0
  %631 = vmatprep.mubr.f32.mxu0 %v204
  %632 = vmatmul.mubr.f32.gmra.mrb[0].mxu0 %v203
  %v633 = vpop.f32.mrb[0].mxu0
  %v634 = vadd.f32 0.0, %v633
  %v635 = vpop.f32.mrb[0].mxu0
  %636 = vmatprep.mubr.f32.mxu0 %v207
  %637 = vmatmul.mubr.f32.gmra.mrb[0].mxu0 %v206
  %v638 = vpop.f32.mrb[0].mxu0
  %v639 = vadd.f32 0.0, %v638
  %v640 = vpop.f32.mrb[0].mxu0
  %641 = vdwg.mxu0
  %642 = vmatprep.subr.mxu0 0.0
  %643 = vmatpush1.msra.mxu0 %v241
  %644 = vmatprep.subr.mxu0 0.0
  %645 = vmatpush1.msra.mxu0 %v242
  %646 = vmatprep.subr.mxu0 0.0
  %647 = vmatpush1.msra.mxu0 %v243
  %648 = vmatprep.subr.mxu0 0.0
  %649 = vmatpush1.msra.mxu0 %v244
  %650 = vmatprep.subr.mxu0 0.0
  %651 = vmatpush1.msra.mxu0 %v245
  %652 = vmatprep.subr.mxu0 0.0
  %653 = vmatpush1.msra.mxu0 %v246
  %654 = vmatprep.subr.mxu0 0.0
  %655 = vmatpush1.msra.mxu0 %v247
  %656 = vmatprep.subr.mxu0 0.0
  %657 = vmatpush1.msra.mxu0 %v248
  %658 = vmatprep.subr.mxu0 0.0
  %659 = vmatpush1.msra.mxu0 %v249
  %660 = vmatprep.subr.mxu0 0.0
  %661 = vmatpush1.msra.mxu0 %v250
  %662 = vmatprep.subr.mxu0 0.0
  %663 = vmatpush1.msra.mxu0 %v251
  %664 = vmatprep.subr.mxu0 0.0
  %665 = vmatpush1.msra.mxu0 %v252
  %666 = vmatprep.subr.mxu0 0.0
  %667 = vmatpush1.msra.mxu0 %v253
  %668 = vmatprep.subr.mxu0 0.0
  %669 = vmatpush1.msra.mxu0 %v254
  %670 = vmatprep.subr.mxu0 0.0
  %671 = vmatpush1.msra.mxu0 %v255
  %672 = vmatprep.subr.mxu0 0.0
  %673 = vmatpush1.msra.mxu0 %v256
  %674 = vmatprep.subr.mxu0 0.0
  %675 = vmatpush1.msra.mxu0 0.0
  %676 = vmatprep.subr.mxu0 0.0
  %677 = vmatpush1.msra.mxu0 0.0
  %678 = vmatprep.subr.mxu0 0.0
  %679 = vmatpush1.msra.mxu0 0.0
  %680 = vmatprep.subr.mxu0 0.0
  %681 = vmatpush1.msra.mxu0 0.0
  %682 = vmatprep.subr.mxu0 0.0
  %683 = vmatpush1.msra.mxu0 0.0
  %684 = vmatprep.subr.mxu0 0.0
  %685 = vmatpush1.msra.mxu0 0.0
  %686 = vmatprep.subr.mxu0 0.0
  %687 = vmatpush1.msra.mxu0 0.0
  %688 = vmatprep.subr.mxu0 0.0
  %689 = vmatpush1.msra.mxu0 0.0
  %690 = vmatprep.subr.mxu0 0.0
  %691 = vmatpush1.msra.mxu0 0.0
  %692 = vmatprep.subr.mxu0 0.0
  %693 = vmatpush1.msra.mxu0 0.0
  %694 = vmatprep.subr.mxu0 0.0
  %695 = vmatpush1.msra.mxu0 0.0
  %696 = vmatprep.subr.mxu0 0.0
  %697 = vmatpush1.msra.mxu0 0.0
  %698 = vmatprep.subr.mxu0 0.0
  %699 = vmatpush1.msra.mxu0 0.0
  %700 = vmatprep.subr.mxu0 0.0
  %701 = vmatpush1.msra.mxu0 0.0
  %702 = vmatprep.subr.mxu0 0.0
  %703 = vmatpush1.msra.mxu0 0.0
  %704 = vmatprep.subr.mxu0 0.0
  %705 = vmatpush1.msra.mxu0 0.0
  %706 = vmatprep.mubr.f32.mxu0 0.0
  %707 = vmatmul.mubr.f32.gmra.mrb[0].mxu0 %v19
  %v708 = vpop.f32.mrb[0].mxu0
  %v709 = vadd.f32 %v324, %v708
  %v710 = vpop.f32.mrb[0].mxu0
  %711 = vmatprep.mubr.f32.mxu0 0.0
  %712 = vmatmul.mubr.f32.gmra.mrb[0].mxu0 %v22
  %v713 = vpop.f32.mrb[0].mxu0
  %v714 = vadd.f32 %v329, %v713
  %v715 = vpop.f32.mrb[0].mxu0
  %716 = vmatprep.mubr.f32.mxu0 0.0
  %717 = vmatmul.mubr.f32.gmra.mrb[0].mxu0 %v25
  %v718 = vpop.f32.mrb[0].mxu0
  %v719 = vadd.f32 %v334, %v718
  %v720 = vpop.f32.mrb[0].mxu0
  %721 = vmatprep.mubr.f32.mxu0 0.0
  %722 = vmatmul.mubr.f32.gmra.mrb[0].mxu0 %v28
  %v723 = vpop.f32.mrb[0].mxu0
  %v724 = vadd.f32 %v339, %v723
  %v725 = vpop.f32.mrb[0].mxu0
  %726 = vmatprep.mubr.f32.mxu0 0.0
  %727 = vmatmul.mubr.f32.gmra.mrb[0].mxu0 %v31
  %v728 = vpop.f32.mrb[0].mxu0
  %v729 = vadd.f32 %v344, %v728
  %v730 = vpop.f32.mrb[0].mxu0
  %731 = vmatprep.mubr.f32.mxu0 0.0
  %732 = vmatmul.mubr.f32.gmra.mrb[0].mxu0 %v34
  %v733 = vpop.f32.mrb[0].mxu0
  %v734 = vadd.f32 %v349, %v733
  %v735 = vpop.f32.mrb[0].mxu0
  %736 = vmatprep.mubr.f32.mxu0 0.0
  %737 = vmatmul.mubr.f32.gmra.mrb[0].mxu0 %v37
  %v738 = vpop.f32.mrb[0].mxu0
  %v739 = vadd.f32 %v354, %v738
  %v740 = vpop.f32.mrb[0].mxu0
  %741 = vmatprep.mubr.f32.mxu0 0.0
  %742 = vmatmul.mubr.f32.gmra.mrb[0].mxu0 %v40
  %v743 = vpop.f32.mrb[0].mxu0
  %v744 = vadd.f32 %v359, %v743
  %v745 = vpop.f32.mrb[0].mxu0
  %746 = vmatprep.mubr.f32.mxu0 0.0
  %747 = vmatmul.mubr.f32.gmra.mrb[0].mxu0 %v43
  %v748 = vpop.f32.mrb[0].mxu0
  %v749 = vadd.f32 %v364, %v748
  %v750 = vpop.f32.mrb[0].mxu0
  %751 = vmatprep.mubr.f32.mxu0 0.0
  %752 = vmatmul.mubr.f32.gmra.mrb[0].mxu0 %v46
  %v753 = vpop.f32.mrb[0].mxu0
  %v754 = vadd.f32 %v369, %v753
  %v755 = vpop.f32.mrb[0].mxu0
  %756 = vmatprep.mubr.f32.mxu0 0.0
  %757 = vmatmul.mubr.f32.gmra.mrb[0].mxu0 %v49
  %v758 = vpop.f32.mrb[0].mxu0
  %v759 = vadd.f32 %v374, %v758
  %v760 = vpop.f32.mrb[0].mxu0
  %761 = vmatprep.mubr.f32.mxu0 0.0
  %762 = vmatmul.mubr.f32.gmra.mrb[0].mxu0 %v52
  %v763 = vpop.f32.mrb[0].mxu0
  %v764 = vadd.f32 %v379, %v763
  %v765 = vpop.f32.mrb[0].mxu0
  %766 = vmatprep.mubr.f32.mxu0 0.0
  %767 = vmatmul.mubr.f32.gmra.mrb[0].mxu0 %v55
  %v768 = vpop.f32.mrb[0].mxu0
  %v769 = vadd.f32 %v384, %v768
  %v770 = vpop.f32.mrb[0].mxu0
  %771 = vmatprep.mubr.f32.mxu0 0.0
  %772 = vmatmul.mubr.f32.gmra.mrb[0].mxu0 %v58
  %v773 = vpop.f32.mrb[0].mxu0
  %v774 = vadd.f32 %v389, %v773
  %v775 = vpop.f32.mrb[0].mxu0
  %776 = vmatprep.mubr.f32.mxu0 0.0
  %777 = vmatmul.mubr.f32.gmra.mrb[0].mxu0 %v61
  %v778 = vpop.f32.mrb[0].mxu0
  %v779 = vadd.f32 %v394, %v778
  %v780 = vpop.f32.mrb[0].mxu0
  %781 = vmatprep.mubr.f32.mxu0 0.0
  %782 = vmatmul.mubr.f32.gmra.mrb[0].mxu0 %v64
  %v783 = vpop.f32.mrb[0].mxu0
  %v784 = vadd.f32 %v399, %v783
  %v785 = vpop.f32.mrb[0].mxu0
  %786 = vmatprep.mubr.f32.mxu0 0.0
  %787 = vmatmul.mubr.f32.gmra.mrb[0].mxu0 %v67
  %v788 = vpop.f32.mrb[0].mxu0
  %v789 = vadd.f32 %v404, %v788
  %v790 = vpop.f32.mrb[0].mxu0
  %791 = vmatprep.mubr.f32.mxu0 0.0
  %792 = vmatmul.mubr.f32.gmra.mrb[0].mxu0 %v70
  %v793 = vpop.f32.mrb[0].mxu0
  %v794 = vadd.f32 %v409, %v793
  %v795 = vpop.f32.mrb[0].mxu0
  %796 = vmatprep.mubr.f32.mxu0 0.0
  %797 = vmatmul.mubr.f32.gmra.mrb[0].mxu0 %v73
  %v798 = vpop.f32.mrb[0].mxu0
  %v799 = vadd.f32 %v414, %v798
  %v800 = vpop.f32.mrb[0].mxu0
  %801 = vmatprep.mubr.f32.mxu0 0.0
  %802 = vmatmul.mubr.f32.gmra.mrb[0].mxu0 %v76
  %v803 = vpop.f32.mrb[0].mxu0
  %v804 = vadd.f32 %v419, %v803
  %v805 = vpop.f32.mrb[0].mxu0
  %806 = vmatprep.mubr.f32.mxu0 0.0
  %807 = vmatmul.mubr.f32.gmra.mrb[0].mxu0 %v79
  %v808 = vpop.f32.mrb[0].mxu0
  %v809 = vadd.f32 %v424, %v808
  %v810 = vpop.f32.mrb[0].mxu0
  %811 = vmatprep.mubr.f32.mxu0 0.0
  %812 = vmatmul.mubr.f32.gmra.mrb[0].mxu0 %v82
  %v813 = vpop.f32.mrb[0].mxu0
  %v814 = vadd.f32 %v429, %v813
  %v815 = vpop.f32.mrb[0].mxu0
  %816 = vmatprep.mubr.f32.mxu0 0.0
  %817 = vmatmul.mubr.f32.gmra.mrb[0].mxu0 %v85
  %v818 = vpop.f32.mrb[0].mxu0
  %v819 = vadd.f32 %v434, %v818
  %v820 = vpop.f32.mrb[0].mxu0
  %821 = vmatprep.mubr.f32.mxu0 0.0
  %822 = vmatmul.mubr.f32.gmra.mrb[0].mxu0 %v88
  %v823 = vpop.f32.mrb[0].mxu0
  %v824 = vadd.f32 %v439, %v823
  %v825 = vpop.f32.mrb[0].mxu0
  %826 = vmatprep.mubr.f32.mxu0 0.0
  %827 = vmatmul.mubr.f32.gmra.mrb[0].mxu0 %v91
  %v828 = vpop.f32.mrb[0].mxu0
  %v829 = vadd.f32 %v444, %v828
  %v830 = vpop.f32.mrb[0].mxu0
  %831 = vmatprep.mubr.f32.mxu0 0.0
  %832 = vmatmul.mubr.f32.gmra.mrb[0].mxu0 %v94
  %v833 = vpop.f32.mrb[0].mxu0
  %v834 = vadd.f32 %v449, %v833
  %v835 = vpop.f32.mrb[0].mxu0
  %836 = vmatprep.mubr.f32.mxu0 0.0
  %837 = vmatmul.mubr.f32.gmra.mrb[0].mxu0 %v97
  %v838 = vpop.f32.mrb[0].mxu0
  %v839 = vadd.f32 %v454, %v838
  %v840 = vpop.f32.mrb[0].mxu0
  %841 = vmatprep.mubr.f32.mxu0 0.0
  %842 = vmatmul.mubr.f32.gmra.mrb[0].mxu0 %v100
  %v843 = vpop.f32.mrb[0].mxu0
  %v844 = vadd.f32 %v459, %v843
  %v845 = vpop.f32.mrb[0].mxu0
  %846 = vmatprep.mubr.f32.mxu0 0.0
  %847 = vmatmul.mubr.f32.gmra.mrb[0].mxu0 %v103
  %v848 = vpop.f32.mrb[0].mxu0
  %v849 = vadd.f32 %v464, %v848
  %v850 = vpop.f32.mrb[0].mxu0
  %851 = vmatprep.mubr.f32.mxu0 0.0
  %852 = vmatmul.mubr.f32.gmra.mrb[0].mxu0 %v106
  %v853 = vpop.f32.mrb[0].mxu0
  %v854 = vadd.f32 %v469, %v853
  %v855 = vpop.f32.mrb[0].mxu0
  %856 = vmatprep.mubr.f32.mxu0 0.0
  %857 = vmatmul.mubr.f32.gmra.mrb[0].mxu0 %v109
  %v858 = vpop.f32.mrb[0].mxu0
  %v859 = vadd.f32 %v474, %v858
  %v860 = vpop.f32.mrb[0].mxu0
  %861 = vmatprep.mubr.f32.mxu0 0.0
  %862 = vmatmul.mubr.f32.gmra.mrb[0].mxu0 %v112
  %v863 = vpop.f32.mrb[0].mxu0
  %v864 = vadd.f32 %v479, %v863
  %v865 = vpop.f32.mrb[0].mxu0
  %866 = vmatprep.mubr.f32.mxu0 0.0
  %867 = vmatmul.mubr.f32.gmra.mrb[0].mxu0 %v115
  %v868 = vpop.f32.mrb[0].mxu0
  %v869 = vadd.f32 %v484, %v868
  %v870 = vpop.f32.mrb[0].mxu0
  %871 = vmatprep.mubr.f32.mxu0 0.0
  %872 = vmatmul.mubr.f32.gmra.mrb[0].mxu0 %v118
  %v873 = vpop.f32.mrb[0].mxu0
  %v874 = vadd.f32 %v489, %v873
  %v875 = vpop.f32.mrb[0].mxu0
  %876 = vmatprep.mubr.f32.mxu0 0.0
  %877 = vmatmul.mubr.f32.gmra.mrb[0].mxu0 %v121
  %v878 = vpop.f32.mrb[0].mxu0
  %v879 = vadd.f32 %v494, %v878
  %v880 = vpop.f32.mrb[0].mxu0
  %881 = vmatprep.mubr.f32.mxu0 0.0
  %882 = vmatmul.mubr.f32.gmra.mrb[0].mxu0 %v124
  %v883 = vpop.f32.mrb[0].mxu0
  %v884 = vadd.f32 %v499, %v883
  %v885 = vpop.f32.mrb[0].mxu0
  %886 = vmatprep.mubr.f32.mxu0 0.0
  %887 = vmatmul.mubr.f32.gmra.mrb[0].mxu0 %v127
  %v888 = vpop.f32.mrb[0].mxu0
  %v889 = vadd.f32 %v504, %v888
  %v890 = vpop.f32.mrb[0].mxu0
  %891 = vmatprep.mubr.f32.mxu0 0.0
  %892 = vmatmul.mubr.f32.gmra.mrb[0].mxu0 %v130
  %v893 = vpop.f32.mrb[0].mxu0
  %v894 = vadd.f32 %v509, %v893
  %v895 = vpop.f32.mrb[0].mxu0
  %896 = vmatprep.mubr.f32.mxu0 0.0
  %897 = vmatmul.mubr.f32.gmra.mrb[0].mxu0 %v133
  %v898 = vpop.f32.mrb[0].mxu0
  %v899 = vadd.f32 %v514, %v898
  %v900 = vpop.f32.mrb[0].mxu0
  %901 = vmatprep.mubr.f32.mxu0 0.0
  %902 = vmatmul.mubr.f32.gmra.mrb[0].mxu0 %v136
  %v903 = vpop.f32.mrb[0].mxu0
  %v904 = vadd.f32 %v519, %v903
  %v905 = vpop.f32.mrb[0].mxu0
  %906 = vmatprep.mubr.f32.mxu0 0.0
  %907 = vmatmul.mubr.f32.gmra.mrb[0].mxu0 %v139
  %v908 = vpop.f32.mrb[0].mxu0
  %v909 = vadd.f32 %v524, %v908
  %v910 = vpop.f32.mrb[0].mxu0
  %911 = vmatprep.mubr.f32.mxu0 0.0
  %912 = vmatmul.mubr.f32.gmra.mrb[0].mxu0 %v142
  %v913 = vpop.f32.mrb[0].mxu0
  %v914 = vadd.f32 %v529, %v913
  %v915 = vpop.f32.mrb[0].mxu0
  %916 = vmatprep.mubr.f32.mxu0 0.0
  %917 = vmatmul.mubr.f32.gmra.mrb[0].mxu0 %v145
  %v918 = vpop.f32.mrb[0].mxu0
  %v919 = vadd.f32 %v534, %v918
  %v920 = vpop.f32.mrb[0].mxu0
  %921 = vmatprep.mubr.f32.mxu0 0.0
  %922 = vmatmul.mubr.f32.gmra.mrb[0].mxu0 %v148
  %v923 = vpop.f32.mrb[0].mxu0
  %v924 = vadd.f32 %v539, %v923
  %v925 = vpop.f32.mrb[0].mxu0
  %926 = vmatprep.mubr.f32.mxu0 0.0
  %927 = vmatmul.mubr.f32.gmra.mrb[0].mxu0 %v151
  %v928 = vpop.f32.mrb[0].mxu0
  %v929 = vadd.f32 %v544, %v928
  %v930 = vpop.f32.mrb[0].mxu0
  %931 = vmatprep.mubr.f32.mxu0 0.0
  %932 = vmatmul.mubr.f32.gmra.mrb[0].mxu0 %v154
  %v933 = vpop.f32.mrb[0].mxu0
  %v934 = vadd.f32 %v549, %v933
  %v935 = vpop.f32.mrb[0].mxu0
  %936 = vmatprep.mubr.f32.mxu0 0.0
  %937 = vmatmul.mubr.f32.gmra.mrb[0].mxu0 %v157
  %v938 = vpop.f32.mrb[0].mxu0
  %v939 = vadd.f32 %v554, %v938
  %v940 = vpop.f32.mrb[0].mxu0
  %941 = vmatprep.mubr.f32.mxu0 0.0
  %942 = vmatmul.mubr.f32.gmra.mrb[0].mxu0 %v160
  %v943 = vpop.f32.mrb[0].mxu0
  %v944 = vadd.f32 %v559, %v943
  %v945 = vpop.f32.mrb[0].mxu0
  %946 = vmatprep.mubr.f32.mxu0 0.0
  %947 = vmatmul.mubr.f32.gmra.mrb[0].mxu0 %v163
  %v948 = vpop.f32.mrb[0].mxu0
  %v949 = vadd.f32 %v564, %v948
  %v950 = vpop.f32.mrb[0].mxu0
  %951 = vmatprep.mubr.f32.mxu0 0.0
  %952 = vmatmul.mubr.f32.gmra.mrb[0].mxu0 %v166
  %v953 = vpop.f32.mrb[0].mxu0
  %v954 = vadd.f32 %v569, %v953
  %v955 = vpop.f32.mrb[0].mxu0
  %956 = vmatprep.mubr.f32.mxu0 0.0
  %957 = vmatmul.mubr.f32.gmra.mrb[0].mxu0 %v169
  %v958 = vpop.f32.mrb[0].mxu0
  %v959 = vadd.f32 %v574, %v958
  %v960 = vpop.f32.mrb[0].mxu0
  %961 = vmatprep.mubr.f32.mxu0 0.0
  %962 = vmatmul.mubr.f32.gmra.mrb[0].mxu0 %v172
  %v963 = vpop.f32.mrb[0].mxu0
  %v964 = vadd.f32 %v579, %v963
  %v965 = vpop.f32.mrb[0].mxu0
  %966 = vmatprep.mubr.f32.mxu0 0.0
  %967 = vmatmul.mubr.f32.gmra.mrb[0].mxu0 %v175
  %v968 = vpop.f32.mrb[0].mxu0
  %v969 = vadd.f32 %v584, %v968
  %v970 = vpop.f32.mrb[0].mxu0
  %971 = vmatprep.mubr.f32.mxu0 0.0
  %972 = vmatmul.mubr.f32.gmra.mrb[0].mxu0 %v178
  %v973 = vpop.f32.mrb[0].mxu0
  %v974 = vadd.f32 %v589, %v973
  %v975 = vpop.f32.mrb[0].mxu0
  %976 = vmatprep.mubr.f32.mxu0 0.0
  %977 = vmatmul.mubr.f32.gmra.mrb[0].mxu0 %v181
  %v978 = vpop.f32.mrb[0].mxu0
  %v979 = vadd.f32 %v594, %v978
  %v980 = vpop.f32.mrb[0].mxu0
  %981 = vmatprep.mubr.f32.mxu0 0.0
  %982 = vmatmul.mubr.f32.gmra.mrb[0].mxu0 %v184
  %v983 = vpop.f32.mrb[0].mxu0
  %v984 = vadd.f32 %v599, %v983
  %v985 = vpop.f32.mrb[0].mxu0
  %986 = vmatprep.mubr.f32.mxu0 0.0
  %987 = vmatmul.mubr.f32.gmra.mrb[0].mxu0 %v187
  %v988 = vpop.f32.mrb[0].mxu0
  %v989 = vadd.f32 %v604, %v988
  %v990 = vpop.f32.mrb[0].mxu0
  %991 = vmatprep.mubr.f32.mxu0 0.0
  %992 = vmatmul.mubr.f32.gmra.mrb[0].mxu0 %v190
  %v993 = vpop.f32.mrb[0].mxu0
  %v994 = vadd.f32 %v609, %v993
  %v995 = vpop.f32.mrb[0].mxu0
  %996 = vmatprep.mubr.f32.mxu0 0.0
  %997 = vmatmul.mubr.f32.gmra.mrb[0].mxu0 %v193
  %v998 = vpop.f32.mrb[0].mxu0
  %v999 = vadd.f32 %v614, %v998
  %v1000 = vpop.f32.mrb[0].mxu0
  %1001 = vmatprep.mubr.f32.mxu0 0.0
  %1002 = vmatmul.mubr.f32.gmra.mrb[0].mxu0 %v196
  %v1003 = vpop.f32.mrb[0].mxu0
  %v1004 = vadd.f32 %v619, %v1003
  %v1005 = vpop.f32.mrb[0].mxu0
  %1006 = vmatprep.mubr.f32.mxu0 0.0
  %1007 = vmatmul.mubr.f32.gmra.mrb[0].mxu0 %v199
  %v1008 = vpop.f32.mrb[0].mxu0
  %v1009 = vadd.f32 %v624, %v1008
  %v1010 = vpop.f32.mrb[0].mxu0
  %1011 = vmatprep.mubr.f32.mxu0 0.0
  %1012 = vmatmul.mubr.f32.gmra.mrb[0].mxu0 %v202
  %v1013 = vpop.f32.mrb[0].mxu0
  %v1014 = vadd.f32 %v629, %v1013
  %v1015 = vpop.f32.mrb[0].mxu0
  %1016 = vmatprep.mubr.f32.mxu0 0.0
  %1017 = vmatmul.mubr.f32.gmra.mrb[0].mxu0 %v205
  %v1018 = vpop.f32.mrb[0].mxu0
  %v1019 = vadd.f32 %v634, %v1018
  %v1020 = vpop.f32.mrb[0].mxu0
  %1021 = vmatprep.mubr.f32.mxu0 0.0
  %1022 = vmatmul.mubr.f32.gmra.mrb[0].mxu0 %v208
  %v1023 = vpop.f32.mrb[0].mxu0
  %v1024 = vadd.f32 %v639, %v1023
  %v1025 = vpop.f32.mrb[0].mxu0
  %1026 = vdwg.mxu0
  %v1027 = vld [vmem:[%s2] sm:$0x1]
  %v1029 = vlaneseq
  %v1030 = vshrl.u32 %v1029, 7
  %v1031 = vsub.s32 0, %v1030
  %v1032 = vrot.slane %v1027, %v1031
  %v1034 = vmul.f32 %v709, %v1032
  %v1035 = vmul.f32 %v714, %v1032
  %v1036 = vmul.f32 %v719, %v1032
  %v1037 = vmul.f32 %v724, %v1032
  %v1038 = vmul.f32 %v729, %v1032
  %v1039 = vmul.f32 %v734, %v1032
  %v1040 = vmul.f32 %v739, %v1032
  %v1041 = vmul.f32 %v744, %v1032
  %v1042 = vmul.f32 %v749, %v1032
  %v1043 = vmul.f32 %v754, %v1032
  %v1044 = vmul.f32 %v759, %v1032
  %v1045 = vmul.f32 %v764, %v1032
  %v1046 = vmul.f32 %v769, %v1032
  %v1047 = vmul.f32 %v774, %v1032
  %v1048 = vmul.f32 %v779, %v1032
  %v1049 = vmul.f32 %v784, %v1032
  %v1050 = vmul.f32 %v789, %v1032
  %v1051 = vmul.f32 %v794, %v1032
  %v1052 = vmul.f32 %v799, %v1032
  %v1053 = vmul.f32 %v804, %v1032
  %v1054 = vmul.f32 %v809, %v1032
  %v1055 = vmul.f32 %v814, %v1032
  %v1056 = vmul.f32 %v819, %v1032
  %v1057 = vmul.f32 %v824, %v1032
  %v1058 = vmul.f32 %v829, %v1032
  %v1059 = vmul.f32 %v834, %v1032
  %v1060 = vmul.f32 %v839, %v1032
  %v1061 = vmul.f32 %v844, %v1032
  %v1062 = vmul.f32 %v849, %v1032
  %v1063 = vmul.f32 %v854, %v1032
  %v1064 = vmul.f32 %v859, %v1032
  %v1065 = vmul.f32 %v864, %v1032
  %v1066 = vmul.f32 %v869, %v1032
  %v1067 = vmul.f32 %v874, %v1032
  %v1068 = vmul.f32 %v879, %v1032
  %v1069 = vmul.f32 %v884, %v1032
  %v1070 = vmul.f32 %v889, %v1032
  %v1071 = vmul.f32 %v894, %v1032
  %v1072 = vmul.f32 %v899, %v1032
  %v1073 = vmul.f32 %v904, %v1032
  %v1074 = vmul.f32 %v909, %v1032
  %v1075 = vmul.f32 %v914, %v1032
  %v1076 = vmul.f32 %v919, %v1032
  %v1077 = vmul.f32 %v924, %v1032
  %v1078 = vmul.f32 %v929, %v1032
  %v1079 = vmul.f32 %v934, %v1032
  %v1080 = vmul.f32 %v939, %v1032
  %v1081 = vmul.f32 %v944, %v1032
  %v1082 = vmul.f32 %v949, %v1032
  %v1083 = vmul.f32 %v954, %v1032
  %v1084 = vmul.f32 %v959, %v1032
  %v1085 = vmul.f32 %v964, %v1032
  %v1086 = vmul.f32 %v969, %v1032
  %v1087 = vmul.f32 %v974, %v1032
  %v1088 = vmul.f32 %v979, %v1032
  %v1089 = vmul.f32 %v984, %v1032
  %v1090 = vmul.f32 %v989, %v1032
  %v1091 = vmul.f32 %v994, %v1032
  %v1092 = vmul.f32 %v999, %v1032
  %v1093 = vmul.f32 %v1004, %v1032
  %v1094 = vmul.f32 %v1009, %v1032
  %v1095 = vmul.f32 %v1014, %v1032
  %v1096 = vmul.f32 %v1019, %v1032
  %v1097 = vmul.f32 %v1024, %v1032
  %v1098 = vld [vmem:[%s3] sm:$0x1]
  %v1100 = vlaneseq
  %v1101 = vshrl.u32 %v1100, 7
  %v1102 = vsub.s32 0, %v1101
  %v1103 = vrot.slane %v1098, %v1102
  %v1105 = vadd.f32 %v1034, %v1103
  %v1106 = vadd.f32 %v1035, %v1103
  %v1107 = vadd.f32 %v1036, %v1103
  %v1108 = vadd.f32 %v1037, %v1103
  %v1109 = vadd.f32 %v1038, %v1103
  %v1110 = vadd.f32 %v1039, %v1103
  %v1111 = vadd.f32 %v1040, %v1103
  %v1112 = vadd.f32 %v1041, %v1103
  %v1113 = vadd.f32 %v1042, %v1103
  %v1114 = vadd.f32 %v1043, %v1103
  %v1115 = vadd.f32 %v1044, %v1103
  %v1116 = vadd.f32 %v1045, %v1103
  %v1117 = vadd.f32 %v1046, %v1103
  %v1118 = vadd.f32 %v1047, %v1103
  %v1119 = vadd.f32 %v1048, %v1103
  %v1120 = vadd.f32 %v1049, %v1103
  %v1121 = vadd.f32 %v1050, %v1103
  %v1122 = vadd.f32 %v1051, %v1103
  %v1123 = vadd.f32 %v1052, %v1103
  %v1124 = vadd.f32 %v1053, %v1103
  %v1125 = vadd.f32 %v1054, %v1103
  %v1126 = vadd.f32 %v1055, %v1103
  %v1127 = vadd.f32 %v1056, %v1103
  %v1128 = vadd.f32 %v1057, %v1103
  %v1129 = vadd.f32 %v1058, %v1103
  %v1130 = vadd.f32 %v1059, %v1103
  %v1131 = vadd.f32 %v1060, %v1103
  %v1132 = vadd.f32 %v1061, %v1103
  %v1133 = vadd.f32 %v1062, %v1103
  %v1134 = vadd.f32 %v1063, %v1103
  %v1135 = vadd.f32 %v1064, %v1103
  %v1136 = vadd.f32 %v1065, %v1103
  %v1137 = vadd.f32 %v1066, %v1103
  %v1138 = vadd.f32 %v1067, %v1103
  %v1139 = vadd.f32 %v1068, %v1103
  %v1140 = vadd.f32 %v1069, %v1103
  %v1141 = vadd.f32 %v1070, %v1103
  %v1142 = vadd.f32 %v1071, %v1103
  %v1143 = vadd.f32 %v1072, %v1103
  %v1144 = vadd.f32 %v1073, %v1103
  %v1145 = vadd.f32 %v1074, %v1103
  %v1146 = vadd.f32 %v1075, %v1103
  %v1147 = vadd.f32 %v1076, %v1103
  %v1148 = vadd.f32 %v1077, %v1103
  %v1149 = vadd.f32 %v1078, %v1103
  %v1150 = vadd.f32 %v1079, %v1103
  %v1151 = vadd.f32 %v1080, %v1103
  %v1152 = vadd.f32 %v1081, %v1103
  %v1153 = vadd.f32 %v1082, %v1103
  %v1154 = vadd.f32 %v1083, %v1103
  %v1155 = vadd.f32 %v1084, %v1103
  %v1156 = vadd.f32 %v1085, %v1103
  %v1157 = vadd.f32 %v1086, %v1103
  %v1158 = vadd.f32 %v1087, %v1103
  %v1159 = vadd.f32 %v1088, %v1103
  %v1160 = vadd.f32 %v1089, %v1103
  %v1161 = vadd.f32 %v1090, %v1103
  %v1162 = vadd.f32 %v1091, %v1103
  %v1163 = vadd.f32 %v1092, %v1103
  %v1164 = vadd.f32 %v1093, %v1103
  %v1165 = vadd.f32 %v1094, %v1103
  %v1166 = vadd.f32 %v1095, %v1103
  %v1167 = vadd.f32 %v1096, %v1103
  %v1168 = vadd.f32 %v1097, %v1103
  %1169 = vst [vmem:[%s4] sm:$0xff] %v1105
  %1170 = vst [vmem:[%s4 + $0x8] sm:$0xff] %v1106
  %1171 = vst [vmem:[%s4 + $0x10] sm:$0xff] %v1107
  %1172 = vst [vmem:[%s4 + $0x18] sm:$0xff] %v1108
  %1173 = vst [vmem:[%s4 + $0x20] sm:$0xff] %v1109
  %1174 = vst [vmem:[%s4 + $0x28] sm:$0xff] %v1110
  %1175 = vst [vmem:[%s4 + $0x30] sm:$0xff] %v1111
  %1176 = vst [vmem:[%s4 + $0x38] sm:$0xff] %v1112
  %1177 = vst [vmem:[%s4 + $0x40] sm:$0xff] %v1113
  %1178 = vst [vmem:[%s4 + $0x48] sm:$0xff] %v1114
  %1179 = vst [vmem:[%s4 + $0x50] sm:$0xff] %v1115
  %1180 = vst [vmem:[%s4 + $0x58] sm:$0xff] %v1116
  %1181 = vst [vmem:[%s4 + $0x60] sm:$0xff] %v1117
  %1182 = vst [vmem:[%s4 + $0x68] sm:$0xff] %v1118
  %1183 = vst [vmem:[%s4 + $0x70] sm:$0xff] %v1119
  %1184 = vst [vmem:[%s4 + $0x78] sm:$0xff] %v1120
  %1185 = vst [vmem:[%s4 + $0x80] sm:$0xff] %v1121
  %1186 = vst [vmem:[%s4 + $0x88] sm:$0xff] %v1122
  %1187 = vst [vmem:[%s4 + $0x90] sm:$0xff] %v1123
  %1188 = vst [vmem:[%s4 + $0x98] sm:$0xff] %v1124
  %1189 = vst [vmem:[%s4 + $0xa0] sm:$0xff] %v1125
  %1190 = vst [vmem:[%s4 + $0xa8] sm:$0xff] %v1126
  %1191 = vst [vmem:[%s4 + $0xb0] sm:$0xff] %v1127
  %1192 = vst [vmem:[%s4 + $0xb8] sm:$0xff] %v1128
  %1193 = vst [vmem:[%s4 + $0xc0] sm:$0xff] %v1129
  %1194 = vst [vmem:[%s4 + $0xc8] sm:$0xff] %v1130
  %1195 = vst [vmem:[%s4 + $0xd0] sm:$0xff] %v1131
  %1196 = vst [vmem:[%s4 + $0xd8] sm:$0xff] %v1132
  %1197 = vst [vmem:[%s4 + $0xe0] sm:$0xff] %v1133
  %1198 = vst [vmem:[%s4 + $0xe8] sm:$0xff] %v1134
  %1199 = vst [vmem:[%s4 + $0xf0] sm:$0xff] %v1135
  %1200 = vst [vmem:[%s4 + $0xf8] sm:$0xff] %v1136
  %1201 = vst [vmem:[%s4 + $0x100] sm:$0xff] %v1137
  %1202 = vst [vmem:[%s4 + $0x108] sm:$0xff] %v1138
  %1203 = vst [vmem:[%s4 + $0x110] sm:$0xff] %v1139
  %1204 = vst [vmem:[%s4 + $0x118] sm:$0xff] %v1140
  %1205 = vst [vmem:[%s4 + $0x120] sm:$0xff] %v1141
  %1206 = vst [vmem:[%s4 + $0x128] sm:$0xff] %v1142
  %1207 = vst [vmem:[%s4 + $0x130] sm:$0xff] %v1143
  %1208 = vst [vmem:[%s4 + $0x138] sm:$0xff] %v1144
  %1209 = vst [vmem:[%s4 + $0x140] sm:$0xff] %v1145
  %1210 = vst [vmem:[%s4 + $0x148] sm:$0xff] %v1146
  %1211 = vst [vmem:[%s4 + $0x150] sm:$0xff] %v1147
  %1212 = vst [vmem:[%s4 + $0x158] sm:$0xff] %v1148
  %1213 = vst [vmem:[%s4 + $0x160] sm:$0xff] %v1149
  %1214 = vst [vmem:[%s4 + $0x168] sm:$0xff] %v1150
  %1215 = vst [vmem:[%s4 + $0x170] sm:$0xff] %v1151
  %1216 = vst [vmem:[%s4 + $0x178] sm:$0xff] %v1152
  %1217 = vst [vmem:[%s4 + $0x180] sm:$0xff] %v1153
  %1218 = vst [vmem:[%s4 + $0x188] sm:$0xff] %v1154
  %1219 = vst [vmem:[%s4 + $0x190] sm:$0xff] %v1155
  %1220 = vst [vmem:[%s4 + $0x198] sm:$0xff] %v1156
  %1221 = vst [vmem:[%s4 + $0x1a0] sm:$0xff] %v1157
  %1222 = vst [vmem:[%s4 + $0x1a8] sm:$0xff] %v1158
  %1223 = vst [vmem:[%s4 + $0x1b0] sm:$0xff] %v1159
  %1224 = vst [vmem:[%s4 + $0x1b8] sm:$0xff] %v1160
  %1225 = vst [vmem:[%s4 + $0x1c0] sm:$0xff] %v1161
  %1226 = vst [vmem:[%s4 + $0x1c8] sm:$0xff] %v1162
  %1227 = vst [vmem:[%s4 + $0x1d0] sm:$0xff] %v1163
  %1228 = vst [vmem:[%s4 + $0x1d8] sm:$0xff] %v1164
  %1229 = vst [vmem:[%s4 + $0x1e0] sm:$0xff] %v1165
  %1230 = vst [vmem:[%s4 + $0x1e8] sm:$0xff] %v1166
  %1231 = vst [vmem:[%s4 + $0x1f0] sm:$0xff] %v1167
  %1232 = vst [vmem:[%s4 + $0x1f8] sm:$0xff] %v1168
  // Predicated region
  $region18: #{coordinator_forward.17} parent=0 // pred_check
    _
  $region19: #{coordinator_forward.17} parent=0 // pred_check_branch
    %1234 = sbr.rel (0) target = $region21
  $region20: #{coordinator_forward.17} parent=0 // pred_region
    _
  $region21: #{coordinator_forward.17} parent=0 // pred_fallthru
    _
  // Predicated region
  $region22: #{coordinator_forward.17} parent=0 // pred_check
    _
  $region23: #{coordinator_forward.17} parent=0 // pred_check_branch
    %1236 = sbr.rel (0) target = $region25
  $region24: #{coordinator_forward.17} parent=0 // pred_region
    _
  $region25: #{coordinator_forward.17} parent=0 // pred_fallthru
    _

// kernel: coordinator_forward.18
$region0: #{coordinator_forward.18}
  #allocation0 [shape = 'u32[]', space=smem, size = 0x4, offset = 0x4, fixed_abs, tag = 'smem constant byte address 0x4 - core index']
  #allocation1 [shape = 'u32[144,128]{1,0:T(1,128)}', space=vmem, size = 0x12000, scoped, tag = 'internal scratch']
  %s0 = inlined_call_operand.vmem [shape: f32[128,128], index: 0, kind: input, shape index: {}]
  %s1 = inlined_call_operand.vmem [shape: f32[128,128], index: 1, kind: input, shape index: {}]
  %s2 = inlined_call_operand.vmem [shape: f32[1,128], index: 2, kind: input, shape index: {}]
  %s3 = inlined_call_operand.vmem [shape: f32[1,128], index: 3, kind: input, shape index: {}]
  %s4 = inlined_call_operand.vmem [shape: f32[128,128], index: 4, kind: output, shape index: {}]
  %s5 = sld [smem:[#allocation0]]
  $region26: #{coordinator_forward.18} parent=0
    _
  %s7 = ssub.s32 1, %s5
  %s8 = scalar_select 0, %s7, %s5
  // Predicated region
  $region2: #{coordinator_forward.18} parent=0 // pred_check
    _
  $region3: #{coordinator_forward.18} parent=0 // pred_check_branch
    %10 = sbr.rel (0) target = $region5
  $region4: #{coordinator_forward.18} parent=0 // pred_region
    _
  $region5: #{coordinator_forward.18} parent=0 // pred_fallthru
    _
  // Predicated region
  $region6: #{coordinator_forward.18} parent=0 // pred_check
    _
  $region7: #{coordinator_forward.18} parent=0 // pred_check_branch
    %12 = sbr.rel (0) target = $region9
  $region8: #{coordinator_forward.18} parent=0 // pred_region
    _
  $region9: #{coordinator_forward.18} parent=0 // pred_fallthru
    _
  // Predicated region
  $region10: #{coordinator_forward.18} parent=0 // pred_check
    _
  $region11: #{coordinator_forward.18} parent=0 // pred_check_branch
    %14 = sbr.rel (0) target = $region13
  $region12: #{coordinator_forward.18} parent=0 // pred_region
    _
  $region13: #{coordinator_forward.18} parent=0 // pred_fallthru
    _
  // Predicated region
  $region14: #{coordinator_forward.18} parent=0 // pred_check
    _
  $region15: #{coordinator_forward.18} parent=0 // pred_check_branch
    %16 = sbr.rel (0) target = $region17
  $region16: #{coordinator_forward.18} parent=0 // pred_region
    _
  $region17: #{coordinator_forward.18} parent=0 // pred_fallthru
    _
  %v17 = vld [vmem:[%s0] sm:$0xff]
  %v18 = vld [vmem:[%s0 + $0x8] sm:$0xff]
  %v19 = vld [vmem:[%s0 + $0x10] sm:$0xff]
  %v20 = vld [vmem:[%s0 + $0x18] sm:$0xff]
  %v21 = vld [vmem:[%s0 + $0x20] sm:$0xff]
  %v22 = vld [vmem:[%s0 + $0x28] sm:$0xff]
  %v23 = vld [vmem:[%s0 + $0x30] sm:$0xff]
  %v24 = vld [vmem:[%s0 + $0x38] sm:$0xff]
  %v25 = vld [vmem:[%s0 + $0x40] sm:$0xff]
  %v26 = vld [vmem:[%s0 + $0x48] sm:$0xff]
  %v27 = vld [vmem:[%s0 + $0x50] sm:$0xff]
  %v28 = vld [vmem:[%s0 + $0x58] sm:$0xff]
  %v29 = vld [vmem:[%s0 + $0x60] sm:$0xff]
  %v30 = vld [vmem:[%s0 + $0x68] sm:$0xff]
  %v31 = vld [vmem:[%s0 + $0x70] sm:$0xff]
  %v32 = vld [vmem:[%s0 + $0x78] sm:$0xff]
  %v33 = vld [vmem:[%s1] sm:$0xff]
  %v34 = vld [vmem:[%s1 + $0x8] sm:$0xff]
  %v35 = vld [vmem:[%s1 + $0x10] sm:$0xff]
  %v36 = vld [vmem:[%s1 + $0x18] sm:$0xff]
  %v37 = vld [vmem:[%s1 + $0x20] sm:$0xff]
  %v38 = vld [vmem:[%s1 + $0x28] sm:$0xff]
  %v39 = vld [vmem:[%s1 + $0x30] sm:$0xff]
  %v40 = vld [vmem:[%s1 + $0x38] sm:$0xff]
  %v41 = vld [vmem:[%s1 + $0x40] sm:$0xff]
  %v42 = vld [vmem:[%s1 + $0x48] sm:$0xff]
  %v43 = vld [vmem:[%s1 + $0x50] sm:$0xff]
  %v44 = vld [vmem:[%s1 + $0x58] sm:$0xff]
  %v45 = vld [vmem:[%s1 + $0x60] sm:$0xff]
  %v46 = vld [vmem:[%s1 + $0x68] sm:$0xff]
  %v47 = vld [vmem:[%s1 + $0x70] sm:$0xff]
  %v48 = vld [vmem:[%s1 + $0x78] sm:$0xff]
  %49 = vmatprep.subr.mxu0 0.0
  %50 = vmatpush1.msra.mxu0 %v33
  %51 = vmatprep.subr.mxu0 0.0
  %52 = vmatpush1.msra.mxu0 %v34
  %53 = vmatprep.subr.mxu0 0.0
  %54 = vmatpush1.msra.mxu0 %v35
  %55 = vmatprep.subr.mxu0 0.0
  %56 = vmatpush1.msra.mxu0 %v36
  %57 = vmatprep.subr.mxu0 0.0
  %58 = vmatpush1.msra.mxu0 %v37
  %59 = vmatprep.subr.mxu0 0.0
  %60 = vmatpush1.msra.mxu0 %v38
  %61 = vmatprep.subr.mxu0 0.0
  %62 = vmatpush1.msra.mxu0 %v39
  %63 = vmatprep.subr.mxu0 0.0
  %64 = vmatpush1.msra.mxu0 %v40
  %65 = vmatprep.subr.mxu0 0.0
  %66 = vmatpush1.msra.mxu0 %v41
  %67 = vmatprep.subr.mxu0 0.0
  %68 = vmatpush1.msra.mxu0 %v42
  %69 = vmatprep.subr.mxu0 0.0
  %70 = vmatpush1.msra.mxu0 %v43
  %71 = vmatprep.subr.mxu0 0.0
  %72 = vmatpush1.msra.mxu0 %v44
  %73 = vmatprep.subr.mxu0 0.0
  %74 = vmatpush1.msra.mxu0 %v45
  %75 = vmatprep.subr.mxu0 0.0
  %76 = vmatpush1.msra.mxu0 %v46
  %77 = vmatprep.subr.mxu0 0.0
  %78 = vmatpush1.msra.mxu0 %v47
  %79 = vmatprep.subr.mxu0 0.0
  %80 = vmatpush1.msra.mxu0 %v48
  %81 = vmatprep.subr.mxu0 0.0
  %82 = vmatpush1.msra.mxu0 0.0
  %83 = vmatprep.subr.mxu0 0.0
  %84 = vmatpush1.msra.mxu0 0.0
  %85 = vmatprep.subr.mxu0 0.0
  %86 = vmatpush1.msra.mxu0 0.0
  %87 = vmatprep.subr.mxu0 0.0
  %88 = vmatpush1.msra.mxu0 0.0
  %89 = vmatprep.subr.mxu0 0.0
  %90 = vmatpush1.msra.mxu0 0.0
  %91 = vmatprep.subr.mxu0 0.0
  %92 = vmatpush1.msra.mxu0 0.0
  %93 = vmatprep.subr.mxu0 0.0
  %94 = vmatpush1.msra.mxu0 0.0
  %95 = vmatprep.subr.mxu0 0.0
  %96 = vmatpush1.msra.mxu0 0.0
  %97 = vmatprep.subr.mxu0 0.0
  %98 = vmatpush1.msra.mxu0 0.0
  %99 = vmatprep.subr.mxu0 0.0
  %100 = vmatpush1.msra.mxu0 0.0
  %101 = vmatprep.subr.mxu0 0.0
  %102 = vmatpush1.msra.mxu0 0.0
  %103 = vmatprep.subr.mxu0 0.0
  %104 = vmatpush1.msra.mxu0 0.0
  %105 = vmatprep.subr.mxu0 0.0
  %106 = vmatpush1.msra.mxu0 0.0
  %107 = vmatprep.subr.mxu0 0.0
  %108 = vmatpush1.msra.mxu0 0.0
  %109 = vmatprep.subr.mxu0 0.0
  %110 = vmatpush1.msra.mxu0 0.0
  %111 = vmatprep.subr.mxu0 0.0
  %112 = vmatpush1.msra.mxu0 0.0
  %113 = vmatprep.mubr.f32.mxu0 0.0
  %114 = vmatmul.mubr.f32.gmra.mrb[0].mxu0 %v17
  %v115 = vpop.f32.mrb[0].mxu0
  %v116 = vadd.f32 0.0, %v115
  %v117 = vpop.f32.mrb[0].mxu0
  %118 = vmatprep.mubr.f32.mxu0 0.0
  %119 = vmatmul.mubr.f32.gmra.mrb[0].mxu0 %v18
  %v120 = vpop.f32.mrb[0].mxu0
  %v121 = vadd.f32 0.0, %v120
  %v122 = vpop.f32.mrb[0].mxu0
  %123 = vmatprep.mubr.f32.mxu0 0.0
  %124 = vmatmul.mubr.f32.gmra.mrb[0].mxu0 %v19
  %v125 = vpop.f32.mrb[0].mxu0
  %v126 = vadd.f32 0.0, %v125
  %v127 = vpop.f32.mrb[0].mxu0
  %128 = vmatprep.mubr.f32.mxu0 0.0
  %129 = vmatmul.mubr.f32.gmra.mrb[0].mxu0 %v20
  %v130 = vpop.f32.mrb[0].mxu0
  %v131 = vadd.f32 0.0, %v130
  %v132 = vpop.f32.mrb[0].mxu0
  %133 = vmatprep.mubr.f32.mxu0 0.0
  %134 = vmatmul.mubr.f32.gmra.mrb[0].mxu0 %v21
  %v135 = vpop.f32.mrb[0].mxu0
  %v136 = vadd.f32 0.0, %v135
  %v137 = vpop.f32.mrb[0].mxu0
  %138 = vmatprep.mubr.f32.mxu0 0.0
  %139 = vmatmul.mubr.f32.gmra.mrb[0].mxu0 %v22
  %v140 = vpop.f32.mrb[0].mxu0
  %v141 = vadd.f32 0.0, %v140
  %v142 = vpop.f32.mrb[0].mxu0
  %143 = vmatprep.mubr.f32.mxu0 0.0
  %144 = vmatmul.mubr.f32.gmra.mrb[0].mxu0 %v23
  %v145 = vpop.f32.mrb[0].mxu0
  %v146 = vadd.f32 0.0, %v145
  %v147 = vpop.f32.mrb[0].mxu0
  %148 = vmatprep.mubr.f32.mxu0 0.0
  %149 = vmatmul.mubr.f32.gmra.mrb[0].mxu0 %v24
  %v150 = vpop.f32.mrb[0].mxu0
  %v151 = vadd.f32 0.0, %v150
  %v152 = vpop.f32.mrb[0].mxu0
  %153 = vmatprep.mubr.f32.mxu0 0.0
  %154 = vmatmul.mubr.f32.gmra.mrb[0].mxu0 %v25
  %v155 = vpop.f32.mrb[0].mxu0
  %v156 = vadd.f32 0.0, %v155
  %v157 = vpop.f32.mrb[0].mxu0
  %158 = vmatprep.mubr.f32.mxu0 0.0
  %159 = vmatmul.mubr.f32.gmra.mrb[0].mxu0 %v26
  %v160 = vpop.f32.mrb[0].mxu0
  %v161 = vadd.f32 0.0, %v160
  %v162 = vpop.f32.mrb[0].mxu0
  %163 = vmatprep.mubr.f32.mxu0 0.0
  %164 = vmatmul.mubr.f32.gmra.mrb[0].mxu0 %v27
  %v165 = vpop.f32.mrb[0].mxu0
  %v166 = vadd.f32 0.0, %v165
  %v167 = vpop.f32.mrb[0].mxu0
  %168 = vmatprep.mubr.f32.mxu0 0.0
  %169 = vmatmul.mubr.f32.gmra.mrb[0].mxu0 %v28
  %v170 = vpop.f32.mrb[0].mxu0
  %v171 = vadd.f32 0.0, %v170
  %v172 = vpop.f32.mrb[0].mxu0
  %173 = vmatprep.mubr.f32.mxu0 0.0
  %174 = vmatmul.mubr.f32.gmra.mrb[0].mxu0 %v29
  %v175 = vpop.f32.mrb[0].mxu0
  %v176 = vadd.f32 0.0, %v175
  %v177 = vpop.f32.mrb[0].mxu0
  %178 = vmatprep.mubr.f32.mxu0 0.0
  %179 = vmatmul.mubr.f32.gmra.mrb[0].mxu0 %v30
  %v180 = vpop.f32.mrb[0].mxu0
  %v181 = vadd.f32 0.0, %v180
  %v182 = vpop.f32.mrb[0].mxu0
  %183 = vmatprep.mubr.f32.mxu0 0.0
  %184 = vmatmul.mubr.f32.gmra.mrb[0].mxu0 %v31
  %v185 = vpop.f32.mrb[0].mxu0
  %v186 = vadd.f32 0.0, %v185
  %v187 = vpop.f32.mrb[0].mxu0
  %188 = vmatprep.mubr.f32.mxu0 0.0
  %189 = vmatmul.mubr.f32.gmra.mrb[0].mxu0 %v32
  %v190 = vpop.f32.mrb[0].mxu0
  %v191 = vadd.f32 0.0, %v190
  %v192 = vpop.f32.mrb[0].mxu0
  %193 = vdwg.mxu0
  %v194 = vld [vmem:[%s2] sm:$0x1]
  %v196 = vlaneseq
  %v197 = vshrl.u32 %v196, 7
  %v198 = vsub.s32 0, %v197
  %v199 = vrot.slane %v194, %v198
  %v201 = vmul.f32 %v116, %v199
  %v202 = vmul.f32 %v121, %v199
  %v203 = vmul.f32 %v126, %v199
  %v204 = vmul.f32 %v131, %v199
  %v205 = vmul.f32 %v136, %v199
  %v206 = vmul.f32 %v141, %v199
  %v207 = vmul.f32 %v146, %v199
  %v208 = vmul.f32 %v151, %v199
  %v209 = vmul.f32 %v156, %v199
  %v210 = vmul.f32 %v161, %v199
  %v211 = vmul.f32 %v166, %v199
  %v212 = vmul.f32 %v171, %v199
  %v213 = vmul.f32 %v176, %v199
  %v214 = vmul.f32 %v181, %v199
  %v215 = vmul.f32 %v186, %v199
  %v216 = vmul.f32 %v191, %v199
  %v217 = vld [vmem:[%s3] sm:$0x1]
  %v219 = vlaneseq
  %v220 = vshrl.u32 %v219, 7
  %v221 = vsub.s32 0, %v220
  %v222 = vrot.slane %v217, %v221
  %v224 = vadd.f32 %v201, %v222
  %v225 = vadd.f32 %v202, %v222
  %v226 = vadd.f32 %v203, %v222
  %v227 = vadd.f32 %v204, %v222
  %v228 = vadd.f32 %v205, %v222
  %v229 = vadd.f32 %v206, %v222
  %v230 = vadd.f32 %v207, %v222
  %v231 = vadd.f32 %v208, %v222
  %v232 = vadd.f32 %v209, %v222
  %v233 = vadd.f32 %v210, %v222
  %v234 = vadd.f32 %v211, %v222
  %v235 = vadd.f32 %v212, %v222
  %v236 = vadd.f32 %v213, %v222
  %v237 = vadd.f32 %v214, %v222
  %v238 = vadd.f32 %v215, %v222
  %v239 = vadd.f32 %v216, %v222
  %v240 = vmul.f32 %v224, 0.5
  %v241 = vmul.f32 %v225, 0.5
  %v242 = vmul.f32 %v226, 0.5
  %v243 = vmul.f32 %v227, 0.5
  %v244 = vmul.f32 %v228, 0.5
  %v245 = vmul.f32 %v229, 0.5
  %v246 = vmul.f32 %v230, 0.5
  %v247 = vmul.f32 %v231, 0.5
  %v248 = vmul.f32 %v232, 0.5
  %v249 = vmul.f32 %v233, 0.5
  %v250 = vmul.f32 %v234, 0.5
  %v251 = vmul.f32 %v235, 0.5
  %v252 = vmul.f32 %v236, 0.5
  %v253 = vmul.f32 %v237, 0.5
  %v254 = vmul.f32 %v238, 0.5
  %v255 = vmul.f32 %v239, 0.5
  %v256 = vmul.f32 %v224, 0.70710677
  %v257 = vmul.f32 %v225, 0.70710677
  %v258 = vmul.f32 %v226, 0.70710677
  %v259 = vmul.f32 %v227, 0.70710677
  %v260 = vmul.f32 %v228, 0.70710677
  %v261 = vmul.f32 %v229, 0.70710677
  %v262 = vmul.f32 %v230, 0.70710677
  %v263 = vmul.f32 %v231, 0.70710677
  %v264 = vmul.f32 %v232, 0.70710677
  %v265 = vmul.f32 %v233, 0.70710677
  %v266 = vmul.f32 %v234, 0.70710677
  %v267 = vmul.f32 %v235, 0.70710677
  %v268 = vmul.f32 %v236, 0.70710677
  %v269 = vmul.f32 %v237, 0.70710677
  %v270 = vmul.f32 %v238, 0.70710677
  %v271 = vmul.f32 %v239, 0.70710677
  %v272 = vand.u32 2147483647, %v256
  %v273 = vand.u32 2147483647, %v257
  %v274 = vand.u32 2147483647, %v258
  %v275 = vand.u32 2147483647, %v259
  %v276 = vand.u32 2147483647, %v260
  %v277 = vand.u32 2147483647, %v261
  %v278 = vand.u32 2147483647, %v262
  %v279 = vand.u32 2147483647, %v263
  %v280 = vand.u32 2147483647, %v264
  %v281 = vand.u32 2147483647, %v265
  %v282 = vand.u32 2147483647, %v266
  %v283 = vand.u32 2147483647, %v267
  %v284 = vand.u32 2147483647, %v268
  %v285 = vand.u32 2147483647, %v269
  %v286 = vand.u32 2147483647, %v270
  %v287 = vand.u32 2147483647, %v271
  %v288 = vmul.f32 %v272, 0.3275911
  %v289 = vmul.f32 %v273, 0.3275911
  %v290 = vmul.f32 %v274, 0.3275911
  %v291 = vmul.f32 %v275, 0.3275911
  %v292 = vmul.f32 %v276, 0.3275911
  %v293 = vmul.f32 %v277, 0.3275911
  %v294 = vmul.f32 %v278, 0.3275911
  %v295 = vmul.f32 %v279, 0.3275911
  %v296 = vmul.f32 %v280, 0.3275911
  %v297 = vmul.f32 %v281, 0.3275911
  %v298 = vmul.f32 %v282, 0.3275911
  %v299 = vmul.f32 %v283, 0.3275911
  %v300 = vmul.f32 %v284, 0.3275911
  %v301 = vmul.f32 %v285, 0.3275911
  %v302 = vmul.f32 %v286, 0.3275911
  %v303 = vmul.f32 %v287, 0.3275911
  %v304 = vadd.f32 %v288, 1.0
  %v305 = vadd.f32 %v289, 1.0
  %v306 = vadd.f32 %v290, 1.0
  %v307 = vadd.f32 %v291, 1.0
  %v308 = vadd.f32 %v292, 1.0
  %v309 = vadd.f32 %v293, 1.0
  %v310 = vadd.f32 %v294, 1.0
  %v311 = vadd.f32 %v295, 1.0
  %v312 = vadd.f32 %v296, 1.0
  %v313 = vadd.f32 %v297, 1.0
  %v314 = vadd.f32 %v298, 1.0
  %v315 = vadd.f32 %v299, 1.0
  %v316 = vadd.f32 %v300, 1.0
  %v317 = vadd.f32 %v301, 1.0
  %v318 = vadd.f32 %v302, 1.0
  %v319 = vadd.f32 %v303, 1.0
  %v320 = vrcp.pop %v304
  %v321 = vmul.f32 1.0, %v320
  %v322 = vrcp.pop %v305
  %v323 = vmul.f32 1.0, %v322
  %v324 = vrcp.pop %v306
  %v325 = vmul.f32 1.0, %v324
  %v326 = vrcp.pop %v307
  %v327 = vmul.f32 1.0, %v326
  %v328 = vrcp.pop %v308
  %v329 = vmul.f32 1.0, %v328
  %v330 = vrcp.pop %v309
  %v331 = vmul.f32 1.0, %v330
  %v332 = vrcp.pop %v310
  %v333 = vmul.f32 1.0, %v332
  %v334 = vrcp.pop %v311
  %v335 = vmul.f32 1.0, %v334
  %v336 = vrcp.pop %v312
  %v337 = vmul.f32 1.0, %v336
  %v338 = vrcp.pop %v313
  %v339 = vmul.f32 1.0, %v338
  %v340 = vrcp.pop %v314
  %v341 = vmul.f32 1.0, %v340
  %v342 = vrcp.pop %v315
  %v343 = vmul.f32 1.0, %v342
  %v344 = vrcp.pop %v316
  %v345 = vmul.f32 1.0, %v344
  %v346 = vrcp.pop %v317
  %v347 = vmul.f32 1.0, %v346
  %v348 = vrcp.pop %v318
  %v349 = vmul.f32 1.0, %v348
  %v350 = vrcp.pop %v319
  %v351 = vmul.f32 1.0, %v350
  %v352 = vmul.f32 %v321, 1.0614054
  %v353 = vmul.f32 %v323, 1.0614054
  %v354 = vmul.f32 %v325, 1.0614054
  %v355 = vmul.f32 %v327, 1.0614054
  %v356 = vmul.f32 %v329, 1.0614054
  %v357 = vmul.f32 %v331, 1.0614054
  %v358 = vmul.f32 %v333, 1.0614054
  %v359 = vmul.f32 %v335, 1.0614054
  %v360 = vmul.f32 %v337, 1.0614054
  %v361 = vmul.f32 %v339, 1.0614054
  %v362 = vmul.f32 %v341, 1.0614054
  %v363 = vmul.f32 %v343, 1.0614054
  %v364 = vmul.f32 %v345, 1.0614054
  %v365 = vmul.f32 %v347, 1.0614054
  %v366 = vmul.f32 %v349, 1.0614054
  %v367 = vmul.f32 %v351, 1.0614054
  %v368 = vadd.f32 %v352, -1.4531521
  %v369 = vadd.f32 %v353, -1.4531521
  %v370 = vadd.f32 %v354, -1.4531521
  %v371 = vadd.f32 %v355, -1.4531521
  %v372 = vadd.f32 %v356, -1.4531521
  %v373 = vadd.f32 %v357, -1.4531521
  %v374 = vadd.f32 %v358, -1.4531521
  %v375 = vadd.f32 %v359, -1.4531521
  %v376 = vadd.f32 %v360, -1.4531521
  %v377 = vadd.f32 %v361, -1.4531521
  %v378 = vadd.f32 %v362, -1.4531521
  %v379 = vadd.f32 %v363, -1.4531521
  %v380 = vadd.f32 %v364, -1.4531521
  %v381 = vadd.f32 %v365, -1.4531521
  %v382 = vadd.f32 %v366, -1.4531521
  %v383 = vadd.f32 %v367, -1.4531521
  %v384 = vmul.f32 %v368, %v321
  %v385 = vmul.f32 %v369, %v323
  %v386 = vmul.f32 %v370, %v325
  %v387 = vmul.f32 %v371, %v327
  %v388 = vmul.f32 %v372, %v329
  %v389 = vmul.f32 %v373, %v331
  %v390 = vmul.f32 %v374, %v333
  %v391 = vmul.f32 %v375, %v335
  %v392 = vmul.f32 %v376, %v337
  %v393 = vmul.f32 %v377, %v339
  %v394 = vmul.f32 %v378, %v341
  %v395 = vmul.f32 %v379, %v343
  %v396 = vmul.f32 %v380, %v345
  %v397 = vmul.f32 %v381, %v347
  %v398 = vmul.f32 %v382, %v349
  %v399 = vmul.f32 %v383, %v351
  %v400 = vadd.f32 %v384, 1.4214138
  %v401 = vadd.f32 %v385, 1.4214138
  %v402 = vadd.f32 %v386, 1.4214138
  %v403 = vadd.f32 %v387, 1.4214138
  %v404 = vadd.f32 %v388, 1.4214138
  %v405 = vadd.f32 %v389, 1.4214138
  %v406 = vadd.f32 %v390, 1.4214138
  %v407 = vadd.f32 %v391, 1.4214138
  %v408 = vadd.f32 %v392, 1.4214138
  %v409 = vadd.f32 %v393, 1.4214138
  %v410 = vadd.f32 %v394, 1.4214138
  %v411 = vadd.f32 %v395, 1.4214138
  %v412 = vadd.f32 %v396, 1.4214138
  %v413 = vadd.f32 %v397, 1.4214138
  %v414 = vadd.f32 %v398, 1.4214138
  %v415 = vadd.f32 %v399, 1.4214138
  %v416 = vmul.f32 %v400, %v321
  %v417 = vmul.f32 %v401, %v323
  %v418 = vmul.f32 %v402, %v325
  %v419 = vmul.f32 %v403, %v327
  %v420 = vmul.f32 %v404, %v329
  %v421 = vmul.f32 %v405, %v331
  %v422 = vmul.f32 %v406, %v333
  %v423 = vmul.f32 %v407, %v335
  %v424 = vmul.f32 %v408, %v337
  %v425 = vmul.f32 %v409, %v339
  %v426 = vmul.f32 %v410, %v341
  %v427 = vmul.f32 %v411, %v343
  %v428 = vmul.f32 %v412, %v345
  %v429 = vmul.f32 %v413, %v347
  %v430 = vmul.f32 %v414, %v349
  %v431 = vmul.f32 %v415, %v351
  %v432 = vadd.f32 %v416, -0.28449672
  %v433 = vadd.f32 %v417, -0.28449672
  %v434 = vadd.f32 %v418, -0.28449672
  %v435 = vadd.f32 %v419, -0.28449672
  %v436 = vadd.f32 %v420, -0.28449672
  %v437 = vadd.f32 %v421, -0.28449672
  %v438 = vadd.f32 %v422, -0.28449672
  %v439 = vadd.f32 %v423, -0.28449672
  %v440 = vadd.f32 %v424, -0.28449672
  %v441 = vadd.f32 %v425, -0.28449672
  %v442 = vadd.f32 %v426, -0.28449672
  %v443 = vadd.f32 %v427, -0.28449672
  %v444 = vadd.f32 %v428, -0.28449672
  %v445 = vadd.f32 %v429, -0.28449672
  %v446 = vadd.f32 %v430, -0.28449672
  %v447 = vadd.f32 %v431, -0.28449672
  %v448 = vmul.f32 %v432, %v321
  %v449 = vmul.f32 %v433, %v323
  %v450 = vmul.f32 %v434, %v325
  %v451 = vmul.f32 %v435, %v327
  %v452 = vmul.f32 %v436, %v329
  %v453 = vmul.f32 %v437, %v331
  %v454 = vmul.f32 %v438, %v333
  %v455 = vmul.f32 %v439, %v335
  %v456 = vmul.f32 %v440, %v337
  %v457 = vmul.f32 %v441, %v339
  %v458 = vmul.f32 %v442, %v341
  %v459 = vmul.f32 %v443, %v343
  %v460 = vmul.f32 %v444, %v345
  %v461 = vmul.f32 %v445, %v347
  %v462 = vmul.f32 %v446, %v349
  %v463 = vmul.f32 %v447, %v351
  %v464 = vadd.f32 %v448, 0.2548296
  %v465 = vadd.f32 %v449, 0.2548296
  %v466 = vadd.f32 %v450, 0.2548296
  %v467 = vadd.f32 %v451, 0.2548296
  %v468 = vadd.f32 %v452, 0.2548296
  %v469 = vadd.f32 %v453, 0.2548296
  %v470 = vadd.f32 %v454, 0.2548296
  %v471 = vadd.f32 %v455, 0.2548296
  %v472 = vadd.f32 %v456, 0.2548296
  %v473 = vadd.f32 %v457, 0.2548296
  %v474 = vadd.f32 %v458, 0.2548296
  %v475 = vadd.f32 %v459, 0.2548296
  %v476 = vadd.f32 %v460, 0.2548296
  %v477 = vadd.f32 %v461, 0.2548296
  %v478 = vadd.f32 %v462, 0.2548296
  %v479 = vadd.f32 %v463, 0.2548296
  %v480 = vmul.f32 %v464, %v321
  %v481 = vmul.f32 %v465, %v323
  %v482 = vmul.f32 %v466, %v325
  %v483 = vmul.f32 %v467, %v327
  %v484 = vmul.f32 %v468, %v329
  %v485 = vmul.f32 %v469, %v331
  %v486 = vmul.f32 %v470, %v333
  %v487 = vmul.f32 %v471, %v335
  %v488 = vmul.f32 %v472, %v337
  %v489 = vmul.f32 %v473, %v339
  %v490 = vmul.f32 %v474, %v341
  %v491 = vmul.f32 %v475, %v343
  %v492 = vmul.f32 %v476, %v345
  %v493 = vmul.f32 %v477, %v347
  %v494 = vmul.f32 %v478, %v349
  %v495 = vmul.f32 %v479, %v351
  %v496 = vsub.f32 0.0, %v272
  %v497 = vsub.f32 0.0, %v273
  %v498 = vsub.f32 0.0, %v274
  %v499 = vsub.f32 0.0, %v275
  %v500 = vsub.f32 0.0, %v276
  %v501 = vsub.f32 0.0, %v277
  %v502 = vsub.f32 0.0, %v278
  %v503 = vsub.f32 0.0, %v279
  %v504 = vsub.f32 0.0, %v280
  %v505 = vsub.f32 0.0, %v281
  %v506 = vsub.f32 0.0, %v282
  %v507 = vsub.f32 0.0, %v283
  %v508 = vsub.f32 0.0, %v284
  %v509 = vsub.f32 0.0, %v285
  %v510 = vsub.f32 0.0, %v286
  %v511 = vsub.f32 0.0, %v287
  %v512 = vmul.f32 %v496, %v272
  %v513 = vmul.f32 %v497, %v273
  %v514 = vmul.f32 %v498, %v274
  %v515 = vmul.f32 %v499, %v275
  %v516 = vmul.f32 %v500, %v276
  %v517 = vmul.f32 %v501, %v277
  %v518 = vmul.f32 %v502, %v278
  %v519 = vmul.f32 %v503, %v279
  %v520 = vmul.f32 %v504, %v280
  %v521 = vmul.f32 %v505, %v281
  %v522 = vmul.f32 %v506, %v282
  %v523 = vmul.f32 %v507, %v283
  %v524 = vmul.f32 %v508, %v284
  %v525 = vmul.f32 %v509, %v285
  %v526 = vmul.f32 %v510, %v286
  %v527 = vmul.f32 %v511, %v287
  %v528 = vmul.f32 %v512, 1.442695
  %v529 = vpow.pop %v528
  %v530 = vmul.f32 %v513, 1.442695
  %v531 = vpow.pop %v530
  %v532 = vmul.f32 %v514, 1.442695
  %v533 = vpow.pop %v532
  %v534 = vmul.f32 %v515, 1.442695
  %v535 = vpow.pop %v534
  %v536 = vmul.f32 %v516, 1.442695
  %v537 = vpow.pop %v536
  %v538 = vmul.f32 %v517, 1.442695
  %v539 = vpow.pop %v538
  %v540 = vmul.f32 %v518, 1.442695
  %v541 = vpow.pop %v540
  %v542 = vmul.f32 %v519, 1.442695
  %v543 = vpow.pop %v542
  %v544 = vmul.f32 %v520, 1.442695
  %v545 = vpow.pop %v544
  %v546 = vmul.f32 %v521, 1.442695
  %v547 = vpow.pop %v546
  %v548 = vmul.f32 %v522, 1.442695
  %v549 = vpow.pop %v548
  %v550 = vmul.f32 %v523, 1.442695
  %v551 = vpow.pop %v550
  %v552 = vmul.f32 %v524, 1.442695
  %v553 = vpow.pop %v552
  %v554 = vmul.f32 %v525, 1.442695
  %v555 = vpow.pop %v554
  %v556 = vmul.f32 %v526, 1.442695
  %v557 = vpow.pop %v556
  %v558 = vmul.f32 %v527, 1.442695
  %v559 = vpow.pop %v558
  %v560 = vmul.f32 %v480, %v529
  %v561 = vmul.f32 %v481, %v531
  %v562 = vmul.f32 %v482, %v533
  %v563 = vmul.f32 %v483, %v535
  %v564 = vmul.f32 %v484, %v537
  %v565 = vmul.f32 %v485, %v539
  %v566 = vmul.f32 %v486, %v541
  %v567 = vmul.f32 %v487, %v543
  %v568 = vmul.f32 %v488, %v545
  %v569 = vmul.f32 %v489, %v547
  %v570 = vmul.f32 %v490, %v549
  %v571 = vmul.f32 %v491, %v551
  %v572 = vmul.f32 %v492, %v553
  %v573 = vmul.f32 %v493, %v555
  %v574 = vmul.f32 %v494, %v557
  %v575 = vmul.f32 %v495, %v559
  %v576 = vsub.f32 1.0, %v560
  %v577 = vsub.f32 1.0, %v561
  %v578 = vsub.f32 1.0, %v562
  %v579 = vsub.f32 1.0, %v563
  %v580 = vsub.f32 1.0, %v564
  %v581 = vsub.f32 1.0, %v565
  %v582 = vsub.f32 1.0, %v566
  %v583 = vsub.f32 1.0, %v567
  %v584 = vsub.f32 1.0, %v568
  %v585 = vsub.f32 1.0, %v569
  %v586 = vsub.f32 1.0, %v570
  %v587 = vsub.f32 1.0, %v571
  %v588 = vsub.f32 1.0, %v572
  %v589 = vsub.f32 1.0, %v573
  %v590 = vsub.f32 1.0, %v574
  %v591 = vsub.f32 1.0, %v575
  %vm592 = vcmp.lt.f32.partialorder %v256, 0.0
  %vm593 = vcmp.lt.f32.partialorder %v257, 0.0
  %vm594 = vcmp.lt.f32.partialorder %v258, 0.0
  %vm595 = vcmp.lt.f32.partialorder %v259, 0.0
  %vm596 = vcmp.lt.f32.partialorder %v260, 0.0
  %vm597 = vcmp.lt.f32.partialorder %v261, 0.0
  %vm598 = vcmp.lt.f32.partialorder %v262, 0.0
  %vm599 = vcmp.lt.f32.partialorder %v263, 0.0
  %vm600 = vcmp.lt.f32.partialorder %v264, 0.0
  %vm601 = vcmp.lt.f32.partialorder %v265, 0.0
  %vm602 = vcmp.lt.f32.partialorder %v266, 0.0
  %vm603 = vcmp.lt.f32.partialorder %v267, 0.0
  %vm604 = vcmp.lt.f32.partialorder %v268, 0.0
  %vm605 = vcmp.lt.f32.partialorder %v269, 0.0
  %vm606 = vcmp.lt.f32.partialorder %v270, 0.0
  %vm607 = vcmp.lt.f32.partialorder %v271, 0.0
  %v608 = vsub.f32 0.0, %v576
  %v609 = vsub.f32 0.0, %v577
  %v610 = vsub.f32 0.0, %v578
  %v611 = vsub.f32 0.0, %v579
  %v612 = vsub.f32 0.0, %v580
  %v613 = vsub.f32 0.0, %v581
  %v614 = vsub.f32 0.0, %v582
  %v615 = vsub.f32 0.0, %v583
  %v616 = vsub.f32 0.0, %v584
  %v617 = vsub.f32 0.0, %v585
  %v618 = vsub.f32 0.0, %v586
  %v619 = vsub.f32 0.0, %v587
  %v620 = vsub.f32 0.0, %v588
  %v621 = vsub.f32 0.0, %v589
  %v622 = vsub.f32 0.0, %v590
  %v623 = vsub.f32 0.0, %v591
  %v624 = vsel %vm592, %v608, %v576
  %v625 = vsel %vm593, %v609, %v577
  %v626 = vsel %vm594, %v610, %v578
  %v627 = vsel %vm595, %v611, %v579
  %v628 = vsel %vm596, %v612, %v580
  %v629 = vsel %vm597, %v613, %v581
  %v630 = vsel %vm598, %v614, %v582
  %v631 = vsel %vm599, %v615, %v583
  %v632 = vsel %vm600, %v616, %v584
  %v633 = vsel %vm601, %v617, %v585
  %v634 = vsel %vm602, %v618, %v586
  %v635 = vsel %vm603, %v619, %v587
  %v636 = vsel %vm604, %v620, %v588
  %v637 = vsel %vm605, %v621, %v589
  %v638 = vsel %vm606, %v622, %v590
  %v639 = vsel %vm607, %v623, %v591
  %v640 = vadd.f32 %v624, 1.0
  %v641 = vadd.f32 %v625, 1.0
  %v642 = vadd.f32 %v626, 1.0
  %v643 = vadd.f32 %v627, 1.0
  %v644 = vadd.f32 %v628, 1.0
  %v645 = vadd.f32 %v629, 1.0
  %v646 = vadd.f32 %v630, 1.0
  %v647 = vadd.f32 %v631, 1.0
  %v648 = vadd.f32 %v632, 1.0
  %v649 = vadd.f32 %v633, 1.0
  %v650 = vadd.f32 %v634, 1.0
  %v651 = vadd.f32 %v635, 1.0
  %v652 = vadd.f32 %v636, 1.0
  %v653 = vadd.f32 %v637, 1.0
  %v654 = vadd.f32 %v638, 1.0
  %v655 = vadd.f32 %v639, 1.0
  %v656 = vmul.f32 %v240, %v640
  %v657 = vmul.f32 %v241, %v641
  %v658 = vmul.f32 %v242, %v642
  %v659 = vmul.f32 %v243, %v643
  %v660 = vmul.f32 %v244, %v644
  %v661 = vmul.f32 %v245, %v645
  %v662 = vmul.f32 %v246, %v646
  %v663 = vmul.f32 %v247, %v647
  %v664 = vmul.f32 %v248, %v648
  %v665 = vmul.f32 %v249, %v649
  %v666 = vmul.f32 %v250, %v650
  %v667 = vmul.f32 %v251, %v651
  %v668 = vmul.f32 %v252, %v652
  %v669 = vmul.f32 %v253, %v653
  %v670 = vmul.f32 %v254, %v654
  %v671 = vmul.f32 %v255, %v655
  %672 = vst [vmem:[%s4] sm:$0xff] %v656
  %673 = vst [vmem:[%s4 + $0x8] sm:$0xff] %v657
  %674 = vst [vmem:[%s4 + $0x10] sm:$0xff] %v658
  %675 = vst [vmem:[%s4 + $0x18] sm:$0xff] %v659
  %676 = vst [vmem:[%s4 + $0x20] sm:$0xff] %v660
  %677 = vst [vmem:[%s4 + $0x28] sm:$0xff] %v661
  %678 = vst [vmem:[%s4 + $0x30] sm:$0xff] %v662
  %679 = vst [vmem:[%s4 + $0x38] sm:$0xff] %v663
  %680 = vst [vmem:[%s4 + $0x40] sm:$0xff] %v664
  %681 = vst [vmem:[%s4 + $0x48] sm:$0xff] %v665
  %682 = vst [vmem:[%s4 + $0x50] sm:$0xff] %v666
  %683 = vst [vmem:[%s4 + $0x58] sm:$0xff] %v667
  %684 = vst [vmem:[%s4 + $0x60] sm:$0xff] %v668
  %685 = vst [vmem:[%s4 + $0x68] sm:$0xff] %v669
  %686 = vst [vmem:[%s4 + $0x70] sm:$0xff] %v670
  %687 = vst [vmem:[%s4 + $0x78] sm:$0xff] %v671
  // Predicated region
  $region18: #{coordinator_forward.18} parent=0 // pred_check
    _
  $region19: #{coordinator_forward.18} parent=0 // pred_check_branch
    %689 = sbr.rel (0) target = $region21
  $region20: #{coordinator_forward.18} parent=0 // pred_region
    _
  $region21: #{coordinator_forward.18} parent=0 // pred_fallthru
    _
  // Predicated region
  $region22: #{coordinator_forward.18} parent=0 // pred_check
    _
  $region23: #{coordinator_forward.18} parent=0 // pred_check_branch
    %691 = sbr.rel (0) target = $region25
  $region24: #{coordinator_forward.18} parent=0 // pred_region
    _
  $region25: #{coordinator_forward.18} parent=0 // pred_fallthru
    _

// kernel: coordinator_forward.19
$region0: #{coordinator_forward.19}
  #allocation0 [shape = 'u32[]', space=smem, size = 0x4, offset = 0x4, fixed_abs, tag = 'smem constant byte address 0x4 - core index']
  #allocation1 [shape = 'u32[144,128]{1,0:T(1,128)}', space=vmem, size = 0x12000, scoped, tag = 'internal scratch']
  %s0 = inlined_call_operand.vmem [shape: f32[128,640], index: 0, kind: input, shape index: {}]
  %s1 = inlined_call_operand.vmem [shape: f32[640,128], index: 1, kind: input, shape index: {}]
  %s2 = inlined_call_operand.vmem [shape: f32[1,128], index: 2, kind: input, shape index: {}]
  %s3 = inlined_call_operand.vmem [shape: f32[1,128], index: 3, kind: input, shape index: {}]
  %s4 = inlined_call_operand.vmem [shape: f32[128,128], index: 4, kind: output, shape index: {}]
  %s5 = sld [smem:[#allocation0]]
  $region26: #{coordinator_forward.19} parent=0
    _
  %s7 = ssub.s32 1, %s5
  %s8 = scalar_select 0, %s7, %s5
  // Predicated region
  $region2: #{coordinator_forward.19} parent=0 // pred_check
    _
  $region3: #{coordinator_forward.19} parent=0 // pred_check_branch
    %10 = sbr.rel (0) target = $region5
  $region4: #{coordinator_forward.19} parent=0 // pred_region
    _
  $region5: #{coordinator_forward.19} parent=0 // pred_fallthru
    _
  // Predicated region
  $region6: #{coordinator_forward.19} parent=0 // pred_check
    _
  $region7: #{coordinator_forward.19} parent=0 // pred_check_branch
    %12 = sbr.rel (0) target = $region9
  $region8: #{coordinator_forward.19} parent=0 // pred_region
    _
  $region9: #{coordinator_forward.19} parent=0 // pred_fallthru
    _
  // Predicated region
  $region10: #{coordinator_forward.19} parent=0 // pred_check
    _
  $region11: #{coordinator_forward.19} parent=0 // pred_check_branch
    %14 = sbr.rel (0) target = $region13
  $region12: #{coordinator_forward.19} parent=0 // pred_region
    _
  $region13: #{coordinator_forward.19} parent=0 // pred_fallthru
    _
  // Predicated region
  $region14: #{coordinator_forward.19} parent=0 // pred_check
    _
  $region15: #{coordinator_forward.19} parent=0 // pred_check_branch
    %16 = sbr.rel (0) target = $region17
  $region16: #{coordinator_forward.19} parent=0 // pred_region
    _
  $region17: #{coordinator_forward.19} parent=0 // pred_fallthru
    _
  %v17 = vld [vmem:[%s0] sm:$0xff]
  %v18 = vld [vmem:[%s0 + $0x8] sm:$0xff]
  %v19 = vld [vmem:[%s0 + $0x10] sm:$0xff]
  %v20 = vld [vmem:[%s0 + $0x18] sm:$0xff]
  %v21 = vld [vmem:[%s0 + $0x20] sm:$0xff]
  %v22 = vld [vmem:[%s0 + $0x28] sm:$0xff]
  %v23 = vld [vmem:[%s0 + $0x30] sm:$0xff]
  %v24 = vld [vmem:[%s0 + $0x38] sm:$0xff]
  %v25 = vld [vmem:[%s0 + $0x40] sm:$0xff]
  %v26 = vld [vmem:[%s0 + $0x48] sm:$0xff]
  %v27 = vld [vmem:[%s0 + $0x50] sm:$0xff]
  %v28 = vld [vmem:[%s0 + $0x58] sm:$0xff]
  %v29 = vld [vmem:[%s0 + $0x60] sm:$0xff]
  %v30 = vld [vmem:[%s0 + $0x68] sm:$0xff]
  %v31 = vld [vmem:[%s0 + $0x70] sm:$0xff]
  %v32 = vld [vmem:[%s0 + $0x78] sm:$0xff]
  %v33 = vld [vmem:[%s0 + $0x80] sm:$0xff]
  %v34 = vld [vmem:[%s0 + $0x88] sm:$0xff]
  %v35 = vld [vmem:[%s0 + $0x90] sm:$0xff]
  %v36 = vld [vmem:[%s0 + $0x98] sm:$0xff]
  %v37 = vld [vmem:[%s0 + $0xa0] sm:$0xff]
  %v38 = vld [vmem:[%s0 + $0xa8] sm:$0xff]
  %v39 = vld [vmem:[%s0 + $0xb0] sm:$0xff]
  %v40 = vld [vmem:[%s0 + $0xb8] sm:$0xff]
  %v41 = vld [vmem:[%s0 + $0xc0] sm:$0xff]
  %v42 = vld [vmem:[%s0 + $0xc8] sm:$0xff]
  %v43 = vld [vmem:[%s0 + $0xd0] sm:$0xff]
  %v44 = vld [vmem:[%s0 + $0xd8] sm:$0xff]
  %v45 = vld [vmem:[%s0 + $0xe0] sm:$0xff]
  %v46 = vld [vmem:[%s0 + $0xe8] sm:$0xff]
  %v47 = vld [vmem:[%s0 + $0xf0] sm:$0xff]
  %v48 = vld [vmem:[%s0 + $0xf8] sm:$0xff]
  %v49 = vld [vmem:[%s0 + $0x100] sm:$0xff]
  %v50 = vld [vmem:[%s0 + $0x108] sm:$0xff]
  %v51 = vld [vmem:[%s0 + $0x110] sm:$0xff]
  %v52 = vld [vmem:[%s0 + $0x118] sm:$0xff]
  %v53 = vld [vmem:[%s0 + $0x120] sm:$0xff]
  %v54 = vld [vmem:[%s0 + $0x128] sm:$0xff]
  %v55 = vld [vmem:[%s0 + $0x130] sm:$0xff]
  %v56 = vld [vmem:[%s0 + $0x138] sm:$0xff]
  %v57 = vld [vmem:[%s0 + $0x140] sm:$0xff]
  %v58 = vld [vmem:[%s0 + $0x148] sm:$0xff]
  %v59 = vld [vmem:[%s0 + $0x150] sm:$0xff]
  %v60 = vld [vmem:[%s0 + $0x158] sm:$0xff]
  %v61 = vld [vmem:[%s0 + $0x160] sm:$0xff]
  %v62 = vld [vmem:[%s0 + $0x168] sm:$0xff]
  %v63 = vld [vmem:[%s0 + $0x170] sm:$0xff]
  %v64 = vld [vmem:[%s0 + $0x178] sm:$0xff]
  %v65 = vld [vmem:[%s0 + $0x180] sm:$0xff]
  %v66 = vld [vmem:[%s0 + $0x188] sm:$0xff]
  %v67 = vld [vmem:[%s0 + $0x190] sm:$0xff]
  %v68 = vld [vmem:[%s0 + $0x198] sm:$0xff]
  %v69 = vld [vmem:[%s0 + $0x1a0] sm:$0xff]
  %v70 = vld [vmem:[%s0 + $0x1a8] sm:$0xff]
  %v71 = vld [vmem:[%s0 + $0x1b0] sm:$0xff]
  %v72 = vld [vmem:[%s0 + $0x1b8] sm:$0xff]
  %v73 = vld [vmem:[%s0 + $0x1c0] sm:$0xff]
  %v74 = vld [vmem:[%s0 + $0x1c8] sm:$0xff]
  %v75 = vld [vmem:[%s0 + $0x1d0] sm:$0xff]
  %v76 = vld [vmem:[%s0 + $0x1d8] sm:$0xff]
  %v77 = vld [vmem:[%s0 + $0x1e0] sm:$0xff]
  %v78 = vld [vmem:[%s0 + $0x1e8] sm:$0xff]
  %v79 = vld [vmem:[%s0 + $0x1f0] sm:$0xff]
  %v80 = vld [vmem:[%s0 + $0x1f8] sm:$0xff]
  %v81 = vld [vmem:[%s0 + $0x200] sm:$0xff]
  %v82 = vld [vmem:[%s0 + $0x208] sm:$0xff]
  %v83 = vld [vmem:[%s0 + $0x210] sm:$0xff]
  %v84 = vld [vmem:[%s0 + $0x218] sm:$0xff]
  %v85 = vld [vmem:[%s0 + $0x220] sm:$0xff]
  %v86 = vld [vmem:[%s0 + $0x228] sm:$0xff]
  %v87 = vld [vmem:[%s0 + $0x230] sm:$0xff]
  %v88 = vld [vmem:[%s0 + $0x238] sm:$0xff]
  %v89 = vld [vmem:[%s0 + $0x240] sm:$0xff]
  %v90 = vld [vmem:[%s0 + $0x248] sm:$0xff]
  %v91 = vld [vmem:[%s0 + $0x250] sm:$0xff]
  %v92 = vld [vmem:[%s0 + $0x258] sm:$0xff]
  %v93 = vld [vmem:[%s0 + $0x260] sm:$0xff]
  %v94 = vld [vmem:[%s0 + $0x268] sm:$0xff]
  %v95 = vld [vmem:[%s0 + $0x270] sm:$0xff]
  %v96 = vld [vmem:[%s0 + $0x278] sm:$0xff]
  %v97 = vld [vmem:[%s1] sm:$0xff]
  %v98 = vld [vmem:[%s1 + $0x8] sm:$0xff]
  %v99 = vld [vmem:[%s1 + $0x10] sm:$0xff]
  %v100 = vld [vmem:[%s1 + $0x18] sm:$0xff]
  %v101 = vld [vmem:[%s1 + $0x20] sm:$0xff]
  %v102 = vld [vmem:[%s1 + $0x28] sm:$0xff]
  %v103 = vld [vmem:[%s1 + $0x30] sm:$0xff]
  %v104 = vld [vmem:[%s1 + $0x38] sm:$0xff]
  %v105 = vld [vmem:[%s1 + $0x40] sm:$0xff]
  %v106 = vld [vmem:[%s1 + $0x48] sm:$0xff]
  %v107 = vld [vmem:[%s1 + $0x50] sm:$0xff]
  %v108 = vld [vmem:[%s1 + $0x58] sm:$0xff]
  %v109 = vld [vmem:[%s1 + $0x60] sm:$0xff]
  %v110 = vld [vmem:[%s1 + $0x68] sm:$0xff]
  %v111 = vld [vmem:[%s1 + $0x70] sm:$0xff]
  %v112 = vld [vmem:[%s1 + $0x78] sm:$0xff]
  %v113 = vld [vmem:[%s1 + $0x80] sm:$0xff]
  %v114 = vld [vmem:[%s1 + $0x88] sm:$0xff]
  %v115 = vld [vmem:[%s1 + $0x90] sm:$0xff]
  %v116 = vld [vmem:[%s1 + $0x98] sm:$0xff]
  %v117 = vld [vmem:[%s1 + $0xa0] sm:$0xff]
  %v118 = vld [vmem:[%s1 + $0xa8] sm:$0xff]
  %v119 = vld [vmem:[%s1 + $0xb0] sm:$0xff]
  %v120 = vld [vmem:[%s1 + $0xb8] sm:$0xff]
  %v121 = vld [vmem:[%s1 + $0xc0] sm:$0xff]
  %v122 = vld [vmem:[%s1 + $0xc8] sm:$0xff]
  %v123 = vld [vmem:[%s1 + $0xd0] sm:$0xff]
  %v124 = vld [vmem:[%s1 + $0xd8] sm:$0xff]
  %v125 = vld [vmem:[%s1 + $0xe0] sm:$0xff]
  %v126 = vld [vmem:[%s1 + $0xe8] sm:$0xff]
  %v127 = vld [vmem:[%s1 + $0xf0] sm:$0xff]
  %v128 = vld [vmem:[%s1 + $0xf8] sm:$0xff]
  %v129 = vld [vmem:[%s1 + $0x100] sm:$0xff]
  %v130 = vld [vmem:[%s1 + $0x108] sm:$0xff]
  %v131 = vld [vmem:[%s1 + $0x110] sm:$0xff]
  %v132 = vld [vmem:[%s1 + $0x118] sm:$0xff]
  %v133 = vld [vmem:[%s1 + $0x120] sm:$0xff]
  %v134 = vld [vmem:[%s1 + $0x128] sm:$0xff]
  %v135 = vld [vmem:[%s1 + $0x130] sm:$0xff]
  %v136 = vld [vmem:[%s1 + $0x138] sm:$0xff]
  %v137 = vld [vmem:[%s1 + $0x140] sm:$0xff]
  %v138 = vld [vmem:[%s1 + $0x148] sm:$0xff]
  %v139 = vld [vmem:[%s1 + $0x150] sm:$0xff]
  %v140 = vld [vmem:[%s1 + $0x158] sm:$0xff]
  %v141 = vld [vmem:[%s1 + $0x160] sm:$0xff]
  %v142 = vld [vmem:[%s1 + $0x168] sm:$0xff]
  %v143 = vld [vmem:[%s1 + $0x170] sm:$0xff]
  %v144 = vld [vmem:[%s1 + $0x178] sm:$0xff]
  %v145 = vld [vmem:[%s1 + $0x180] sm:$0xff]
  %v146 = vld [vmem:[%s1 + $0x188] sm:$0xff]
  %v147 = vld [vmem:[%s1 + $0x190] sm:$0xff]
  %v148 = vld [vmem:[%s1 + $0x198] sm:$0xff]
  %v149 = vld [vmem:[%s1 + $0x1a0] sm:$0xff]
  %v150 = vld [vmem:[%s1 + $0x1a8] sm:$0xff]
  %v151 = vld [vmem:[%s1 + $0x1b0] sm:$0xff]
  %v152 = vld [vmem:[%s1 + $0x1b8] sm:$0xff]
  %v153 = vld [vmem:[%s1 + $0x1c0] sm:$0xff]
  %v154 = vld [vmem:[%s1 + $0x1c8] sm:$0xff]
  %v155 = vld [vmem:[%s1 + $0x1d0] sm:$0xff]
  %v156 = vld [vmem:[%s1 + $0x1d8] sm:$0xff]
  %v157 = vld [vmem:[%s1 + $0x1e0] sm:$0xff]
  %v158 = vld [vmem:[%s1 + $0x1e8] sm:$0xff]
  %v159 = vld [vmem:[%s1 + $0x1f0] sm:$0xff]
  %v160 = vld [vmem:[%s1 + $0x1f8] sm:$0xff]
  %v161 = vld [vmem:[%s1 + $0x200] sm:$0xff]
  %v162 = vld [vmem:[%s1 + $0x208] sm:$0xff]
  %v163 = vld [vmem:[%s1 + $0x210] sm:$0xff]
  %v164 = vld [vmem:[%s1 + $0x218] sm:$0xff]
  %v165 = vld [vmem:[%s1 + $0x220] sm:$0xff]
  %v166 = vld [vmem:[%s1 + $0x228] sm:$0xff]
  %v167 = vld [vmem:[%s1 + $0x230] sm:$0xff]
  %v168 = vld [vmem:[%s1 + $0x238] sm:$0xff]
  %v169 = vld [vmem:[%s1 + $0x240] sm:$0xff]
  %v170 = vld [vmem:[%s1 + $0x248] sm:$0xff]
  %v171 = vld [vmem:[%s1 + $0x250] sm:$0xff]
  %v172 = vld [vmem:[%s1 + $0x258] sm:$0xff]
  %v173 = vld [vmem:[%s1 + $0x260] sm:$0xff]
  %v174 = vld [vmem:[%s1 + $0x268] sm:$0xff]
  %v175 = vld [vmem:[%s1 + $0x270] sm:$0xff]
  %v176 = vld [vmem:[%s1 + $0x278] sm:$0xff]
  %177 = vmatprep.subr.mxu0 0.0
  %178 = vmatpush1.msra.mxu0 %v97
  %179 = vmatprep.subr.mxu0 0.0
  %180 = vmatpush1.msra.mxu0 %v98
  %181 = vmatprep.subr.mxu0 0.0
  %182 = vmatpush1.msra.mxu0 %v99
  %183 = vmatprep.subr.mxu0 0.0
  %184 = vmatpush1.msra.mxu0 %v100
  %185 = vmatprep.subr.mxu0 0.0
  %186 = vmatpush1.msra.mxu0 %v101
  %187 = vmatprep.subr.mxu0 0.0
  %188 = vmatpush1.msra.mxu0 %v102
  %189 = vmatprep.subr.mxu0 0.0
  %190 = vmatpush1.msra.mxu0 %v103
  %191 = vmatprep.subr.mxu0 0.0
  %192 = vmatpush1.msra.mxu0 %v104
  %193 = vmatprep.subr.mxu0 0.0
  %194 = vmatpush1.msra.mxu0 %v105
  %195 = vmatprep.subr.mxu0 0.0
  %196 = vmatpush1.msra.mxu0 %v106
  %197 = vmatprep.subr.mxu0 0.0
  %198 = vmatpush1.msra.mxu0 %v107
  %199 = vmatprep.subr.mxu0 0.0
  %200 = vmatpush1.msra.mxu0 %v108
  %201 = vmatprep.subr.mxu0 0.0
  %202 = vmatpush1.msra.mxu0 %v109
  %203 = vmatprep.subr.mxu0 0.0
  %204 = vmatpush1.msra.mxu0 %v110
  %205 = vmatprep.subr.mxu0 0.0
  %206 = vmatpush1.msra.mxu0 %v111
  %207 = vmatprep.subr.mxu0 0.0
  %208 = vmatpush1.msra.mxu0 %v112
  %209 = vmatprep.subr.mxu0 0.0
  %210 = vmatpush1.msra.mxu0 %v113
  %211 = vmatprep.subr.mxu0 0.0
  %212 = vmatpush1.msra.mxu0 %v114
  %213 = vmatprep.subr.mxu0 0.0
  %214 = vmatpush1.msra.mxu0 %v115
  %215 = vmatprep.subr.mxu0 0.0
  %216 = vmatpush1.msra.mxu0 %v116
  %217 = vmatprep.subr.mxu0 0.0
  %218 = vmatpush1.msra.mxu0 %v117
  %219 = vmatprep.subr.mxu0 0.0
  %220 = vmatpush1.msra.mxu0 %v118
  %221 = vmatprep.subr.mxu0 0.0
  %222 = vmatpush1.msra.mxu0 %v119
  %223 = vmatprep.subr.mxu0 0.0
  %224 = vmatpush1.msra.mxu0 %v120
  %225 = vmatprep.subr.mxu0 0.0
  %226 = vmatpush1.msra.mxu0 %v121
  %227 = vmatprep.subr.mxu0 0.0
  %228 = vmatpush1.msra.mxu0 %v122
  %229 = vmatprep.subr.mxu0 0.0
  %230 = vmatpush1.msra.mxu0 %v123
  %231 = vmatprep.subr.mxu0 0.0
  %232 = vmatpush1.msra.mxu0 %v124
  %233 = vmatprep.subr.mxu0 0.0
  %234 = vmatpush1.msra.mxu0 %v125
  %235 = vmatprep.subr.mxu0 0.0
  %236 = vmatpush1.msra.mxu0 %v126
  %237 = vmatprep.subr.mxu0 0.0
  %238 = vmatpush1.msra.mxu0 %v127
  %239 = vmatprep.subr.mxu0 0.0
  %240 = vmatpush1.msra.mxu0 %v128
  %241 = vmatprep.mubr.f32.mxu0 %v18
  %242 = vmatmul.mubr.f32.gmra.mrb[0].mxu0 %v17
  %v243 = vpop.f32.mrb[0].mxu0
  %v244 = vadd.f32 0.0, %v243
  %v245 = vpop.f32.mrb[0].mxu0
  %246 = vmatprep.mubr.f32.mxu0 %v23
  %247 = vmatmul.mubr.f32.gmra.mrb[0].mxu0 %v22
  %v248 = vpop.f32.mrb[0].mxu0
  %v249 = vadd.f32 0.0, %v248
  %v250 = vpop.f32.mrb[0].mxu0
  %251 = vmatprep.mubr.f32.mxu0 %v28
  %252 = vmatmul.mubr.f32.gmra.mrb[0].mxu0 %v27
  %v253 = vpop.f32.mrb[0].mxu0
  %v254 = vadd.f32 0.0, %v253
  %v255 = vpop.f32.mrb[0].mxu0
  %256 = vmatprep.mubr.f32.mxu0 %v33
  %257 = vmatmul.mubr.f32.gmra.mrb[0].mxu0 %v32
  %v258 = vpop.f32.mrb[0].mxu0
  %v259 = vadd.f32 0.0, %v258
  %v260 = vpop.f32.mrb[0].mxu0
  %261 = vmatprep.mubr.f32.mxu0 %v38
  %262 = vmatmul.mubr.f32.gmra.mrb[0].mxu0 %v37
  %v263 = vpop.f32.mrb[0].mxu0
  %v264 = vadd.f32 0.0, %v263
  %v265 = vpop.f32.mrb[0].mxu0
  %266 = vmatprep.mubr.f32.mxu0 %v43
  %267 = vmatmul.mubr.f32.gmra.mrb[0].mxu0 %v42
  %v268 = vpop.f32.mrb[0].mxu0
  %v269 = vadd.f32 0.0, %v268
  %v270 = vpop.f32.mrb[0].mxu0
  %271 = vmatprep.mubr.f32.mxu0 %v48
  %272 = vmatmul.mubr.f32.gmra.mrb[0].mxu0 %v47
  %v273 = vpop.f32.mrb[0].mxu0
  %v274 = vadd.f32 0.0, %v273
  %v275 = vpop.f32.mrb[0].mxu0
  %276 = vmatprep.mubr.f32.mxu0 %v53
  %277 = vmatmul.mubr.f32.gmra.mrb[0].mxu0 %v52
  %v278 = vpop.f32.mrb[0].mxu0
  %v279 = vadd.f32 0.0, %v278
  %v280 = vpop.f32.mrb[0].mxu0
  %281 = vmatprep.mubr.f32.mxu0 %v58
  %282 = vmatmul.mubr.f32.gmra.mrb[0].mxu0 %v57
  %v283 = vpop.f32.mrb[0].mxu0
  %v284 = vadd.f32 0.0, %v283
  %v285 = vpop.f32.mrb[0].mxu0
  %286 = vmatprep.mubr.f32.mxu0 %v63
  %287 = vmatmul.mubr.f32.gmra.mrb[0].mxu0 %v62
  %v288 = vpop.f32.mrb[0].mxu0
  %v289 = vadd.f32 0.0, %v288
  %v290 = vpop.f32.mrb[0].mxu0
  %291 = vmatprep.mubr.f32.mxu0 %v68
  %292 = vmatmul.mubr.f32.gmra.mrb[0].mxu0 %v67
  %v293 = vpop.f32.mrb[0].mxu0
  %v294 = vadd.f32 0.0, %v293
  %v295 = vpop.f32.mrb[0].mxu0
  %296 = vmatprep.mubr.f32.mxu0 %v73
  %297 = vmatmul.mubr.f32.gmra.mrb[0].mxu0 %v72
  %v298 = vpop.f32.mrb[0].mxu0
  %v299 = vadd.f32 0.0, %v298
  %v300 = vpop.f32.mrb[0].mxu0
  %301 = vmatprep.mubr.f32.mxu0 %v78
  %302 = vmatmul.mubr.f32.gmra.mrb[0].mxu0 %v77
  %v303 = vpop.f32.mrb[0].mxu0
  %v304 = vadd.f32 0.0, %v303
  %v305 = vpop.f32.mrb[0].mxu0
  %306 = vmatprep.mubr.f32.mxu0 %v83
  %307 = vmatmul.mubr.f32.gmra.mrb[0].mxu0 %v82
  %v308 = vpop.f32.mrb[0].mxu0
  %v309 = vadd.f32 0.0, %v308
  %v310 = vpop.f32.mrb[0].mxu0
  %311 = vmatprep.mubr.f32.mxu0 %v88
  %312 = vmatmul.mubr.f32.gmra.mrb[0].mxu0 %v87
  %v313 = vpop.f32.mrb[0].mxu0
  %v314 = vadd.f32 0.0, %v313
  %v315 = vpop.f32.mrb[0].mxu0
  %316 = vmatprep.mubr.f32.mxu0 %v93
  %317 = vmatmul.mubr.f32.gmra.mrb[0].mxu0 %v92
  %v318 = vpop.f32.mrb[0].mxu0
  %v319 = vadd.f32 0.0, %v318
  %v320 = vpop.f32.mrb[0].mxu0
  %321 = vdwg.mxu0
  %322 = vmatprep.subr.mxu0 0.0
  %323 = vmatpush1.msra.mxu0 %v129
  %324 = vmatprep.subr.mxu0 0.0
  %325 = vmatpush1.msra.mxu0 %v130
  %326 = vmatprep.subr.mxu0 0.0
  %327 = vmatpush1.msra.mxu0 %v131
  %328 = vmatprep.subr.mxu0 0.0
  %329 = vmatpush1.msra.mxu0 %v132
  %330 = vmatprep.subr.mxu0 0.0
  %331 = vmatpush1.msra.mxu0 %v133
  %332 = vmatprep.subr.mxu0 0.0
  %333 = vmatpush1.msra.mxu0 %v134
  %334 = vmatprep.subr.mxu0 0.0
  %335 = vmatpush1.msra.mxu0 %v135
  %336 = vmatprep.subr.mxu0 0.0
  %337 = vmatpush1.msra.mxu0 %v136
  %338 = vmatprep.subr.mxu0 0.0
  %339 = vmatpush1.msra.mxu0 %v137
  %340 = vmatprep.subr.mxu0 0.0
  %341 = vmatpush1.msra.mxu0 %v138
  %342 = vmatprep.subr.mxu0 0.0
  %343 = vmatpush1.msra.mxu0 %v139
  %344 = vmatprep.subr.mxu0 0.0
  %345 = vmatpush1.msra.mxu0 %v140
  %346 = vmatprep.subr.mxu0 0.0
  %347 = vmatpush1.msra.mxu0 %v141
  %348 = vmatprep.subr.mxu0 0.0
  %349 = vmatpush1.msra.mxu0 %v142
  %350 = vmatprep.subr.mxu0 0.0
  %351 = vmatpush1.msra.mxu0 %v143
  %352 = vmatprep.subr.mxu0 0.0
  %353 = vmatpush1.msra.mxu0 %v144
  %354 = vmatprep.subr.mxu0 0.0
  %355 = vmatpush1.msra.mxu0 %v145
  %356 = vmatprep.subr.mxu0 0.0
  %357 = vmatpush1.msra.mxu0 %v146
  %358 = vmatprep.subr.mxu0 0.0
  %359 = vmatpush1.msra.mxu0 %v147
  %360 = vmatprep.subr.mxu0 0.0
  %361 = vmatpush1.msra.mxu0 %v148
  %362 = vmatprep.subr.mxu0 0.0
  %363 = vmatpush1.msra.mxu0 %v149
  %364 = vmatprep.subr.mxu0 0.0
  %365 = vmatpush1.msra.mxu0 %v150
  %366 = vmatprep.subr.mxu0 0.0
  %367 = vmatpush1.msra.mxu0 %v151
  %368 = vmatprep.subr.mxu0 0.0
  %369 = vmatpush1.msra.mxu0 %v152
  %370 = vmatprep.subr.mxu0 0.0
  %371 = vmatpush1.msra.mxu0 %v153
  %372 = vmatprep.subr.mxu0 0.0
  %373 = vmatpush1.msra.mxu0 %v154
  %374 = vmatprep.subr.mxu0 0.0
  %375 = vmatpush1.msra.mxu0 %v155
  %376 = vmatprep.subr.mxu0 0.0
  %377 = vmatpush1.msra.mxu0 %v156
  %378 = vmatprep.subr.mxu0 0.0
  %379 = vmatpush1.msra.mxu0 %v157
  %380 = vmatprep.subr.mxu0 0.0
  %381 = vmatpush1.msra.mxu0 %v158
  %382 = vmatprep.subr.mxu0 0.0
  %383 = vmatpush1.msra.mxu0 %v159
  %384 = vmatprep.subr.mxu0 0.0
  %385 = vmatpush1.msra.mxu0 %v160
  %386 = vmatprep.mubr.f32.mxu0 %v20
  %387 = vmatmul.mubr.f32.gmra.mrb[0].mxu0 %v19
  %v388 = vpop.f32.mrb[0].mxu0
  %v389 = vadd.f32 %v244, %v388
  %v390 = vpop.f32.mrb[0].mxu0
  %391 = vmatprep.mubr.f32.mxu0 %v25
  %392 = vmatmul.mubr.f32.gmra.mrb[0].mxu0 %v24
  %v393 = vpop.f32.mrb[0].mxu0
  %v394 = vadd.f32 %v249, %v393
  %v395 = vpop.f32.mrb[0].mxu0
  %396 = vmatprep.mubr.f32.mxu0 %v30
  %397 = vmatmul.mubr.f32.gmra.mrb[0].mxu0 %v29
  %v398 = vpop.f32.mrb[0].mxu0
  %v399 = vadd.f32 %v254, %v398
  %v400 = vpop.f32.mrb[0].mxu0
  %401 = vmatprep.mubr.f32.mxu0 %v35
  %402 = vmatmul.mubr.f32.gmra.mrb[0].mxu0 %v34
  %v403 = vpop.f32.mrb[0].mxu0
  %v404 = vadd.f32 %v259, %v403
  %v405 = vpop.f32.mrb[0].mxu0
  %406 = vmatprep.mubr.f32.mxu0 %v40
  %407 = vmatmul.mubr.f32.gmra.mrb[0].mxu0 %v39
  %v408 = vpop.f32.mrb[0].mxu0
  %v409 = vadd.f32 %v264, %v408
  %v410 = vpop.f32.mrb[0].mxu0
  %411 = vmatprep.mubr.f32.mxu0 %v45
  %412 = vmatmul.mubr.f32.gmra.mrb[0].mxu0 %v44
  %v413 = vpop.f32.mrb[0].mxu0
  %v414 = vadd.f32 %v269, %v413
  %v415 = vpop.f32.mrb[0].mxu0
  %416 = vmatprep.mubr.f32.mxu0 %v50
  %417 = vmatmul.mubr.f32.gmra.mrb[0].mxu0 %v49
  %v418 = vpop.f32.mrb[0].mxu0
  %v419 = vadd.f32 %v274, %v418
  %v420 = vpop.f32.mrb[0].mxu0
  %421 = vmatprep.mubr.f32.mxu0 %v55
  %422 = vmatmul.mubr.f32.gmra.mrb[0].mxu0 %v54
  %v423 = vpop.f32.mrb[0].mxu0
  %v424 = vadd.f32 %v279, %v423
  %v425 = vpop.f32.mrb[0].mxu0
  %426 = vmatprep.mubr.f32.mxu0 %v60
  %427 = vmatmul.mubr.f32.gmra.mrb[0].mxu0 %v59
  %v428 = vpop.f32.mrb[0].mxu0
  %v429 = vadd.f32 %v284, %v428
  %v430 = vpop.f32.mrb[0].mxu0
  %431 = vmatprep.mubr.f32.mxu0 %v65
  %432 = vmatmul.mubr.f32.gmra.mrb[0].mxu0 %v64
  %v433 = vpop.f32.mrb[0].mxu0
  %v434 = vadd.f32 %v289, %v433
  %v435 = vpop.f32.mrb[0].mxu0
  %436 = vmatprep.mubr.f32.mxu0 %v70
  %437 = vmatmul.mubr.f32.gmra.mrb[0].mxu0 %v69
  %v438 = vpop.f32.mrb[0].mxu0
  %v439 = vadd.f32 %v294, %v438
  %v440 = vpop.f32.mrb[0].mxu0
  %441 = vmatprep.mubr.f32.mxu0 %v75
  %442 = vmatmul.mubr.f32.gmra.mrb[0].mxu0 %v74
  %v443 = vpop.f32.mrb[0].mxu0
  %v444 = vadd.f32 %v299, %v443
  %v445 = vpop.f32.mrb[0].mxu0
  %446 = vmatprep.mubr.f32.mxu0 %v80
  %447 = vmatmul.mubr.f32.gmra.mrb[0].mxu0 %v79
  %v448 = vpop.f32.mrb[0].mxu0
  %v449 = vadd.f32 %v304, %v448
  %v450 = vpop.f32.mrb[0].mxu0
  %451 = vmatprep.mubr.f32.mxu0 %v85
  %452 = vmatmul.mubr.f32.gmra.mrb[0].mxu0 %v84
  %v453 = vpop.f32.mrb[0].mxu0
  %v454 = vadd.f32 %v309, %v453
  %v455 = vpop.f32.mrb[0].mxu0
  %456 = vmatprep.mubr.f32.mxu0 %v90
  %457 = vmatmul.mubr.f32.gmra.mrb[0].mxu0 %v89
  %v458 = vpop.f32.mrb[0].mxu0
  %v459 = vadd.f32 %v314, %v458
  %v460 = vpop.f32.mrb[0].mxu0
  %461 = vmatprep.mubr.f32.mxu0 %v95
  %462 = vmatmul.mubr.f32.gmra.mrb[0].mxu0 %v94
  %v463 = vpop.f32.mrb[0].mxu0
  %v464 = vadd.f32 %v319, %v463
  %v465 = vpop.f32.mrb[0].mxu0
  %466 = vdwg.mxu0
  %467 = vmatprep.subr.mxu0 0.0
  %468 = vmatpush1.msra.mxu0 %v161
  %469 = vmatprep.subr.mxu0 0.0
  %470 = vmatpush1.msra.mxu0 %v162
  %471 = vmatprep.subr.mxu0 0.0
  %472 = vmatpush1.msra.mxu0 %v163
  %473 = vmatprep.subr.mxu0 0.0
  %474 = vmatpush1.msra.mxu0 %v164
  %475 = vmatprep.subr.mxu0 0.0
  %476 = vmatpush1.msra.mxu0 %v165
  %477 = vmatprep.subr.mxu0 0.0
  %478 = vmatpush1.msra.mxu0 %v166
  %479 = vmatprep.subr.mxu0 0.0
  %480 = vmatpush1.msra.mxu0 %v167
  %481 = vmatprep.subr.mxu0 0.0
  %482 = vmatpush1.msra.mxu0 %v168
  %483 = vmatprep.subr.mxu0 0.0
  %484 = vmatpush1.msra.mxu0 %v169
  %485 = vmatprep.subr.mxu0 0.0
  %486 = vmatpush1.msra.mxu0 %v170
  %487 = vmatprep.subr.mxu0 0.0
  %488 = vmatpush1.msra.mxu0 %v171
  %489 = vmatprep.subr.mxu0 0.0
  %490 = vmatpush1.msra.mxu0 %v172
  %491 = vmatprep.subr.mxu0 0.0
  %492 = vmatpush1.msra.mxu0 %v173
  %493 = vmatprep.subr.mxu0 0.0
  %494 = vmatpush1.msra.mxu0 %v174
  %495 = vmatprep.subr.mxu0 0.0
  %496 = vmatpush1.msra.mxu0 %v175
  %497 = vmatprep.subr.mxu0 0.0
  %498 = vmatpush1.msra.mxu0 %v176
  %499 = vmatprep.subr.mxu0 0.0
  %500 = vmatpush1.msra.mxu0 0.0
  %501 = vmatprep.subr.mxu0 0.0
  %502 = vmatpush1.msra.mxu0 0.0
  %503 = vmatprep.subr.mxu0 0.0
  %504 = vmatpush1.msra.mxu0 0.0
  %505 = vmatprep.subr.mxu0 0.0
  %506 = vmatpush1.msra.mxu0 0.0
  %507 = vmatprep.subr.mxu0 0.0
  %508 = vmatpush1.msra.mxu0 0.0
  %509 = vmatprep.subr.mxu0 0.0
  %510 = vmatpush1.msra.mxu0 0.0
  %511 = vmatprep.subr.mxu0 0.0
  %512 = vmatpush1.msra.mxu0 0.0
  %513 = vmatprep.subr.mxu0 0.0
  %514 = vmatpush1.msra.mxu0 0.0
  %515 = vmatprep.subr.mxu0 0.0
  %516 = vmatpush1.msra.mxu0 0.0
  %517 = vmatprep.subr.mxu0 0.0
  %518 = vmatpush1.msra.mxu0 0.0
  %519 = vmatprep.subr.mxu0 0.0
  %520 = vmatpush1.msra.mxu0 0.0
  %521 = vmatprep.subr.mxu0 0.0
  %522 = vmatpush1.msra.mxu0 0.0
  %523 = vmatprep.subr.mxu0 0.0
  %524 = vmatpush1.msra.mxu0 0.0
  %525 = vmatprep.subr.mxu0 0.0
  %526 = vmatpush1.msra.mxu0 0.0
  %527 = vmatprep.subr.mxu0 0.0
  %528 = vmatpush1.msra.mxu0 0.0
  %529 = vmatprep.subr.mxu0 0.0
  %530 = vmatpush1.msra.mxu0 0.0
  %531 = vmatprep.mubr.f32.mxu0 0.0
  %532 = vmatmul.mubr.f32.gmra.mrb[0].mxu0 %v21
  %v533 = vpop.f32.mrb[0].mxu0
  %v534 = vadd.f32 %v389, %v533
  %v535 = vpop.f32.mrb[0].mxu0
  %536 = vmatprep.mubr.f32.mxu0 0.0
  %537 = vmatmul.mubr.f32.gmra.mrb[0].mxu0 %v26
  %v538 = vpop.f32.mrb[0].mxu0
  %v539 = vadd.f32 %v394, %v538
  %v540 = vpop.f32.mrb[0].mxu0
  %541 = vmatprep.mubr.f32.mxu0 0.0
  %542 = vmatmul.mubr.f32.gmra.mrb[0].mxu0 %v31
  %v543 = vpop.f32.mrb[0].mxu0
  %v544 = vadd.f32 %v399, %v543
  %v545 = vpop.f32.mrb[0].mxu0
  %546 = vmatprep.mubr.f32.mxu0 0.0
  %547 = vmatmul.mubr.f32.gmra.mrb[0].mxu0 %v36
  %v548 = vpop.f32.mrb[0].mxu0
  %v549 = vadd.f32 %v404, %v548
  %v550 = vpop.f32.mrb[0].mxu0
  %551 = vmatprep.mubr.f32.mxu0 0.0
  %552 = vmatmul.mubr.f32.gmra.mrb[0].mxu0 %v41
  %v553 = vpop.f32.mrb[0].mxu0
  %v554 = vadd.f32 %v409, %v553
  %v555 = vpop.f32.mrb[0].mxu0
  %556 = vmatprep.mubr.f32.mxu0 0.0
  %557 = vmatmul.mubr.f32.gmra.mrb[0].mxu0 %v46
  %v558 = vpop.f32.mrb[0].mxu0
  %v559 = vadd.f32 %v414, %v558
  %v560 = vpop.f32.mrb[0].mxu0
  %561 = vmatprep.mubr.f32.mxu0 0.0
  %562 = vmatmul.mubr.f32.gmra.mrb[0].mxu0 %v51
  %v563 = vpop.f32.mrb[0].mxu0
  %v564 = vadd.f32 %v419, %v563
  %v565 = vpop.f32.mrb[0].mxu0
  %566 = vmatprep.mubr.f32.mxu0 0.0
  %567 = vmatmul.mubr.f32.gmra.mrb[0].mxu0 %v56
  %v568 = vpop.f32.mrb[0].mxu0
  %v569 = vadd.f32 %v424, %v568
  %v570 = vpop.f32.mrb[0].mxu0
  %571 = vmatprep.mubr.f32.mxu0 0.0
  %572 = vmatmul.mubr.f32.gmra.mrb[0].mxu0 %v61
  %v573 = vpop.f32.mrb[0].mxu0
  %v574 = vadd.f32 %v429, %v573
  %v575 = vpop.f32.mrb[0].mxu0
  %576 = vmatprep.mubr.f32.mxu0 0.0
  %577 = vmatmul.mubr.f32.gmra.mrb[0].mxu0 %v66
  %v578 = vpop.f32.mrb[0].mxu0
  %v579 = vadd.f32 %v434, %v578
  %v580 = vpop.f32.mrb[0].mxu0
  %581 = vmatprep.mubr.f32.mxu0 0.0
  %582 = vmatmul.mubr.f32.gmra.mrb[0].mxu0 %v71
  %v583 = vpop.f32.mrb[0].mxu0
  %v584 = vadd.f32 %v439, %v583
  %v585 = vpop.f32.mrb[0].mxu0
  %586 = vmatprep.mubr.f32.mxu0 0.0
  %587 = vmatmul.mubr.f32.gmra.mrb[0].mxu0 %v76
  %v588 = vpop.f32.mrb[0].mxu0
  %v589 = vadd.f32 %v444, %v588
  %v590 = vpop.f32.mrb[0].mxu0
  %591 = vmatprep.mubr.f32.mxu0 0.0
  %592 = vmatmul.mubr.f32.gmra.mrb[0].mxu0 %v81
  %v593 = vpop.f32.mrb[0].mxu0
  %v594 = vadd.f32 %v449, %v593
  %v595 = vpop.f32.mrb[0].mxu0
  %596 = vmatprep.mubr.f32.mxu0 0.0
  %597 = vmatmul.mubr.f32.gmra.mrb[0].mxu0 %v86
  %v598 = vpop.f32.mrb[0].mxu0
  %v599 = vadd.f32 %v454, %v598
  %v600 = vpop.f32.mrb[0].mxu0
  %601 = vmatprep.mubr.f32.mxu0 0.0
  %602 = vmatmul.mubr.f32.gmra.mrb[0].mxu0 %v91
  %v603 = vpop.f32.mrb[0].mxu0
  %v604 = vadd.f32 %v459, %v603
  %v605 = vpop.f32.mrb[0].mxu0
  %606 = vmatprep.mubr.f32.mxu0 0.0
  %607 = vmatmul.mubr.f32.gmra.mrb[0].mxu0 %v96
  %v608 = vpop.f32.mrb[0].mxu0
  %v609 = vadd.f32 %v464, %v608
  %v610 = vpop.f32.mrb[0].mxu0
  %611 = vdwg.mxu0
  %v612 = vld [vmem:[%s2] sm:$0x1]
  %v614 = vlaneseq
  %v615 = vshrl.u32 %v614, 7
  %v616 = vsub.s32 0, %v615
  %v617 = vrot.slane %v612, %v616
  %v619 = vmul.f32 %v534, %v617
  %v620 = vmul.f32 %v539, %v617
  %v621 = vmul.f32 %v544, %v617
  %v622 = vmul.f32 %v549, %v617
  %v623 = vmul.f32 %v554, %v617
  %v624 = vmul.f32 %v559, %v617
  %v625 = vmul.f32 %v564, %v617
  %v626 = vmul.f32 %v569, %v617
  %v627 = vmul.f32 %v574, %v617
  %v628 = vmul.f32 %v579, %v617
  %v629 = vmul.f32 %v584, %v617
  %v630 = vmul.f32 %v589, %v617
  %v631 = vmul.f32 %v594, %v617
  %v632 = vmul.f32 %v599, %v617
  %v633 = vmul.f32 %v604, %v617
  %v634 = vmul.f32 %v609, %v617
  %v635 = vld [vmem:[%s3] sm:$0x1]
  %v637 = vlaneseq
  %v638 = vshrl.u32 %v637, 7
  %v639 = vsub.s32 0, %v638
  %v640 = vrot.slane %v635, %v639
  %v642 = vadd.f32 %v619, %v640
  %v643 = vadd.f32 %v620, %v640
  %v644 = vadd.f32 %v621, %v640
  %v645 = vadd.f32 %v622, %v640
  %v646 = vadd.f32 %v623, %v640
  %v647 = vadd.f32 %v624, %v640
  %v648 = vadd.f32 %v625, %v640
  %v649 = vadd.f32 %v626, %v640
  %v650 = vadd.f32 %v627, %v640
  %v651 = vadd.f32 %v628, %v640
  %v652 = vadd.f32 %v629, %v640
  %v653 = vadd.f32 %v630, %v640
  %v654 = vadd.f32 %v631, %v640
  %v655 = vadd.f32 %v632, %v640
  %v656 = vadd.f32 %v633, %v640
  %v657 = vadd.f32 %v634, %v640
  %658 = vst [vmem:[%s4] sm:$0xff] %v642
  %659 = vst [vmem:[%s4 + $0x8] sm:$0xff] %v643
  %660 = vst [vmem:[%s4 + $0x10] sm:$0xff] %v644
  %661 = vst [vmem:[%s4 + $0x18] sm:$0xff] %v645
  %662 = vst [vmem:[%s4 + $0x20] sm:$0xff] %v646
  %663 = vst [vmem:[%s4 + $0x28] sm:$0xff] %v647
  %664 = vst [vmem:[%s4 + $0x30] sm:$0xff] %v648
  %665 = vst [vmem:[%s4 + $0x38] sm:$0xff] %v649
  %666 = vst [vmem:[%s4 + $0x40] sm:$0xff] %v650
  %667 = vst [vmem:[%s4 + $0x48] sm:$0xff] %v651
  %668 = vst [vmem:[%s4 + $0x50] sm:$0xff] %v652
  %669 = vst [vmem:[%s4 + $0x58] sm:$0xff] %v653
  %670 = vst [vmem:[%s4 + $0x60] sm:$0xff] %v654
  %671 = vst [vmem:[%s4 + $0x68] sm:$0xff] %v655
  %672 = vst [vmem:[%s4 + $0x70] sm:$0xff] %v656
  %673 = vst [vmem:[%s4 + $0x78] sm:$0xff] %v657
  // Predicated region
  $region18: #{coordinator_forward.19} parent=0 // pred_check
    _
  $region19: #{coordinator_forward.19} parent=0 // pred_check_branch
    %675 = sbr.rel (0) target = $region21
  $region20: #{coordinator_forward.19} parent=0 // pred_region
    _
  $region21: #{coordinator_forward.19} parent=0 // pred_fallthru
    _
  // Predicated region
  $region22: #{coordinator_forward.19} parent=0 // pred_check
    _
  $region23: #{coordinator_forward.19} parent=0 // pred_check_branch
    %677 = sbr.rel (0) target = $region25
  $region24: #{coordinator_forward.19} parent=0 // pred_region
    _
  $region25: #{coordinator_forward.19} parent=0 // pred_fallthru
    _

// kernel: coordinator_forward.21
$region0: #{coordinator_forward.21}
  #allocation0 [shape = 'u32[]', space=smem, size = 0x4, offset = 0x4, fixed_abs, tag = 'smem constant byte address 0x4 - core index']
  #allocation1 [shape = 'u32[144,128]{1,0:T(1,128)}', space=vmem, size = 0x12000, scoped, tag = 'internal scratch']
  %s0 = inlined_call_operand.vmem [shape: f32[32,640], index: 0, kind: input, shape index: {}]
  %s1 = inlined_call_operand.vmem [shape: f32[640,128], index: 1, kind: input, shape index: {}]
  %s2 = inlined_call_operand.vmem [shape: f32[1,128], index: 2, kind: input, shape index: {}]
  %s3 = inlined_call_operand.vmem [shape: f32[1,128], index: 3, kind: input, shape index: {}]
  %s4 = inlined_call_operand.vmem [shape: f32[32,128], index: 4, kind: output, shape index: {}]
  %s5 = sld [smem:[#allocation0]]
  $region26: #{coordinator_forward.21} parent=0
    _
  %s7 = ssub.s32 1, %s5
  %s8 = scalar_select 0, %s7, %s5
  // Predicated region
  $region2: #{coordinator_forward.21} parent=0 // pred_check
    _
  $region3: #{coordinator_forward.21} parent=0 // pred_check_branch
    %10 = sbr.rel (0) target = $region5
  $region4: #{coordinator_forward.21} parent=0 // pred_region
    _
  $region5: #{coordinator_forward.21} parent=0 // pred_fallthru
    _
  // Predicated region
  $region6: #{coordinator_forward.21} parent=0 // pred_check
    _
  $region7: #{coordinator_forward.21} parent=0 // pred_check_branch
    %12 = sbr.rel (0) target = $region9
  $region8: #{coordinator_forward.21} parent=0 // pred_region
    _
  $region9: #{coordinator_forward.21} parent=0 // pred_fallthru
    _
  // Predicated region
  $region10: #{coordinator_forward.21} parent=0 // pred_check
    _
  $region11: #{coordinator_forward.21} parent=0 // pred_check_branch
    %14 = sbr.rel (0) target = $region13
  $region12: #{coordinator_forward.21} parent=0 // pred_region
    _
  $region13: #{coordinator_forward.21} parent=0 // pred_fallthru
    _
  // Predicated region
  $region14: #{coordinator_forward.21} parent=0 // pred_check
    _
  $region15: #{coordinator_forward.21} parent=0 // pred_check_branch
    %16 = sbr.rel (0) target = $region17
  $region16: #{coordinator_forward.21} parent=0 // pred_region
    _
  $region17: #{coordinator_forward.21} parent=0 // pred_fallthru
    _
  %v17 = vld [vmem:[%s0] sm:$0xff]
  %v18 = vld [vmem:[%s0 + $0x8] sm:$0xff]
  %v19 = vld [vmem:[%s0 + $0x10] sm:$0xff]
  %v20 = vld [vmem:[%s0 + $0x18] sm:$0xff]
  %v21 = vld [vmem:[%s0 + $0x20] sm:$0xff]
  %v22 = vld [vmem:[%s0 + $0x28] sm:$0xff]
  %v23 = vld [vmem:[%s0 + $0x30] sm:$0xff]
  %v24 = vld [vmem:[%s0 + $0x38] sm:$0xff]
  %v25 = vld [vmem:[%s0 + $0x40] sm:$0xff]
  %v26 = vld [vmem:[%s0 + $0x48] sm:$0xff]
  %v27 = vld [vmem:[%s0 + $0x50] sm:$0xff]
  %v28 = vld [vmem:[%s0 + $0x58] sm:$0xff]
  %v29 = vld [vmem:[%s0 + $0x60] sm:$0xff]
  %v30 = vld [vmem:[%s0 + $0x68] sm:$0xff]
  %v31 = vld [vmem:[%s0 + $0x70] sm:$0xff]
  %v32 = vld [vmem:[%s0 + $0x78] sm:$0xff]
  %v33 = vld [vmem:[%s0 + $0x80] sm:$0xff]
  %v34 = vld [vmem:[%s0 + $0x88] sm:$0xff]
  %v35 = vld [vmem:[%s0 + $0x90] sm:$0xff]
  %v36 = vld [vmem:[%s0 + $0x98] sm:$0xff]
  %v37 = vld [vmem:[%s1] sm:$0xff]
  %v38 = vld [vmem:[%s1 + $0x8] sm:$0xff]
  %v39 = vld [vmem:[%s1 + $0x10] sm:$0xff]
  %v40 = vld [vmem:[%s1 + $0x18] sm:$0xff]
  %v41 = vld [vmem:[%s1 + $0x20] sm:$0xff]
  %v42 = vld [vmem:[%s1 + $0x28] sm:$0xff]
  %v43 = vld [vmem:[%s1 + $0x30] sm:$0xff]
  %v44 = vld [vmem:[%s1 + $0x38] sm:$0xff]
  %v45 = vld [vmem:[%s1 + $0x40] sm:$0xff]
  %v46 = vld [vmem:[%s1 + $0x48] sm:$0xff]
  %v47 = vld [vmem:[%s1 + $0x50] sm:$0xff]
  %v48 = vld [vmem:[%s1 + $0x58] sm:$0xff]
  %v49 = vld [vmem:[%s1 + $0x60] sm:$0xff]
  %v50 = vld [vmem:[%s1 + $0x68] sm:$0xff]
  %v51 = vld [vmem:[%s1 + $0x70] sm:$0xff]
  %v52 = vld [vmem:[%s1 + $0x78] sm:$0xff]
  %v53 = vld [vmem:[%s1 + $0x80] sm:$0xff]
  %v54 = vld [vmem:[%s1 + $0x88] sm:$0xff]
  %v55 = vld [vmem:[%s1 + $0x90] sm:$0xff]
  %v56 = vld [vmem:[%s1 + $0x98] sm:$0xff]
  %v57 = vld [vmem:[%s1 + $0xa0] sm:$0xff]
  %v58 = vld [vmem:[%s1 + $0xa8] sm:$0xff]
  %v59 = vld [vmem:[%s1 + $0xb0] sm:$0xff]
  %v60 = vld [vmem:[%s1 + $0xb8] sm:$0xff]
  %v61 = vld [vmem:[%s1 + $0xc0] sm:$0xff]
  %v62 = vld [vmem:[%s1 + $0xc8] sm:$0xff]
  %v63 = vld [vmem:[%s1 + $0xd0] sm:$0xff]
  %v64 = vld [vmem:[%s1 + $0xd8] sm:$0xff]
  %v65 = vld [vmem:[%s1 + $0xe0] sm:$0xff]
  %v66 = vld [vmem:[%s1 + $0xe8] sm:$0xff]
  %v67 = vld [vmem:[%s1 + $0xf0] sm:$0xff]
  %v68 = vld [vmem:[%s1 + $0xf8] sm:$0xff]
  %v69 = vld [vmem:[%s1 + $0x100] sm:$0xff]
  %v70 = vld [vmem:[%s1 + $0x108] sm:$0xff]
  %v71 = vld [vmem:[%s1 + $0x110] sm:$0xff]
  %v72 = vld [vmem:[%s1 + $0x118] sm:$0xff]
  %v73 = vld [vmem:[%s1 + $0x120] sm:$0xff]
  %v74 = vld [vmem:[%s1 + $0x128] sm:$0xff]
  %v75 = vld [vmem:[%s1 + $0x130] sm:$0xff]
  %v76 = vld [vmem:[%s1 + $0x138] sm:$0xff]
  %v77 = vld [vmem:[%s1 + $0x140] sm:$0xff]
  %v78 = vld [vmem:[%s1 + $0x148] sm:$0xff]
  %v79 = vld [vmem:[%s1 + $0x150] sm:$0xff]
  %v80 = vld [vmem:[%s1 + $0x158] sm:$0xff]
  %v81 = vld [vmem:[%s1 + $0x160] sm:$0xff]
  %v82 = vld [vmem:[%s1 + $0x168] sm:$0xff]
  %v83 = vld [vmem:[%s1 + $0x170] sm:$0xff]
  %v84 = vld [vmem:[%s1 + $0x178] sm:$0xff]
  %v85 = vld [vmem:[%s1 + $0x180] sm:$0xff]
  %v86 = vld [vmem:[%s1 + $0x188] sm:$0xff]
  %v87 = vld [vmem:[%s1 + $0x190] sm:$0xff]
  %v88 = vld [vmem:[%s1 + $0x198] sm:$0xff]
  %v89 = vld [vmem:[%s1 + $0x1a0] sm:$0xff]
  %v90 = vld [vmem:[%s1 + $0x1a8] sm:$0xff]
  %v91 = vld [vmem:[%s1 + $0x1b0] sm:$0xff]
  %v92 = vld [vmem:[%s1 + $0x1b8] sm:$0xff]
  %v93 = vld [vmem:[%s1 + $0x1c0] sm:$0xff]
  %v94 = vld [vmem:[%s1 + $0x1c8] sm:$0xff]
  %v95 = vld [vmem:[%s1 + $0x1d0] sm:$0xff]
  %v96 = vld [vmem:[%s1 + $0x1d8] sm:$0xff]
  %v97 = vld [vmem:[%s1 + $0x1e0] sm:$0xff]
  %v98 = vld [vmem:[%s1 + $0x1e8] sm:$0xff]
  %v99 = vld [vmem:[%s1 + $0x1f0] sm:$0xff]
  %v100 = vld [vmem:[%s1 + $0x1f8] sm:$0xff]
  %v101 = vld [vmem:[%s1 + $0x200] sm:$0xff]
  %v102 = vld [vmem:[%s1 + $0x208] sm:$0xff]
  %v103 = vld [vmem:[%s1 + $0x210] sm:$0xff]
  %v104 = vld [vmem:[%s1 + $0x218] sm:$0xff]
  %v105 = vld [vmem:[%s1 + $0x220] sm:$0xff]
  %v106 = vld [vmem:[%s1 + $0x228] sm:$0xff]
  %v107 = vld [vmem:[%s1 + $0x230] sm:$0xff]
  %v108 = vld [vmem:[%s1 + $0x238] sm:$0xff]
  %v109 = vld [vmem:[%s1 + $0x240] sm:$0xff]
  %v110 = vld [vmem:[%s1 + $0x248] sm:$0xff]
  %v111 = vld [vmem:[%s1 + $0x250] sm:$0xff]
  %v112 = vld [vmem:[%s1 + $0x258] sm:$0xff]
  %v113 = vld [vmem:[%s1 + $0x260] sm:$0xff]
  %v114 = vld [vmem:[%s1 + $0x268] sm:$0xff]
  %v115 = vld [vmem:[%s1 + $0x270] sm:$0xff]
  %v116 = vld [vmem:[%s1 + $0x278] sm:$0xff]
  %117 = vmatprep.subr.mxu0 0.0
  %118 = vmatpush1.msra.mxu0 %v37
  %119 = vmatprep.subr.mxu0 0.0
  %120 = vmatpush1.msra.mxu0 %v38
  %121 = vmatprep.subr.mxu0 0.0
  %122 = vmatpush1.msra.mxu0 %v39
  %123 = vmatprep.subr.mxu0 0.0
  %124 = vmatpush1.msra.mxu0 %v40
  %125 = vmatprep.subr.mxu0 0.0
  %126 = vmatpush1.msra.mxu0 %v41
  %127 = vmatprep.subr.mxu0 0.0
  %128 = vmatpush1.msra.mxu0 %v42
  %129 = vmatprep.subr.mxu0 0.0
  %130 = vmatpush1.msra.mxu0 %v43
  %131 = vmatprep.subr.mxu0 0.0
  %132 = vmatpush1.msra.mxu0 %v44
  %133 = vmatprep.subr.mxu0 0.0
  %134 = vmatpush1.msra.mxu0 %v45
  %135 = vmatprep.subr.mxu0 0.0
  %136 = vmatpush1.msra.mxu0 %v46
  %137 = vmatprep.subr.mxu0 0.0
  %138 = vmatpush1.msra.mxu0 %v47
  %139 = vmatprep.subr.mxu0 0.0
  %140 = vmatpush1.msra.mxu0 %v48
  %141 = vmatprep.subr.mxu0 0.0
  %142 = vmatpush1.msra.mxu0 %v49
  %143 = vmatprep.subr.mxu0 0.0
  %144 = vmatpush1.msra.mxu0 %v50
  %145 = vmatprep.subr.mxu0 0.0
  %146 = vmatpush1.msra.mxu0 %v51
  %147 = vmatprep.subr.mxu0 0.0
  %148 = vmatpush1.msra.mxu0 %v52
  %149 = vmatprep.subr.mxu0 0.0
  %150 = vmatpush1.msra.mxu0 %v53
  %151 = vmatprep.subr.mxu0 0.0
  %152 = vmatpush1.msra.mxu0 %v54
  %153 = vmatprep.subr.mxu0 0.0
  %154 = vmatpush1.msra.mxu0 %v55
  %155 = vmatprep.subr.mxu0 0.0
  %156 = vmatpush1.msra.mxu0 %v56
  %157 = vmatprep.subr.mxu0 0.0
  %158 = vmatpush1.msra.mxu0 %v57
  %159 = vmatprep.subr.mxu0 0.0
  %160 = vmatpush1.msra.mxu0 %v58
  %161 = vmatprep.subr.mxu0 0.0
  %162 = vmatpush1.msra.mxu0 %v59
  %163 = vmatprep.subr.mxu0 0.0
  %164 = vmatpush1.msra.mxu0 %v60
  %165 = vmatprep.subr.mxu0 0.0
  %166 = vmatpush1.msra.mxu0 %v61
  %167 = vmatprep.subr.mxu0 0.0
  %168 = vmatpush1.msra.mxu0 %v62
  %169 = vmatprep.subr.mxu0 0.0
  %170 = vmatpush1.msra.mxu0 %v63
  %171 = vmatprep.subr.mxu0 0.0
  %172 = vmatpush1.msra.mxu0 %v64
  %173 = vmatprep.subr.mxu0 0.0
  %174 = vmatpush1.msra.mxu0 %v65
  %175 = vmatprep.subr.mxu0 0.0
  %176 = vmatpush1.msra.mxu0 %v66
  %177 = vmatprep.subr.mxu0 0.0
  %178 = vmatpush1.msra.mxu0 %v67
  %179 = vmatprep.subr.mxu0 0.0
  %180 = vmatpush1.msra.mxu0 %v68
  %181 = vmatprep.mubr.f32.mxu0 %v18
  %182 = vmatmul.mubr.f32.gmra.mrb[0].mxu0 %v17
  %v183 = vpop.f32.mrb[0].mxu0
  %v184 = vadd.f32 0.0, %v183
  %v185 = vpop.f32.mrb[0].mxu0
  %186 = vmatprep.mubr.f32.mxu0 %v23
  %187 = vmatmul.mubr.f32.gmra.mrb[0].mxu0 %v22
  %v188 = vpop.f32.mrb[0].mxu0
  %v189 = vadd.f32 0.0, %v188
  %v190 = vpop.f32.mrb[0].mxu0
  %191 = vmatprep.mubr.f32.mxu0 %v28
  %192 = vmatmul.mubr.f32.gmra.mrb[0].mxu0 %v27
  %v193 = vpop.f32.mrb[0].mxu0
  %v194 = vadd.f32 0.0, %v193
  %v195 = vpop.f32.mrb[0].mxu0
  %196 = vmatprep.mubr.f32.mxu0 %v33
  %197 = vmatmul.mubr.f32.gmra.mrb[0].mxu0 %v32
  %v198 = vpop.f32.mrb[0].mxu0
  %v199 = vadd.f32 0.0, %v198
  %v200 = vpop.f32.mrb[0].mxu0
  %201 = vdwg.mxu0
  %202 = vmatprep.subr.mxu0 0.0
  %203 = vmatpush1.msra.mxu0 %v69
  %204 = vmatprep.subr.mxu0 0.0
  %205 = vmatpush1.msra.mxu0 %v70
  %206 = vmatprep.subr.mxu0 0.0
  %207 = vmatpush1.msra.mxu0 %v71
  %208 = vmatprep.subr.mxu0 0.0
  %209 = vmatpush1.msra.mxu0 %v72
  %210 = vmatprep.subr.mxu0 0.0
  %211 = vmatpush1.msra.mxu0 %v73
  %212 = vmatprep.subr.mxu0 0.0
  %213 = vmatpush1.msra.mxu0 %v74
  %214 = vmatprep.subr.mxu0 0.0
  %215 = vmatpush1.msra.mxu0 %v75
  %216 = vmatprep.subr.mxu0 0.0
  %217 = vmatpush1.msra.mxu0 %v76
  %218 = vmatprep.subr.mxu0 0.0
  %219 = vmatpush1.msra.mxu0 %v77
  %220 = vmatprep.subr.mxu0 0.0
  %221 = vmatpush1.msra.mxu0 %v78
  %222 = vmatprep.subr.mxu0 0.0
  %223 = vmatpush1.msra.mxu0 %v79
  %224 = vmatprep.subr.mxu0 0.0
  %225 = vmatpush1.msra.mxu0 %v80
  %226 = vmatprep.subr.mxu0 0.0
  %227 = vmatpush1.msra.mxu0 %v81
  %228 = vmatprep.subr.mxu0 0.0
  %229 = vmatpush1.msra.mxu0 %v82
  %230 = vmatprep.subr.mxu0 0.0
  %231 = vmatpush1.msra.mxu0 %v83
  %232 = vmatprep.subr.mxu0 0.0
  %233 = vmatpush1.msra.mxu0 %v84
  %234 = vmatprep.subr.mxu0 0.0
  %235 = vmatpush1.msra.mxu0 %v85
  %236 = vmatprep.subr.mxu0 0.0
  %237 = vmatpush1.msra.mxu0 %v86
  %238 = vmatprep.subr.mxu0 0.0
  %239 = vmatpush1.msra.mxu0 %v87
  %240 = vmatprep.subr.mxu0 0.0
  %241 = vmatpush1.msra.mxu0 %v88
  %242 = vmatprep.subr.mxu0 0.0
  %243 = vmatpush1.msra.mxu0 %v89
  %244 = vmatprep.subr.mxu0 0.0
  %245 = vmatpush1.msra.mxu0 %v90
  %246 = vmatprep.subr.mxu0 0.0
  %247 = vmatpush1.msra.mxu0 %v91
  %248 = vmatprep.subr.mxu0 0.0
  %249 = vmatpush1.msra.mxu0 %v92
  %250 = vmatprep.subr.mxu0 0.0
  %251 = vmatpush1.msra.mxu0 %v93
  %252 = vmatprep.subr.mxu0 0.0
  %253 = vmatpush1.msra.mxu0 %v94
  %254 = vmatprep.subr.mxu0 0.0
  %255 = vmatpush1.msra.mxu0 %v95
  %256 = vmatprep.subr.mxu0 0.0
  %257 = vmatpush1.msra.mxu0 %v96
  %258 = vmatprep.subr.mxu0 0.0
  %259 = vmatpush1.msra.mxu0 %v97
  %260 = vmatprep.subr.mxu0 0.0
  %261 = vmatpush1.msra.mxu0 %v98
  %262 = vmatprep.subr.mxu0 0.0
  %263 = vmatpush1.msra.mxu0 %v99
  %264 = vmatprep.subr.mxu0 0.0
  %265 = vmatpush1.msra.mxu0 %v100
  %266 = vmatprep.mubr.f32.mxu0 %v20
  %267 = vmatmul.mubr.f32.gmra.mrb[0].mxu0 %v19
  %v268 = vpop.f32.mrb[0].mxu0
  %v269 = vadd.f32 %v184, %v268
  %v270 = vpop.f32.mrb[0].mxu0
  %271 = vmatprep.mubr.f32.mxu0 %v25
  %272 = vmatmul.mubr.f32.gmra.mrb[0].mxu0 %v24
  %v273 = vpop.f32.mrb[0].mxu0
  %v274 = vadd.f32 %v189, %v273
  %v275 = vpop.f32.mrb[0].mxu0
  %276 = vmatprep.mubr.f32.mxu0 %v30
  %277 = vmatmul.mubr.f32.gmra.mrb[0].mxu0 %v29
  %v278 = vpop.f32.mrb[0].mxu0
  %v279 = vadd.f32 %v194, %v278
  %v280 = vpop.f32.mrb[0].mxu0
  %281 = vmatprep.mubr.f32.mxu0 %v35
  %282 = vmatmul.mubr.f32.gmra.mrb[0].mxu0 %v34
  %v283 = vpop.f32.mrb[0].mxu0
  %v284 = vadd.f32 %v199, %v283
  %v285 = vpop.f32.mrb[0].mxu0
  %286 = vdwg.mxu0
  %287 = vmatprep.subr.mxu0 0.0
  %288 = vmatpush1.msra.mxu0 %v101
  %289 = vmatprep.subr.mxu0 0.0
  %290 = vmatpush1.msra.mxu0 %v102
  %291 = vmatprep.subr.mxu0 0.0
  %292 = vmatpush1.msra.mxu0 %v103
  %293 = vmatprep.subr.mxu0 0.0
  %294 = vmatpush1.msra.mxu0 %v104
  %295 = vmatprep.subr.mxu0 0.0
  %296 = vmatpush1.msra.mxu0 %v105
  %297 = vmatprep.subr.mxu0 0.0
  %298 = vmatpush1.msra.mxu0 %v106
  %299 = vmatprep.subr.mxu0 0.0
  %300 = vmatpush1.msra.mxu0 %v107
  %301 = vmatprep.subr.mxu0 0.0
  %302 = vmatpush1.msra.mxu0 %v108
  %303 = vmatprep.subr.mxu0 0.0
  %304 = vmatpush1.msra.mxu0 %v109
  %305 = vmatprep.subr.mxu0 0.0
  %306 = vmatpush1.msra.mxu0 %v110
  %307 = vmatprep.subr.mxu0 0.0
  %308 = vmatpush1.msra.mxu0 %v111
  %309 = vmatprep.subr.mxu0 0.0
  %310 = vmatpush1.msra.mxu0 %v112
  %311 = vmatprep.subr.mxu0 0.0
  %312 = vmatpush1.msra.mxu0 %v113
  %313 = vmatprep.subr.mxu0 0.0
  %314 = vmatpush1.msra.mxu0 %v114
  %315 = vmatprep.subr.mxu0 0.0
  %316 = vmatpush1.msra.mxu0 %v115
  %317 = vmatprep.subr.mxu0 0.0
  %318 = vmatpush1.msra.mxu0 %v116
  %319 = vmatprep.subr.mxu0 0.0
  %320 = vmatpush1.msra.mxu0 0.0
  %321 = vmatprep.subr.mxu0 0.0
  %322 = vmatpush1.msra.mxu0 0.0
  %323 = vmatprep.subr.mxu0 0.0
  %324 = vmatpush1.msra.mxu0 0.0
  %325 = vmatprep.subr.mxu0 0.0
  %326 = vmatpush1.msra.mxu0 0.0
  %327 = vmatprep.subr.mxu0 0.0
  %328 = vmatpush1.msra.mxu0 0.0
  %329 = vmatprep.subr.mxu0 0.0
  %330 = vmatpush1.msra.mxu0 0.0
  %331 = vmatprep.subr.mxu0 0.0
  %332 = vmatpush1.msra.mxu0 0.0
  %333 = vmatprep.subr.mxu0 0.0
  %334 = vmatpush1.msra.mxu0 0.0
  %335 = vmatprep.subr.mxu0 0.0
  %336 = vmatpush1.msra.mxu0 0.0
  %337 = vmatprep.subr.mxu0 0.0
  %338 = vmatpush1.msra.mxu0 0.0
  %339 = vmatprep.subr.mxu0 0.0
  %340 = vmatpush1.msra.mxu0 0.0
  %341 = vmatprep.subr.mxu0 0.0
  %342 = vmatpush1.msra.mxu0 0.0
  %343 = vmatprep.subr.mxu0 0.0
  %344 = vmatpush1.msra.mxu0 0.0
  %345 = vmatprep.subr.mxu0 0.0
  %346 = vmatpush1.msra.mxu0 0.0
  %347 = vmatprep.subr.mxu0 0.0
  %348 = vmatpush1.msra.mxu0 0.0
  %349 = vmatprep.subr.mxu0 0.0
  %350 = vmatpush1.msra.mxu0 0.0
  %351 = vmatprep.mubr.f32.mxu0 0.0
  %352 = vmatmul.mubr.f32.gmra.mrb[0].mxu0 %v21
  %v353 = vpop.f32.mrb[0].mxu0
  %v354 = vadd.f32 %v269, %v353
  %v355 = vpop.f32.mrb[0].mxu0
  %356 = vmatprep.mubr.f32.mxu0 0.0
  %357 = vmatmul.mubr.f32.gmra.mrb[0].mxu0 %v26
  %v358 = vpop.f32.mrb[0].mxu0
  %v359 = vadd.f32 %v274, %v358
  %v360 = vpop.f32.mrb[0].mxu0
  %361 = vmatprep.mubr.f32.mxu0 0.0
  %362 = vmatmul.mubr.f32.gmra.mrb[0].mxu0 %v31
  %v363 = vpop.f32.mrb[0].mxu0
  %v364 = vadd.f32 %v279, %v363
  %v365 = vpop.f32.mrb[0].mxu0
  %366 = vmatprep.mubr.f32.mxu0 0.0
  %367 = vmatmul.mubr.f32.gmra.mrb[0].mxu0 %v36
  %v368 = vpop.f32.mrb[0].mxu0
  %v369 = vadd.f32 %v284, %v368
  %v370 = vpop.f32.mrb[0].mxu0
  %371 = vdwg.mxu0
  %v372 = vld [vmem:[%s2] sm:$0x1]
  %v374 = vlaneseq
  %v375 = vshrl.u32 %v374, 7
  %v376 = vsub.s32 0, %v375
  %v377 = vrot.slane %v372, %v376
  %v379 = vmul.f32 %v354, %v377
  %v380 = vmul.f32 %v359, %v377
  %v381 = vmul.f32 %v364, %v377
  %v382 = vmul.f32 %v369, %v377
  %v383 = vld [vmem:[%s3] sm:$0x1]
  %v385 = vlaneseq
  %v386 = vshrl.u32 %v385, 7
  %v387 = vsub.s32 0, %v386
  %v388 = vrot.slane %v383, %v387
  %v390 = vadd.f32 %v379, %v388
  %v391 = vadd.f32 %v380, %v388
  %v392 = vadd.f32 %v381, %v388
  %v393 = vadd.f32 %v382, %v388
  %394 = vst [vmem:[%s4] sm:$0xff] %v390
  %395 = vst [vmem:[%s4 + $0x8] sm:$0xff] %v391
  %396 = vst [vmem:[%s4 + $0x10] sm:$0xff] %v392
  %397 = vst [vmem:[%s4 + $0x18] sm:$0xff] %v393
  // Predicated region
  $region18: #{coordinator_forward.21} parent=0 // pred_check
    _
  $region19: #{coordinator_forward.21} parent=0 // pred_check_branch
    %399 = sbr.rel (0) target = $region21
  $region20: #{coordinator_forward.21} parent=0 // pred_region
    _
  $region21: #{coordinator_forward.21} parent=0 // pred_fallthru
    _
  // Predicated region
  $region22: #{coordinator_forward.21} parent=0 // pred_check
    _
  $region23: #{coordinator_forward.21} parent=0 // pred_check_branch
    %401 = sbr.rel (0) target = $region25
  $region24: #{coordinator_forward.21} parent=0 // pred_region
    _
  $region25: #{coordinator_forward.21} parent=0 // pred_fallthru
    _

// kernel: coordinator_forward.20
$region0: #{coordinator_forward.20}
  #allocation0 [shape = 'u32[]', space=smem, size = 0x4, offset = 0x4, fixed_abs, tag = 'smem constant byte address 0x4 - core index']
  #allocation1 [shape = 'u32[144,128]{1,0:T(1,128)}', space=vmem, size = 0x12000, scoped, tag = 'internal scratch']
  %s0 = inlined_call_operand.vmem [shape: f32[32,256], index: 0, kind: input, shape index: {}]
  %s1 = inlined_call_operand.vmem [shape: f32[256,128], index: 1, kind: input, shape index: {}]
  %s2 = inlined_call_operand.vmem [shape: f32[1,128], index: 2, kind: input, shape index: {}]
  %s3 = inlined_call_operand.vmem [shape: f32[1,128], index: 3, kind: input, shape index: {}]
  %s4 = inlined_call_operand.vmem [shape: f32[32,128], index: 4, kind: output, shape index: {}]
  %s5 = sld [smem:[#allocation0]]
  $region26: #{coordinator_forward.20} parent=0
    _
  %s7 = ssub.s32 1, %s5
  %s8 = scalar_select 0, %s7, %s5
  // Predicated region
  $region2: #{coordinator_forward.20} parent=0 // pred_check
    _
  $region3: #{coordinator_forward.20} parent=0 // pred_check_branch
    %10 = sbr.rel (0) target = $region5
  $region4: #{coordinator_forward.20} parent=0 // pred_region
    _
  $region5: #{coordinator_forward.20} parent=0 // pred_fallthru
    _
  // Predicated region
  $region6: #{coordinator_forward.20} parent=0 // pred_check
    _
  $region7: #{coordinator_forward.20} parent=0 // pred_check_branch
    %12 = sbr.rel (0) target = $region9
  $region8: #{coordinator_forward.20} parent=0 // pred_region
    _
  $region9: #{coordinator_forward.20} parent=0 // pred_fallthru
    _
  // Predicated region
  $region10: #{coordinator_forward.20} parent=0 // pred_check
    _
  $region11: #{coordinator_forward.20} parent=0 // pred_check_branch
    %14 = sbr.rel (0) target = $region13
  $region12: #{coordinator_forward.20} parent=0 // pred_region
    _
  $region13: #{coordinator_forward.20} parent=0 // pred_fallthru
    _
  // Predicated region
  $region14: #{coordinator_forward.20} parent=0 // pred_check
    _
  $region15: #{coordinator_forward.20} parent=0 // pred_check_branch
    %16 = sbr.rel (0) target = $region17
  $region16: #{coordinator_forward.20} parent=0 // pred_region
    _
  $region17: #{coordinator_forward.20} parent=0 // pred_fallthru
    _
  %v17 = vld [vmem:[%s0] sm:$0xff]
  %v18 = vld [vmem:[%s0 + $0x8] sm:$0xff]
  %v19 = vld [vmem:[%s0 + $0x10] sm:$0xff]
  %v20 = vld [vmem:[%s0 + $0x18] sm:$0xff]
  %v21 = vld [vmem:[%s0 + $0x20] sm:$0xff]
  %v22 = vld [vmem:[%s0 + $0x28] sm:$0xff]
  %v23 = vld [vmem:[%s0 + $0x30] sm:$0xff]
  %v24 = vld [vmem:[%s0 + $0x38] sm:$0xff]
  %v25 = vld [vmem:[%s1] sm:$0xff]
  %v26 = vld [vmem:[%s1 + $0x8] sm:$0xff]
  %v27 = vld [vmem:[%s1 + $0x10] sm:$0xff]
  %v28 = vld [vmem:[%s1 + $0x18] sm:$0xff]
  %v29 = vld [vmem:[%s1 + $0x20] sm:$0xff]
  %v30 = vld [vmem:[%s1 + $0x28] sm:$0xff]
  %v31 = vld [vmem:[%s1 + $0x30] sm:$0xff]
  %v32 = vld [vmem:[%s1 + $0x38] sm:$0xff]
  %v33 = vld [vmem:[%s1 + $0x40] sm:$0xff]
  %v34 = vld [vmem:[%s1 + $0x48] sm:$0xff]
  %v35 = vld [vmem:[%s1 + $0x50] sm:$0xff]
  %v36 = vld [vmem:[%s1 + $0x58] sm:$0xff]
  %v37 = vld [vmem:[%s1 + $0x60] sm:$0xff]
  %v38 = vld [vmem:[%s1 + $0x68] sm:$0xff]
  %v39 = vld [vmem:[%s1 + $0x70] sm:$0xff]
  %v40 = vld [vmem:[%s1 + $0x78] sm:$0xff]
  %v41 = vld [vmem:[%s1 + $0x80] sm:$0xff]
  %v42 = vld [vmem:[%s1 + $0x88] sm:$0xff]
  %v43 = vld [vmem:[%s1 + $0x90] sm:$0xff]
  %v44 = vld [vmem:[%s1 + $0x98] sm:$0xff]
  %v45 = vld [vmem:[%s1 + $0xa0] sm:$0xff]
  %v46 = vld [vmem:[%s1 + $0xa8] sm:$0xff]
  %v47 = vld [vmem:[%s1 + $0xb0] sm:$0xff]
  %v48 = vld [vmem:[%s1 + $0xb8] sm:$0xff]
  %v49 = vld [vmem:[%s1 + $0xc0] sm:$0xff]
  %v50 = vld [vmem:[%s1 + $0xc8] sm:$0xff]
  %v51 = vld [vmem:[%s1 + $0xd0] sm:$0xff]
  %v52 = vld [vmem:[%s1 + $0xd8] sm:$0xff]
  %v53 = vld [vmem:[%s1 + $0xe0] sm:$0xff]
  %v54 = vld [vmem:[%s1 + $0xe8] sm:$0xff]
  %v55 = vld [vmem:[%s1 + $0xf0] sm:$0xff]
  %v56 = vld [vmem:[%s1 + $0xf8] sm:$0xff]
  %57 = vmatprep.subr.mxu0 0.0
  %58 = vmatpush1.msra.mxu0 %v25
  %59 = vmatprep.subr.mxu0 0.0
  %60 = vmatpush1.msra.mxu0 %v26
  %61 = vmatprep.subr.mxu0 0.0
  %62 = vmatpush1.msra.mxu0 %v27
  %63 = vmatprep.subr.mxu0 0.0
  %64 = vmatpush1.msra.mxu0 %v28
  %65 = vmatprep.subr.mxu0 0.0
  %66 = vmatpush1.msra.mxu0 %v29
  %67 = vmatprep.subr.mxu0 0.0
  %68 = vmatpush1.msra.mxu0 %v30
  %69 = vmatprep.subr.mxu0 0.0
  %70 = vmatpush1.msra.mxu0 %v31
  %71 = vmatprep.subr.mxu0 0.0
  %72 = vmatpush1.msra.mxu0 %v32
  %73 = vmatprep.subr.mxu0 0.0
  %74 = vmatpush1.msra.mxu0 %v33
  %75 = vmatprep.subr.mxu0 0.0
  %76 = vmatpush1.msra.mxu0 %v34
  %77 = vmatprep.subr.mxu0 0.0
  %78 = vmatpush1.msra.mxu0 %v35
  %79 = vmatprep.subr.mxu0 0.0
  %80 = vmatpush1.msra.mxu0 %v36
  %81 = vmatprep.subr.mxu0 0.0
  %82 = vmatpush1.msra.mxu0 %v37
  %83 = vmatprep.subr.mxu0 0.0
  %84 = vmatpush1.msra.mxu0 %v38
  %85 = vmatprep.subr.mxu0 0.0
  %86 = vmatpush1.msra.mxu0 %v39
  %87 = vmatprep.subr.mxu0 0.0
  %88 = vmatpush1.msra.mxu0 %v40
  %89 = vmatprep.subr.mxu0 0.0
  %90 = vmatpush1.msra.mxu0 %v41
  %91 = vmatprep.subr.mxu0 0.0
  %92 = vmatpush1.msra.mxu0 %v42
  %93 = vmatprep.subr.mxu0 0.0
  %94 = vmatpush1.msra.mxu0 %v43
  %95 = vmatprep.subr.mxu0 0.0
  %96 = vmatpush1.msra.mxu0 %v44
  %97 = vmatprep.subr.mxu0 0.0
  %98 = vmatpush1.msra.mxu0 %v45
  %99 = vmatprep.subr.mxu0 0.0
  %100 = vmatpush1.msra.mxu0 %v46
  %101 = vmatprep.subr.mxu0 0.0
  %102 = vmatpush1.msra.mxu0 %v47
  %103 = vmatprep.subr.mxu0 0.0
  %104 = vmatpush1.msra.mxu0 %v48
  %105 = vmatprep.subr.mxu0 0.0
  %106 = vmatpush1.msra.mxu0 %v49
  %107 = vmatprep.subr.mxu0 0.0
  %108 = vmatpush1.msra.mxu0 %v50
  %109 = vmatprep.subr.mxu0 0.0
  %110 = vmatpush1.msra.mxu0 %v51
  %111 = vmatprep.subr.mxu0 0.0
  %112 = vmatpush1.msra.mxu0 %v52
  %113 = vmatprep.subr.mxu0 0.0
  %114 = vmatpush1.msra.mxu0 %v53
  %115 = vmatprep.subr.mxu0 0.0
  %116 = vmatpush1.msra.mxu0 %v54
  %117 = vmatprep.subr.mxu0 0.0
  %118 = vmatpush1.msra.mxu0 %v55
  %119 = vmatprep.subr.mxu0 0.0
  %120 = vmatpush1.msra.mxu0 %v56
  %121 = vmatprep.mubr.f32.mxu0 %v18
  %122 = vmatmul.mubr.f32.gmra.mrb[0].mxu0 %v17
  %v123 = vpop.f32.mrb[0].mxu0
  %v124 = vadd.f32 0.0, %v123
  %v125 = vpop.f32.mrb[0].mxu0
  %126 = vmatprep.mubr.f32.mxu0 %v20
  %127 = vmatmul.mubr.f32.gmra.mrb[0].mxu0 %v19
  %v128 = vpop.f32.mrb[0].mxu0
  %v129 = vadd.f32 0.0, %v128
  %v130 = vpop.f32.mrb[0].mxu0
  %131 = vmatprep.mubr.f32.mxu0 %v22
  %132 = vmatmul.mubr.f32.gmra.mrb[0].mxu0 %v21
  %v133 = vpop.f32.mrb[0].mxu0
  %v134 = vadd.f32 0.0, %v133
  %v135 = vpop.f32.mrb[0].mxu0
  %136 = vmatprep.mubr.f32.mxu0 %v24
  %137 = vmatmul.mubr.f32.gmra.mrb[0].mxu0 %v23
  %v138 = vpop.f32.mrb[0].mxu0
  %v139 = vadd.f32 0.0, %v138
  %v140 = vpop.f32.mrb[0].mxu0
  %141 = vdwg.mxu0
  %v142 = vld [vmem:[%s2] sm:$0x1]
  %v144 = vlaneseq
  %v145 = vshrl.u32 %v144, 7
  %v146 = vsub.s32 0, %v145
  %v147 = vrot.slane %v142, %v146
  %v149 = vmul.f32 %v124, %v147
  %v150 = vmul.f32 %v129, %v147
  %v151 = vmul.f32 %v134, %v147
  %v152 = vmul.f32 %v139, %v147
  %v153 = vld [vmem:[%s3] sm:$0x1]
  %v155 = vlaneseq
  %v156 = vshrl.u32 %v155, 7
  %v157 = vsub.s32 0, %v156
  %v158 = vrot.slane %v153, %v157
  %v160 = vadd.f32 %v149, %v158
  %v161 = vadd.f32 %v150, %v158
  %v162 = vadd.f32 %v151, %v158
  %v163 = vadd.f32 %v152, %v158
  %v164 = vmul.f32 %v160, 0.5
  %v165 = vmul.f32 %v161, 0.5
  %v166 = vmul.f32 %v162, 0.5
  %v167 = vmul.f32 %v163, 0.5
  %v168 = vmul.f32 %v160, 0.70710677
  %v169 = vmul.f32 %v161, 0.70710677
  %v170 = vmul.f32 %v162, 0.70710677
  %v171 = vmul.f32 %v163, 0.70710677
  %v172 = vand.u32 2147483647, %v168
  %v173 = vand.u32 2147483647, %v169
  %v174 = vand.u32 2147483647, %v170
  %v175 = vand.u32 2147483647, %v171
  %v176 = vmul.f32 %v172, 0.3275911
  %v177 = vmul.f32 %v173, 0.3275911
  %v178 = vmul.f32 %v174, 0.3275911
  %v179 = vmul.f32 %v175, 0.3275911
  %v180 = vadd.f32 %v176, 1.0
  %v181 = vadd.f32 %v177, 1.0
  %v182 = vadd.f32 %v178, 1.0
  %v183 = vadd.f32 %v179, 1.0
  %v184 = vrcp.pop %v180
  %v185 = vmul.f32 1.0, %v184
  %v186 = vrcp.pop %v181
  %v187 = vmul.f32 1.0, %v186
  %v188 = vrcp.pop %v182
  %v189 = vmul.f32 1.0, %v188
  %v190 = vrcp.pop %v183
  %v191 = vmul.f32 1.0, %v190
  %v192 = vmul.f32 %v185, 1.0614054
  %v193 = vmul.f32 %v187, 1.0614054
  %v194 = vmul.f32 %v189, 1.0614054
  %v195 = vmul.f32 %v191, 1.0614054
  %v196 = vadd.f32 %v192, -1.4531521
  %v197 = vadd.f32 %v193, -1.4531521
  %v198 = vadd.f32 %v194, -1.4531521
  %v199 = vadd.f32 %v195, -1.4531521
  %v200 = vmul.f32 %v196, %v185
  %v201 = vmul.f32 %v197, %v187
  %v202 = vmul.f32 %v198, %v189
  %v203 = vmul.f32 %v199, %v191
  %v204 = vadd.f32 %v200, 1.4214138
  %v205 = vadd.f32 %v201, 1.4214138
  %v206 = vadd.f32 %v202, 1.4214138
  %v207 = vadd.f32 %v203, 1.4214138
  %v208 = vmul.f32 %v204, %v185
  %v209 = vmul.f32 %v205, %v187
  %v210 = vmul.f32 %v206, %v189
  %v211 = vmul.f32 %v207, %v191
  %v212 = vadd.f32 %v208, -0.28449672
  %v213 = vadd.f32 %v209, -0.28449672
  %v214 = vadd.f32 %v210, -0.28449672
  %v215 = vadd.f32 %v211, -0.28449672
  %v216 = vmul.f32 %v212, %v185
  %v217 = vmul.f32 %v213, %v187
  %v218 = vmul.f32 %v214, %v189
  %v219 = vmul.f32 %v215, %v191
  %v220 = vadd.f32 %v216, 0.2548296
  %v221 = vadd.f32 %v217, 0.2548296
  %v222 = vadd.f32 %v218, 0.2548296
  %v223 = vadd.f32 %v219, 0.2548296
  %v224 = vmul.f32 %v220, %v185
  %v225 = vmul.f32 %v221, %v187
  %v226 = vmul.f32 %v222, %v189
  %v227 = vmul.f32 %v223, %v191
  %v228 = vsub.f32 0.0, %v172
  %v229 = vsub.f32 0.0, %v173
  %v230 = vsub.f32 0.0, %v174
  %v231 = vsub.f32 0.0, %v175
  %v232 = vmul.f32 %v228, %v172
  %v233 = vmul.f32 %v229, %v173
  %v234 = vmul.f32 %v230, %v174
  %v235 = vmul.f32 %v231, %v175
  %v236 = vmul.f32 %v232, 1.442695
  %v237 = vpow.pop %v236
  %v238 = vmul.f32 %v233, 1.442695
  %v239 = vpow.pop %v238
  %v240 = vmul.f32 %v234, 1.442695
  %v241 = vpow.pop %v240
  %v242 = vmul.f32 %v235, 1.442695
  %v243 = vpow.pop %v242
  %v244 = vmul.f32 %v224, %v237
  %v245 = vmul.f32 %v225, %v239
  %v246 = vmul.f32 %v226, %v241
  %v247 = vmul.f32 %v227, %v243
  %v248 = vsub.f32 1.0, %v244
  %v249 = vsub.f32 1.0, %v245
  %v250 = vsub.f32 1.0, %v246
  %v251 = vsub.f32 1.0, %v247
  %vm252 = vcmp.lt.f32.partialorder %v168, 0.0
  %vm253 = vcmp.lt.f32.partialorder %v169, 0.0
  %vm254 = vcmp.lt.f32.partialorder %v170, 0.0
  %vm255 = vcmp.lt.f32.partialorder %v171, 0.0
  %v256 = vsub.f32 0.0, %v248
  %v257 = vsub.f32 0.0, %v249
  %v258 = vsub.f32 0.0, %v250
  %v259 = vsub.f32 0.0, %v251
  %v260 = vsel %vm252, %v256, %v248
  %v261 = vsel %vm253, %v257, %v249
  %v262 = vsel %vm254, %v258, %v250
  %v263 = vsel %vm255, %v259, %v251
  %v264 = vadd.f32 %v260, 1.0
  %v265 = vadd.f32 %v261, 1.0
  %v266 = vadd.f32 %v262, 1.0
  %v267 = vadd.f32 %v263, 1.0
  %v268 = vmul.f32 %v164, %v264
  %v269 = vmul.f32 %v165, %v265
  %v270 = vmul.f32 %v166, %v266
  %v271 = vmul.f32 %v167, %v267
  %272 = vst [vmem:[%s4] sm:$0xff] %v268
  %273 = vst [vmem:[%s4 + $0x8] sm:$0xff] %v269
  %274 = vst [vmem:[%s4 + $0x10] sm:$0xff] %v270
  %275 = vst [vmem:[%s4 + $0x18] sm:$0xff] %v271
  // Predicated region
  $region18: #{coordinator_forward.20} parent=0 // pred_check
    _
  $region19: #{coordinator_forward.20} parent=0 // pred_check_branch
    %277 = sbr.rel (0) target = $region21
  $region20: #{coordinator_forward.20} parent=0 // pred_region
    _
  $region21: #{coordinator_forward.20} parent=0 // pred_fallthru
    _
  // Predicated region
  $region22: #{coordinator_forward.20} parent=0 // pred_check
    _
  $region23: #{coordinator_forward.20} parent=0 // pred_check_branch
    %279 = sbr.rel (0) target = $region25
  $region24: #{coordinator_forward.20} parent=0 // pred_region
    _
  $region25: #{coordinator_forward.20} parent=0 // pred_fallthru
    _

// kernel: coordinator_forward.22
$region0: #{coordinator_forward.22}
  #allocation0 [shape = 'u32[]', space=smem, size = 0x4, offset = 0x4, fixed_abs, tag = 'smem constant byte address 0x4 - core index']
  #allocation1 [shape = 'u32[144,128]{1,0:T(1,128)}', space=vmem, size = 0x12000, scoped, tag = 'internal scratch']
  %s0 = inlined_call_operand.vmem [shape: f32[8,256], index: 0, kind: input, shape index: {}]
  %s1 = inlined_call_operand.vmem [shape: f32[256,128], index: 1, kind: input, shape index: {}]
  %s2 = inlined_call_operand.vmem [shape: f32[1,128], index: 2, kind: input, shape index: {}]
  %s3 = inlined_call_operand.vmem [shape: f32[1,128], index: 3, kind: input, shape index: {}]
  %s4 = inlined_call_operand.vmem [shape: f32[8,128], index: 4, kind: output, shape index: {}]
  %s5 = sld [smem:[#allocation0]]
  $region26: #{coordinator_forward.22} parent=0
    _
  %s7 = ssub.s32 1, %s5
  %s8 = scalar_select 0, %s7, %s5
  // Predicated region
  $region2: #{coordinator_forward.22} parent=0 // pred_check
    _
  $region3: #{coordinator_forward.22} parent=0 // pred_check_branch
    %10 = sbr.rel (0) target = $region5
  $region4: #{coordinator_forward.22} parent=0 // pred_region
    _
  $region5: #{coordinator_forward.22} parent=0 // pred_fallthru
    _
  // Predicated region
  $region6: #{coordinator_forward.22} parent=0 // pred_check
    _
  $region7: #{coordinator_forward.22} parent=0 // pred_check_branch
    %12 = sbr.rel (0) target = $region9
  $region8: #{coordinator_forward.22} parent=0 // pred_region
    _
  $region9: #{coordinator_forward.22} parent=0 // pred_fallthru
    _
  // Predicated region
  $region10: #{coordinator_forward.22} parent=0 // pred_check
    _
  $region11: #{coordinator_forward.22} parent=0 // pred_check_branch
    %14 = sbr.rel (0) target = $region13
  $region12: #{coordinator_forward.22} parent=0 // pred_region
    _
  $region13: #{coordinator_forward.22} parent=0 // pred_fallthru
    _
  // Predicated region
  $region14: #{coordinator_forward.22} parent=0 // pred_check
    _
  $region15: #{coordinator_forward.22} parent=0 // pred_check_branch
    %16 = sbr.rel (0) target = $region17
  $region16: #{coordinator_forward.22} parent=0 // pred_region
    _
  $region17: #{coordinator_forward.22} parent=0 // pred_fallthru
    _
  %v17 = vld [vmem:[%s0] sm:$0xff]
  %v18 = vld [vmem:[%s0 + $0x8] sm:$0xff]
  %v19 = vld [vmem:[%s1] sm:$0xff]
  %v20 = vld [vmem:[%s1 + $0x8] sm:$0xff]
  %v21 = vld [vmem:[%s1 + $0x10] sm:$0xff]
  %v22 = vld [vmem:[%s1 + $0x18] sm:$0xff]
  %v23 = vld [vmem:[%s1 + $0x20] sm:$0xff]
  %v24 = vld [vmem:[%s1 + $0x28] sm:$0xff]
  %v25 = vld [vmem:[%s1 + $0x30] sm:$0xff]
  %v26 = vld [vmem:[%s1 + $0x38] sm:$0xff]
  %v27 = vld [vmem:[%s1 + $0x40] sm:$0xff]
  %v28 = vld [vmem:[%s1 + $0x48] sm:$0xff]
  %v29 = vld [vmem:[%s1 + $0x50] sm:$0xff]
  %v30 = vld [vmem:[%s1 + $0x58] sm:$0xff]
  %v31 = vld [vmem:[%s1 + $0x60] sm:$0xff]
  %v32 = vld [vmem:[%s1 + $0x68] sm:$0xff]
  %v33 = vld [vmem:[%s1 + $0x70] sm:$0xff]
  %v34 = vld [vmem:[%s1 + $0x78] sm:$0xff]
  %v35 = vld [vmem:[%s1 + $0x80] sm:$0xff]
  %v36 = vld [vmem:[%s1 + $0x88] sm:$0xff]
  %v37 = vld [vmem:[%s1 + $0x90] sm:$0xff]
  %v38 = vld [vmem:[%s1 + $0x98] sm:$0xff]
  %v39 = vld [vmem:[%s1 + $0xa0] sm:$0xff]
  %v40 = vld [vmem:[%s1 + $0xa8] sm:$0xff]
  %v41 = vld [vmem:[%s1 + $0xb0] sm:$0xff]
  %v42 = vld [vmem:[%s1 + $0xb8] sm:$0xff]
  %v43 = vld [vmem:[%s1 + $0xc0] sm:$0xff]
  %v44 = vld [vmem:[%s1 + $0xc8] sm:$0xff]
  %v45 = vld [vmem:[%s1 + $0xd0] sm:$0xff]
  %v46 = vld [vmem:[%s1 + $0xd8] sm:$0xff]
  %v47 = vld [vmem:[%s1 + $0xe0] sm:$0xff]
  %v48 = vld [vmem:[%s1 + $0xe8] sm:$0xff]
  %v49 = vld [vmem:[%s1 + $0xf0] sm:$0xff]
  %v50 = vld [vmem:[%s1 + $0xf8] sm:$0xff]
  %51 = vmatprep.subr.mxu0 0.0
  %52 = vmatpush1.msra.mxu0 %v19
  %53 = vmatprep.subr.mxu0 0.0
  %54 = vmatpush1.msra.mxu0 %v20
  %55 = vmatprep.subr.mxu0 0.0
  %56 = vmatpush1.msra.mxu0 %v21
  %57 = vmatprep.subr.mxu0 0.0
  %58 = vmatpush1.msra.mxu0 %v22
  %59 = vmatprep.subr.mxu0 0.0
  %60 = vmatpush1.msra.mxu0 %v23
  %61 = vmatprep.subr.mxu0 0.0
  %62 = vmatpush1.msra.mxu0 %v24
  %63 = vmatprep.subr.mxu0 0.0
  %64 = vmatpush1.msra.mxu0 %v25
  %65 = vmatprep.subr.mxu0 0.0
  %66 = vmatpush1.msra.mxu0 %v26
  %67 = vmatprep.subr.mxu0 0.0
  %68 = vmatpush1.msra.mxu0 %v27
  %69 = vmatprep.subr.mxu0 0.0
  %70 = vmatpush1.msra.mxu0 %v28
  %71 = vmatprep.subr.mxu0 0.0
  %72 = vmatpush1.msra.mxu0 %v29
  %73 = vmatprep.subr.mxu0 0.0
  %74 = vmatpush1.msra.mxu0 %v30
  %75 = vmatprep.subr.mxu0 0.0
  %76 = vmatpush1.msra.mxu0 %v31
  %77 = vmatprep.subr.mxu0 0.0
  %78 = vmatpush1.msra.mxu0 %v32
  %79 = vmatprep.subr.mxu0 0.0
  %80 = vmatpush1.msra.mxu0 %v33
  %81 = vmatprep.subr.mxu0 0.0
  %82 = vmatpush1.msra.mxu0 %v34
  %83 = vmatprep.subr.mxu0 0.0
  %84 = vmatpush1.msra.mxu0 %v35
  %85 = vmatprep.subr.mxu0 0.0
  %86 = vmatpush1.msra.mxu0 %v36
  %87 = vmatprep.subr.mxu0 0.0
  %88 = vmatpush1.msra.mxu0 %v37
  %89 = vmatprep.subr.mxu0 0.0
  %90 = vmatpush1.msra.mxu0 %v38
  %91 = vmatprep.subr.mxu0 0.0
  %92 = vmatpush1.msra.mxu0 %v39
  %93 = vmatprep.subr.mxu0 0.0
  %94 = vmatpush1.msra.mxu0 %v40
  %95 = vmatprep.subr.mxu0 0.0
  %96 = vmatpush1.msra.mxu0 %v41
  %97 = vmatprep.subr.mxu0 0.0
  %98 = vmatpush1.msra.mxu0 %v42
  %99 = vmatprep.subr.mxu0 0.0
  %100 = vmatpush1.msra.mxu0 %v43
  %101 = vmatprep.subr.mxu0 0.0
  %102 = vmatpush1.msra.mxu0 %v44
  %103 = vmatprep.subr.mxu0 0.0
  %104 = vmatpush1.msra.mxu0 %v45
  %105 = vmatprep.subr.mxu0 0.0
  %106 = vmatpush1.msra.mxu0 %v46
  %107 = vmatprep.subr.mxu0 0.0
  %108 = vmatpush1.msra.mxu0 %v47
  %109 = vmatprep.subr.mxu0 0.0
  %110 = vmatpush1.msra.mxu0 %v48
  %111 = vmatprep.subr.mxu0 0.0
  %112 = vmatpush1.msra.mxu0 %v49
  %113 = vmatprep.subr.mxu0 0.0
  %114 = vmatpush1.msra.mxu0 %v50
  %115 = vmatprep.mubr.f32.mxu0 %v18
  %116 = vmatmul.mubr.f32.gmra.mrb[0].mxu0 %v17
  %v117 = vpop.f32.mrb[0].mxu0
  %v118 = vadd.f32 0.0, %v117
  %v119 = vpop.f32.mrb[0].mxu0
  %120 = vdwg.mxu0
  %v121 = vld [vmem:[%s2] sm:$0x1]
  %v123 = vlaneseq
  %v124 = vshrl.u32 %v123, 7
  %v125 = vsub.s32 0, %v124
  %v126 = vrot.slane %v121, %v125
  %v128 = vmul.f32 %v118, %v126
  %v129 = vld [vmem:[%s3] sm:$0x1]
  %v131 = vlaneseq
  %v132 = vshrl.u32 %v131, 7
  %v133 = vsub.s32 0, %v132
  %v134 = vrot.slane %v129, %v133
  %v136 = vadd.f32 %v128, %v134
  %v137 = vmul.f32 %v136, 0.5
  %v138 = vmul.f32 %v136, 0.70710677
  %v139 = vand.u32 2147483647, %v138
  %v140 = vmul.f32 %v139, 0.3275911
  %v141 = vadd.f32 %v140, 1.0
  %v142 = vrcp.pop %v141
  %v143 = vmul.f32 1.0, %v142
  %v144 = vmul.f32 %v143, 1.0614054
  %v145 = vadd.f32 %v144, -1.4531521
  %v146 = vmul.f32 %v145, %v143
  %v147 = vadd.f32 %v146, 1.4214138
  %v148 = vmul.f32 %v147, %v143
  %v149 = vadd.f32 %v148, -0.28449672
  %v150 = vmul.f32 %v149, %v143
  %v151 = vadd.f32 %v150, 0.2548296
  %v152 = vmul.f32 %v151, %v143
  %v153 = vsub.f32 0.0, %v139
  %v154 = vmul.f32 %v153, %v139
  %v155 = vmul.f32 %v154, 1.442695
  %v156 = vpow.pop %v155
  %v157 = vmul.f32 %v152, %v156
  %v158 = vsub.f32 1.0, %v157
  %vm159 = vcmp.lt.f32.partialorder %v138, 0.0
  %v160 = vsub.f32 0.0, %v158
  %v161 = vsel %vm159, %v160, %v158
  %v162 = vadd.f32 %v161, 1.0
  %v163 = vmul.f32 %v137, %v162
  %164 = vst [vmem:[%s4] sm:$0xff] %v163
  // Predicated region
  $region18: #{coordinator_forward.22} parent=0 // pred_check
    _
  $region19: #{coordinator_forward.22} parent=0 // pred_check_branch
    %166 = sbr.rel (0) target = $region21
  $region20: #{coordinator_forward.22} parent=0 // pred_region
    _
  $region21: #{coordinator_forward.22} parent=0 // pred_fallthru
    _
  // Predicated region
  $region22: #{coordinator_forward.22} parent=0 // pred_check
    _
  $region23: #{coordinator_forward.22} parent=0 // pred_check_branch
    %168 = sbr.rel (0) target = $region25
  $region24: #{coordinator_forward.22} parent=0 // pred_region
    _
  $region25: #{coordinator_forward.22} parent=0 // pred_fallthru
    _

// kernel: coordinator_forward.23
$region0: #{coordinator_forward.23}
  #allocation0 [shape = 'u32[]', space=smem, size = 0x4, offset = 0x4, fixed_abs, tag = 'smem constant byte address 0x4 - core index']
  #allocation1 [shape = 'u32[144,128]{1,0:T(1,128)}', space=vmem, size = 0x12000, scoped, tag = 'internal scratch']
  %s0 = inlined_call_operand.vmem [shape: f32[8,1152], index: 0, kind: input, shape index: {}]
  %s1 = inlined_call_operand.vmem [shape: f32[1152,128], index: 1, kind: input, shape index: {}]
  %s2 = inlined_call_operand.vmem [shape: f32[1,128], index: 2, kind: input, shape index: {}]
  %s3 = inlined_call_operand.vmem [shape: f32[1,128], index: 3, kind: input, shape index: {}]
  %s4 = inlined_call_operand.vmem [shape: f32[8,128], index: 4, kind: output, shape index: {}]
  %s5 = sld [smem:[#allocation0]]
  $region26: #{coordinator_forward.23} parent=0
    _
  %s7 = ssub.s32 1, %s5
  %s8 = scalar_select 0, %s7, %s5
  // Predicated region
  $region2: #{coordinator_forward.23} parent=0 // pred_check
    _
  $region3: #{coordinator_forward.23} parent=0 // pred_check_branch
    %10 = sbr.rel (0) target = $region5
  $region4: #{coordinator_forward.23} parent=0 // pred_region
    _
  $region5: #{coordinator_forward.23} parent=0 // pred_fallthru
    _
  // Predicated region
  $region6: #{coordinator_forward.23} parent=0 // pred_check
    _
  $region7: #{coordinator_forward.23} parent=0 // pred_check_branch
    %12 = sbr.rel (0) target = $region9
  $region8: #{coordinator_forward.23} parent=0 // pred_region
    _
  $region9: #{coordinator_forward.23} parent=0 // pred_fallthru
    _
  // Predicated region
  $region10: #{coordinator_forward.23} parent=0 // pred_check
    _
  $region11: #{coordinator_forward.23} parent=0 // pred_check_branch
    %14 = sbr.rel (0) target = $region13
  $region12: #{coordinator_forward.23} parent=0 // pred_region
    _
  $region13: #{coordinator_forward.23} parent=0 // pred_fallthru
    _
  // Predicated region
  $region14: #{coordinator_forward.23} parent=0 // pred_check
    _
  $region15: #{coordinator_forward.23} parent=0 // pred_check_branch
    %16 = sbr.rel (0) target = $region17
  $region16: #{coordinator_forward.23} parent=0 // pred_region
    _
  $region17: #{coordinator_forward.23} parent=0 // pred_fallthru
    _
  %v17 = vld [vmem:[%s0] sm:$0xff]
  %v18 = vld [vmem:[%s0 + $0x8] sm:$0xff]
  %v19 = vld [vmem:[%s0 + $0x10] sm:$0xff]
  %v20 = vld [vmem:[%s0 + $0x18] sm:$0xff]
  %v21 = vld [vmem:[%s0 + $0x20] sm:$0xff]
  %v22 = vld [vmem:[%s0 + $0x28] sm:$0xff]
  %v23 = vld [vmem:[%s0 + $0x30] sm:$0xff]
  %v24 = vld [vmem:[%s0 + $0x38] sm:$0xff]
  %v25 = vld [vmem:[%s0 + $0x40] sm:$0xff]
  %v26 = vld [vmem:[%s1] sm:$0xff]
  %v27 = vld [vmem:[%s1 + $0x8] sm:$0xff]
  %v28 = vld [vmem:[%s1 + $0x10] sm:$0xff]
  %v29 = vld [vmem:[%s1 + $0x18] sm:$0xff]
  %v30 = vld [vmem:[%s1 + $0x20] sm:$0xff]
  %v31 = vld [vmem:[%s1 + $0x28] sm:$0xff]
  %v32 = vld [vmem:[%s1 + $0x30] sm:$0xff]
  %v33 = vld [vmem:[%s1 + $0x38] sm:$0xff]
  %v34 = vld [vmem:[%s1 + $0x40] sm:$0xff]
  %v35 = vld [vmem:[%s1 + $0x48] sm:$0xff]
  %v36 = vld [vmem:[%s1 + $0x50] sm:$0xff]
  %v37 = vld [vmem:[%s1 + $0x58] sm:$0xff]
  %v38 = vld [vmem:[%s1 + $0x60] sm:$0xff]
  %v39 = vld [vmem:[%s1 + $0x68] sm:$0xff]
  %v40 = vld [vmem:[%s1 + $0x70] sm:$0xff]
  %v41 = vld [vmem:[%s1 + $0x78] sm:$0xff]
  %v42 = vld [vmem:[%s1 + $0x80] sm:$0xff]
  %v43 = vld [vmem:[%s1 + $0x88] sm:$0xff]
  %v44 = vld [vmem:[%s1 + $0x90] sm:$0xff]
  %v45 = vld [vmem:[%s1 + $0x98] sm:$0xff]
  %v46 = vld [vmem:[%s1 + $0xa0] sm:$0xff]
  %v47 = vld [vmem:[%s1 + $0xa8] sm:$0xff]
  %v48 = vld [vmem:[%s1 + $0xb0] sm:$0xff]
  %v49 = vld [vmem:[%s1 + $0xb8] sm:$0xff]
  %v50 = vld [vmem:[%s1 + $0xc0] sm:$0xff]
  %v51 = vld [vmem:[%s1 + $0xc8] sm:$0xff]
  %v52 = vld [vmem:[%s1 + $0xd0] sm:$0xff]
  %v53 = vld [vmem:[%s1 + $0xd8] sm:$0xff]
  %v54 = vld [vmem:[%s1 + $0xe0] sm:$0xff]
  %v55 = vld [vmem:[%s1 + $0xe8] sm:$0xff]
  %v56 = vld [vmem:[%s1 + $0xf0] sm:$0xff]
  %v57 = vld [vmem:[%s1 + $0xf8] sm:$0xff]
  %v58 = vld [vmem:[%s1 + $0x100] sm:$0xff]
  %v59 = vld [vmem:[%s1 + $0x108] sm:$0xff]
  %v60 = vld [vmem:[%s1 + $0x110] sm:$0xff]
  %v61 = vld [vmem:[%s1 + $0x118] sm:$0xff]
  %v62 = vld [vmem:[%s1 + $0x120] sm:$0xff]
  %v63 = vld [vmem:[%s1 + $0x128] sm:$0xff]
  %v64 = vld [vmem:[%s1 + $0x130] sm:$0xff]
  %v65 = vld [vmem:[%s1 + $0x138] sm:$0xff]
  %v66 = vld [vmem:[%s1 + $0x140] sm:$0xff]
  %v67 = vld [vmem:[%s1 + $0x148] sm:$0xff]
  %v68 = vld [vmem:[%s1 + $0x150] sm:$0xff]
  %v69 = vld [vmem:[%s1 + $0x158] sm:$0xff]
  %v70 = vld [vmem:[%s1 + $0x160] sm:$0xff]
  %v71 = vld [vmem:[%s1 + $0x168] sm:$0xff]
  %v72 = vld [vmem:[%s1 + $0x170] sm:$0xff]
  %v73 = vld [vmem:[%s1 + $0x178] sm:$0xff]
  %v74 = vld [vmem:[%s1 + $0x180] sm:$0xff]
  %v75 = vld [vmem:[%s1 + $0x188] sm:$0xff]
  %v76 = vld [vmem:[%s1 + $0x190] sm:$0xff]
  %v77 = vld [vmem:[%s1 + $0x198] sm:$0xff]
  %v78 = vld [vmem:[%s1 + $0x1a0] sm:$0xff]
  %v79 = vld [vmem:[%s1 + $0x1a8] sm:$0xff]
  %v80 = vld [vmem:[%s1 + $0x1b0] sm:$0xff]
  %v81 = vld [vmem:[%s1 + $0x1b8] sm:$0xff]
  %v82 = vld [vmem:[%s1 + $0x1c0] sm:$0xff]
  %v83 = vld [vmem:[%s1 + $0x1c8] sm:$0xff]
  %v84 = vld [vmem:[%s1 + $0x1d0] sm:$0xff]
  %v85 = vld [vmem:[%s1 + $0x1d8] sm:$0xff]
  %v86 = vld [vmem:[%s1 + $0x1e0] sm:$0xff]
  %v87 = vld [vmem:[%s1 + $0x1e8] sm:$0xff]
  %v88 = vld [vmem:[%s1 + $0x1f0] sm:$0xff]
  %v89 = vld [vmem:[%s1 + $0x1f8] sm:$0xff]
  %v90 = vld [vmem:[%s1 + $0x200] sm:$0xff]
  %v91 = vld [vmem:[%s1 + $0x208] sm:$0xff]
  %v92 = vld [vmem:[%s1 + $0x210] sm:$0xff]
  %v93 = vld [vmem:[%s1 + $0x218] sm:$0xff]
  %v94 = vld [vmem:[%s1 + $0x220] sm:$0xff]
  %v95 = vld [vmem:[%s1 + $0x228] sm:$0xff]
  %v96 = vld [vmem:[%s1 + $0x230] sm:$0xff]
  %v97 = vld [vmem:[%s1 + $0x238] sm:$0xff]
  %v98 = vld [vmem:[%s1 + $0x240] sm:$0xff]
  %v99 = vld [vmem:[%s1 + $0x248] sm:$0xff]
  %v100 = vld [vmem:[%s1 + $0x250] sm:$0xff]
  %v101 = vld [vmem:[%s1 + $0x258] sm:$0xff]
  %v102 = vld [vmem:[%s1 + $0x260] sm:$0xff]
  %v103 = vld [vmem:[%s1 + $0x268] sm:$0xff]
  %v104 = vld [vmem:[%s1 + $0x270] sm:$0xff]
  %v105 = vld [vmem:[%s1 + $0x278] sm:$0xff]
  %v106 = vld [vmem:[%s1 + $0x280] sm:$0xff]
  %v107 = vld [vmem:[%s1 + $0x288] sm:$0xff]
  %v108 = vld [vmem:[%s1 + $0x290] sm:$0xff]
  %v109 = vld [vmem:[%s1 + $0x298] sm:$0xff]
  %v110 = vld [vmem:[%s1 + $0x2a0] sm:$0xff]
  %v111 = vld [vmem:[%s1 + $0x2a8] sm:$0xff]
  %v112 = vld [vmem:[%s1 + $0x2b0] sm:$0xff]
  %v113 = vld [vmem:[%s1 + $0x2b8] sm:$0xff]
  %v114 = vld [vmem:[%s1 + $0x2c0] sm:$0xff]
  %v115 = vld [vmem:[%s1 + $0x2c8] sm:$0xff]
  %v116 = vld [vmem:[%s1 + $0x2d0] sm:$0xff]
  %v117 = vld [vmem:[%s1 + $0x2d8] sm:$0xff]
  %v118 = vld [vmem:[%s1 + $0x2e0] sm:$0xff]
  %v119 = vld [vmem:[%s1 + $0x2e8] sm:$0xff]
  %v120 = vld [vmem:[%s1 + $0x2f0] sm:$0xff]
  %v121 = vld [vmem:[%s1 + $0x2f8] sm:$0xff]
  %v122 = vld [vmem:[%s1 + $0x300] sm:$0xff]
  %v123 = vld [vmem:[%s1 + $0x308] sm:$0xff]
  %v124 = vld [vmem:[%s1 + $0x310] sm:$0xff]
  %v125 = vld [vmem:[%s1 + $0x318] sm:$0xff]
  %v126 = vld [vmem:[%s1 + $0x320] sm:$0xff]
  %v127 = vld [vmem:[%s1 + $0x328] sm:$0xff]
  %v128 = vld [vmem:[%s1 + $0x330] sm:$0xff]
  %v129 = vld [vmem:[%s1 + $0x338] sm:$0xff]
  %v130 = vld [vmem:[%s1 + $0x340] sm:$0xff]
  %v131 = vld [vmem:[%s1 + $0x348] sm:$0xff]
  %v132 = vld [vmem:[%s1 + $0x350] sm:$0xff]
  %v133 = vld [vmem:[%s1 + $0x358] sm:$0xff]
  %v134 = vld [vmem:[%s1 + $0x360] sm:$0xff]
  %v135 = vld [vmem:[%s1 + $0x368] sm:$0xff]
  %v136 = vld [vmem:[%s1 + $0x370] sm:$0xff]
  %v137 = vld [vmem:[%s1 + $0x378] sm:$0xff]
  %v138 = vld [vmem:[%s1 + $0x380] sm:$0xff]
  %v139 = vld [vmem:[%s1 + $0x388] sm:$0xff]
  %v140 = vld [vmem:[%s1 + $0x390] sm:$0xff]
  %v141 = vld [vmem:[%s1 + $0x398] sm:$0xff]
  %v142 = vld [vmem:[%s1 + $0x3a0] sm:$0xff]
  %v143 = vld [vmem:[%s1 + $0x3a8] sm:$0xff]
  %v144 = vld [vmem:[%s1 + $0x3b0] sm:$0xff]
  %v145 = vld [vmem:[%s1 + $0x3b8] sm:$0xff]
  %v146 = vld [vmem:[%s1 + $0x3c0] sm:$0xff]
  %v147 = vld [vmem:[%s1 + $0x3c8] sm:$0xff]
  %v148 = vld [vmem:[%s1 + $0x3d0] sm:$0xff]
  %v149 = vld [vmem:[%s1 + $0x3d8] sm:$0xff]
  %v150 = vld [vmem:[%s1 + $0x3e0] sm:$0xff]
  %v151 = vld [vmem:[%s1 + $0x3e8] sm:$0xff]
  %v152 = vld [vmem:[%s1 + $0x3f0] sm:$0xff]
  %v153 = vld [vmem:[%s1 + $0x3f8] sm:$0xff]
  %v154 = vld [vmem:[%s1 + $0x400] sm:$0xff]
  %v155 = vld [vmem:[%s1 + $0x408] sm:$0xff]
  %v156 = vld [vmem:[%s1 + $0x410] sm:$0xff]
  %v157 = vld [vmem:[%s1 + $0x418] sm:$0xff]
  %v158 = vld [vmem:[%s1 + $0x420] sm:$0xff]
  %v159 = vld [vmem:[%s1 + $0x428] sm:$0xff]
  %v160 = vld [vmem:[%s1 + $0x430] sm:$0xff]
  %v161 = vld [vmem:[%s1 + $0x438] sm:$0xff]
  %v162 = vld [vmem:[%s1 + $0x440] sm:$0xff]
  %v163 = vld [vmem:[%s1 + $0x448] sm:$0xff]
  %v164 = vld [vmem:[%s1 + $0x450] sm:$0xff]
  %v165 = vld [vmem:[%s1 + $0x458] sm:$0xff]
  %v166 = vld [vmem:[%s1 + $0x460] sm:$0xff]
  %v167 = vld [vmem:[%s1 + $0x468] sm:$0xff]
  %v168 = vld [vmem:[%s1 + $0x470] sm:$0xff]
  %v169 = vld [vmem:[%s1 + $0x478] sm:$0xff]
  %170 = vmatprep.subr.mxu0 0.0
  %171 = vmatpush1.msra.mxu0 %v26
  %172 = vmatprep.subr.mxu0 0.0
  %173 = vmatpush1.msra.mxu0 %v27
  %174 = vmatprep.subr.mxu0 0.0
  %175 = vmatpush1.msra.mxu0 %v28
  %176 = vmatprep.subr.mxu0 0.0
  %177 = vmatpush1.msra.mxu0 %v29
  %178 = vmatprep.subr.mxu0 0.0
  %179 = vmatpush1.msra.mxu0 %v30
  %180 = vmatprep.subr.mxu0 0.0
  %181 = vmatpush1.msra.mxu0 %v31
  %182 = vmatprep.subr.mxu0 0.0
  %183 = vmatpush1.msra.mxu0 %v32
  %184 = vmatprep.subr.mxu0 0.0
  %185 = vmatpush1.msra.mxu0 %v33
  %186 = vmatprep.subr.mxu0 0.0
  %187 = vmatpush1.msra.mxu0 %v34
  %188 = vmatprep.subr.mxu0 0.0
  %189 = vmatpush1.msra.mxu0 %v35
  %190 = vmatprep.subr.mxu0 0.0
  %191 = vmatpush1.msra.mxu0 %v36
  %192 = vmatprep.subr.mxu0 0.0
  %193 = vmatpush1.msra.mxu0 %v37
  %194 = vmatprep.subr.mxu0 0.0
  %195 = vmatpush1.msra.mxu0 %v38
  %196 = vmatprep.subr.mxu0 0.0
  %197 = vmatpush1.msra.mxu0 %v39
  %198 = vmatprep.subr.mxu0 0.0
  %199 = vmatpush1.msra.mxu0 %v40
  %200 = vmatprep.subr.mxu0 0.0
  %201 = vmatpush1.msra.mxu0 %v41
  %202 = vmatprep.subr.mxu0 0.0
  %203 = vmatpush1.msra.mxu0 %v42
  %204 = vmatprep.subr.mxu0 0.0
  %205 = vmatpush1.msra.mxu0 %v43
  %206 = vmatprep.subr.mxu0 0.0
  %207 = vmatpush1.msra.mxu0 %v44
  %208 = vmatprep.subr.mxu0 0.0
  %209 = vmatpush1.msra.mxu0 %v45
  %210 = vmatprep.subr.mxu0 0.0
  %211 = vmatpush1.msra.mxu0 %v46
  %212 = vmatprep.subr.mxu0 0.0
  %213 = vmatpush1.msra.mxu0 %v47
  %214 = vmatprep.subr.mxu0 0.0
  %215 = vmatpush1.msra.mxu0 %v48
  %216 = vmatprep.subr.mxu0 0.0
  %217 = vmatpush1.msra.mxu0 %v49
  %218 = vmatprep.subr.mxu0 0.0
  %219 = vmatpush1.msra.mxu0 %v50
  %220 = vmatprep.subr.mxu0 0.0
  %221 = vmatpush1.msra.mxu0 %v51
  %222 = vmatprep.subr.mxu0 0.0
  %223 = vmatpush1.msra.mxu0 %v52
  %224 = vmatprep.subr.mxu0 0.0
  %225 = vmatpush1.msra.mxu0 %v53
  %226 = vmatprep.subr.mxu0 0.0
  %227 = vmatpush1.msra.mxu0 %v54
  %228 = vmatprep.subr.mxu0 0.0
  %229 = vmatpush1.msra.mxu0 %v55
  %230 = vmatprep.subr.mxu0 0.0
  %231 = vmatpush1.msra.mxu0 %v56
  %232 = vmatprep.subr.mxu0 0.0
  %233 = vmatpush1.msra.mxu0 %v57
  %234 = vmatprep.mubr.f32.mxu0 %v18
  %235 = vmatmul.mubr.f32.gmra.mrb[0].mxu0 %v17
  %v236 = vpop.f32.mrb[0].mxu0
  %v237 = vadd.f32 0.0, %v236
  %v238 = vpop.f32.mrb[0].mxu0
  %239 = vdwg.mxu0
  %240 = vmatprep.subr.mxu0 0.0
  %241 = vmatpush1.msra.mxu0 %v58
  %242 = vmatprep.subr.mxu0 0.0
  %243 = vmatpush1.msra.mxu0 %v59
  %244 = vmatprep.subr.mxu0 0.0
  %245 = vmatpush1.msra.mxu0 %v60
  %246 = vmatprep.subr.mxu0 0.0
  %247 = vmatpush1.msra.mxu0 %v61
  %248 = vmatprep.subr.mxu0 0.0
  %249 = vmatpush1.msra.mxu0 %v62
  %250 = vmatprep.subr.mxu0 0.0
  %251 = vmatpush1.msra.mxu0 %v63
  %252 = vmatprep.subr.mxu0 0.0
  %253 = vmatpush1.msra.mxu0 %v64
  %254 = vmatprep.subr.mxu0 0.0
  %255 = vmatpush1.msra.mxu0 %v65
  %256 = vmatprep.subr.mxu0 0.0
  %257 = vmatpush1.msra.mxu0 %v66
  %258 = vmatprep.subr.mxu0 0.0
  %259 = vmatpush1.msra.mxu0 %v67
  %260 = vmatprep.subr.mxu0 0.0
  %261 = vmatpush1.msra.mxu0 %v68
  %262 = vmatprep.subr.mxu0 0.0
  %263 = vmatpush1.msra.mxu0 %v69
  %264 = vmatprep.subr.mxu0 0.0
  %265 = vmatpush1.msra.mxu0 %v70
  %266 = vmatprep.subr.mxu0 0.0
  %267 = vmatpush1.msra.mxu0 %v71
  %268 = vmatprep.subr.mxu0 0.0
  %269 = vmatpush1.msra.mxu0 %v72
  %270 = vmatprep.subr.mxu0 0.0
  %271 = vmatpush1.msra.mxu0 %v73
  %272 = vmatprep.subr.mxu0 0.0
  %273 = vmatpush1.msra.mxu0 %v74
  %274 = vmatprep.subr.mxu0 0.0
  %275 = vmatpush1.msra.mxu0 %v75
  %276 = vmatprep.subr.mxu0 0.0
  %277 = vmatpush1.msra.mxu0 %v76
  %278 = vmatprep.subr.mxu0 0.0
  %279 = vmatpush1.msra.mxu0 %v77
  %280 = vmatprep.subr.mxu0 0.0
  %281 = vmatpush1.msra.mxu0 %v78
  %282 = vmatprep.subr.mxu0 0.0
  %283 = vmatpush1.msra.mxu0 %v79
  %284 = vmatprep.subr.mxu0 0.0
  %285 = vmatpush1.msra.mxu0 %v80
  %286 = vmatprep.subr.mxu0 0.0
  %287 = vmatpush1.msra.mxu0 %v81
  %288 = vmatprep.subr.mxu0 0.0
  %289 = vmatpush1.msra.mxu0 %v82
  %290 = vmatprep.subr.mxu0 0.0
  %291 = vmatpush1.msra.mxu0 %v83
  %292 = vmatprep.subr.mxu0 0.0
  %293 = vmatpush1.msra.mxu0 %v84
  %294 = vmatprep.subr.mxu0 0.0
  %295 = vmatpush1.msra.mxu0 %v85
  %296 = vmatprep.subr.mxu0 0.0
  %297 = vmatpush1.msra.mxu0 %v86
  %298 = vmatprep.subr.mxu0 0.0
  %299 = vmatpush1.msra.mxu0 %v87
  %300 = vmatprep.subr.mxu0 0.0
  %301 = vmatpush1.msra.mxu0 %v88
  %302 = vmatprep.subr.mxu0 0.0
  %303 = vmatpush1.msra.mxu0 %v89
  %304 = vmatprep.mubr.f32.mxu0 %v20
  %305 = vmatmul.mubr.f32.gmra.mrb[0].mxu0 %v19
  %v306 = vpop.f32.mrb[0].mxu0
  %v307 = vadd.f32 %v237, %v306
  %v308 = vpop.f32.mrb[0].mxu0
  %309 = vdwg.mxu0
  %310 = vmatprep.subr.mxu0 0.0
  %311 = vmatpush1.msra.mxu0 %v90
  %312 = vmatprep.subr.mxu0 0.0
  %313 = vmatpush1.msra.mxu0 %v91
  %314 = vmatprep.subr.mxu0 0.0
  %315 = vmatpush1.msra.mxu0 %v92
  %316 = vmatprep.subr.mxu0 0.0
  %317 = vmatpush1.msra.mxu0 %v93
  %318 = vmatprep.subr.mxu0 0.0
  %319 = vmatpush1.msra.mxu0 %v94
  %320 = vmatprep.subr.mxu0 0.0
  %321 = vmatpush1.msra.mxu0 %v95
  %322 = vmatprep.subr.mxu0 0.0
  %323 = vmatpush1.msra.mxu0 %v96
  %324 = vmatprep.subr.mxu0 0.0
  %325 = vmatpush1.msra.mxu0 %v97
  %326 = vmatprep.subr.mxu0 0.0
  %327 = vmatpush1.msra.mxu0 %v98
  %328 = vmatprep.subr.mxu0 0.0
  %329 = vmatpush1.msra.mxu0 %v99
  %330 = vmatprep.subr.mxu0 0.0
  %331 = vmatpush1.msra.mxu0 %v100
  %332 = vmatprep.subr.mxu0 0.0
  %333 = vmatpush1.msra.mxu0 %v101
  %334 = vmatprep.subr.mxu0 0.0
  %335 = vmatpush1.msra.mxu0 %v102
  %336 = vmatprep.subr.mxu0 0.0
  %337 = vmatpush1.msra.mxu0 %v103
  %338 = vmatprep.subr.mxu0 0.0
  %339 = vmatpush1.msra.mxu0 %v104
  %340 = vmatprep.subr.mxu0 0.0
  %341 = vmatpush1.msra.mxu0 %v105
  %342 = vmatprep.subr.mxu0 0.0
  %343 = vmatpush1.msra.mxu0 %v106
  %344 = vmatprep.subr.mxu0 0.0
  %345 = vmatpush1.msra.mxu0 %v107
  %346 = vmatprep.subr.mxu0 0.0
  %347 = vmatpush1.msra.mxu0 %v108
  %348 = vmatprep.subr.mxu0 0.0
  %349 = vmatpush1.msra.mxu0 %v109
  %350 = vmatprep.subr.mxu0 0.0
  %351 = vmatpush1.msra.mxu0 %v110
  %352 = vmatprep.subr.mxu0 0.0
  %353 = vmatpush1.msra.mxu0 %v111
  %354 = vmatprep.subr.mxu0 0.0
  %355 = vmatpush1.msra.mxu0 %v112
  %356 = vmatprep.subr.mxu0 0.0
  %357 = vmatpush1.msra.mxu0 %v113
  %358 = vmatprep.subr.mxu0 0.0
  %359 = vmatpush1.msra.mxu0 %v114
  %360 = vmatprep.subr.mxu0 0.0
  %361 = vmatpush1.msra.mxu0 %v115
  %362 = vmatprep.subr.mxu0 0.0
  %363 = vmatpush1.msra.mxu0 %v116
  %364 = vmatprep.subr.mxu0 0.0
  %365 = vmatpush1.msra.mxu0 %v117
  %366 = vmatprep.subr.mxu0 0.0
  %367 = vmatpush1.msra.mxu0 %v118
  %368 = vmatprep.subr.mxu0 0.0
  %369 = vmatpush1.msra.mxu0 %v119
  %370 = vmatprep.subr.mxu0 0.0
  %371 = vmatpush1.msra.mxu0 %v120
  %372 = vmatprep.subr.mxu0 0.0
  %373 = vmatpush1.msra.mxu0 %v121
  %374 = vmatprep.mubr.f32.mxu0 %v22
  %375 = vmatmul.mubr.f32.gmra.mrb[0].mxu0 %v21
  %v376 = vpop.f32.mrb[0].mxu0
  %v377 = vadd.f32 %v307, %v376
  %v378 = vpop.f32.mrb[0].mxu0
  %379 = vdwg.mxu0
  %380 = vmatprep.subr.mxu0 0.0
  %381 = vmatpush1.msra.mxu0 %v122
  %382 = vmatprep.subr.mxu0 0.0
  %383 = vmatpush1.msra.mxu0 %v123
  %384 = vmatprep.subr.mxu0 0.0
  %385 = vmatpush1.msra.mxu0 %v124
  %386 = vmatprep.subr.mxu0 0.0
  %387 = vmatpush1.msra.mxu0 %v125
  %388 = vmatprep.subr.mxu0 0.0
  %389 = vmatpush1.msra.mxu0 %v126
  %390 = vmatprep.subr.mxu0 0.0
  %391 = vmatpush1.msra.mxu0 %v127
  %392 = vmatprep.subr.mxu0 0.0
  %393 = vmatpush1.msra.mxu0 %v128
  %394 = vmatprep.subr.mxu0 0.0
  %395 = vmatpush1.msra.mxu0 %v129
  %396 = vmatprep.subr.mxu0 0.0
  %397 = vmatpush1.msra.mxu0 %v130
  %398 = vmatprep.subr.mxu0 0.0
  %399 = vmatpush1.msra.mxu0 %v131
  %400 = vmatprep.subr.mxu0 0.0
  %401 = vmatpush1.msra.mxu0 %v132
  %402 = vmatprep.subr.mxu0 0.0
  %403 = vmatpush1.msra.mxu0 %v133
  %404 = vmatprep.subr.mxu0 0.0
  %405 = vmatpush1.msra.mxu0 %v134
  %406 = vmatprep.subr.mxu0 0.0
  %407 = vmatpush1.msra.mxu0 %v135
  %408 = vmatprep.subr.mxu0 0.0
  %409 = vmatpush1.msra.mxu0 %v136
  %410 = vmatprep.subr.mxu0 0.0
  %411 = vmatpush1.msra.mxu0 %v137
  %412 = vmatprep.subr.mxu0 0.0
  %413 = vmatpush1.msra.mxu0 %v138
  %414 = vmatprep.subr.mxu0 0.0
  %415 = vmatpush1.msra.mxu0 %v139
  %416 = vmatprep.subr.mxu0 0.0
  %417 = vmatpush1.msra.mxu0 %v140
  %418 = vmatprep.subr.mxu0 0.0
  %419 = vmatpush1.msra.mxu0 %v141
  %420 = vmatprep.subr.mxu0 0.0
  %421 = vmatpush1.msra.mxu0 %v142
  %422 = vmatprep.subr.mxu0 0.0
  %423 = vmatpush1.msra.mxu0 %v143
  %424 = vmatprep.subr.mxu0 0.0
  %425 = vmatpush1.msra.mxu0 %v144
  %426 = vmatprep.subr.mxu0 0.0
  %427 = vmatpush1.msra.mxu0 %v145
  %428 = vmatprep.subr.mxu0 0.0
  %429 = vmatpush1.msra.mxu0 %v146
  %430 = vmatprep.subr.mxu0 0.0
  %431 = vmatpush1.msra.mxu0 %v147
  %432 = vmatprep.subr.mxu0 0.0
  %433 = vmatpush1.msra.mxu0 %v148
  %434 = vmatprep.subr.mxu0 0.0
  %435 = vmatpush1.msra.mxu0 %v149
  %436 = vmatprep.subr.mxu0 0.0
  %437 = vmatpush1.msra.mxu0 %v150
  %438 = vmatprep.subr.mxu0 0.0
  %439 = vmatpush1.msra.mxu0 %v151
  %440 = vmatprep.subr.mxu0 0.0
  %441 = vmatpush1.msra.mxu0 %v152
  %442 = vmatprep.subr.mxu0 0.0
  %443 = vmatpush1.msra.mxu0 %v153
  %444 = vmatprep.mubr.f32.mxu0 %v24
  %445 = vmatmul.mubr.f32.gmra.mrb[0].mxu0 %v23
  %v446 = vpop.f32.mrb[0].mxu0
  %v447 = vadd.f32 %v377, %v446
  %v448 = vpop.f32.mrb[0].mxu0
  %449 = vdwg.mxu0
  %450 = vmatprep.subr.mxu0 0.0
  %451 = vmatpush1.msra.mxu0 %v154
  %452 = vmatprep.subr.mxu0 0.0
  %453 = vmatpush1.msra.mxu0 %v155
  %454 = vmatprep.subr.mxu0 0.0
  %455 = vmatpush1.msra.mxu0 %v156
  %456 = vmatprep.subr.mxu0 0.0
  %457 = vmatpush1.msra.mxu0 %v157
  %458 = vmatprep.subr.mxu0 0.0
  %459 = vmatpush1.msra.mxu0 %v158
  %460 = vmatprep.subr.mxu0 0.0
  %461 = vmatpush1.msra.mxu0 %v159
  %462 = vmatprep.subr.mxu0 0.0
  %463 = vmatpush1.msra.mxu0 %v160
  %464 = vmatprep.subr.mxu0 0.0
  %465 = vmatpush1.msra.mxu0 %v161
  %466 = vmatprep.subr.mxu0 0.0
  %467 = vmatpush1.msra.mxu0 %v162
  %468 = vmatprep.subr.mxu0 0.0
  %469 = vmatpush1.msra.mxu0 %v163
  %470 = vmatprep.subr.mxu0 0.0
  %471 = vmatpush1.msra.mxu0 %v164
  %472 = vmatprep.subr.mxu0 0.0
  %473 = vmatpush1.msra.mxu0 %v165
  %474 = vmatprep.subr.mxu0 0.0
  %475 = vmatpush1.msra.mxu0 %v166
  %476 = vmatprep.subr.mxu0 0.0
  %477 = vmatpush1.msra.mxu0 %v167
  %478 = vmatprep.subr.mxu0 0.0
  %479 = vmatpush1.msra.mxu0 %v168
  %480 = vmatprep.subr.mxu0 0.0
  %481 = vmatpush1.msra.mxu0 %v169
  %482 = vmatprep.subr.mxu0 0.0
  %483 = vmatpush1.msra.mxu0 0.0
  %484 = vmatprep.subr.mxu0 0.0
  %485 = vmatpush1.msra.mxu0 0.0
  %486 = vmatprep.subr.mxu0 0.0
  %487 = vmatpush1.msra.mxu0 0.0
  %488 = vmatprep.subr.mxu0 0.0
  %489 = vmatpush1.msra.mxu0 0.0
  %490 = vmatprep.subr.mxu0 0.0
  %491 = vmatpush1.msra.mxu0 0.0
  %492 = vmatprep.subr.mxu0 0.0
  %493 = vmatpush1.msra.mxu0 0.0
  %494 = vmatprep.subr.mxu0 0.0
  %495 = vmatpush1.msra.mxu0 0.0
  %496 = vmatprep.subr.mxu0 0.0
  %497 = vmatpush1.msra.mxu0 0.0
  %498 = vmatprep.subr.mxu0 0.0
  %499 = vmatpush1.msra.mxu0 0.0
  %500 = vmatprep.subr.mxu0 0.0
  %501 = vmatpush1.msra.mxu0 0.0
  %502 = vmatprep.subr.mxu0 0.0
  %503 = vmatpush1.msra.mxu0 0.0
  %504 = vmatprep.subr.mxu0 0.0
  %505 = vmatpush1.msra.mxu0 0.0
  %506 = vmatprep.subr.mxu0 0.0
  %507 = vmatpush1.msra.mxu0 0.0
  %508 = vmatprep.subr.mxu0 0.0
  %509 = vmatpush1.msra.mxu0 0.0
  %510 = vmatprep.subr.mxu0 0.0
  %511 = vmatpush1.msra.mxu0 0.0
  %512 = vmatprep.subr.mxu0 0.0
  %513 = vmatpush1.msra.mxu0 0.0
  %514 = vmatprep.mubr.f32.mxu0 0.0
  %515 = vmatmul.mubr.f32.gmra.mrb[0].mxu0 %v25
  %v516 = vpop.f32.mrb[0].mxu0
  %v517 = vadd.f32 %v447, %v516
  %v518 = vpop.f32.mrb[0].mxu0
  %519 = vdwg.mxu0
  %v520 = vld [vmem:[%s2] sm:$0x1]
  %v522 = vlaneseq
  %v523 = vshrl.u32 %v522, 7
  %v524 = vsub.s32 0, %v523
  %v525 = vrot.slane %v520, %v524
  %v527 = vmul.f32 %v517, %v525
  %v528 = vld [vmem:[%s3] sm:$0x1]
  %v530 = vlaneseq
  %v531 = vshrl.u32 %v530, 7
  %v532 = vsub.s32 0, %v531
  %v533 = vrot.slane %v528, %v532
  %v535 = vadd.f32 %v527, %v533
  %536 = vst [vmem:[%s4] sm:$0xff] %v535
  // Predicated region
  $region18: #{coordinator_forward.23} parent=0 // pred_check
    _
  $region19: #{coordinator_forward.23} parent=0 // pred_check_branch
    %538 = sbr.rel (0) target = $region21
  $region20: #{coordinator_forward.23} parent=0 // pred_region
    _
  $region21: #{coordinator_forward.23} parent=0 // pred_fallthru
    _
  // Predicated region
  $region22: #{coordinator_forward.23} parent=0 // pred_check
    _
  $region23: #{coordinator_forward.23} parent=0 // pred_check_branch
    %540 = sbr.rel (0) target = $region25
  $region24: #{coordinator_forward.23} parent=0 // pred_region
    _
  $region25: #{coordinator_forward.23} parent=0 // pred_fallthru
    _

// kernel: coordinator_forward.24
$region0: #{coordinator_forward.24}
  #allocation0 [shape = 'u32[]', space=smem, size = 0x4, offset = 0x4, fixed_abs, tag = 'smem constant byte address 0x4 - core index']
  #allocation1 [shape = 'u32[144,128]{1,0:T(1,128)}', space=vmem, size = 0x12000, scoped, tag = 'internal scratch']
  %s0 = inlined_call_operand.vmem [shape: f32[8,512], index: 0, kind: input, shape index: {}]
  %s1 = inlined_call_operand.vmem [shape: f32[512,128], index: 1, kind: input, shape index: {}]
  %s2 = inlined_call_operand.vmem [shape: f32[1,128], index: 2, kind: input, shape index: {}]
  %s3 = inlined_call_operand.vmem [shape: f32[1,128], index: 3, kind: input, shape index: {}]
  %s4 = inlined_call_operand.vmem [shape: f32[8,128], index: 4, kind: output, shape index: {}]
  %s5 = sld [smem:[#allocation0]]
  $region26: #{coordinator_forward.24} parent=0
    _
  %s7 = ssub.s32 1, %s5
  %s8 = scalar_select 0, %s7, %s5
  // Predicated region
  $region2: #{coordinator_forward.24} parent=0 // pred_check
    _
  $region3: #{coordinator_forward.24} parent=0 // pred_check_branch
    %10 = sbr.rel (0) target = $region5
  $region4: #{coordinator_forward.24} parent=0 // pred_region
    _
  $region5: #{coordinator_forward.24} parent=0 // pred_fallthru
    _
  // Predicated region
  $region6: #{coordinator_forward.24} parent=0 // pred_check
    _
  $region7: #{coordinator_forward.24} parent=0 // pred_check_branch
    %12 = sbr.rel (0) target = $region9
  $region8: #{coordinator_forward.24} parent=0 // pred_region
    _
  $region9: #{coordinator_forward.24} parent=0 // pred_fallthru
    _
  // Predicated region
  $region10: #{coordinator_forward.24} parent=0 // pred_check
    _
  $region11: #{coordinator_forward.24} parent=0 // pred_check_branch
    %14 = sbr.rel (0) target = $region13
  $region12: #{coordinator_forward.24} parent=0 // pred_region
    _
  $region13: #{coordinator_forward.24} parent=0 // pred_fallthru
    _
  // Predicated region
  $region14: #{coordinator_forward.24} parent=0 // pred_check
    _
  $region15: #{coordinator_forward.24} parent=0 // pred_check_branch
    %16 = sbr.rel (0) target = $region17
  $region16: #{coordinator_forward.24} parent=0 // pred_region
    _
  $region17: #{coordinator_forward.24} parent=0 // pred_fallthru
    _
  %v17 = vld [vmem:[%s0] sm:$0xff]
  %v18 = vld [vmem:[%s0 + $0x8] sm:$0xff]
  %v19 = vld [vmem:[%s0 + $0x10] sm:$0xff]
  %v20 = vld [vmem:[%s0 + $0x18] sm:$0xff]
  %v21 = vld [vmem:[%s1] sm:$0xff]
  %v22 = vld [vmem:[%s1 + $0x8] sm:$0xff]
  %v23 = vld [vmem:[%s1 + $0x10] sm:$0xff]
  %v24 = vld [vmem:[%s1 + $0x18] sm:$0xff]
  %v25 = vld [vmem:[%s1 + $0x20] sm:$0xff]
  %v26 = vld [vmem:[%s1 + $0x28] sm:$0xff]
  %v27 = vld [vmem:[%s1 + $0x30] sm:$0xff]
  %v28 = vld [vmem:[%s1 + $0x38] sm:$0xff]
  %v29 = vld [vmem:[%s1 + $0x40] sm:$0xff]
  %v30 = vld [vmem:[%s1 + $0x48] sm:$0xff]
  %v31 = vld [vmem:[%s1 + $0x50] sm:$0xff]
  %v32 = vld [vmem:[%s1 + $0x58] sm:$0xff]
  %v33 = vld [vmem:[%s1 + $0x60] sm:$0xff]
  %v34 = vld [vmem:[%s1 + $0x68] sm:$0xff]
  %v35 = vld [vmem:[%s1 + $0x70] sm:$0xff]
  %v36 = vld [vmem:[%s1 + $0x78] sm:$0xff]
  %v37 = vld [vmem:[%s1 + $0x80] sm:$0xff]
  %v38 = vld [vmem:[%s1 + $0x88] sm:$0xff]
  %v39 = vld [vmem:[%s1 + $0x90] sm:$0xff]
  %v40 = vld [vmem:[%s1 + $0x98] sm:$0xff]
  %v41 = vld [vmem:[%s1 + $0xa0] sm:$0xff]
  %v42 = vld [vmem:[%s1 + $0xa8] sm:$0xff]
  %v43 = vld [vmem:[%s1 + $0xb0] sm:$0xff]
  %v44 = vld [vmem:[%s1 + $0xb8] sm:$0xff]
  %v45 = vld [vmem:[%s1 + $0xc0] sm:$0xff]
  %v46 = vld [vmem:[%s1 + $0xc8] sm:$0xff]
  %v47 = vld [vmem:[%s1 + $0xd0] sm:$0xff]
  %v48 = vld [vmem:[%s1 + $0xd8] sm:$0xff]
  %v49 = vld [vmem:[%s1 + $0xe0] sm:$0xff]
  %v50 = vld [vmem:[%s1 + $0xe8] sm:$0xff]
  %v51 = vld [vmem:[%s1 + $0xf0] sm:$0xff]
  %v52 = vld [vmem:[%s1 + $0xf8] sm:$0xff]
  %v53 = vld [vmem:[%s1 + $0x100] sm:$0xff]
  %v54 = vld [vmem:[%s1 + $0x108] sm:$0xff]
  %v55 = vld [vmem:[%s1 + $0x110] sm:$0xff]
  %v56 = vld [vmem:[%s1 + $0x118] sm:$0xff]
  %v57 = vld [vmem:[%s1 + $0x120] sm:$0xff]
  %v58 = vld [vmem:[%s1 + $0x128] sm:$0xff]
  %v59 = vld [vmem:[%s1 + $0x130] sm:$0xff]
  %v60 = vld [vmem:[%s1 + $0x138] sm:$0xff]
  %v61 = vld [vmem:[%s1 + $0x140] sm:$0xff]
  %v62 = vld [vmem:[%s1 + $0x148] sm:$0xff]
  %v63 = vld [vmem:[%s1 + $0x150] sm:$0xff]
  %v64 = vld [vmem:[%s1 + $0x158] sm:$0xff]
  %v65 = vld [vmem:[%s1 + $0x160] sm:$0xff]
  %v66 = vld [vmem:[%s1 + $0x168] sm:$0xff]
  %v67 = vld [vmem:[%s1 + $0x170] sm:$0xff]
  %v68 = vld [vmem:[%s1 + $0x178] sm:$0xff]
  %v69 = vld [vmem:[%s1 + $0x180] sm:$0xff]
  %v70 = vld [vmem:[%s1 + $0x188] sm:$0xff]
  %v71 = vld [vmem:[%s1 + $0x190] sm:$0xff]
  %v72 = vld [vmem:[%s1 + $0x198] sm:$0xff]
  %v73 = vld [vmem:[%s1 + $0x1a0] sm:$0xff]
  %v74 = vld [vmem:[%s1 + $0x1a8] sm:$0xff]
  %v75 = vld [vmem:[%s1 + $0x1b0] sm:$0xff]
  %v76 = vld [vmem:[%s1 + $0x1b8] sm:$0xff]
  %v77 = vld [vmem:[%s1 + $0x1c0] sm:$0xff]
  %v78 = vld [vmem:[%s1 + $0x1c8] sm:$0xff]
  %v79 = vld [vmem:[%s1 + $0x1d0] sm:$0xff]
  %v80 = vld [vmem:[%s1 + $0x1d8] sm:$0xff]
  %v81 = vld [vmem:[%s1 + $0x1e0] sm:$0xff]
  %v82 = vld [vmem:[%s1 + $0x1e8] sm:$0xff]
  %v83 = vld [vmem:[%s1 + $0x1f0] sm:$0xff]
  %v84 = vld [vmem:[%s1 + $0x1f8] sm:$0xff]
  %85 = vmatprep.subr.mxu0 0.0
  %86 = vmatpush1.msra.mxu0 %v21
  %87 = vmatprep.subr.mxu0 0.0
  %88 = vmatpush1.msra.mxu0 %v22
  %89 = vmatprep.subr.mxu0 0.0
  %90 = vmatpush1.msra.mxu0 %v23
  %91 = vmatprep.subr.mxu0 0.0
  %92 = vmatpush1.msra.mxu0 %v24
  %93 = vmatprep.subr.mxu0 0.0
  %94 = vmatpush1.msra.mxu0 %v25
  %95 = vmatprep.subr.mxu0 0.0
  %96 = vmatpush1.msra.mxu0 %v26
  %97 = vmatprep.subr.mxu0 0.0
  %98 = vmatpush1.msra.mxu0 %v27
  %99 = vmatprep.subr.mxu0 0.0
  %100 = vmatpush1.msra.mxu0 %v28
  %101 = vmatprep.subr.mxu0 0.0
  %102 = vmatpush1.msra.mxu0 %v29
  %103 = vmatprep.subr.mxu0 0.0
  %104 = vmatpush1.msra.mxu0 %v30
  %105 = vmatprep.subr.mxu0 0.0
  %106 = vmatpush1.msra.mxu0 %v31
  %107 = vmatprep.subr.mxu0 0.0
  %108 = vmatpush1.msra.mxu0 %v32
  %109 = vmatprep.subr.mxu0 0.0
  %110 = vmatpush1.msra.mxu0 %v33
  %111 = vmatprep.subr.mxu0 0.0
  %112 = vmatpush1.msra.mxu0 %v34
  %113 = vmatprep.subr.mxu0 0.0
  %114 = vmatpush1.msra.mxu0 %v35
  %115 = vmatprep.subr.mxu0 0.0
  %116 = vmatpush1.msra.mxu0 %v36
  %117 = vmatprep.subr.mxu0 0.0
  %118 = vmatpush1.msra.mxu0 %v37
  %119 = vmatprep.subr.mxu0 0.0
  %120 = vmatpush1.msra.mxu0 %v38
  %121 = vmatprep.subr.mxu0 0.0
  %122 = vmatpush1.msra.mxu0 %v39
  %123 = vmatprep.subr.mxu0 0.0
  %124 = vmatpush1.msra.mxu0 %v40
  %125 = vmatprep.subr.mxu0 0.0
  %126 = vmatpush1.msra.mxu0 %v41
  %127 = vmatprep.subr.mxu0 0.0
  %128 = vmatpush1.msra.mxu0 %v42
  %129 = vmatprep.subr.mxu0 0.0
  %130 = vmatpush1.msra.mxu0 %v43
  %131 = vmatprep.subr.mxu0 0.0
  %132 = vmatpush1.msra.mxu0 %v44
  %133 = vmatprep.subr.mxu0 0.0
  %134 = vmatpush1.msra.mxu0 %v45
  %135 = vmatprep.subr.mxu0 0.0
  %136 = vmatpush1.msra.mxu0 %v46
  %137 = vmatprep.subr.mxu0 0.0
  %138 = vmatpush1.msra.mxu0 %v47
  %139 = vmatprep.subr.mxu0 0.0
  %140 = vmatpush1.msra.mxu0 %v48
  %141 = vmatprep.subr.mxu0 0.0
  %142 = vmatpush1.msra.mxu0 %v49
  %143 = vmatprep.subr.mxu0 0.0
  %144 = vmatpush1.msra.mxu0 %v50
  %145 = vmatprep.subr.mxu0 0.0
  %146 = vmatpush1.msra.mxu0 %v51
  %147 = vmatprep.subr.mxu0 0.0
  %148 = vmatpush1.msra.mxu0 %v52
  %149 = vmatprep.mubr.f32.mxu0 %v18
  %150 = vmatmul.mubr.f32.gmra.mrb[0].mxu0 %v17
  %v151 = vpop.f32.mrb[0].mxu0
  %v152 = vadd.f32 0.0, %v151
  %v153 = vpop.f32.mrb[0].mxu0
  %154 = vdwg.mxu0
  %155 = vmatprep.subr.mxu0 0.0
  %156 = vmatpush1.msra.mxu0 %v53
  %157 = vmatprep.subr.mxu0 0.0
  %158 = vmatpush1.msra.mxu0 %v54
  %159 = vmatprep.subr.mxu0 0.0
  %160 = vmatpush1.msra.mxu0 %v55
  %161 = vmatprep.subr.mxu0 0.0
  %162 = vmatpush1.msra.mxu0 %v56
  %163 = vmatprep.subr.mxu0 0.0
  %164 = vmatpush1.msra.mxu0 %v57
  %165 = vmatprep.subr.mxu0 0.0
  %166 = vmatpush1.msra.mxu0 %v58
  %167 = vmatprep.subr.mxu0 0.0
  %168 = vmatpush1.msra.mxu0 %v59
  %169 = vmatprep.subr.mxu0 0.0
  %170 = vmatpush1.msra.mxu0 %v60
  %171 = vmatprep.subr.mxu0 0.0
  %172 = vmatpush1.msra.mxu0 %v61
  %173 = vmatprep.subr.mxu0 0.0
  %174 = vmatpush1.msra.mxu0 %v62
  %175 = vmatprep.subr.mxu0 0.0
  %176 = vmatpush1.msra.mxu0 %v63
  %177 = vmatprep.subr.mxu0 0.0
  %178 = vmatpush1.msra.mxu0 %v64
  %179 = vmatprep.subr.mxu0 0.0
  %180 = vmatpush1.msra.mxu0 %v65
  %181 = vmatprep.subr.mxu0 0.0
  %182 = vmatpush1.msra.mxu0 %v66
  %183 = vmatprep.subr.mxu0 0.0
  %184 = vmatpush1.msra.mxu0 %v67
  %185 = vmatprep.subr.mxu0 0.0
  %186 = vmatpush1.msra.mxu0 %v68
  %187 = vmatprep.subr.mxu0 0.0
  %188 = vmatpush1.msra.mxu0 %v69
  %189 = vmatprep.subr.mxu0 0.0
  %190 = vmatpush1.msra.mxu0 %v70
  %191 = vmatprep.subr.mxu0 0.0
  %192 = vmatpush1.msra.mxu0 %v71
  %193 = vmatprep.subr.mxu0 0.0
  %194 = vmatpush1.msra.mxu0 %v72
  %195 = vmatprep.subr.mxu0 0.0
  %196 = vmatpush1.msra.mxu0 %v73
  %197 = vmatprep.subr.mxu0 0.0
  %198 = vmatpush1.msra.mxu0 %v74
  %199 = vmatprep.subr.mxu0 0.0
  %200 = vmatpush1.msra.mxu0 %v75
  %201 = vmatprep.subr.mxu0 0.0
  %202 = vmatpush1.msra.mxu0 %v76
  %203 = vmatprep.subr.mxu0 0.0
  %204 = vmatpush1.msra.mxu0 %v77
  %205 = vmatprep.subr.mxu0 0.0
  %206 = vmatpush1.msra.mxu0 %v78
  %207 = vmatprep.subr.mxu0 0.0
  %208 = vmatpush1.msra.mxu0 %v79
  %209 = vmatprep.subr.mxu0 0.0
  %210 = vmatpush1.msra.mxu0 %v80
  %211 = vmatprep.subr.mxu0 0.0
  %212 = vmatpush1.msra.mxu0 %v81
  %213 = vmatprep.subr.mxu0 0.0
  %214 = vmatpush1.msra.mxu0 %v82
  %215 = vmatprep.subr.mxu0 0.0
  %216 = vmatpush1.msra.mxu0 %v83
  %217 = vmatprep.subr.mxu0 0.0
  %218 = vmatpush1.msra.mxu0 %v84
  %219 = vmatprep.mubr.f32.mxu0 %v20
  %220 = vmatmul.mubr.f32.gmra.mrb[0].mxu0 %v19
  %v221 = vpop.f32.mrb[0].mxu0
  %v222 = vadd.f32 %v152, %v221
  %v223 = vpop.f32.mrb[0].mxu0
  %224 = vdwg.mxu0
  %v225 = vld [vmem:[%s2] sm:$0x1]
  %v227 = vlaneseq
  %v228 = vshrl.u32 %v227, 7
  %v229 = vsub.s32 0, %v228
  %v230 = vrot.slane %v225, %v229
  %v232 = vmul.f32 %v222, %v230
  %v233 = vld [vmem:[%s3] sm:$0x1]
  %v235 = vlaneseq
  %v236 = vshrl.u32 %v235, 7
  %v237 = vsub.s32 0, %v236
  %v238 = vrot.slane %v233, %v237
  %v240 = vadd.f32 %v232, %v238
  %v241 = vmul.f32 %v240, 0.5
  %v242 = vmul.f32 %v240, 0.70710677
  %v243 = vand.u32 2147483647, %v242
  %v244 = vmul.f32 %v243, 0.3275911
  %v245 = vadd.f32 %v244, 1.0
  %v246 = vrcp.pop %v245
  %v247 = vmul.f32 1.0, %v246
  %v248 = vmul.f32 %v247, 1.0614054
  %v249 = vadd.f32 %v248, -1.4531521
  %v250 = vmul.f32 %v249, %v247
  %v251 = vadd.f32 %v250, 1.4214138
  %v252 = vmul.f32 %v251, %v247
  %v253 = vadd.f32 %v252, -0.28449672
  %v254 = vmul.f32 %v253, %v247
  %v255 = vadd.f32 %v254, 0.2548296
  %v256 = vmul.f32 %v255, %v247
  %v257 = vsub.f32 0.0, %v243
  %v258 = vmul.f32 %v257, %v243
  %v259 = vmul.f32 %v258, 1.442695
  %v260 = vpow.pop %v259
  %v261 = vmul.f32 %v256, %v260
  %v262 = vsub.f32 1.0, %v261
  %vm263 = vcmp.lt.f32.partialorder %v242, 0.0
  %v264 = vsub.f32 0.0, %v262
  %v265 = vsel %vm263, %v264, %v262
  %v266 = vadd.f32 %v265, 1.0
  %v267 = vmul.f32 %v241, %v266
  %268 = vst [vmem:[%s4] sm:$0xff] %v267
  // Predicated region
  $region18: #{coordinator_forward.24} parent=0 // pred_check
    _
  $region19: #{coordinator_forward.24} parent=0 // pred_check_branch
    %270 = sbr.rel (0) target = $region21
  $region20: #{coordinator_forward.24} parent=0 // pred_region
    _
  $region21: #{coordinator_forward.24} parent=0 // pred_fallthru
    _
  // Predicated region
  $region22: #{coordinator_forward.24} parent=0 // pred_check
    _
  $region23: #{coordinator_forward.24} parent=0 // pred_check_branch
    %272 = sbr.rel (0) target = $region25
  $region24: #{coordinator_forward.24} parent=0 // pred_region
    _
  $region25: #{coordinator_forward.24} parent=0 // pred_fallthru
    _

// kernel: tile.43
$region0: #{tile.43}
  #allocation0 [shape = 's32[1]{0}', space=sflag, size = 0x4, scoped, tag = 'scoped memory for tile.43']
  %s0 = inlined_call_operand.vmem [shape: f32[64], index: 0, kind: input, shape index: {}]
  %s1 = inlined_call_operand.vmem [shape: f32[4,64], index: 1, kind: output, shape index: {}]
  // Predicated region
  $region2: #{tile.43} parent=0 // pred_check
    _
  $region3: #{tile.43} parent=0 // pred_check_branch
    %3 = sbr.rel (0) target = $region5
  $region4: #{tile.43} parent=0 // pred_region
    _
  $region5: #{tile.43} parent=0 // pred_fallthru
    _
  %v4 = vld [vmem:[%s0] ss:$0 sm:$0xff]
  %5 = vst [vmem:[%s1] sm:$0xf] %v4

// kernel: tile.48
$region0: #{tile.48}
  %s0 = inlined_call_operand.vmem [shape: f32[4,64], index: 0, kind: input, shape index: {}]
  %s1 = inlined_call_operand.vmem [shape: f32[1,256], index: 1, kind: output, shape index: {}]
  $region1: #{tile.48} parent=0
    #allocation0 [shape = 'u8[8192]{0}', space=vmem, size = 0x2000, scoped, tag = 'scoped mem for output reshape']
    #allocation1 [shape = 'u8[4096]{0}', space=vmem, size = 0x1000, scoped, tag = 'scoped mem for input reshape']
    %s3 = sshllo.u32 0, 4
    %v4 = vld [vmem:[%s0] sm:%s3]
    %5 = vst [vmem:[#allocation1] sm:%s3] %v4
    %s6 = smov 3
    %v7 = vld [vmem:[#allocation1] ss:$2 sm:%s6]
    %vm8 = vcmask 523264
    %9 = vst.msk [vmem:[#allocation0] ss:$8 sm:$0x3] %vm8, %v7
    %s10 = scalar_lea.vmem [#allocation1], 1
    %s11 = smov 3
    %v12 = vld [vmem:[%s10] ss:$2 sm:%s11]
    %13 = vrot.lane.b32.xlu0 %v12, 64
    %v14 = vpop.permute.xlu0 %13
    %vm15 = vcmask 1048064
    %16 = vst.msk [vmem:[#allocation0] ss:$8 sm:$0x3] %vm15, %v14
    %s18 = sshllo.u32 0, 1
    %v20 = vld [vmem:[#allocation0] sm:%s18]
    %s21 = sshllo.u32 0, 1
    %22 = vst [vmem:[%s1] sm:%s21] %v20
    %s23 = scalar_lea.vmem [#allocation0], 8
    %v24 = vld [vmem:[%s23] sm:%s18]
    %s25 = sshllo.u32 0, 1
    %s26 = scalar_lea.vmem %s1, 1
    %27 = vst [vmem:[%s26] sm:%s25] %v24

// kernel: coordinator_forward.25
$region0: #{coordinator_forward.25}
  #allocation0 [shape = 'u32[]', space=smem, size = 0x4, offset = 0x4, fixed_abs, tag = 'smem constant byte address 0x4 - core index']
  #allocation1 [shape = 'u32[144,128]{1,0:T(1,128)}', space=vmem, size = 0x12000, scoped, tag = 'internal scratch']
  %s0 = inlined_call_operand.vmem [shape: f32[8,128], index: 0, kind: input, shape index: {}]
  %s1 = inlined_call_operand.vmem [shape: f32[128,256], index: 1, kind: input, shape index: {}]
  %s2 = inlined_call_operand.vmem [shape: f32[1,256], index: 2, kind: input, shape index: {}]
  %s3 = inlined_call_operand.vmem [shape: f32[1,256], index: 3, kind: input, shape index: {}]
  %s4 = inlined_call_operand.vmem [shape: f32[8,256], index: 4, kind: output, shape index: {}]
  %s5 = sld [smem:[#allocation0]]
  $region26: #{coordinator_forward.25} parent=0
    _
  %s7 = ssub.s32 1, %s5
  %s8 = scalar_select 0, %s7, %s5
  // Predicated region
  $region2: #{coordinator_forward.25} parent=0 // pred_check
    _
  $region3: #{coordinator_forward.25} parent=0 // pred_check_branch
    %10 = sbr.rel (0) target = $region5
  $region4: #{coordinator_forward.25} parent=0 // pred_region
    _
  $region5: #{coordinator_forward.25} parent=0 // pred_fallthru
    _
  // Predicated region
  $region6: #{coordinator_forward.25} parent=0 // pred_check
    _
  $region7: #{coordinator_forward.25} parent=0 // pred_check_branch
    %12 = sbr.rel (0) target = $region9
  $region8: #{coordinator_forward.25} parent=0 // pred_region
    _
  $region9: #{coordinator_forward.25} parent=0 // pred_fallthru
    _
  // Predicated region
  $region10: #{coordinator_forward.25} parent=0 // pred_check
    _
  $region11: #{coordinator_forward.25} parent=0 // pred_check_branch
    %14 = sbr.rel (0) target = $region13
  $region12: #{coordinator_forward.25} parent=0 // pred_region
    _
  $region13: #{coordinator_forward.25} parent=0 // pred_fallthru
    _
  // Predicated region
  $region14: #{coordinator_forward.25} parent=0 // pred_check
    _
  $region15: #{coordinator_forward.25} parent=0 // pred_check_branch
    %16 = sbr.rel (0) target = $region17
  $region16: #{coordinator_forward.25} parent=0 // pred_region
    _
  $region17: #{coordinator_forward.25} parent=0 // pred_fallthru
    _
  %v17 = vld [vmem:[%s0] sm:$0xff]
  %v18 = vld [vmem:[%s1] sm:$0xff]
  %v19 = vld [vmem:[%s1 + $0x8] sm:$0xff]
  %v20 = vld [vmem:[%s1 + $0x10] sm:$0xff]
  %v21 = vld [vmem:[%s1 + $0x18] sm:$0xff]
  %v22 = vld [vmem:[%s1 + $0x20] sm:$0xff]
  %v23 = vld [vmem:[%s1 + $0x28] sm:$0xff]
  %v24 = vld [vmem:[%s1 + $0x30] sm:$0xff]
  %v25 = vld [vmem:[%s1 + $0x38] sm:$0xff]
  %v26 = vld [vmem:[%s1 + $0x40] sm:$0xff]
  %v27 = vld [vmem:[%s1 + $0x48] sm:$0xff]
  %v28 = vld [vmem:[%s1 + $0x50] sm:$0xff]
  %v29 = vld [vmem:[%s1 + $0x58] sm:$0xff]
  %v30 = vld [vmem:[%s1 + $0x60] sm:$0xff]
  %v31 = vld [vmem:[%s1 + $0x68] sm:$0xff]
  %v32 = vld [vmem:[%s1 + $0x70] sm:$0xff]
  %v33 = vld [vmem:[%s1 + $0x78] sm:$0xff]
  %v34 = vld [vmem:[%s1 + $0x80] sm:$0xff]
  %v35 = vld [vmem:[%s1 + $0x88] sm:$0xff]
  %v36 = vld [vmem:[%s1 + $0x90] sm:$0xff]
  %v37 = vld [vmem:[%s1 + $0x98] sm:$0xff]
  %v38 = vld [vmem:[%s1 + $0xa0] sm:$0xff]
  %v39 = vld [vmem:[%s1 + $0xa8] sm:$0xff]
  %v40 = vld [vmem:[%s1 + $0xb0] sm:$0xff]
  %v41 = vld [vmem:[%s1 + $0xb8] sm:$0xff]
  %v42 = vld [vmem:[%s1 + $0xc0] sm:$0xff]
  %v43 = vld [vmem:[%s1 + $0xc8] sm:$0xff]
  %v44 = vld [vmem:[%s1 + $0xd0] sm:$0xff]
  %v45 = vld [vmem:[%s1 + $0xd8] sm:$0xff]
  %v46 = vld [vmem:[%s1 + $0xe0] sm:$0xff]
  %v47 = vld [vmem:[%s1 + $0xe8] sm:$0xff]
  %v48 = vld [vmem:[%s1 + $0xf0] sm:$0xff]
  %v49 = vld [vmem:[%s1 + $0xf8] sm:$0xff]
  %50 = vmatprep.subr.mxu0 %v19
  %51 = vmatpush1.msra.mxu0 %v18
  %52 = vmatprep.subr.mxu0 %v21
  %53 = vmatpush1.msra.mxu0 %v20
  %54 = vmatprep.subr.mxu0 %v23
  %55 = vmatpush1.msra.mxu0 %v22
  %56 = vmatprep.subr.mxu0 %v25
  %57 = vmatpush1.msra.mxu0 %v24
  %58 = vmatprep.subr.mxu0 %v27
  %59 = vmatpush1.msra.mxu0 %v26
  %60 = vmatprep.subr.mxu0 %v29
  %61 = vmatpush1.msra.mxu0 %v28
  %62 = vmatprep.subr.mxu0 %v31
  %63 = vmatpush1.msra.mxu0 %v30
  %64 = vmatprep.subr.mxu0 %v33
  %65 = vmatpush1.msra.mxu0 %v32
  %66 = vmatprep.subr.mxu0 %v35
  %67 = vmatpush1.msra.mxu0 %v34
  %68 = vmatprep.subr.mxu0 %v37
  %69 = vmatpush1.msra.mxu0 %v36
  %70 = vmatprep.subr.mxu0 %v39
  %71 = vmatpush1.msra.mxu0 %v38
  %72 = vmatprep.subr.mxu0 %v41
  %73 = vmatpush1.msra.mxu0 %v40
  %74 = vmatprep.subr.mxu0 %v43
  %75 = vmatpush1.msra.mxu0 %v42
  %76 = vmatprep.subr.mxu0 %v45
  %77 = vmatpush1.msra.mxu0 %v44
  %78 = vmatprep.subr.mxu0 %v47
  %79 = vmatpush1.msra.mxu0 %v46
  %80 = vmatprep.subr.mxu0 %v49
  %81 = vmatpush1.msra.mxu0 %v48
  %82 = vmatprep.subr.mxu0 0.0
  %83 = vmatpush1.msra.mxu0 0.0
  %84 = vmatprep.subr.mxu0 0.0
  %85 = vmatpush1.msra.mxu0 0.0
  %86 = vmatprep.subr.mxu0 0.0
  %87 = vmatpush1.msra.mxu0 0.0
  %88 = vmatprep.subr.mxu0 0.0
  %89 = vmatpush1.msra.mxu0 0.0
  %90 = vmatprep.subr.mxu0 0.0
  %91 = vmatpush1.msra.mxu0 0.0
  %92 = vmatprep.subr.mxu0 0.0
  %93 = vmatpush1.msra.mxu0 0.0
  %94 = vmatprep.subr.mxu0 0.0
  %95 = vmatpush1.msra.mxu0 0.0
  %96 = vmatprep.subr.mxu0 0.0
  %97 = vmatpush1.msra.mxu0 0.0
  %98 = vmatprep.subr.mxu0 0.0
  %99 = vmatpush1.msra.mxu0 0.0
  %100 = vmatprep.subr.mxu0 0.0
  %101 = vmatpush1.msra.mxu0 0.0
  %102 = vmatprep.subr.mxu0 0.0
  %103 = vmatpush1.msra.mxu0 0.0
  %104 = vmatprep.subr.mxu0 0.0
  %105 = vmatpush1.msra.mxu0 0.0
  %106 = vmatprep.subr.mxu0 0.0
  %107 = vmatpush1.msra.mxu0 0.0
  %108 = vmatprep.subr.mxu0 0.0
  %109 = vmatpush1.msra.mxu0 0.0
  %110 = vmatprep.subr.mxu0 0.0
  %111 = vmatpush1.msra.mxu0 0.0
  %112 = vmatprep.subr.mxu0 0.0
  %113 = vmatpush1.msra.mxu0 0.0
  %114 = vmatprep.mubr.f32.mxu0 0.0
  %115 = vmatmul.mubr.f32.gmra.mrb[0].mxu0 %v17
  %v116 = vpop.f32.mrb[0].mxu0
  %v117 = vadd.f32 0.0, %v116
  %v118 = vpop.f32.mrb[0].mxu0
  %v119 = vadd.f32 0.0, %v118
  %120 = vdwg.mxu0
  %v121 = vld [vmem:[%s2] sm:$0x3]
  %v123 = vlaneseq
  %v124 = vshrl.u32 %v123, 7
  %v125 = vsub.s32 0, %v124
  %v126 = vrot.slane %v121, %v125
  %v127 = vlaneseq
  %v128 = vshrl.u32 %v127, 7
  %v129 = vsub.s32 1, %v128
  %v130 = vrot.slane %v121, %v129
  %v133 = vmul.f32 %v117, %v126
  %v134 = vmul.f32 %v119, %v130
  %v135 = vld [vmem:[%s3] sm:$0x3]
  %v137 = vlaneseq
  %v138 = vshrl.u32 %v137, 7
  %v139 = vsub.s32 0, %v138
  %v140 = vrot.slane %v135, %v139
  %v141 = vlaneseq
  %v142 = vshrl.u32 %v141, 7
  %v143 = vsub.s32 1, %v142
  %v144 = vrot.slane %v135, %v143
  %v147 = vadd.f32 %v133, %v140
  %v148 = vadd.f32 %v134, %v144
  %v149 = vmul.f32 %v147, 0.5
  %v150 = vmul.f32 %v148, 0.5
  %v151 = vmul.f32 %v147, 0.70710677
  %v152 = vmul.f32 %v148, 0.70710677
  %v153 = vand.u32 2147483647, %v151
  %v154 = vand.u32 2147483647, %v152
  %v155 = vmul.f32 %v153, 0.3275911
  %v156 = vmul.f32 %v154, 0.3275911
  %v157 = vadd.f32 %v155, 1.0
  %v158 = vadd.f32 %v156, 1.0
  %v159 = vrcp.pop %v157
  %v160 = vmul.f32 1.0, %v159
  %v161 = vrcp.pop %v158
  %v162 = vmul.f32 1.0, %v161
  %v163 = vmul.f32 %v160, 1.0614054
  %v164 = vmul.f32 %v162, 1.0614054
  %v165 = vadd.f32 %v163, -1.4531521
  %v166 = vadd.f32 %v164, -1.4531521
  %v167 = vmul.f32 %v165, %v160
  %v168 = vmul.f32 %v166, %v162
  %v169 = vadd.f32 %v167, 1.4214138
  %v170 = vadd.f32 %v168, 1.4214138
  %v171 = vmul.f32 %v169, %v160
  %v172 = vmul.f32 %v170, %v162
  %v173 = vadd.f32 %v171, -0.28449672
  %v174 = vadd.f32 %v172, -0.28449672
  %v175 = vmul.f32 %v173, %v160
  %v176 = vmul.f32 %v174, %v162
  %v177 = vadd.f32 %v175, 0.2548296
  %v178 = vadd.f32 %v176, 0.2548296
  %v179 = vmul.f32 %v177, %v160
  %v180 = vmul.f32 %v178, %v162
  %v181 = vsub.f32 0.0, %v153
  %v182 = vsub.f32 0.0, %v154
  %v183 = vmul.f32 %v181, %v153
  %v184 = vmul.f32 %v182, %v154
  %v185 = vmul.f32 %v183, 1.442695
  %v186 = vpow.pop %v185
  %v187 = vmul.f32 %v184, 1.442695
  %v188 = vpow.pop %v187
  %v189 = vmul.f32 %v179, %v186
  %v190 = vmul.f32 %v180, %v188
  %v191 = vsub.f32 1.0, %v189
  %v192 = vsub.f32 1.0, %v190
  %vm193 = vcmp.lt.f32.partialorder %v151, 0.0
  %vm194 = vcmp.lt.f32.partialorder %v152, 0.0
  %v195 = vsub.f32 0.0, %v191
  %v196 = vsub.f32 0.0, %v192
  %v197 = vsel %vm193, %v195, %v191
  %v198 = vsel %vm194, %v196, %v192
  %v199 = vadd.f32 %v197, 1.0
  %v200 = vadd.f32 %v198, 1.0
  %v201 = vmul.f32 %v149, %v199
  %v202 = vmul.f32 %v150, %v200
  %203 = vst [vmem:[%s4] sm:$0xff] %v201
  %204 = vst [vmem:[%s4 + $0x8] sm:$0xff] %v202
  // Predicated region
  $region18: #{coordinator_forward.25} parent=0 // pred_check
    _
  $region19: #{coordinator_forward.25} parent=0 // pred_check_branch
    %206 = sbr.rel (0) target = $region21
  $region20: #{coordinator_forward.25} parent=0 // pred_region
    _
  $region21: #{coordinator_forward.25} parent=0 // pred_fallthru
    _
  // Predicated region
  $region22: #{coordinator_forward.25} parent=0 // pred_check
    _
  $region23: #{coordinator_forward.25} parent=0 // pred_check_branch
    %208 = sbr.rel (0) target = $region25
  $region24: #{coordinator_forward.25} parent=0 // pred_region
    _
  $region25: #{coordinator_forward.25} parent=0 // pred_fallthru
    _

// kernel: tile.53
$region0: #{tile.53}
  #allocation0 [shape = 's32[1]{0}', space=sflag, size = 0x4, scoped, tag = 'scoped memory for tile.53']
  %s0 = inlined_call_operand.vmem [shape: f32[32], index: 0, kind: input, shape index: {}]
  %s1 = inlined_call_operand.vmem [shape: f32[4,32], index: 1, kind: output, shape index: {}]
  // Predicated region
  $region2: #{tile.53} parent=0 // pred_check
    _
  $region3: #{tile.53} parent=0 // pred_check_branch
    %3 = sbr.rel (0) target = $region5
  $region4: #{tile.53} parent=0 // pred_region
    _
  $region5: #{tile.53} parent=0 // pred_fallthru
    _
  %v4 = vld [vmem:[%s0] ss:$0 sm:$0xff]
  %5 = vst [vmem:[%s1] sm:$0xf] %v4

// kernel: tile.58
$region0: #{tile.58}
  %s0 = inlined_call_operand.vmem [shape: f32[4,32], index: 0, kind: input, shape index: {}]
  %s1 = inlined_call_operand.vmem [shape: f32[1,128], index: 1, kind: output, shape index: {}]
  $region1: #{tile.58} parent=0
    #allocation0 [shape = 'u8[4096]{0}', space=vmem, size = 0x1000, scoped, tag = 'scoped mem for output reshape']
    #allocation1 [shape = 'u8[4096]{0}', space=vmem, size = 0x1000, scoped, tag = 'scoped mem for input reshape']
    %s3 = sshllo.u32 0, 4
    %v4 = vld [vmem:[%s0] sm:%s3]
    %5 = vst [vmem:[#allocation1] sm:%s3] %v4
    %v6 = vld [vmem:[#allocation1] sm:$0x1]
    %vm7 = vcmask 261120
    %8 = vst.msk [vmem:[#allocation0] sm:$0x1] %vm7, %v6
    %s9 = scalar_lea.vmem [#allocation1], 3
    %v10 = vld [vmem:[%s9] sm:$0x1]
    %11 = vrot.lane.b32.xlu0 %v10, 96
    %v12 = vpop.permute.xlu0 %11
    %vm13 = vcmask 1048320
    %14 = vst.msk [vmem:[#allocation0] sm:$0x1] %vm13, %v12
    %s15 = scalar_lea.vmem [#allocation1], 2
    %v16 = vld [vmem:[%s15] sm:$0x1]
    %17 = vrot.lane.b32.xlu0 %v16, 64
    %v18 = vpop.permute.xlu0 %17
    %vm19 = vcmask 785920
    %20 = vst.msk [vmem:[#allocation0] sm:$0x1] %vm19, %v18
    %s21 = scalar_lea.vmem [#allocation1], 1
    %v22 = vld [vmem:[%s21] sm:$0x1]
    %23 = vrot.lane.b32.xlu0 %v22, 32
    %v24 = vpop.permute.xlu0 %23
    %vm25 = vcmask 523520
    %26 = vst.msk [vmem:[#allocation0] sm:$0x1] %vm25, %v24
    %s28 = sshllo.u32 0, 1
    %v30 = vld [vmem:[#allocation0] sm:%s28]
    %s31 = sshllo.u32 0, 1
    %32 = vst [vmem:[%s1] sm:%s31] %v30

// kernel: coordinator_forward.26
$region0: #{coordinator_forward.26}
  #allocation0 [shape = 'u32[]', space=smem, size = 0x4, offset = 0x4, fixed_abs, tag = 'smem constant byte address 0x4 - core index']
  #allocation1 [shape = 'u32[144,128]{1,0:T(1,128)}', space=vmem, size = 0x12000, scoped, tag = 'internal scratch']
  %s0 = inlined_call_operand.vmem [shape: f32[8,128], index: 0, kind: input, shape index: {}]
  %s1 = inlined_call_operand.vmem [shape: f32[128,128], index: 1, kind: input, shape index: {}]
  %s2 = inlined_call_operand.vmem [shape: f32[1,128], index: 2, kind: input, shape index: {}]
  %s3 = inlined_call_operand.vmem [shape: f32[1,128], index: 3, kind: input, shape index: {}]
  %s4 = inlined_call_operand.vmem [shape: f32[8,128], index: 4, kind: output, shape index: {}]
  %s5 = sld [smem:[#allocation0]]
  $region26: #{coordinator_forward.26} parent=0
    _
  %s7 = ssub.s32 1, %s5
  %s8 = scalar_select 0, %s7, %s5
  // Predicated region
  $region2: #{coordinator_forward.26} parent=0 // pred_check
    _
  $region3: #{coordinator_forward.26} parent=0 // pred_check_branch
    %10 = sbr.rel (0) target = $region5
  $region4: #{coordinator_forward.26} parent=0 // pred_region
    _
  $region5: #{coordinator_forward.26} parent=0 // pred_fallthru
    _
  // Predicated region
  $region6: #{coordinator_forward.26} parent=0 // pred_check
    _
  $region7: #{coordinator_forward.26} parent=0 // pred_check_branch
    %12 = sbr.rel (0) target = $region9
  $region8: #{coordinator_forward.26} parent=0 // pred_region
    _
  $region9: #{coordinator_forward.26} parent=0 // pred_fallthru
    _
  // Predicated region
  $region10: #{coordinator_forward.26} parent=0 // pred_check
    _
  $region11: #{coordinator_forward.26} parent=0 // pred_check_branch
    %14 = sbr.rel (0) target = $region13
  $region12: #{coordinator_forward.26} parent=0 // pred_region
    _
  $region13: #{coordinator_forward.26} parent=0 // pred_fallthru
    _
  // Predicated region
  $region14: #{coordinator_forward.26} parent=0 // pred_check
    _
  $region15: #{coordinator_forward.26} parent=0 // pred_check_branch
    %16 = sbr.rel (0) target = $region17
  $region16: #{coordinator_forward.26} parent=0 // pred_region
    _
  $region17: #{coordinator_forward.26} parent=0 // pred_fallthru
    _
  %v17 = vld [vmem:[%s0] sm:$0xff]
  %v18 = vld [vmem:[%s1] sm:$0xff]
  %v19 = vld [vmem:[%s1 + $0x8] sm:$0xff]
  %v20 = vld [vmem:[%s1 + $0x10] sm:$0xff]
  %v21 = vld [vmem:[%s1 + $0x18] sm:$0xff]
  %v22 = vld [vmem:[%s1 + $0x20] sm:$0xff]
  %v23 = vld [vmem:[%s1 + $0x28] sm:$0xff]
  %v24 = vld [vmem:[%s1 + $0x30] sm:$0xff]
  %v25 = vld [vmem:[%s1 + $0x38] sm:$0xff]
  %v26 = vld [vmem:[%s1 + $0x40] sm:$0xff]
  %v27 = vld [vmem:[%s1 + $0x48] sm:$0xff]
  %v28 = vld [vmem:[%s1 + $0x50] sm:$0xff]
  %v29 = vld [vmem:[%s1 + $0x58] sm:$0xff]
  %v30 = vld [vmem:[%s1 + $0x60] sm:$0xff]
  %v31 = vld [vmem:[%s1 + $0x68] sm:$0xff]
  %v32 = vld [vmem:[%s1 + $0x70] sm:$0xff]
  %v33 = vld [vmem:[%s1 + $0x78] sm:$0xff]
  %34 = vmatprep.subr.mxu0 0.0
  %35 = vmatpush1.msra.mxu0 %v18
  %36 = vmatprep.subr.mxu0 0.0
  %37 = vmatpush1.msra.mxu0 %v19
  %38 = vmatprep.subr.mxu0 0.0
  %39 = vmatpush1.msra.mxu0 %v20
  %40 = vmatprep.subr.mxu0 0.0
  %41 = vmatpush1.msra.mxu0 %v21
  %42 = vmatprep.subr.mxu0 0.0
  %43 = vmatpush1.msra.mxu0 %v22
  %44 = vmatprep.subr.mxu0 0.0
  %45 = vmatpush1.msra.mxu0 %v23
  %46 = vmatprep.subr.mxu0 0.0
  %47 = vmatpush1.msra.mxu0 %v24
  %48 = vmatprep.subr.mxu0 0.0
  %49 = vmatpush1.msra.mxu0 %v25
  %50 = vmatprep.subr.mxu0 0.0
  %51 = vmatpush1.msra.mxu0 %v26
  %52 = vmatprep.subr.mxu0 0.0
  %53 = vmatpush1.msra.mxu0 %v27
  %54 = vmatprep.subr.mxu0 0.0
  %55 = vmatpush1.msra.mxu0 %v28
  %56 = vmatprep.subr.mxu0 0.0
  %57 = vmatpush1.msra.mxu0 %v29
  %58 = vmatprep.subr.mxu0 0.0
  %59 = vmatpush1.msra.mxu0 %v30
  %60 = vmatprep.subr.mxu0 0.0
  %61 = vmatpush1.msra.mxu0 %v31
  %62 = vmatprep.subr.mxu0 0.0
  %63 = vmatpush1.msra.mxu0 %v32
  %64 = vmatprep.subr.mxu0 0.0
  %65 = vmatpush1.msra.mxu0 %v33
  %66 = vmatprep.subr.mxu0 0.0
  %67 = vmatpush1.msra.mxu0 0.0
  %68 = vmatprep.subr.mxu0 0.0
  %69 = vmatpush1.msra.mxu0 0.0
  %70 = vmatprep.subr.mxu0 0.0
  %71 = vmatpush1.msra.mxu0 0.0
  %72 = vmatprep.subr.mxu0 0.0
  %73 = vmatpush1.msra.mxu0 0.0
  %74 = vmatprep.subr.mxu0 0.0
  %75 = vmatpush1.msra.mxu0 0.0
  %76 = vmatprep.subr.mxu0 0.0
  %77 = vmatpush1.msra.mxu0 0.0
  %78 = vmatprep.subr.mxu0 0.0
  %79 = vmatpush1.msra.mxu0 0.0
  %80 = vmatprep.subr.mxu0 0.0
  %81 = vmatpush1.msra.mxu0 0.0
  %82 = vmatprep.subr.mxu0 0.0
  %83 = vmatpush1.msra.mxu0 0.0
  %84 = vmatprep.subr.mxu0 0.0
  %85 = vmatpush1.msra.mxu0 0.0
  %86 = vmatprep.subr.mxu0 0.0
  %87 = vmatpush1.msra.mxu0 0.0
  %88 = vmatprep.subr.mxu0 0.0
  %89 = vmatpush1.msra.mxu0 0.0
  %90 = vmatprep.subr.mxu0 0.0
  %91 = vmatpush1.msra.mxu0 0.0
  %92 = vmatprep.subr.mxu0 0.0
  %93 = vmatpush1.msra.mxu0 0.0
  %94 = vmatprep.subr.mxu0 0.0
  %95 = vmatpush1.msra.mxu0 0.0
  %96 = vmatprep.subr.mxu0 0.0
  %97 = vmatpush1.msra.mxu0 0.0
  %98 = vmatprep.mubr.f32.mxu0 0.0
  %99 = vmatmul.mubr.f32.gmra.mrb[0].mxu0 %v17
  %v100 = vpop.f32.mrb[0].mxu0
  %v101 = vadd.f32 0.0, %v100
  %v102 = vpop.f32.mrb[0].mxu0
  %103 = vdwg.mxu0
  %v104 = vld [vmem:[%s2] sm:$0x1]
  %v106 = vlaneseq
  %v107 = vshrl.u32 %v106, 7
  %v108 = vsub.s32 0, %v107
  %v109 = vrot.slane %v104, %v108
  %v111 = vmul.f32 %v101, %v109
  %v112 = vld [vmem:[%s3] sm:$0x1]
  %v114 = vlaneseq
  %v115 = vshrl.u32 %v114, 7
  %v116 = vsub.s32 0, %v115
  %v117 = vrot.slane %v112, %v116
  %v119 = vadd.f32 %v111, %v117
  %v120 = vmul.f32 %v119, 0.5
  %v121 = vmul.f32 %v119, 0.70710677
  %v122 = vand.u32 2147483647, %v121
  %v123 = vmul.f32 %v122, 0.3275911
  %v124 = vadd.f32 %v123, 1.0
  %v125 = vrcp.pop %v124
  %v126 = vmul.f32 1.0, %v125
  %v127 = vmul.f32 %v126, 1.0614054
  %v128 = vadd.f32 %v127, -1.4531521
  %v129 = vmul.f32 %v128, %v126
  %v130 = vadd.f32 %v129, 1.4214138
  %v131 = vmul.f32 %v130, %v126
  %v132 = vadd.f32 %v131, -0.28449672
  %v133 = vmul.f32 %v132, %v126
  %v134 = vadd.f32 %v133, 0.2548296
  %v135 = vmul.f32 %v134, %v126
  %v136 = vsub.f32 0.0, %v122
  %v137 = vmul.f32 %v136, %v122
  %v138 = vmul.f32 %v137, 1.442695
  %v139 = vpow.pop %v138
  %v140 = vmul.f32 %v135, %v139
  %v141 = vsub.f32 1.0, %v140
  %vm142 = vcmp.lt.f32.partialorder %v121, 0.0
  %v143 = vsub.f32 0.0, %v141
  %v144 = vsel %vm142, %v143, %v141
  %v145 = vadd.f32 %v144, 1.0
  %v146 = vmul.f32 %v120, %v145
  %147 = vst [vmem:[%s4] sm:$0xff] %v146
  // Predicated region
  $region18: #{coordinator_forward.26} parent=0 // pred_check
    _
  $region19: #{coordinator_forward.26} parent=0 // pred_check_branch
    %149 = sbr.rel (0) target = $region21
  $region20: #{coordinator_forward.26} parent=0 // pred_region
    _
  $region21: #{coordinator_forward.26} parent=0 // pred_fallthru
    _
  // Predicated region
  $region22: #{coordinator_forward.26} parent=0 // pred_check
    _
  $region23: #{coordinator_forward.26} parent=0 // pred_check_branch
    %151 = sbr.rel (0) target = $region25
  $region24: #{coordinator_forward.26} parent=0 // pred_region
    _
  $region25: #{coordinator_forward.26} parent=0 // pred_fallthru
    _

// kernel: tile.73
$region0: #{tile.73}
  #allocation0 [shape = 's32[1]{0}', space=sflag, size = 0x4, scoped, tag = 'scoped memory for tile.73']
  %s0 = inlined_call_operand.vmem [shape: f32[16], index: 0, kind: input, shape index: {}]
  %s1 = inlined_call_operand.vmem [shape: f32[4,16], index: 1, kind: output, shape index: {}]
  // Predicated region
  $region2: #{tile.73} parent=0 // pred_check
    _
  $region3: #{tile.73} parent=0 // pred_check_branch
    %3 = sbr.rel (0) target = $region5
  $region4: #{tile.73} parent=0 // pred_region
    _
  $region5: #{tile.73} parent=0 // pred_fallthru
    _
  %v4 = vld [vmem:[%s0] ss:$0 sm:$0xff]
  %5 = vst [vmem:[%s1] sm:$0xf] %v4

// kernel: tile.78
$region0: #{tile.78}
  %s0 = inlined_call_operand.vmem [shape: f32[4,16], index: 0, kind: input, shape index: {}]
  %s1 = inlined_call_operand.vmem [shape: f32[1,64], index: 1, kind: output, shape index: {}]
  $region1: #{tile.78} parent=0
    #allocation0 [shape = 'u8[4096]{0}', space=vmem, size = 0x1000, scoped, tag = 'scoped mem for output reshape']
    #allocation1 [shape = 'u8[4096]{0}', space=vmem, size = 0x1000, scoped, tag = 'scoped mem for input reshape']
    %s3 = sshllo.u32 0, 4
    %v4 = vld [vmem:[%s0] sm:%s3]
    %5 = vst [vmem:[#allocation1] sm:%s3] %v4
    %v6 = vld [vmem:[#allocation1] sm:$0x1]
    %vm7 = vcmask 130048
    %8 = vst.msk [vmem:[#allocation0] sm:$0x1] %vm7, %v6
    %s9 = scalar_lea.vmem [#allocation1], 3
    %v10 = vld [vmem:[%s9] sm:$0x1]
    %11 = vrot.lane.b32.xlu0 %v10, 48
    %v12 = vpop.permute.xlu0 %11
    %vm13 = vcmask 523648
    %14 = vst.msk [vmem:[#allocation0] sm:$0x1] %vm13, %v12
    %s15 = scalar_lea.vmem [#allocation1], 2
    %v16 = vld [vmem:[%s15] sm:$0x1]
    %17 = vrot.lane.b32.xlu0 %v16, 32
    %v18 = vpop.permute.xlu0 %17
    %vm19 = vcmask 392448
    %20 = vst.msk [vmem:[#allocation0] sm:$0x1] %vm19, %v18
    %s21 = scalar_lea.vmem [#allocation1], 1
    %v22 = vld [vmem:[%s21] sm:$0x1]
    %23 = vrot.lane.b32.xlu0 %v22, 16
    %v24 = vpop.permute.xlu0 %23
    %vm25 = vcmask 261248
    %26 = vst.msk [vmem:[#allocation0] sm:$0x1] %vm25, %v24
    %s28 = sshllo.u32 0, 1
    %v30 = vld [vmem:[#allocation0] sm:%s28]
    %s31 = sshllo.u32 0, 1
    %32 = vst [vmem:[%s1] sm:%s31] %v30

// kernel: coordinator_forward.27
$region0: #{coordinator_forward.27}
  #allocation0 [shape = 'u32[]', space=smem, size = 0x4, offset = 0x4, fixed_abs, tag = 'smem constant byte address 0x4 - core index']
  #allocation1 [shape = 'u32[144,128]{1,0:T(1,128)}', space=vmem, size = 0x12000, scoped, tag = 'internal scratch']
  %s0 = inlined_call_operand.vmem [shape: f32[32,128], index: 0, kind: input, shape index: {}]
  %s1 = inlined_call_operand.vmem [shape: f32[128,128], index: 1, kind: input, shape index: {}]
  %s2 = inlined_call_operand.vmem [shape: f32[1,128], index: 2, kind: input, shape index: {}]
  %s3 = inlined_call_operand.vmem [shape: f32[1,128], index: 3, kind: input, shape index: {}]
  %s4 = inlined_call_operand.vmem [shape: f32[32,128], index: 4, kind: output, shape index: {}]
  %s5 = sld [smem:[#allocation0]]
  $region26: #{coordinator_forward.27} parent=0
    _
  %s7 = ssub.s32 1, %s5
  %s8 = scalar_select 0, %s7, %s5
  // Predicated region
  $region2: #{coordinator_forward.27} parent=0 // pred_check
    _
  $region3: #{coordinator_forward.27} parent=0 // pred_check_branch
    %10 = sbr.rel (0) target = $region5
  $region4: #{coordinator_forward.27} parent=0 // pred_region
    _
  $region5: #{coordinator_forward.27} parent=0 // pred_fallthru
    _
  // Predicated region
  $region6: #{coordinator_forward.27} parent=0 // pred_check
    _
  $region7: #{coordinator_forward.27} parent=0 // pred_check_branch
    %12 = sbr.rel (0) target = $region9
  $region8: #{coordinator_forward.27} parent=0 // pred_region
    _
  $region9: #{coordinator_forward.27} parent=0 // pred_fallthru
    _
  // Predicated region
  $region10: #{coordinator_forward.27} parent=0 // pred_check
    _
  $region11: #{coordinator_forward.27} parent=0 // pred_check_branch
    %14 = sbr.rel (0) target = $region13
  $region12: #{coordinator_forward.27} parent=0 // pred_region
    _
  $region13: #{coordinator_forward.27} parent=0 // pred_fallthru
    _
  // Predicated region
  $region14: #{coordinator_forward.27} parent=0 // pred_check
    _
  $region15: #{coordinator_forward.27} parent=0 // pred_check_branch
    %16 = sbr.rel (0) target = $region17
  $region16: #{coordinator_forward.27} parent=0 // pred_region
    _
  $region17: #{coordinator_forward.27} parent=0 // pred_fallthru
    _
  %v17 = vld [vmem:[%s0] sm:$0xff]
  %v18 = vld [vmem:[%s0 + $0x8] sm:$0xff]
  %v19 = vld [vmem:[%s0 + $0x10] sm:$0xff]
  %v20 = vld [vmem:[%s0 + $0x18] sm:$0xff]
  %v21 = vld [vmem:[%s1] sm:$0xff]
  %v22 = vld [vmem:[%s1 + $0x8] sm:$0xff]
  %v23 = vld [vmem:[%s1 + $0x10] sm:$0xff]
  %v24 = vld [vmem:[%s1 + $0x18] sm:$0xff]
  %v25 = vld [vmem:[%s1 + $0x20] sm:$0xff]
  %v26 = vld [vmem:[%s1 + $0x28] sm:$0xff]
  %v27 = vld [vmem:[%s1 + $0x30] sm:$0xff]
  %v28 = vld [vmem:[%s1 + $0x38] sm:$0xff]
  %v29 = vld [vmem:[%s1 + $0x40] sm:$0xff]
  %v30 = vld [vmem:[%s1 + $0x48] sm:$0xff]
  %v31 = vld [vmem:[%s1 + $0x50] sm:$0xff]
  %v32 = vld [vmem:[%s1 + $0x58] sm:$0xff]
  %v33 = vld [vmem:[%s1 + $0x60] sm:$0xff]
  %v34 = vld [vmem:[%s1 + $0x68] sm:$0xff]
  %v35 = vld [vmem:[%s1 + $0x70] sm:$0xff]
  %v36 = vld [vmem:[%s1 + $0x78] sm:$0xff]
  %37 = vmatprep.subr.mxu0 0.0
  %38 = vmatpush1.msra.mxu0 %v21
  %39 = vmatprep.subr.mxu0 0.0
  %40 = vmatpush1.msra.mxu0 %v22
  %41 = vmatprep.subr.mxu0 0.0
  %42 = vmatpush1.msra.mxu0 %v23
  %43 = vmatprep.subr.mxu0 0.0
  %44 = vmatpush1.msra.mxu0 %v24
  %45 = vmatprep.subr.mxu0 0.0
  %46 = vmatpush1.msra.mxu0 %v25
  %47 = vmatprep.subr.mxu0 0.0
  %48 = vmatpush1.msra.mxu0 %v26
  %49 = vmatprep.subr.mxu0 0.0
  %50 = vmatpush1.msra.mxu0 %v27
  %51 = vmatprep.subr.mxu0 0.0
  %52 = vmatpush1.msra.mxu0 %v28
  %53 = vmatprep.subr.mxu0 0.0
  %54 = vmatpush1.msra.mxu0 %v29
  %55 = vmatprep.subr.mxu0 0.0
  %56 = vmatpush1.msra.mxu0 %v30
  %57 = vmatprep.subr.mxu0 0.0
  %58 = vmatpush1.msra.mxu0 %v31
  %59 = vmatprep.subr.mxu0 0.0
  %60 = vmatpush1.msra.mxu0 %v32
  %61 = vmatprep.subr.mxu0 0.0
  %62 = vmatpush1.msra.mxu0 %v33
  %63 = vmatprep.subr.mxu0 0.0
  %64 = vmatpush1.msra.mxu0 %v34
  %65 = vmatprep.subr.mxu0 0.0
  %66 = vmatpush1.msra.mxu0 %v35
  %67 = vmatprep.subr.mxu0 0.0
  %68 = vmatpush1.msra.mxu0 %v36
  %69 = vmatprep.subr.mxu0 0.0
  %70 = vmatpush1.msra.mxu0 0.0
  %71 = vmatprep.subr.mxu0 0.0
  %72 = vmatpush1.msra.mxu0 0.0
  %73 = vmatprep.subr.mxu0 0.0
  %74 = vmatpush1.msra.mxu0 0.0
  %75 = vmatprep.subr.mxu0 0.0
  %76 = vmatpush1.msra.mxu0 0.0
  %77 = vmatprep.subr.mxu0 0.0
  %78 = vmatpush1.msra.mxu0 0.0
  %79 = vmatprep.subr.mxu0 0.0
  %80 = vmatpush1.msra.mxu0 0.0
  %81 = vmatprep.subr.mxu0 0.0
  %82 = vmatpush1.msra.mxu0 0.0
  %83 = vmatprep.subr.mxu0 0.0
  %84 = vmatpush1.msra.mxu0 0.0
  %85 = vmatprep.subr.mxu0 0.0
  %86 = vmatpush1.msra.mxu0 0.0
  %87 = vmatprep.subr.mxu0 0.0
  %88 = vmatpush1.msra.mxu0 0.0
  %89 = vmatprep.subr.mxu0 0.0
  %90 = vmatpush1.msra.mxu0 0.0
  %91 = vmatprep.subr.mxu0 0.0
  %92 = vmatpush1.msra.mxu0 0.0
  %93 = vmatprep.subr.mxu0 0.0
  %94 = vmatpush1.msra.mxu0 0.0
  %95 = vmatprep.subr.mxu0 0.0
  %96 = vmatpush1.msra.mxu0 0.0
  %97 = vmatprep.subr.mxu0 0.0
  %98 = vmatpush1.msra.mxu0 0.0
  %99 = vmatprep.subr.mxu0 0.0
  %100 = vmatpush1.msra.mxu0 0.0
  %101 = vmatprep.mubr.f32.mxu0 0.0
  %102 = vmatmul.mubr.f32.gmra.mrb[0].mxu0 %v17
  %v103 = vpop.f32.mrb[0].mxu0
  %v104 = vadd.f32 0.0, %v103
  %v105 = vpop.f32.mrb[0].mxu0
  %106 = vmatprep.mubr.f32.mxu0 0.0
  %107 = vmatmul.mubr.f32.gmra.mrb[0].mxu0 %v18
  %v108 = vpop.f32.mrb[0].mxu0
  %v109 = vadd.f32 0.0, %v108
  %v110 = vpop.f32.mrb[0].mxu0
  %111 = vmatprep.mubr.f32.mxu0 0.0
  %112 = vmatmul.mubr.f32.gmra.mrb[0].mxu0 %v19
  %v113 = vpop.f32.mrb[0].mxu0
  %v114 = vadd.f32 0.0, %v113
  %v115 = vpop.f32.mrb[0].mxu0
  %116 = vmatprep.mubr.f32.mxu0 0.0
  %117 = vmatmul.mubr.f32.gmra.mrb[0].mxu0 %v20
  %v118 = vpop.f32.mrb[0].mxu0
  %v119 = vadd.f32 0.0, %v118
  %v120 = vpop.f32.mrb[0].mxu0
  %121 = vdwg.mxu0
  %v122 = vld [vmem:[%s2] sm:$0x1]
  %v124 = vlaneseq
  %v125 = vshrl.u32 %v124, 7
  %v126 = vsub.s32 0, %v125
  %v127 = vrot.slane %v122, %v126
  %v129 = vmul.f32 %v104, %v127
  %v130 = vmul.f32 %v109, %v127
  %v131 = vmul.f32 %v114, %v127
  %v132 = vmul.f32 %v119, %v127
  %v133 = vld [vmem:[%s3] sm:$0x1]
  %v135 = vlaneseq
  %v136 = vshrl.u32 %v135, 7
  %v137 = vsub.s32 0, %v136
  %v138 = vrot.slane %v133, %v137
  %v140 = vadd.f32 %v129, %v138
  %v141 = vadd.f32 %v130, %v138
  %v142 = vadd.f32 %v131, %v138
  %v143 = vadd.f32 %v132, %v138
  %v144 = vmul.f32 %v140, 0.5
  %v145 = vmul.f32 %v141, 0.5
  %v146 = vmul.f32 %v142, 0.5
  %v147 = vmul.f32 %v143, 0.5
  %v148 = vmul.f32 %v140, 0.70710677
  %v149 = vmul.f32 %v141, 0.70710677
  %v150 = vmul.f32 %v142, 0.70710677
  %v151 = vmul.f32 %v143, 0.70710677
  %v152 = vand.u32 2147483647, %v148
  %v153 = vand.u32 2147483647, %v149
  %v154 = vand.u32 2147483647, %v150
  %v155 = vand.u32 2147483647, %v151
  %v156 = vmul.f32 %v152, 0.3275911
  %v157 = vmul.f32 %v153, 0.3275911
  %v158 = vmul.f32 %v154, 0.3275911
  %v159 = vmul.f32 %v155, 0.3275911
  %v160 = vadd.f32 %v156, 1.0
  %v161 = vadd.f32 %v157, 1.0
  %v162 = vadd.f32 %v158, 1.0
  %v163 = vadd.f32 %v159, 1.0
  %v164 = vrcp.pop %v160
  %v165 = vmul.f32 1.0, %v164
  %v166 = vrcp.pop %v161
  %v167 = vmul.f32 1.0, %v166
  %v168 = vrcp.pop %v162
  %v169 = vmul.f32 1.0, %v168
  %v170 = vrcp.pop %v163
  %v171 = vmul.f32 1.0, %v170
  %v172 = vmul.f32 %v165, 1.0614054
  %v173 = vmul.f32 %v167, 1.0614054
  %v174 = vmul.f32 %v169, 1.0614054
  %v175 = vmul.f32 %v171, 1.0614054
  %v176 = vadd.f32 %v172, -1.4531521
  %v177 = vadd.f32 %v173, -1.4531521
  %v178 = vadd.f32 %v174, -1.4531521
  %v179 = vadd.f32 %v175, -1.4531521
  %v180 = vmul.f32 %v176, %v165
  %v181 = vmul.f32 %v177, %v167
  %v182 = vmul.f32 %v178, %v169
  %v183 = vmul.f32 %v179, %v171
  %v184 = vadd.f32 %v180, 1.4214138
  %v185 = vadd.f32 %v181, 1.4214138
  %v186 = vadd.f32 %v182, 1.4214138
  %v187 = vadd.f32 %v183, 1.4214138
  %v188 = vmul.f32 %v184, %v165
  %v189 = vmul.f32 %v185, %v167
  %v190 = vmul.f32 %v186, %v169
  %v191 = vmul.f32 %v187, %v171
  %v192 = vadd.f32 %v188, -0.28449672
  %v193 = vadd.f32 %v189, -0.28449672
  %v194 = vadd.f32 %v190, -0.28449672
  %v195 = vadd.f32 %v191, -0.28449672
  %v196 = vmul.f32 %v192, %v165
  %v197 = vmul.f32 %v193, %v167
  %v198 = vmul.f32 %v194, %v169
  %v199 = vmul.f32 %v195, %v171
  %v200 = vadd.f32 %v196, 0.2548296
  %v201 = vadd.f32 %v197, 0.2548296
  %v202 = vadd.f32 %v198, 0.2548296
  %v203 = vadd.f32 %v199, 0.2548296
  %v204 = vmul.f32 %v200, %v165
  %v205 = vmul.f32 %v201, %v167
  %v206 = vmul.f32 %v202, %v169
  %v207 = vmul.f32 %v203, %v171
  %v208 = vsub.f32 0.0, %v152
  %v209 = vsub.f32 0.0, %v153
  %v210 = vsub.f32 0.0, %v154
  %v211 = vsub.f32 0.0, %v155
  %v212 = vmul.f32 %v208, %v152
  %v213 = vmul.f32 %v209, %v153
  %v214 = vmul.f32 %v210, %v154
  %v215 = vmul.f32 %v211, %v155
  %v216 = vmul.f32 %v212, 1.442695
  %v217 = vpow.pop %v216
  %v218 = vmul.f32 %v213, 1.442695
  %v219 = vpow.pop %v218
  %v220 = vmul.f32 %v214, 1.442695
  %v221 = vpow.pop %v220
  %v222 = vmul.f32 %v215, 1.442695
  %v223 = vpow.pop %v222
  %v224 = vmul.f32 %v204, %v217
  %v225 = vmul.f32 %v205, %v219
  %v226 = vmul.f32 %v206, %v221
  %v227 = vmul.f32 %v207, %v223
  %v228 = vsub.f32 1.0, %v224
  %v229 = vsub.f32 1.0, %v225
  %v230 = vsub.f32 1.0, %v226
  %v231 = vsub.f32 1.0, %v227
  %vm232 = vcmp.lt.f32.partialorder %v148, 0.0
  %vm233 = vcmp.lt.f32.partialorder %v149, 0.0
  %vm234 = vcmp.lt.f32.partialorder %v150, 0.0
  %vm235 = vcmp.lt.f32.partialorder %v151, 0.0
  %v236 = vsub.f32 0.0, %v228
  %v237 = vsub.f32 0.0, %v229
  %v238 = vsub.f32 0.0, %v230
  %v239 = vsub.f32 0.0, %v231
  %v240 = vsel %vm232, %v236, %v228
  %v241 = vsel %vm233, %v237, %v229
  %v242 = vsel %vm234, %v238, %v230
  %v243 = vsel %vm235, %v239, %v231
  %v244 = vadd.f32 %v240, 1.0
  %v245 = vadd.f32 %v241, 1.0
  %v246 = vadd.f32 %v242, 1.0
  %v247 = vadd.f32 %v243, 1.0
  %v248 = vmul.f32 %v144, %v244
  %v249 = vmul.f32 %v145, %v245
  %v250 = vmul.f32 %v146, %v246
  %v251 = vmul.f32 %v147, %v247
  %252 = vst [vmem:[%s4] sm:$0xff] %v248
  %253 = vst [vmem:[%s4 + $0x8] sm:$0xff] %v249
  %254 = vst [vmem:[%s4 + $0x10] sm:$0xff] %v250
  %255 = vst [vmem:[%s4 + $0x18] sm:$0xff] %v251
  // Predicated region
  $region18: #{coordinator_forward.27} parent=0 // pred_check
    _
  $region19: #{coordinator_forward.27} parent=0 // pred_check_branch
    %257 = sbr.rel (0) target = $region21
  $region20: #{coordinator_forward.27} parent=0 // pred_region
    _
  $region21: #{coordinator_forward.27} parent=0 // pred_fallthru
    _
  // Predicated region
  $region22: #{coordinator_forward.27} parent=0 // pred_check
    _
  $region23: #{coordinator_forward.27} parent=0 // pred_check_branch
    %259 = sbr.rel (0) target = $region25
  $region24: #{coordinator_forward.27} parent=0 // pred_region
    _
  $region25: #{coordinator_forward.27} parent=0 // pred_fallthru
    _

// kernel: coordinator_forward.29
$region0: #{coordinator_forward.29}
  #allocation0 [shape = 'u32[]', space=smem, size = 0x4, offset = 0x4, fixed_abs, tag = 'smem constant byte address 0x4 - core index']
  #allocation1 [shape = 'u32[144,128]{1,0:T(1,128)}', space=vmem, size = 0x12000, scoped, tag = 'internal scratch']
  %s0 = inlined_call_operand.vmem [shape: f32[512,128], index: 0, kind: input, shape index: {}]
  %s1 = inlined_call_operand.vmem [shape: f32[128,128], index: 1, kind: input, shape index: {}]
  %s2 = inlined_call_operand.vmem [shape: f32[1,128], index: 2, kind: input, shape index: {}]
  %s3 = inlined_call_operand.vmem [shape: f32[1,128], index: 3, kind: input, shape index: {}]
  %s4 = inlined_call_operand.vmem [shape: f32[512,128], index: 4, kind: output, shape index: {}]
  %s5 = sld [smem:[#allocation0]]
  $region26: #{coordinator_forward.29} parent=0
    _
  %s7 = ssub.s32 1, %s5
  %s8 = scalar_select 0, %s7, %s5
  // Predicated region
  $region2: #{coordinator_forward.29} parent=0 // pred_check
    _
  $region3: #{coordinator_forward.29} parent=0 // pred_check_branch
    %10 = sbr.rel (0) target = $region5
  $region4: #{coordinator_forward.29} parent=0 // pred_region
    _
  $region5: #{coordinator_forward.29} parent=0 // pred_fallthru
    _
  // Predicated region
  $region6: #{coordinator_forward.29} parent=0 // pred_check
    _
  $region7: #{coordinator_forward.29} parent=0 // pred_check_branch
    %12 = sbr.rel (0) target = $region9
  $region8: #{coordinator_forward.29} parent=0 // pred_region
    _
  $region9: #{coordinator_forward.29} parent=0 // pred_fallthru
    _
  // Predicated region
  $region10: #{coordinator_forward.29} parent=0 // pred_check
    _
  $region11: #{coordinator_forward.29} parent=0 // pred_check_branch
    %14 = sbr.rel (0) target = $region13
  $region12: #{coordinator_forward.29} parent=0 // pred_region
    _
  $region13: #{coordinator_forward.29} parent=0 // pred_fallthru
    _
  // Predicated region
  $region14: #{coordinator_forward.29} parent=0 // pred_check
    _
  $region15: #{coordinator_forward.29} parent=0 // pred_check_branch
    %16 = sbr.rel (0) target = $region17
  $region16: #{coordinator_forward.29} parent=0 // pred_region
    _
  $region17: #{coordinator_forward.29} parent=0 // pred_fallthru
    _
  %v17 = vld [vmem:[%s0] sm:$0xff]
  %v18 = vld [vmem:[%s0 + $0x8] sm:$0xff]
  %v19 = vld [vmem:[%s0 + $0x10] sm:$0xff]
  %v20 = vld [vmem:[%s0 + $0x18] sm:$0xff]
  %v21 = vld [vmem:[%s0 + $0x20] sm:$0xff]
  %v22 = vld [vmem:[%s0 + $0x28] sm:$0xff]
  %v23 = vld [vmem:[%s0 + $0x30] sm:$0xff]
  %v24 = vld [vmem:[%s0 + $0x38] sm:$0xff]
  %v25 = vld [vmem:[%s0 + $0x40] sm:$0xff]
  %v26 = vld [vmem:[%s0 + $0x48] sm:$0xff]
  %v27 = vld [vmem:[%s0 + $0x50] sm:$0xff]
  %v28 = vld [vmem:[%s0 + $0x58] sm:$0xff]
  %v29 = vld [vmem:[%s0 + $0x60] sm:$0xff]
  %v30 = vld [vmem:[%s0 + $0x68] sm:$0xff]
  %v31 = vld [vmem:[%s0 + $0x70] sm:$0xff]
  %v32 = vld [vmem:[%s0 + $0x78] sm:$0xff]
  %v33 = vld [vmem:[%s0 + $0x80] sm:$0xff]
  %v34 = vld [vmem:[%s0 + $0x88] sm:$0xff]
  %v35 = vld [vmem:[%s0 + $0x90] sm:$0xff]
  %v36 = vld [vmem:[%s0 + $0x98] sm:$0xff]
  %v37 = vld [vmem:[%s0 + $0xa0] sm:$0xff]
  %v38 = vld [vmem:[%s0 + $0xa8] sm:$0xff]
  %v39 = vld [vmem:[%s0 + $0xb0] sm:$0xff]
  %v40 = vld [vmem:[%s0 + $0xb8] sm:$0xff]
  %v41 = vld [vmem:[%s0 + $0xc0] sm:$0xff]
  %v42 = vld [vmem:[%s0 + $0xc8] sm:$0xff]
  %v43 = vld [vmem:[%s0 + $0xd0] sm:$0xff]
  %v44 = vld [vmem:[%s0 + $0xd8] sm:$0xff]
  %v45 = vld [vmem:[%s0 + $0xe0] sm:$0xff]
  %v46 = vld [vmem:[%s0 + $0xe8] sm:$0xff]
  %v47 = vld [vmem:[%s0 + $0xf0] sm:$0xff]
  %v48 = vld [vmem:[%s0 + $0xf8] sm:$0xff]
  %v49 = vld [vmem:[%s0 + $0x100] sm:$0xff]
  %v50 = vld [vmem:[%s0 + $0x108] sm:$0xff]
  %v51 = vld [vmem:[%s0 + $0x110] sm:$0xff]
  %v52 = vld [vmem:[%s0 + $0x118] sm:$0xff]
  %v53 = vld [vmem:[%s0 + $0x120] sm:$0xff]
  %v54 = vld [vmem:[%s0 + $0x128] sm:$0xff]
  %v55 = vld [vmem:[%s0 + $0x130] sm:$0xff]
  %v56 = vld [vmem:[%s0 + $0x138] sm:$0xff]
  %v57 = vld [vmem:[%s0 + $0x140] sm:$0xff]
  %v58 = vld [vmem:[%s0 + $0x148] sm:$0xff]
  %v59 = vld [vmem:[%s0 + $0x150] sm:$0xff]
  %v60 = vld [vmem:[%s0 + $0x158] sm:$0xff]
  %v61 = vld [vmem:[%s0 + $0x160] sm:$0xff]
  %v62 = vld [vmem:[%s0 + $0x168] sm:$0xff]
  %v63 = vld [vmem:[%s0 + $0x170] sm:$0xff]
  %v64 = vld [vmem:[%s0 + $0x178] sm:$0xff]
  %v65 = vld [vmem:[%s0 + $0x180] sm:$0xff]
  %v66 = vld [vmem:[%s0 + $0x188] sm:$0xff]
  %v67 = vld [vmem:[%s0 + $0x190] sm:$0xff]
  %v68 = vld [vmem:[%s0 + $0x198] sm:$0xff]
  %v69 = vld [vmem:[%s0 + $0x1a0] sm:$0xff]
  %v70 = vld [vmem:[%s0 + $0x1a8] sm:$0xff]
  %v71 = vld [vmem:[%s0 + $0x1b0] sm:$0xff]
  %v72 = vld [vmem:[%s0 + $0x1b8] sm:$0xff]
  %v73 = vld [vmem:[%s0 + $0x1c0] sm:$0xff]
  %v74 = vld [vmem:[%s0 + $0x1c8] sm:$0xff]
  %v75 = vld [vmem:[%s0 + $0x1d0] sm:$0xff]
  %v76 = vld [vmem:[%s0 + $0x1d8] sm:$0xff]
  %v77 = vld [vmem:[%s0 + $0x1e0] sm:$0xff]
  %v78 = vld [vmem:[%s0 + $0x1e8] sm:$0xff]
  %v79 = vld [vmem:[%s0 + $0x1f0] sm:$0xff]
  %v80 = vld [vmem:[%s0 + $0x1f8] sm:$0xff]
  %v81 = vld [vmem:[%s1] sm:$0xff]
  %v82 = vld [vmem:[%s1 + $0x8] sm:$0xff]
  %v83 = vld [vmem:[%s1 + $0x10] sm:$0xff]
  %v84 = vld [vmem:[%s1 + $0x18] sm:$0xff]
  %v85 = vld [vmem:[%s1 + $0x20] sm:$0xff]
  %v86 = vld [vmem:[%s1 + $0x28] sm:$0xff]
  %v87 = vld [vmem:[%s1 + $0x30] sm:$0xff]
  %v88 = vld [vmem:[%s1 + $0x38] sm:$0xff]
  %v89 = vld [vmem:[%s1 + $0x40] sm:$0xff]
  %v90 = vld [vmem:[%s1 + $0x48] sm:$0xff]
  %v91 = vld [vmem:[%s1 + $0x50] sm:$0xff]
  %v92 = vld [vmem:[%s1 + $0x58] sm:$0xff]
  %v93 = vld [vmem:[%s1 + $0x60] sm:$0xff]
  %v94 = vld [vmem:[%s1 + $0x68] sm:$0xff]
  %v95 = vld [vmem:[%s1 + $0x70] sm:$0xff]
  %v96 = vld [vmem:[%s1 + $0x78] sm:$0xff]
  %97 = vmatprep.subr.mxu0 0.0
  %98 = vmatpush1.msra.mxu0 %v81
  %99 = vmatprep.subr.mxu0 0.0
  %100 = vmatpush1.msra.mxu0 %v82
  %101 = vmatprep.subr.mxu0 0.0
  %102 = vmatpush1.msra.mxu0 %v83
  %103 = vmatprep.subr.mxu0 0.0
  %104 = vmatpush1.msra.mxu0 %v84
  %105 = vmatprep.subr.mxu0 0.0
  %106 = vmatpush1.msra.mxu0 %v85
  %107 = vmatprep.subr.mxu0 0.0
  %108 = vmatpush1.msra.mxu0 %v86
  %109 = vmatprep.subr.mxu0 0.0
  %110 = vmatpush1.msra.mxu0 %v87
  %111 = vmatprep.subr.mxu0 0.0
  %112 = vmatpush1.msra.mxu0 %v88
  %113 = vmatprep.subr.mxu0 0.0
  %114 = vmatpush1.msra.mxu0 %v89
  %115 = vmatprep.subr.mxu0 0.0
  %116 = vmatpush1.msra.mxu0 %v90
  %117 = vmatprep.subr.mxu0 0.0
  %118 = vmatpush1.msra.mxu0 %v91
  %119 = vmatprep.subr.mxu0 0.0
  %120 = vmatpush1.msra.mxu0 %v92
  %121 = vmatprep.subr.mxu0 0.0
  %122 = vmatpush1.msra.mxu0 %v93
  %123 = vmatprep.subr.mxu0 0.0
  %124 = vmatpush1.msra.mxu0 %v94
  %125 = vmatprep.subr.mxu0 0.0
  %126 = vmatpush1.msra.mxu0 %v95
  %127 = vmatprep.subr.mxu0 0.0
  %128 = vmatpush1.msra.mxu0 %v96
  %129 = vmatprep.subr.mxu0 0.0
  %130 = vmatpush1.msra.mxu0 0.0
  %131 = vmatprep.subr.mxu0 0.0
  %132 = vmatpush1.msra.mxu0 0.0
  %133 = vmatprep.subr.mxu0 0.0
  %134 = vmatpush1.msra.mxu0 0.0
  %135 = vmatprep.subr.mxu0 0.0
  %136 = vmatpush1.msra.mxu0 0.0
  %137 = vmatprep.subr.mxu0 0.0
  %138 = vmatpush1.msra.mxu0 0.0
  %139 = vmatprep.subr.mxu0 0.0
  %140 = vmatpush1.msra.mxu0 0.0
  %141 = vmatprep.subr.mxu0 0.0
  %142 = vmatpush1.msra.mxu0 0.0
  %143 = vmatprep.subr.mxu0 0.0
  %144 = vmatpush1.msra.mxu0 0.0
  %145 = vmatprep.subr.mxu0 0.0
  %146 = vmatpush1.msra.mxu0 0.0
  %147 = vmatprep.subr.mxu0 0.0
  %148 = vmatpush1.msra.mxu0 0.0
  %149 = vmatprep.subr.mxu0 0.0
  %150 = vmatpush1.msra.mxu0 0.0
  %151 = vmatprep.subr.mxu0 0.0
  %152 = vmatpush1.msra.mxu0 0.0
  %153 = vmatprep.subr.mxu0 0.0
  %154 = vmatpush1.msra.mxu0 0.0
  %155 = vmatprep.subr.mxu0 0.0
  %156 = vmatpush1.msra.mxu0 0.0
  %157 = vmatprep.subr.mxu0 0.0
  %158 = vmatpush1.msra.mxu0 0.0
  %159 = vmatprep.subr.mxu0 0.0
  %160 = vmatpush1.msra.mxu0 0.0
  %161 = vmatprep.mubr.f32.mxu0 0.0
  %162 = vmatmul.mubr.f32.gmra.mrb[0].mxu0 %v17
  %v163 = vpop.f32.mrb[0].mxu0
  %v164 = vadd.f32 0.0, %v163
  %v165 = vpop.f32.mrb[0].mxu0
  %166 = vmatprep.mubr.f32.mxu0 0.0
  %167 = vmatmul.mubr.f32.gmra.mrb[0].mxu0 %v18
  %v168 = vpop.f32.mrb[0].mxu0
  %v169 = vadd.f32 0.0, %v168
  %v170 = vpop.f32.mrb[0].mxu0
  %171 = vmatprep.mubr.f32.mxu0 0.0
  %172 = vmatmul.mubr.f32.gmra.mrb[0].mxu0 %v19
  %v173 = vpop.f32.mrb[0].mxu0
  %v174 = vadd.f32 0.0, %v173
  %v175 = vpop.f32.mrb[0].mxu0
  %176 = vmatprep.mubr.f32.mxu0 0.0
  %177 = vmatmul.mubr.f32.gmra.mrb[0].mxu0 %v20
  %v178 = vpop.f32.mrb[0].mxu0
  %v179 = vadd.f32 0.0, %v178
  %v180 = vpop.f32.mrb[0].mxu0
  %181 = vmatprep.mubr.f32.mxu0 0.0
  %182 = vmatmul.mubr.f32.gmra.mrb[0].mxu0 %v21
  %v183 = vpop.f32.mrb[0].mxu0
  %v184 = vadd.f32 0.0, %v183
  %v185 = vpop.f32.mrb[0].mxu0
  %186 = vmatprep.mubr.f32.mxu0 0.0
  %187 = vmatmul.mubr.f32.gmra.mrb[0].mxu0 %v22
  %v188 = vpop.f32.mrb[0].mxu0
  %v189 = vadd.f32 0.0, %v188
  %v190 = vpop.f32.mrb[0].mxu0
  %191 = vmatprep.mubr.f32.mxu0 0.0
  %192 = vmatmul.mubr.f32.gmra.mrb[0].mxu0 %v23
  %v193 = vpop.f32.mrb[0].mxu0
  %v194 = vadd.f32 0.0, %v193
  %v195 = vpop.f32.mrb[0].mxu0
  %196 = vmatprep.mubr.f32.mxu0 0.0
  %197 = vmatmul.mubr.f32.gmra.mrb[0].mxu0 %v24
  %v198 = vpop.f32.mrb[0].mxu0
  %v199 = vadd.f32 0.0, %v198
  %v200 = vpop.f32.mrb[0].mxu0
  %201 = vmatprep.mubr.f32.mxu0 0.0
  %202 = vmatmul.mubr.f32.gmra.mrb[0].mxu0 %v25
  %v203 = vpop.f32.mrb[0].mxu0
  %v204 = vadd.f32 0.0, %v203
  %v205 = vpop.f32.mrb[0].mxu0
  %206 = vmatprep.mubr.f32.mxu0 0.0
  %207 = vmatmul.mubr.f32.gmra.mrb[0].mxu0 %v26
  %v208 = vpop.f32.mrb[0].mxu0
  %v209 = vadd.f32 0.0, %v208
  %v210 = vpop.f32.mrb[0].mxu0
  %211 = vmatprep.mubr.f32.mxu0 0.0
  %212 = vmatmul.mubr.f32.gmra.mrb[0].mxu0 %v27
  %v213 = vpop.f32.mrb[0].mxu0
  %v214 = vadd.f32 0.0, %v213
  %v215 = vpop.f32.mrb[0].mxu0
  %216 = vmatprep.mubr.f32.mxu0 0.0
  %217 = vmatmul.mubr.f32.gmra.mrb[0].mxu0 %v28
  %v218 = vpop.f32.mrb[0].mxu0
  %v219 = vadd.f32 0.0, %v218
  %v220 = vpop.f32.mrb[0].mxu0
  %221 = vmatprep.mubr.f32.mxu0 0.0
  %222 = vmatmul.mubr.f32.gmra.mrb[0].mxu0 %v29
  %v223 = vpop.f32.mrb[0].mxu0
  %v224 = vadd.f32 0.0, %v223
  %v225 = vpop.f32.mrb[0].mxu0
  %226 = vmatprep.mubr.f32.mxu0 0.0
  %227 = vmatmul.mubr.f32.gmra.mrb[0].mxu0 %v30
  %v228 = vpop.f32.mrb[0].mxu0
  %v229 = vadd.f32 0.0, %v228
  %v230 = vpop.f32.mrb[0].mxu0
  %231 = vmatprep.mubr.f32.mxu0 0.0
  %232 = vmatmul.mubr.f32.gmra.mrb[0].mxu0 %v31
  %v233 = vpop.f32.mrb[0].mxu0
  %v234 = vadd.f32 0.0, %v233
  %v235 = vpop.f32.mrb[0].mxu0
  %236 = vmatprep.mubr.f32.mxu0 0.0
  %237 = vmatmul.mubr.f32.gmra.mrb[0].mxu0 %v32
  %v238 = vpop.f32.mrb[0].mxu0
  %v239 = vadd.f32 0.0, %v238
  %v240 = vpop.f32.mrb[0].mxu0
  %241 = vmatprep.mubr.f32.mxu0 0.0
  %242 = vmatmul.mubr.f32.gmra.mrb[0].mxu0 %v33
  %v243 = vpop.f32.mrb[0].mxu0
  %v244 = vadd.f32 0.0, %v243
  %v245 = vpop.f32.mrb[0].mxu0
  %246 = vmatprep.mubr.f32.mxu0 0.0
  %247 = vmatmul.mubr.f32.gmra.mrb[0].mxu0 %v34
  %v248 = vpop.f32.mrb[0].mxu0
  %v249 = vadd.f32 0.0, %v248
  %v250 = vpop.f32.mrb[0].mxu0
  %251 = vmatprep.mubr.f32.mxu0 0.0
  %252 = vmatmul.mubr.f32.gmra.mrb[0].mxu0 %v35
  %v253 = vpop.f32.mrb[0].mxu0
  %v254 = vadd.f32 0.0, %v253
  %v255 = vpop.f32.mrb[0].mxu0
  %256 = vmatprep.mubr.f32.mxu0 0.0
  %257 = vmatmul.mubr.f32.gmra.mrb[0].mxu0 %v36
  %v258 = vpop.f32.mrb[0].mxu0
  %v259 = vadd.f32 0.0, %v258
  %v260 = vpop.f32.mrb[0].mxu0
  %261 = vmatprep.mubr.f32.mxu0 0.0
  %262 = vmatmul.mubr.f32.gmra.mrb[0].mxu0 %v37
  %v263 = vpop.f32.mrb[0].mxu0
  %v264 = vadd.f32 0.0, %v263
  %v265 = vpop.f32.mrb[0].mxu0
  %266 = vmatprep.mubr.f32.mxu0 0.0
  %267 = vmatmul.mubr.f32.gmra.mrb[0].mxu0 %v38
  %v268 = vpop.f32.mrb[0].mxu0
  %v269 = vadd.f32 0.0, %v268
  %v270 = vpop.f32.mrb[0].mxu0
  %271 = vmatprep.mubr.f32.mxu0 0.0
  %272 = vmatmul.mubr.f32.gmra.mrb[0].mxu0 %v39
  %v273 = vpop.f32.mrb[0].mxu0
  %v274 = vadd.f32 0.0, %v273
  %v275 = vpop.f32.mrb[0].mxu0
  %276 = vmatprep.mubr.f32.mxu0 0.0
  %277 = vmatmul.mubr.f32.gmra.mrb[0].mxu0 %v40
  %v278 = vpop.f32.mrb[0].mxu0
  %v279 = vadd.f32 0.0, %v278
  %v280 = vpop.f32.mrb[0].mxu0
  %281 = vmatprep.mubr.f32.mxu0 0.0
  %282 = vmatmul.mubr.f32.gmra.mrb[0].mxu0 %v41
  %v283 = vpop.f32.mrb[0].mxu0
  %v284 = vadd.f32 0.0, %v283
  %v285 = vpop.f32.mrb[0].mxu0
  %286 = vmatprep.mubr.f32.mxu0 0.0
  %287 = vmatmul.mubr.f32.gmra.mrb[0].mxu0 %v42
  %v288 = vpop.f32.mrb[0].mxu0
  %v289 = vadd.f32 0.0, %v288
  %v290 = vpop.f32.mrb[0].mxu0
  %291 = vmatprep.mubr.f32.mxu0 0.0
  %292 = vmatmul.mubr.f32.gmra.mrb[0].mxu0 %v43
  %v293 = vpop.f32.mrb[0].mxu0
  %v294 = vadd.f32 0.0, %v293
  %v295 = vpop.f32.mrb[0].mxu0
  %296 = vmatprep.mubr.f32.mxu0 0.0
  %297 = vmatmul.mubr.f32.gmra.mrb[0].mxu0 %v44
  %v298 = vpop.f32.mrb[0].mxu0
  %v299 = vadd.f32 0.0, %v298
  %v300 = vpop.f32.mrb[0].mxu0
  %301 = vmatprep.mubr.f32.mxu0 0.0
  %302 = vmatmul.mubr.f32.gmra.mrb[0].mxu0 %v45
  %v303 = vpop.f32.mrb[0].mxu0
  %v304 = vadd.f32 0.0, %v303
  %v305 = vpop.f32.mrb[0].mxu0
  %306 = vmatprep.mubr.f32.mxu0 0.0
  %307 = vmatmul.mubr.f32.gmra.mrb[0].mxu0 %v46
  %v308 = vpop.f32.mrb[0].mxu0
  %v309 = vadd.f32 0.0, %v308
  %v310 = vpop.f32.mrb[0].mxu0
  %311 = vmatprep.mubr.f32.mxu0 0.0
  %312 = vmatmul.mubr.f32.gmra.mrb[0].mxu0 %v47
  %v313 = vpop.f32.mrb[0].mxu0
  %v314 = vadd.f32 0.0, %v313
  %v315 = vpop.f32.mrb[0].mxu0
  %316 = vmatprep.mubr.f32.mxu0 0.0
  %317 = vmatmul.mubr.f32.gmra.mrb[0].mxu0 %v48
  %v318 = vpop.f32.mrb[0].mxu0
  %v319 = vadd.f32 0.0, %v318
  %v320 = vpop.f32.mrb[0].mxu0
  %321 = vmatprep.mubr.f32.mxu0 0.0
  %322 = vmatmul.mubr.f32.gmra.mrb[0].mxu0 %v49
  %v323 = vpop.f32.mrb[0].mxu0
  %v324 = vadd.f32 0.0, %v323
  %v325 = vpop.f32.mrb[0].mxu0
  %326 = vmatprep.mubr.f32.mxu0 0.0
  %327 = vmatmul.mubr.f32.gmra.mrb[0].mxu0 %v50
  %v328 = vpop.f32.mrb[0].mxu0
  %v329 = vadd.f32 0.0, %v328
  %v330 = vpop.f32.mrb[0].mxu0
  %331 = vmatprep.mubr.f32.mxu0 0.0
  %332 = vmatmul.mubr.f32.gmra.mrb[0].mxu0 %v51
  %v333 = vpop.f32.mrb[0].mxu0
  %v334 = vadd.f32 0.0, %v333
  %v335 = vpop.f32.mrb[0].mxu0
  %336 = vmatprep.mubr.f32.mxu0 0.0
  %337 = vmatmul.mubr.f32.gmra.mrb[0].mxu0 %v52
  %v338 = vpop.f32.mrb[0].mxu0
  %v339 = vadd.f32 0.0, %v338
  %v340 = vpop.f32.mrb[0].mxu0
  %341 = vmatprep.mubr.f32.mxu0 0.0
  %342 = vmatmul.mubr.f32.gmra.mrb[0].mxu0 %v53
  %v343 = vpop.f32.mrb[0].mxu0
  %v344 = vadd.f32 0.0, %v343
  %v345 = vpop.f32.mrb[0].mxu0
  %346 = vmatprep.mubr.f32.mxu0 0.0
  %347 = vmatmul.mubr.f32.gmra.mrb[0].mxu0 %v54
  %v348 = vpop.f32.mrb[0].mxu0
  %v349 = vadd.f32 0.0, %v348
  %v350 = vpop.f32.mrb[0].mxu0
  %351 = vmatprep.mubr.f32.mxu0 0.0
  %352 = vmatmul.mubr.f32.gmra.mrb[0].mxu0 %v55
  %v353 = vpop.f32.mrb[0].mxu0
  %v354 = vadd.f32 0.0, %v353
  %v355 = vpop.f32.mrb[0].mxu0
  %356 = vmatprep.mubr.f32.mxu0 0.0
  %357 = vmatmul.mubr.f32.gmra.mrb[0].mxu0 %v56
  %v358 = vpop.f32.mrb[0].mxu0
  %v359 = vadd.f32 0.0, %v358
  %v360 = vpop.f32.mrb[0].mxu0
  %361 = vmatprep.mubr.f32.mxu0 0.0
  %362 = vmatmul.mubr.f32.gmra.mrb[0].mxu0 %v57
  %v363 = vpop.f32.mrb[0].mxu0
  %v364 = vadd.f32 0.0, %v363
  %v365 = vpop.f32.mrb[0].mxu0
  %366 = vmatprep.mubr.f32.mxu0 0.0
  %367 = vmatmul.mubr.f32.gmra.mrb[0].mxu0 %v58
  %v368 = vpop.f32.mrb[0].mxu0
  %v369 = vadd.f32 0.0, %v368
  %v370 = vpop.f32.mrb[0].mxu0
  %371 = vmatprep.mubr.f32.mxu0 0.0
  %372 = vmatmul.mubr.f32.gmra.mrb[0].mxu0 %v59
  %v373 = vpop.f32.mrb[0].mxu0
  %v374 = vadd.f32 0.0, %v373
  %v375 = vpop.f32.mrb[0].mxu0
  %376 = vmatprep.mubr.f32.mxu0 0.0
  %377 = vmatmul.mubr.f32.gmra.mrb[0].mxu0 %v60
  %v378 = vpop.f32.mrb[0].mxu0
  %v379 = vadd.f32 0.0, %v378
  %v380 = vpop.f32.mrb[0].mxu0
  %381 = vmatprep.mubr.f32.mxu0 0.0
  %382 = vmatmul.mubr.f32.gmra.mrb[0].mxu0 %v61
  %v383 = vpop.f32.mrb[0].mxu0
  %v384 = vadd.f32 0.0, %v383
  %v385 = vpop.f32.mrb[0].mxu0
  %386 = vmatprep.mubr.f32.mxu0 0.0
  %387 = vmatmul.mubr.f32.gmra.mrb[0].mxu0 %v62
  %v388 = vpop.f32.mrb[0].mxu0
  %v389 = vadd.f32 0.0, %v388
  %v390 = vpop.f32.mrb[0].mxu0
  %391 = vmatprep.mubr.f32.mxu0 0.0
  %392 = vmatmul.mubr.f32.gmra.mrb[0].mxu0 %v63
  %v393 = vpop.f32.mrb[0].mxu0
  %v394 = vadd.f32 0.0, %v393
  %v395 = vpop.f32.mrb[0].mxu0
  %396 = vmatprep.mubr.f32.mxu0 0.0
  %397 = vmatmul.mubr.f32.gmra.mrb[0].mxu0 %v64
  %v398 = vpop.f32.mrb[0].mxu0
  %v399 = vadd.f32 0.0, %v398
  %v400 = vpop.f32.mrb[0].mxu0
  %401 = vmatprep.mubr.f32.mxu0 0.0
  %402 = vmatmul.mubr.f32.gmra.mrb[0].mxu0 %v65
  %v403 = vpop.f32.mrb[0].mxu0
  %v404 = vadd.f32 0.0, %v403
  %v405 = vpop.f32.mrb[0].mxu0
  %406 = vmatprep.mubr.f32.mxu0 0.0
  %407 = vmatmul.mubr.f32.gmra.mrb[0].mxu0 %v66
  %v408 = vpop.f32.mrb[0].mxu0
  %v409 = vadd.f32 0.0, %v408
  %v410 = vpop.f32.mrb[0].mxu0
  %411 = vmatprep.mubr.f32.mxu0 0.0
  %412 = vmatmul.mubr.f32.gmra.mrb[0].mxu0 %v67
  %v413 = vpop.f32.mrb[0].mxu0
  %v414 = vadd.f32 0.0, %v413
  %v415 = vpop.f32.mrb[0].mxu0
  %416 = vmatprep.mubr.f32.mxu0 0.0
  %417 = vmatmul.mubr.f32.gmra.mrb[0].mxu0 %v68
  %v418 = vpop.f32.mrb[0].mxu0
  %v419 = vadd.f32 0.0, %v418
  %v420 = vpop.f32.mrb[0].mxu0
  %421 = vmatprep.mubr.f32.mxu0 0.0
  %422 = vmatmul.mubr.f32.gmra.mrb[0].mxu0 %v69
  %v423 = vpop.f32.mrb[0].mxu0
  %v424 = vadd.f32 0.0, %v423
  %v425 = vpop.f32.mrb[0].mxu0
  %426 = vmatprep.mubr.f32.mxu0 0.0
  %427 = vmatmul.mubr.f32.gmra.mrb[0].mxu0 %v70
  %v428 = vpop.f32.mrb[0].mxu0
  %v429 = vadd.f32 0.0, %v428
  %v430 = vpop.f32.mrb[0].mxu0
  %431 = vmatprep.mubr.f32.mxu0 0.0
  %432 = vmatmul.mubr.f32.gmra.mrb[0].mxu0 %v71
  %v433 = vpop.f32.mrb[0].mxu0
  %v434 = vadd.f32 0.0, %v433
  %v435 = vpop.f32.mrb[0].mxu0
  %436 = vmatprep.mubr.f32.mxu0 0.0
  %437 = vmatmul.mubr.f32.gmra.mrb[0].mxu0 %v72
  %v438 = vpop.f32.mrb[0].mxu0
  %v439 = vadd.f32 0.0, %v438
  %v440 = vpop.f32.mrb[0].mxu0
  %441 = vmatprep.mubr.f32.mxu0 0.0
  %442 = vmatmul.mubr.f32.gmra.mrb[0].mxu0 %v73
  %v443 = vpop.f32.mrb[0].mxu0
  %v444 = vadd.f32 0.0, %v443
  %v445 = vpop.f32.mrb[0].mxu0
  %446 = vmatprep.mubr.f32.mxu0 0.0
  %447 = vmatmul.mubr.f32.gmra.mrb[0].mxu0 %v74
  %v448 = vpop.f32.mrb[0].mxu0
  %v449 = vadd.f32 0.0, %v448
  %v450 = vpop.f32.mrb[0].mxu0
  %451 = vmatprep.mubr.f32.mxu0 0.0
  %452 = vmatmul.mubr.f32.gmra.mrb[0].mxu0 %v75
  %v453 = vpop.f32.mrb[0].mxu0
  %v454 = vadd.f32 0.0, %v453
  %v455 = vpop.f32.mrb[0].mxu0
  %456 = vmatprep.mubr.f32.mxu0 0.0
  %457 = vmatmul.mubr.f32.gmra.mrb[0].mxu0 %v76
  %v458 = vpop.f32.mrb[0].mxu0
  %v459 = vadd.f32 0.0, %v458
  %v460 = vpop.f32.mrb[0].mxu0
  %461 = vmatprep.mubr.f32.mxu0 0.0
  %462 = vmatmul.mubr.f32.gmra.mrb[0].mxu0 %v77
  %v463 = vpop.f32.mrb[0].mxu0
  %v464 = vadd.f32 0.0, %v463
  %v465 = vpop.f32.mrb[0].mxu0
  %466 = vmatprep.mubr.f32.mxu0 0.0
  %467 = vmatmul.mubr.f32.gmra.mrb[0].mxu0 %v78
  %v468 = vpop.f32.mrb[0].mxu0
  %v469 = vadd.f32 0.0, %v468
  %v470 = vpop.f32.mrb[0].mxu0
  %471 = vmatprep.mubr.f32.mxu0 0.0
  %472 = vmatmul.mubr.f32.gmra.mrb[0].mxu0 %v79
  %v473 = vpop.f32.mrb[0].mxu0
  %v474 = vadd.f32 0.0, %v473
  %v475 = vpop.f32.mrb[0].mxu0
  %476 = vmatprep.mubr.f32.mxu0 0.0
  %477 = vmatmul.mubr.f32.gmra.mrb[0].mxu0 %v80
  %v478 = vpop.f32.mrb[0].mxu0
  %v479 = vadd.f32 0.0, %v478
  %v480 = vpop.f32.mrb[0].mxu0
  %481 = vdwg.mxu0
  %v482 = vld [vmem:[%s2] sm:$0x1]
  %v484 = vlaneseq
  %v485 = vshrl.u32 %v484, 7
  %v486 = vsub.s32 0, %v485
  %v487 = vrot.slane %v482, %v486
  %v489 = vmul.f32 %v164, %v487
  %v490 = vmul.f32 %v169, %v487
  %v491 = vmul.f32 %v174, %v487
  %v492 = vmul.f32 %v179, %v487
  %v493 = vmul.f32 %v184, %v487
  %v494 = vmul.f32 %v189, %v487
  %v495 = vmul.f32 %v194, %v487
  %v496 = vmul.f32 %v199, %v487
  %v497 = vmul.f32 %v204, %v487
  %v498 = vmul.f32 %v209, %v487
  %v499 = vmul.f32 %v214, %v487
  %v500 = vmul.f32 %v219, %v487
  %v501 = vmul.f32 %v224, %v487
  %v502 = vmul.f32 %v229, %v487
  %v503 = vmul.f32 %v234, %v487
  %v504 = vmul.f32 %v239, %v487
  %v505 = vmul.f32 %v244, %v487
  %v506 = vmul.f32 %v249, %v487
  %v507 = vmul.f32 %v254, %v487
  %v508 = vmul.f32 %v259, %v487
  %v509 = vmul.f32 %v264, %v487
  %v510 = vmul.f32 %v269, %v487
  %v511 = vmul.f32 %v274, %v487
  %v512 = vmul.f32 %v279, %v487
  %v513 = vmul.f32 %v284, %v487
  %v514 = vmul.f32 %v289, %v487
  %v515 = vmul.f32 %v294, %v487
  %v516 = vmul.f32 %v299, %v487
  %v517 = vmul.f32 %v304, %v487
  %v518 = vmul.f32 %v309, %v487
  %v519 = vmul.f32 %v314, %v487
  %v520 = vmul.f32 %v319, %v487
  %v521 = vmul.f32 %v324, %v487
  %v522 = vmul.f32 %v329, %v487
  %v523 = vmul.f32 %v334, %v487
  %v524 = vmul.f32 %v339, %v487
  %v525 = vmul.f32 %v344, %v487
  %v526 = vmul.f32 %v349, %v487
  %v527 = vmul.f32 %v354, %v487
  %v528 = vmul.f32 %v359, %v487
  %v529 = vmul.f32 %v364, %v487
  %v530 = vmul.f32 %v369, %v487
  %v531 = vmul.f32 %v374, %v487
  %v532 = vmul.f32 %v379, %v487
  %v533 = vmul.f32 %v384, %v487
  %v534 = vmul.f32 %v389, %v487
  %v535 = vmul.f32 %v394, %v487
  %v536 = vmul.f32 %v399, %v487
  %v537 = vmul.f32 %v404, %v487
  %v538 = vmul.f32 %v409, %v487
  %v539 = vmul.f32 %v414, %v487
  %v540 = vmul.f32 %v419, %v487
  %v541 = vmul.f32 %v424, %v487
  %v542 = vmul.f32 %v429, %v487
  %v543 = vmul.f32 %v434, %v487
  %v544 = vmul.f32 %v439, %v487
  %v545 = vmul.f32 %v444, %v487
  %v546 = vmul.f32 %v449, %v487
  %v547 = vmul.f32 %v454, %v487
  %v548 = vmul.f32 %v459, %v487
  %v549 = vmul.f32 %v464, %v487
  %v550 = vmul.f32 %v469, %v487
  %v551 = vmul.f32 %v474, %v487
  %v552 = vmul.f32 %v479, %v487
  %v553 = vld [vmem:[%s3] sm:$0x1]
  %v555 = vlaneseq
  %v556 = vshrl.u32 %v555, 7
  %v557 = vsub.s32 0, %v556
  %v558 = vrot.slane %v553, %v557
  %v560 = vadd.f32 %v489, %v558
  %v561 = vadd.f32 %v490, %v558
  %v562 = vadd.f32 %v491, %v558
  %v563 = vadd.f32 %v492, %v558
  %v564 = vadd.f32 %v493, %v558
  %v565 = vadd.f32 %v494, %v558
  %v566 = vadd.f32 %v495, %v558
  %v567 = vadd.f32 %v496, %v558
  %v568 = vadd.f32 %v497, %v558
  %v569 = vadd.f32 %v498, %v558
  %v570 = vadd.f32 %v499, %v558
  %v571 = vadd.f32 %v500, %v558
  %v572 = vadd.f32 %v501, %v558
  %v573 = vadd.f32 %v502, %v558
  %v574 = vadd.f32 %v503, %v558
  %v575 = vadd.f32 %v504, %v558
  %v576 = vadd.f32 %v505, %v558
  %v577 = vadd.f32 %v506, %v558
  %v578 = vadd.f32 %v507, %v558
  %v579 = vadd.f32 %v508, %v558
  %v580 = vadd.f32 %v509, %v558
  %v581 = vadd.f32 %v510, %v558
  %v582 = vadd.f32 %v511, %v558
  %v583 = vadd.f32 %v512, %v558
  %v584 = vadd.f32 %v513, %v558
  %v585 = vadd.f32 %v514, %v558
  %v586 = vadd.f32 %v515, %v558
  %v587 = vadd.f32 %v516, %v558
  %v588 = vadd.f32 %v517, %v558
  %v589 = vadd.f32 %v518, %v558
  %v590 = vadd.f32 %v519, %v558
  %v591 = vadd.f32 %v520, %v558
  %v592 = vadd.f32 %v521, %v558
  %v593 = vadd.f32 %v522, %v558
  %v594 = vadd.f32 %v523, %v558
  %v595 = vadd.f32 %v524, %v558
  %v596 = vadd.f32 %v525, %v558
  %v597 = vadd.f32 %v526, %v558
  %v598 = vadd.f32 %v527, %v558
  %v599 = vadd.f32 %v528, %v558
  %v600 = vadd.f32 %v529, %v558
  %v601 = vadd.f32 %v530, %v558
  %v602 = vadd.f32 %v531, %v558
  %v603 = vadd.f32 %v532, %v558
  %v604 = vadd.f32 %v533, %v558
  %v605 = vadd.f32 %v534, %v558
  %v606 = vadd.f32 %v535, %v558
  %v607 = vadd.f32 %v536, %v558
  %v608 = vadd.f32 %v537, %v558
  %v609 = vadd.f32 %v538, %v558
  %v610 = vadd.f32 %v539, %v558
  %v611 = vadd.f32 %v540, %v558
  %v612 = vadd.f32 %v541, %v558
  %v613 = vadd.f32 %v542, %v558
  %v614 = vadd.f32 %v543, %v558
  %v615 = vadd.f32 %v544, %v558
  %v616 = vadd.f32 %v545, %v558
  %v617 = vadd.f32 %v546, %v558
  %v618 = vadd.f32 %v547, %v558
  %v619 = vadd.f32 %v548, %v558
  %v620 = vadd.f32 %v549, %v558
  %v621 = vadd.f32 %v550, %v558
  %v622 = vadd.f32 %v551, %v558
  %v623 = vadd.f32 %v552, %v558
  %624 = vst [vmem:[%s4] sm:$0xff] %v560
  %625 = vst [vmem:[%s4 + $0x8] sm:$0xff] %v561
  %626 = vst [vmem:[%s4 + $0x10] sm:$0xff] %v562
  %627 = vst [vmem:[%s4 + $0x18] sm:$0xff] %v563
  %628 = vst [vmem:[%s4 + $0x20] sm:$0xff] %v564
  %629 = vst [vmem:[%s4 + $0x28] sm:$0xff] %v565
  %630 = vst [vmem:[%s4 + $0x30] sm:$0xff] %v566
  %631 = vst [vmem:[%s4 + $0x38] sm:$0xff] %v567
  %632 = vst [vmem:[%s4 + $0x40] sm:$0xff] %v568
  %633 = vst [vmem:[%s4 + $0x48] sm:$0xff] %v569
  %634 = vst [vmem:[%s4 + $0x50] sm:$0xff] %v570
  %635 = vst [vmem:[%s4 + $0x58] sm:$0xff] %v571
  %636 = vst [vmem:[%s4 + $0x60] sm:$0xff] %v572
  %637 = vst [vmem:[%s4 + $0x68] sm:$0xff] %v573
  %638 = vst [vmem:[%s4 + $0x70] sm:$0xff] %v574
  %639 = vst [vmem:[%s4 + $0x78] sm:$0xff] %v575
  %640 = vst [vmem:[%s4 + $0x80] sm:$0xff] %v576
  %641 = vst [vmem:[%s4 + $0x88] sm:$0xff] %v577
  %642 = vst [vmem:[%s4 + $0x90] sm:$0xff] %v578
  %643 = vst [vmem:[%s4 + $0x98] sm:$0xff] %v579
  %644 = vst [vmem:[%s4 + $0xa0] sm:$0xff] %v580
  %645 = vst [vmem:[%s4 + $0xa8] sm:$0xff] %v581
  %646 = vst [vmem:[%s4 + $0xb0] sm:$0xff] %v582
  %647 = vst [vmem:[%s4 + $0xb8] sm:$0xff] %v583
  %648 = vst [vmem:[%s4 + $0xc0] sm:$0xff] %v584
  %649 = vst [vmem:[%s4 + $0xc8] sm:$0xff] %v585
  %650 = vst [vmem:[%s4 + $0xd0] sm:$0xff] %v586
  %651 = vst [vmem:[%s4 + $0xd8] sm:$0xff] %v587
  %652 = vst [vmem:[%s4 + $0xe0] sm:$0xff] %v588
  %653 = vst [vmem:[%s4 + $0xe8] sm:$0xff] %v589
  %654 = vst [vmem:[%s4 + $0xf0] sm:$0xff] %v590
  %655 = vst [vmem:[%s4 + $0xf8] sm:$0xff] %v591
  %656 = vst [vmem:[%s4 + $0x100] sm:$0xff] %v592
  %657 = vst [vmem:[%s4 + $0x108] sm:$0xff] %v593
  %658 = vst [vmem:[%s4 + $0x110] sm:$0xff] %v594
  %659 = vst [vmem:[%s4 + $0x118] sm:$0xff] %v595
  %660 = vst [vmem:[%s4 + $0x120] sm:$0xff] %v596
  %661 = vst [vmem:[%s4 + $0x128] sm:$0xff] %v597
  %662 = vst [vmem:[%s4 + $0x130] sm:$0xff] %v598
  %663 = vst [vmem:[%s4 + $0x138] sm:$0xff] %v599
  %664 = vst [vmem:[%s4 + $0x140] sm:$0xff] %v600
  %665 = vst [vmem:[%s4 + $0x148] sm:$0xff] %v601
  %666 = vst [vmem:[%s4 + $0x150] sm:$0xff] %v602
  %667 = vst [vmem:[%s4 + $0x158] sm:$0xff] %v603
  %668 = vst [vmem:[%s4 + $0x160] sm:$0xff] %v604
  %669 = vst [vmem:[%s4 + $0x168] sm:$0xff] %v605
  %670 = vst [vmem:[%s4 + $0x170] sm:$0xff] %v606
  %671 = vst [vmem:[%s4 + $0x178] sm:$0xff] %v607
  %672 = vst [vmem:[%s4 + $0x180] sm:$0xff] %v608
  %673 = vst [vmem:[%s4 + $0x188] sm:$0xff] %v609
  %674 = vst [vmem:[%s4 + $0x190] sm:$0xff] %v610
  %675 = vst [vmem:[%s4 + $0x198] sm:$0xff] %v611
  %676 = vst [vmem:[%s4 + $0x1a0] sm:$0xff] %v612
  %677 = vst [vmem:[%s4 + $0x1a8] sm:$0xff] %v613
  %678 = vst [vmem:[%s4 + $0x1b0] sm:$0xff] %v614
  %679 = vst [vmem:[%s4 + $0x1b8] sm:$0xff] %v615
  %680 = vst [vmem:[%s4 + $0x1c0] sm:$0xff] %v616
  %681 = vst [vmem:[%s4 + $0x1c8] sm:$0xff] %v617
  %682 = vst [vmem:[%s4 + $0x1d0] sm:$0xff] %v618
  %683 = vst [vmem:[%s4 + $0x1d8] sm:$0xff] %v619
  %684 = vst [vmem:[%s4 + $0x1e0] sm:$0xff] %v620
  %685 = vst [vmem:[%s4 + $0x1e8] sm:$0xff] %v621
  %686 = vst [vmem:[%s4 + $0x1f0] sm:$0xff] %v622
  %687 = vst [vmem:[%s4 + $0x1f8] sm:$0xff] %v623
  // Predicated region
  $region18: #{coordinator_forward.29} parent=0 // pred_check
    _
  $region19: #{coordinator_forward.29} parent=0 // pred_check_branch
    %689 = sbr.rel (0) target = $region21
  $region20: #{coordinator_forward.29} parent=0 // pred_region
    _
  $region21: #{coordinator_forward.29} parent=0 // pred_fallthru
    _
  // Predicated region
  $region22: #{coordinator_forward.29} parent=0 // pred_check
    _
  $region23: #{coordinator_forward.29} parent=0 // pred_check_branch
    %691 = sbr.rel (0) target = $region25
  $region24: #{coordinator_forward.29} parent=0 // pred_region
    _
  $region25: #{coordinator_forward.29} parent=0 // pred_fallthru
    _

</llo_original>
